<compile_context>
chip_gen: v6e
topology: v6e:2x2x1
jax: 0.10.0
libtpu: 0.0.40
codegen_flags: <defaults>
</compile_context>

<pallas_src>
import functools

import jax
import jax.numpy as jnp
from jax import lax
from jax.experimental import pallas as pl
from jax.experimental.pallas import tpu as pltpu

LN_EPS = 1e-5      # torch.nn.LayerNorm default eps
NEG_INF = -1e30


# ---------------------------------------------------------------------------
# small math helpers (shared by the kernel and the pure-JAX reference)
# ---------------------------------------------------------------------------
def _layer_norm(x, w, b):
    mu = jnp.mean(x, axis=-1, keepdims=True)
    var = jnp.mean(jnp.square(x - mu), axis=-1, keepdims=True)
    return (x - mu) * lax.rsqrt(var + LN_EPS) * w + b


def _gelu(x):
    # exact (erf-based) GELU, matching torch.nn.GELU default
    return 0.5 * x * (1.0 + lax.erf(x * 0.7071067811865476))


# batched (leading batch axis) dot_general dimension numbers
_DN_BMM = (((2,), (1,)), ((0,), (0,)))   # (b,a,k) x (b,k,c) -> (b,a,c)
_DN_QKT = (((2,), (2,)), ((0,), (0,)))   # (b,q,d) x (b,k,d) -> (b,q,k)


# ---------------------------------------------------------------------------
# fused forward kernel: one grid step == one batch block, everything in VMEM
# ---------------------------------------------------------------------------
def _mae_fused_kernel(
    patches_ref, patchw_ref, posbias_ref, clstail_ref,
    ln1w_ref, ln1b_ref, qkvw_ref, qkvb_ref,
    projw_ref, projb_ref, ln2w_ref, ln2b_ref,
    fc1w_ref, fc1b_ref, fc2w_ref, fc2b_ref,
    lnfw_ref, lnfb_ref, headw_ref, headb_ref,
    o_ref, x_scr,
    *, num_heads, num_layers, seq_len, t_pad, scale,
):
    f32 = jnp.float32
    bb, npatch, P = patches_ref.shape          # batch block, #patch tokens, patch dim
    D = patchw_ref.shape[-1]
    hd = D // num_heads
    n_tok = bb * t_pad                         # flat token count for this block

    # ---- patch embedding: one lane-dense matmul over the whole batch block ----
    emb = jnp.dot(patches_ref[...].reshape(bb * npatch, P), patchw_ref[...],
                  preferred_element_type=f32)                       # (bb*Np, D)
    # token layout per batch element: [patch tokens 0..Np-1 | cls (row Np) | zero pad]
    x_scr[:, 0:npatch, :] = emb.reshape(bb, npatch, D) + posbias_ref[...]
    x_scr[:, npatch:t_pad, :] = jnp.broadcast_to(
        clstail_ref[...], (bb, t_pad - npatch, D))
    x = x_scr[...].reshape(n_tok, D)                                # flat residual stream

    # additive key-padding mask (token indices >= seq_len are padding)
    kidx = lax.broadcasted_iota(jnp.int32, (1, 1, t_pad), 2)
    kmask = jnp.where(kidx < seq_len, 0.0, NEG_INF).astype(f32)

    def split_heads(a, off):
        # (n_tok, 3D) fused qkv activations -> (num_heads*bb, t_pad, hd)
        return jnp.concatenate(
            [a[:, off + h * hd: off + (h + 1) * hd].reshape(bb, t_pad, hd)
             for h in range(num_heads)], axis=0)

    # ---- transformer blocks (short static unroll; weights stacked on leading L) ----
    for l in range(num_layers):
        # attention branch: x = x + proj(attn(LN1(x)))
        h1 = _layer_norm(x, ln1w_ref[l], ln1b_ref[l])               # (n_tok, D)
        qkv = (jnp.dot(h1, qkvw_ref[l], preferred_element_type=f32)
               + qkvb_ref[l])                                       # (n_tok, 3D) fused
        q = split_heads(qkv, 0)                                     # (nh*bb, t, hd)
        k = split_heads(qkv, D)
        v = split_heads(qkv, 2 * D)
        s = lax.dot_general(q, k, _DN_QKT,
                            preferred_element_type=f32) * scale + kmask   # (nh*bb, t, t)
        s = s - jnp.max(s, axis=-1, keepdims=True)
        p = jnp.exp(s)
        p = p * pl.reciprocal(jnp.sum(p, axis=-1, keepdims=True), approx=True)
        o = lax.dot_general(p, v, _DN_BMM, preferred_element_type=f32)    # (nh*bb, t, hd)
        # head-major concat along lanes == torch's concat of heads, then ONE projection
        o_flat = jnp.concatenate(
            [o[h * bb:(h + 1) * bb].reshape(n_tok, hd) for h in range(num_heads)],
            axis=-1)                                                # (n_tok, D)
        x = x + (jnp.dot(o_flat, projw_ref[l], preferred_element_type=f32)
                 + projb_ref[l])

        # MLP branch: x = x + fc2(gelu(fc1(LN2(x))))
        h2 = _layer_norm(x, ln2w_ref[l], ln2b_ref[l])
        m = jnp.dot(h2, fc1w_ref[l], preferred_element_type=f32) + fc1b_ref[l]
        m = _gelu(m)
        m = jnp.dot(m, fc2w_ref[l], preferred_element_type=f32) + fc2b_ref[l]
        x = x + m

    # ---- final LayerNorm + linear head on the cls token (row Np of each element) ----
    x3 = x.reshape(bb, t_pad, D)
    cls_feat = x3[:, npatch:npatch + 1, :].reshape(bb, D)           # (bb, D)
    feat = _layer_norm(cls_feat, lnfw_ref[...], lnfb_ref[...])
    o_ref[...] = (jnp.dot(feat, headw_ref[...], preferred_element_type=f32)
                  + headb_ref[...])                                 # (bb, NC_PAD)


# ---------------------------------------------------------------------------
# wrapper: host-side layout glue + single pallas_call
# ---------------------------------------------------------------------------
def mae_classifier_forward(img, params, *, batch_block=None):
    patch = params["patch_size"]
    nh = params["num_heads"]
    B, Cin, H, W = img.shape
    Hp, Wp = H // patch, W // patch
    Np = Hp * Wp
    P = Cin * patch * patch
    D = params["patch_w"].shape[0]
    hd = D // nh
    NC = params["head_w"].shape[-1]
    L = len(params["blocks"])
    T = Np + 1                                  # patch tokens + cls
    T_PAD = ((T + 7) // 8) * 8                  # sublane-aligned token rows
    TAIL = T_PAD - Np                           # rows holding [cls, zero pad...]
    NC_PAD = ((NC + 127) // 128) * 128          # lane-aligned logits
    f32 = jnp.float32

    # -- patch extraction (pure layout glue, like Conv2d with kernel=stride=patch) --
    xp = img.reshape(B, Cin, Hp, patch, Wp, patch).transpose(0, 2, 4, 1, 3, 5)
    patches = xp.reshape(B, Np, P).astype(f32)          # unpadded; cls/pad built in-kernel

    B_BLK = int(batch_block) if batch_block else min(B, 8)
    G = pl.cdiv(B, B_BLK)                               # on v7x pass batch_block=cdiv(B,2)
    B_pad = G * B_BLK
    if B_pad != B:
        patches = jnp.concatenate(
            [patches, jnp.zeros((B_pad - B, Np, P), f32)], axis=0)

    patch_wf = params["patch_w"].reshape(D, P).T                          # (P, D)
    posbias = params["patch_b"].reshape(1, D) + params["pos_embedding"]   # (Np, D)
    cls_tail = jnp.concatenate(
        [params["cls_token"].reshape(1, D), jnp.zeros((TAIL - 1, D), f32)], axis=0)
    head_w_pad = jnp.pad(params["head_w"], ((0, 0), (0, NC_PAD - NC)))
    head_b_pad = jnp.pad(params["head_b"].reshape(1, NC), ((0, 0), (0, NC_PAD - NC)))

    def stack(name):
        return jnp.stack([blk[name] for blk in params["blocks"]], axis=0)

    inputs = [
        patches, patch_wf, posbias, cls_tail,
        stack("ln1_w"), stack("ln1_b"),
        stack("qkv_w"), stack("qkv_b"),
        stack("proj_w"), stack("proj_b"),
        stack("ln2_w"), stack("ln2_b"),
        stack("fc1_w"), stack("fc1_b"),
        stack("fc2_w"), stack("fc2_b"),
        params["ln_w"], params["ln_b"], head_w_pad, head_b_pad,
    ]

    kern = functools.partial(
        _mae_fused_kernel,
        num_heads=nh, num_layers=L, seq_len=T, t_pad=T_PAD,
        scale=float(hd) ** -0.5,
    )

    def run(single_buffer_weights):
        def wspec(a):
            nd = a.ndim
            idx = lambda g, nd=nd: (0,) * nd
            if single_buffer_weights:
                # grid-invariant weights: no need for double buffering
                return pl.BlockSpec(a.shape, idx, pipeline_mode=pl.Buffered(1))
            return pl.BlockSpec(a.shape, idx)

        in_specs = [pl.BlockSpec((B_BLK, Np, P), lambda g: (g, 0, 0))]
        in_specs += [wspec(a) for a in inputs[1:]]

        return pl.pallas_call(
            kern,
            out_shape=jax.ShapeDtypeStruct((B_pad, NC_PAD), f32),
            grid=(G,),
            in_specs=in_specs,
            out_specs=pl.BlockSpec((B_BLK, NC_PAD), lambda g: (g, 0)),
            scratch_shapes=[pltpu.VMEM((B_BLK, T_PAD, D), f32)],
            compiler_params=pltpu.CompilerParams(
                dimension_semantics=("parallel",)),
        )(*inputs)

    try:
        out = run(True)
    except Exception:   # fallback if this jax build rejects pipeline_mode / Buffered(1)
        out = run(False)
    return out[:B, :NC]


# ---------------------------------------------------------------------------
# pure-JAX reference (same math, highest precision) for a silent self-check
# ---------------------------------------------------------------------------
def reference_forward(img, params):
    hi = lax.Precision.HIGHEST
    patch = params["patch_size"]
    B, Cin, H, W = img.shape
    Hp, Wp = H // patch, W // patch
    D = params["patch_w"].shape[0]
    x = img.reshape(B, Cin, Hp, patch, Wp, patch).transpose(0, 2, 4, 1, 3, 5)
    x = x.reshape(B, Hp * Wp, Cin * patch * patch)
    wf = params["patch_w"].reshape(D, -1).T
    pe = jnp.dot(x, wf, precision=hi) + params["patch_b"]
    pe = pe + params["pos_embedding"][None]
    cls = jnp.broadcast_to(params["cls_token"], (B, 1, D))
    x = jnp.concatenate([cls, pe], axis=1)
    nh = params["num_heads"]
    hd = D // nh
    scale = float(hd) ** -0.5
    for p in params["blocks"]:
        h = _layer_norm(x, p["ln1_w"], p["ln1_b"])
        qkv = jnp.einsum("btd,de->bte", h, p["qkv_w"], precision=hi) + p["qkv_b"]
        q, k, v = qkv[..., :D], qkv[..., D:2 * D], qkv[..., 2 * D:]
        q = q.reshape(B, -1, nh, hd).transpose(0, 2, 1, 3)
        k = k.reshape(B, -1, nh, hd).transpose(0, 2, 1, 3)
        v = v.reshape(B, -1, nh, hd).transpose(0, 2, 1, 3)
        att = jnp.einsum("bhqd,bhkd->bhqk", q, k, precision=hi) * scale
        att = jax.nn.softmax(att, axis=-1)
        o = jnp.einsum("bhqk,bhkd->bhqd", att, v, precision=hi)
        o = o.transpose(0, 2, 1, 3).reshape(B, -1, D)
        o = jnp.einsum("btd,de->bte", o, p["proj_w"], precision=hi) + p["proj_b"]
        x = x + o
        h2 = _layer_norm(x, p["ln2_w"], p["ln2_b"])
        m = jnp.einsum("btd,de->bte", h2, p["fc1_w"], precision=hi) + p["fc1_b"]
        m = _gelu(m)
        m = jnp.einsum("bte,ed->btd", m, p["fc2_w"], precision=hi) + p["fc2_b"]
        x = x + m
    feat = _layer_norm(x, params["ln_w"], params["ln_b"])[:, 0, :]
    return jnp.dot(feat, params["head_w"], precision=hi) + params["head_b"]


# ---------------------------------------------------------------------------
# deterministic parameter initialization (synthetic, no checkpoint)
# ---------------------------------------------------------------------------
def init_params(key, *, emb_dim=32, patch=4, in_ch=3, img_size=16,
                num_heads=2, num_layers=2, num_classes=10):
    num_patches = (img_size // patch) ** 2
    keys = jax.random.split(key, 8 + num_layers)

    def nrm(k, shape, std):
        return jax.random.normal(k, shape, jnp.float32) * std

    params = {
        "patch_size": patch,
        "num_heads": num_heads,
        "patch_w": nrm(keys[0], (emb_dim, in_ch, patch, patch), 0.05),
        "patch_b": nrm(keys[1], (emb_dim,), 0.02),
        "pos_embedding": nrm(keys[2], (num_patches, emb_dim), 0.02),
        "cls_token": nrm(keys[3], (1, 1, emb_dim), 0.02),
        "ln_w": 1.0 + nrm(keys[4], (1, emb_dim), 0.01),
        "ln_b": nrm(keys[5], (1, emb_dim), 0.01),
        "head_w": nrm(keys[6], (emb_dim, num_classes), 0.05),
        "head_b": nrm(keys[7], (1, num_classes), 0.02),
        "blocks": [],
    }
    hid = emb_dim * 4
    for l in range(num_layers):
        lk = jax.random.split(keys[8 + l], 12)
        params["blocks"].append({
            "ln1_w": 1.0 + nrm(lk[0], (1, emb_dim), 0.01),
            "ln1_b": nrm(lk[1], (1, emb_dim), 0.01),
            "qkv_w": nrm(lk[2], (emb_dim, 3 * emb_dim), 0.05),
            "qkv_b": nrm(lk[3], (1, 3 * emb_dim), 0.02),
            "proj_w": nrm(lk[4], (emb_dim, emb_dim), 0.05),
            "proj_b": nrm(lk[5], (1, emb_dim), 0.02),
            "ln2_w": 1.0 + nrm(lk[6], (1, emb_dim), 0.01),
            "ln2_b": nrm(lk[7], (1, emb_dim), 0.01),
            "fc1_w": nrm(lk[8], (emb_dim, hid), 0.05),
            "fc1_b": nrm(lk[9], (1, hid), 0.02),
            "fc2_w": nrm(lk[10], (hid, emb_dim), 0.05),
            "fc2_b": nrm(lk[11], (1, emb_dim), 0.02),
        })
    return params


if __name__ == "__main__":
    key = jax.random.PRNGKey(0)
    pkey, ikey = jax.random.split(key)
    params = init_params(pkey)
    img = jax.random.normal(ikey, (2, 3, 16, 16), jnp.float32)  # NCHW like PyTorch

    logits = mae_classifier_forward(img, params)
    logits = jax.block_until_ready(logits)
    assert logits.shape == (2, 10)

    ref = jax.block_until_ready(reference_forward(img, params))
    assert jnp.allclose(logits, ref, rtol=2e-2, atol=2e-2)

    print("KERNEL_OK")
</pallas_src>

<mosaic_0001>
module attributes {stable_mosaic.version = 11 : i64} {
  func.func @_mae_fused_kernel(%arg0: i32, %arg1: memref<2x16x48xf32, #tpu.memory_space<vmem>>, %arg2: memref<48x32xf32, #tpu.memory_space<vmem>>, %arg3: memref<16x32xf32, #tpu.memory_space<vmem>>, %arg4: memref<8x32xf32, #tpu.memory_space<vmem>>, %arg5: memref<2x1x32xf32, #tpu.memory_space<vmem>>, %arg6: memref<2x1x32xf32, #tpu.memory_space<vmem>>, %arg7: memref<2x32x96xf32, #tpu.memory_space<vmem>>, %arg8: memref<2x1x96xf32, #tpu.memory_space<vmem>>, %arg9: memref<2x32x32xf32, #tpu.memory_space<vmem>>, %arg10: memref<2x1x32xf32, #tpu.memory_space<vmem>>, %arg11: memref<2x1x32xf32, #tpu.memory_space<vmem>>, %arg12: memref<2x1x32xf32, #tpu.memory_space<vmem>>, %arg13: memref<2x32x128xf32, #tpu.memory_space<vmem>>, %arg14: memref<2x1x128xf32, #tpu.memory_space<vmem>>, %arg15: memref<2x128x32xf32, #tpu.memory_space<vmem>>, %arg16: memref<2x1x32xf32, #tpu.memory_space<vmem>>, %arg17: memref<1x32xf32, #tpu.memory_space<vmem>>, %arg18: memref<1x32xf32, #tpu.memory_space<vmem>>, %arg19: memref<32x128xf32, #tpu.memory_space<vmem>>, %arg20: memref<1x128xf32, #tpu.memory_space<vmem>>, %arg21: memref<2x128xf32, #tpu.memory_space<vmem>>, %arg22: memref<2x24x32xf32, #tpu.memory_space<vmem>>) attributes {dimension_semantics = [#tpu.dimension_semantics<parallel>], iteration_bounds = array<i64: 1>, scalar_prefetch = 0 : i64, scratch_operands = 1 : i64, tpu.core_type = #tpu.core_type<tc>, window_params = [{transform_indices = @transform_0, window_bounds = array<i64: 2, 16, 48>}, {pipeline_mode = #tpu.pipeline_mode<synchronous>, transform_indices = @transform_1, window_bounds = array<i64: 48, 32>}, {pipeline_mode = #tpu.pipeline_mode<synchronous>, transform_indices = @transform_2, window_bounds = array<i64: 16, 32>}, {pipeline_mode = #tpu.pipeline_mode<synchronous>, transform_indices = @transform_3, window_bounds = array<i64: 8, 32>}, {pipeline_mode = #tpu.pipeline_mode<synchronous>, transform_indices = @transform_4, window_bounds = array<i64: 2, 1, 32>}, {pipeline_mode = #tpu.pipeline_mode<synchronous>, transform_indices = @transform_5, window_bounds = array<i64: 2, 1, 32>}, {pipeline_mode = #tpu.pipeline_mode<synchronous>, transform_indices = @transform_6, window_bounds = array<i64: 2, 32, 96>}, {pipeline_mode = #tpu.pipeline_mode<synchronous>, transform_indices = @transform_7, window_bounds = array<i64: 2, 1, 96>}, {pipeline_mode = #tpu.pipeline_mode<synchronous>, transform_indices = @transform_8, window_bounds = array<i64: 2, 32, 32>}, {pipeline_mode = #tpu.pipeline_mode<synchronous>, transform_indices = @transform_9, window_bounds = array<i64: 2, 1, 32>}, {pipeline_mode = #tpu.pipeline_mode<synchronous>, transform_indices = @transform_10, window_bounds = array<i64: 2, 1, 32>}, {pipeline_mode = #tpu.pipeline_mode<synchronous>, transform_indices = @transform_11, window_bounds = array<i64: 2, 1, 32>}, {pipeline_mode = #tpu.pipeline_mode<synchronous>, transform_indices = @transform_12, window_bounds = array<i64: 2, 32, 128>}, {pipeline_mode = #tpu.pipeline_mode<synchronous>, transform_indices = @transform_13, window_bounds = array<i64: 2, 1, 128>}, {pipeline_mode = #tpu.pipeline_mode<synchronous>, transform_indices = @transform_14, window_bounds = array<i64: 2, 128, 32>}, {pipeline_mode = #tpu.pipeline_mode<synchronous>, transform_indices = @transform_15, window_bounds = array<i64: 2, 1, 32>}, {pipeline_mode = #tpu.pipeline_mode<synchronous>, transform_indices = @transform_16, window_bounds = array<i64: 1, 32>}, {pipeline_mode = #tpu.pipeline_mode<synchronous>, transform_indices = @transform_17, window_bounds = array<i64: 1, 32>}, {pipeline_mode = #tpu.pipeline_mode<synchronous>, transform_indices = @transform_18, window_bounds = array<i64: 32, 128>}, {pipeline_mode = #tpu.pipeline_mode<synchronous>, transform_indices = @transform_19, window_bounds = array<i64: 1, 128>}, {transform_indices = @transform_20, window_bounds = array<i64: 2, 128>}]} {
    %c0 = arith.constant 0 : index
    %c0_0 = arith.constant 0 : index
    %c0_1 = arith.constant 0 : index
    %0 = vector.load %arg1[%c0, %c0_0, %c0_1] : memref<2x16x48xf32, #tpu.memory_space<vmem>>, vector<2x16x48xf32>
    %1 = vector.shape_cast %0 : vector<2x16x48xf32> to vector<32x48xf32>
    %c0_2 = arith.constant 0 : index
    %c0_3 = arith.constant 0 : index
    %2 = vector.load %arg2[%c0_2, %c0_3] : memref<48x32xf32, #tpu.memory_space<vmem>>, vector<48x32xf32>
    %cst = arith.constant dense<0.000000e+00> : vector<32x32xf32>
    %3 = tpu.matmul %1, %2, %cst {dimension_numbers = #tpu.dot_dimension_numbers<[1], [0], [0], [1], [0, 0, 1, 1], [], []>} : vector<32x48xf32>, vector<48x32xf32>, vector<32x32xf32> -> vector<32x32xf32>
    %4 = vector.shape_cast %3 : vector<32x32xf32> to vector<2x16x32xf32>
    %c0_4 = arith.constant 0 : index
    %c0_5 = arith.constant 0 : index
    %5 = vector.load %arg3[%c0_4, %c0_5] : memref<16x32xf32, #tpu.memory_space<vmem>>, vector<16x32xf32>
    %6 = vector.shape_cast %5 : vector<16x32xf32> to vector<1x16x32xf32>
    %7 = vector.broadcast %6 : vector<1x16x32xf32> to vector<2x16x32xf32>
    %8 = arith.addf %4, %7 : vector<2x16x32xf32>
    %c0_6 = arith.constant 0 : index
    %c0_7 = arith.constant 0 : index
    %c0_8 = arith.constant 0 : index
    %9 = vector.load %arg22[%c0_6, %c0_7, %c0_8] : memref<2x24x32xf32, #tpu.memory_space<vmem>>, vector<2x16x32xf32>
    tpu.vector_store %arg22[%c0_6, %c0_7, %c0_8], %8 {strides = array<i32>} : memref<2x24x32xf32, #tpu.memory_space<vmem>>, vector<2x16x32xf32>,
    %c0_9 = arith.constant 0 : index
    %c0_10 = arith.constant 0 : index
    %10 = vector.load %arg4[%c0_9, %c0_10] : memref<8x32xf32, #tpu.memory_space<vmem>>, vector<8x32xf32>
    %11 = vector.shape_cast %10 : vector<8x32xf32> to vector<1x8x32xf32>
    %12 = vector.broadcast %11 : vector<1x8x32xf32> to vector<2x8x32xf32>
    %c0_11 = arith.constant 0 : index
    %c16 = arith.constant 16 : index
    %c0_12 = arith.constant 0 : index
    %13 = vector.load %arg22[%c0_11, %c16, %c0_12] : memref<2x24x32xf32, #tpu.memory_space<vmem>>, vector<2x8x32xf32>
    tpu.vector_store %arg22[%c0_11, %c16, %c0_12], %12 {strides = array<i32>} : memref<2x24x32xf32, #tpu.memory_space<vmem>>, vector<2x8x32xf32>,
    %c0_13 = arith.constant 0 : index
    %c0_14 = arith.constant 0 : index
    %c0_15 = arith.constant 0 : index
    %14 = vector.load %arg22[%c0_13, %c0_14, %c0_15] : memref<2x24x32xf32, #tpu.memory_space<vmem>>, vector<2x24x32xf32>
    %15 = vector.shape_cast %14 : vector<2x24x32xf32> to vector<48x32xf32>
    %16 = tpu.iota {dimensions = array<i32: 2>} : vector<1x1x24xi32>
    %c17_i32 = arith.constant 17 : i32
    %17 = vector.broadcast %c17_i32 : i32 to vector<1x1x24xi32>
    %18 = arith.cmpi slt, %16, %17 : vector<1x1x24xi32>
    %cst_16 = arith.constant 0.000000e+00 : f32
    %cst_17 = arith.constant -1.000000e+30 : f32
    %19 = vector.broadcast %cst_16 : f32 to vector<1x1x24xf32>
    %20 = vector.broadcast %cst_17 : f32 to vector<1x1x24xf32>
    %21 = arith.select %18, %19, %20 : vector<1x1x24xi1>, vector<1x1x24xf32>
    %c0_18 = arith.constant 0 : index
    %c0_19 = arith.constant 0 : index
    %c0_20 = arith.constant 0 : index
    %22 = vector.load %arg5[%c0_18, %c0_19, %c0_20] : memref<2x1x32xf32, #tpu.memory_space<vmem>>, vector<1x1x32xf32>
    %23 = vector.shape_cast %22 : vector<1x1x32xf32> to vector<1x32xf32>
    %c0_21 = arith.constant 0 : index
    %c0_22 = arith.constant 0 : index
    %c0_23 = arith.constant 0 : index
    %24 = vector.load %arg6[%c0_21, %c0_22, %c0_23] : memref<2x1x32xf32, #tpu.memory_space<vmem>>, vector<1x1x32xf32>
    %25 = vector.shape_cast %24 : vector<1x1x32xf32> to vector<1x32xf32>
    %cst_24 = arith.constant dense<0.000000e+00> : vector<48xf32>
    %26 = vector.multi_reduction <add>, %15, %cst_24 [1] : vector<48x32xf32> to vector<48xf32>
    %27 = vector.shape_cast %26 : vector<48xf32> to vector<48x1xf32>
    %cst_25 = arith.constant 3.200000e+01 : f32
    %28 = vector.broadcast %cst_25 : f32 to vector<48x1xf32>
    %29 = arith.divf %27, %28 : vector<48x1xf32>
    %30 = vector.broadcast %29 : vector<48x1xf32> to vector<48x32xf32>
    %31 = arith.subf %15, %30 : vector<48x32xf32>
    %32 = arith.mulf %31, %31 : vector<48x32xf32>
    %cst_26 = arith.constant dense<0.000000e+00> : vector<48xf32>
    %33 = vector.multi_reduction <add>, %32, %cst_26 [1] : vector<48x32xf32> to vector<48xf32>
    %34 = vector.shape_cast %33 : vector<48xf32> to vector<48x1xf32>
    %cst_27 = arith.constant 3.200000e+01 : f32
    %35 = vector.broadcast %cst_27 : f32 to vector<48x1xf32>
    %36 = arith.divf %34, %35 : vector<48x1xf32>
    %37 = vector.broadcast %29 : vector<48x1xf32> to vector<48x32xf32>
    %38 = arith.subf %15, %37 : vector<48x32xf32>
    %cst_28 = arith.constant 9.99999974E-6 : f32
    %39 = vector.broadcast %cst_28 : f32 to vector<48x1xf32>
    %40 = arith.addf %36, %39 : vector<48x1xf32>
    %41 = math.rsqrt %40 : vector<48x1xf32>
    %42 = vector.broadcast %41 : vector<48x1xf32> to vector<48x32xf32>
    %43 = arith.mulf %38, %42 : vector<48x32xf32>
    %44 = vector.broadcast %23 : vector<1x32xf32> to vector<48x32xf32>
    %45 = arith.mulf %43, %44 : vector<48x32xf32>
    %46 = vector.broadcast %25 : vector<1x32xf32> to vector<48x32xf32>
    %47 = arith.addf %45, %46 : vector<48x32xf32>
    %c0_29 = arith.constant 0 : index
    %c0_30 = arith.constant 0 : index
    %c0_31 = arith.constant 0 : index
    %48 = vector.load %arg7[%c0_29, %c0_30, %c0_31] : memref<2x32x96xf32, #tpu.memory_space<vmem>>, vector<1x32x96xf32>
    %49 = vector.shape_cast %48 : vector<1x32x96xf32> to vector<32x96xf32>
    %cst_32 = arith.constant dense<0.000000e+00> : vector<48x96xf32>
    %50 = tpu.matmul %47, %49, %cst_32 {dimension_numbers = #tpu.dot_dimension_numbers<[1], [0], [0], [1], [0, 0, 1, 1], [], []>} : vector<48x32xf32>, vector<32x96xf32>, vector<48x96xf32> -> vector<48x96xf32>
    %c0_33 = arith.constant 0 : index
    %c0_34 = arith.constant 0 : index
    %c0_35 = arith.constant 0 : index
    %51 = vector.load %arg8[%c0_33, %c0_34, %c0_35] : memref<2x1x96xf32, #tpu.memory_space<vmem>>, vector<1x1x96xf32>
    %52 = vector.shape_cast %51 : vector<1x1x96xf32> to vector<1x96xf32>
    %53 = vector.broadcast %52 : vector<1x96xf32> to vector<48x96xf32>
    %54 = arith.addf %50, %53 : vector<48x96xf32>
    %55 = vector.extract_strided_slice %54 {offsets = [0, 0], sizes = [48, 16], strides = [1, 1]} : vector<48x96xf32> to vector<48x16xf32>
    %56 = vector.shape_cast %55 : vector<48x16xf32> to vector<2x24x16xf32>
    %57 = vector.extract_strided_slice %54 {offsets = [0, 16], sizes = [48, 16], strides = [1, 1]} : vector<48x96xf32> to vector<48x16xf32>
    %58 = vector.shape_cast %57 : vector<48x16xf32> to vector<2x24x16xf32>
    %59 = tpu.concatenate %56, %58 in 0 : vector<2x24x16xf32>, vector<2x24x16xf32> -> vector<4x24x16xf32>
    %60 = vector.extract_strided_slice %54 {offsets = [0, 32], sizes = [48, 16], strides = [1, 1]} : vector<48x96xf32> to vector<48x16xf32>
    %61 = vector.shape_cast %60 : vector<48x16xf32> to vector<2x24x16xf32>
    %62 = vector.extract_strided_slice %54 {offsets = [0, 48], sizes = [48, 16], strides = [1, 1]} : vector<48x96xf32> to vector<48x16xf32>
    %63 = vector.shape_cast %62 : vector<48x16xf32> to vector<2x24x16xf32>
    %64 = tpu.concatenate %61, %63 in 0 : vector<2x24x16xf32>, vector<2x24x16xf32> -> vector<4x24x16xf32>
    %65 = vector.extract_strided_slice %54 {offsets = [0, 64], sizes = [48, 16], strides = [1, 1]} : vector<48x96xf32> to vector<48x16xf32>
    %66 = vector.shape_cast %65 : vector<48x16xf32> to vector<2x24x16xf32>
    %67 = vector.extract_strided_slice %54 {offsets = [0, 80], sizes = [48, 16], strides = [1, 1]} : vector<48x96xf32> to vector<48x16xf32>
    %68 = vector.shape_cast %67 : vector<48x16xf32> to vector<2x24x16xf32>
    %69 = tpu.concatenate %66, %68 in 0 : vector<2x24x16xf32>, vector<2x24x16xf32> -> vector<4x24x16xf32>
    %cst_36 = arith.constant dense<0.000000e+00> : vector<4x24x24xf32>
    %70 = tpu.matmul %59, %64, %cst_36 {dimension_numbers = #tpu.dot_dimension_numbers<[2], [2], [1], [1], [0, 0, 0, 1, 1, 1], [0], [0]>} : vector<4x24x16xf32>, vector<4x24x16xf32>, vector<4x24x24xf32> -> vector<4x24x24xf32>
    %cst_37 = arith.constant 2.500000e-01 : f32
    %71 = vector.broadcast %cst_37 : f32 to vector<4x24x24xf32>
    %72 = arith.mulf %70, %71 : vector<4x24x24xf32>
    %73 = vector.broadcast %21 : vector<1x1x24xf32> to vector<4x24x24xf32>
    %74 = arith.addf %72, %73 : vector<4x24x24xf32>
    %cst_38 = arith.constant dense<0xFF800000> : vector<4x24xf32>
    %75 = vector.multi_reduction <maximumf>, %74, %cst_38 [2] : vector<4x24x24xf32> to vector<4x24xf32>
    %76 = vector.shape_cast %75 : vector<4x24xf32> to vector<4x24x1xf32>
    %77 = vector.broadcast %76 : vector<4x24x1xf32> to vector<4x24x24xf32>
    %78 = arith.subf %74, %77 : vector<4x24x24xf32>
    %79 = math.exp %78 : vector<4x24x24xf32>
    %cst_39 = arith.constant dense<0.000000e+00> : vector<4x24xf32>
    %80 = vector.multi_reduction <add>, %79, %cst_39 [2] : vector<4x24x24xf32> to vector<4x24xf32>
    %81 = vector.shape_cast %80 : vector<4x24xf32> to vector<4x24x1xf32>
    %82 = tpu.reciprocal %81 {approx = true} : vector<4x24x1xf32> -> vector<4x24x1xf32>
    %83 = vector.broadcast %82 : vector<4x24x1xf32> to vector<4x24x24xf32>
    %84 = arith.mulf %79, %83 : vector<4x24x24xf32>
    %cst_40 = arith.constant dense<0.000000e+00> : vector<4x24x16xf32>
    %85 = tpu.matmul %84, %69, %cst_40 {dimension_numbers = #tpu.dot_dimension_numbers<[2], [1], [1], [2], [0, 0, 0, 1, 1, 2], [0], [0]>} : vector<4x24x24xf32>, vector<4x24x16xf32>, vector<4x24x16xf32> -> vector<4x24x16xf32>
    %86 = vector.extract_strided_slice %85 {offsets = [0, 0, 0], sizes = [2, 24, 16], strides = [1, 1, 1]} : vector<4x24x16xf32> to vector<2x24x16xf32>
    %87 = vector.shape_cast %86 : vector<2x24x16xf32> to vector<48x16xf32>
    %88 = vector.extract_strided_slice %85 {offsets = [2, 0, 0], sizes = [2, 24, 16], strides = [1, 1, 1]} : vector<4x24x16xf32> to vector<2x24x16xf32>
    %89 = vector.shape_cast %88 : vector<2x24x16xf32> to vector<48x16xf32>
    %90 = tpu.concatenate %87, %89 in 1 : vector<48x16xf32>, vector<48x16xf32> -> vector<48x32xf32>
    %c0_41 = arith.constant 0 : index
    %c0_42 = arith.constant 0 : index
    %c0_43 = arith.constant 0 : index
    %91 = vector.load %arg9[%c0_41, %c0_42, %c0_43] : memref<2x32x32xf32, #tpu.memory_space<vmem>>, vector<1x32x32xf32>
    %92 = vector.shape_cast %91 : vector<1x32x32xf32> to vector<32x32xf32>
    %cst_44 = arith.constant dense<0.000000e+00> : vector<48x32xf32>
    %93 = tpu.matmul %90, %92, %cst_44 {dimension_numbers = #tpu.dot_dimension_numbers<[1], [0], [0], [1], [0, 0, 1, 1], [], []>} : vector<48x32xf32>, vector<32x32xf32>, vector<48x32xf32> -> vector<48x32xf32>
    %c0_45 = arith.constant 0 : index
    %c0_46 = arith.constant 0 : index
    %c0_47 = arith.constant 0 : index
    %94 = vector.load %arg10[%c0_45, %c0_46, %c0_47] : memref<2x1x32xf32, #tpu.memory_space<vmem>>, vector<1x1x32xf32>
    %95 = vector.shape_cast %94 : vector<1x1x32xf32> to vector<1x32xf32>
    %96 = vector.broadcast %95 : vector<1x32xf32> to vector<48x32xf32>
    %97 = arith.addf %93, %96 : vector<48x32xf32>
    %98 = arith.addf %15, %97 : vector<48x32xf32>
    %c0_48 = arith.constant 0 : index
    %c0_49 = arith.constant 0 : index
    %c0_50 = arith.constant 0 : index
    %99 = vector.load %arg11[%c0_48, %c0_49, %c0_50] : memref<2x1x32xf32, #tpu.memory_space<vmem>>, vector<1x1x32xf32>
    %100 = vector.shape_cast %99 : vector<1x1x32xf32> to vector<1x32xf32>
    %c0_51 = arith.constant 0 : index
    %c0_52 = arith.constant 0 : index
    %c0_53 = arith.constant 0 : index
    %101 = vector.load %arg12[%c0_51, %c0_52, %c0_53] : memref<2x1x32xf32, #tpu.memory_space<vmem>>, vector<1x1x32xf32>
    %102 = vector.shape_cast %101 : vector<1x1x32xf32> to vector<1x32xf32>
    %cst_54 = arith.constant dense<0.000000e+00> : vector<48xf32>
    %103 = vector.multi_reduction <add>, %98, %cst_54 [1] : vector<48x32xf32> to vector<48xf32>
    %104 = vector.shape_cast %103 : vector<48xf32> to vector<48x1xf32>
    %cst_55 = arith.constant 3.200000e+01 : f32
    %105 = vector.broadcast %cst_55 : f32 to vector<48x1xf32>
    %106 = arith.divf %104, %105 : vector<48x1xf32>
    %107 = vector.broadcast %106 : vector<48x1xf32> to vector<48x32xf32>
    %108 = arith.subf %98, %107 : vector<48x32xf32>
    %109 = arith.mulf %108, %108 : vector<48x32xf32>
    %cst_56 = arith.constant dense<0.000000e+00> : vector<48xf32>
    %110 = vector.multi_reduction <add>, %109, %cst_56 [1] : vector<48x32xf32> to vector<48xf32>
    %111 = vector.shape_cast %110 : vector<48xf32> to vector<48x1xf32>
    %cst_57 = arith.constant 3.200000e+01 : f32
    %112 = vector.broadcast %cst_57 : f32 to vector<48x1xf32>
    %113 = arith.divf %111, %112 : vector<48x1xf32>
    %114 = vector.broadcast %106 : vector<48x1xf32> to vector<48x32xf32>
    %115 = arith.subf %98, %114 : vector<48x32xf32>
    %cst_58 = arith.constant 9.99999974E-6 : f32
    %116 = vector.broadcast %cst_58 : f32 to vector<48x1xf32>
    %117 = arith.addf %113, %116 : vector<48x1xf32>
    %118 = math.rsqrt %117 : vector<48x1xf32>
    %119 = vector.broadcast %118 : vector<48x1xf32> to vector<48x32xf32>
    %120 = arith.mulf %115, %119 : vector<48x32xf32>
    %121 = vector.broadcast %100 : vector<1x32xf32> to vector<48x32xf32>
    %122 = arith.mulf %120, %121 : vector<48x32xf32>
    %123 = vector.broadcast %102 : vector<1x32xf32> to vector<48x32xf32>
    %124 = arith.addf %122, %123 : vector<48x32xf32>
    %c0_59 = arith.constant 0 : index
    %c0_60 = arith.constant 0 : index
    %c0_61 = arith.constant 0 : index
    %125 = vector.load %arg13[%c0_59, %c0_60, %c0_61] : memref<2x32x128xf32, #tpu.memory_space<vmem>>, vector<1x32x128xf32>
    %126 = vector.shape_cast %125 : vector<1x32x128xf32> to vector<32x128xf32>
    %cst_62 = arith.constant dense<0.000000e+00> : vector<48x128xf32>
    %127 = tpu.matmul %124, %126, %cst_62 {dimension_numbers = #tpu.dot_dimension_numbers<[1], [0], [0], [1], [0, 0, 1, 1], [], []>} : vector<48x32xf32>, vector<32x128xf32>, vector<48x128xf32> -> vector<48x128xf32>
    %c0_63 = arith.constant 0 : index
    %c0_64 = arith.constant 0 : index
    %c0_65 = arith.constant 0 : index
    %128 = vector.load %arg14[%c0_63, %c0_64, %c0_65] : memref<2x1x128xf32, #tpu.memory_space<vmem>>, vector<1x1x128xf32>
    %129 = vector.shape_cast %128 : vector<1x1x128xf32> to vector<1x128xf32>
    %130 = vector.broadcast %129 : vector<1x128xf32> to vector<48x128xf32>
    %131 = arith.addf %127, %130 : vector<48x128xf32>
    %cst_66 = arith.constant 5.000000e-01 : f32
    %132 = vector.broadcast %cst_66 : f32 to vector<48x128xf32>
    %133 = arith.mulf %132, %131 : vector<48x128xf32>
    %cst_67 = arith.constant 0.707106769 : f32
    %134 = vector.broadcast %cst_67 : f32 to vector<48x128xf32>
    %135 = arith.mulf %131, %134 : vector<48x128xf32>
    %136 = math.erf %135 : vector<48x128xf32>
    %cst_68 = arith.constant 1.000000e+00 : f32
    %137 = vector.broadcast %cst_68 : f32 to vector<48x128xf32>
    %138 = arith.addf %137, %136 : vector<48x128xf32>
    %139 = arith.mulf %133, %138 : vector<48x128xf32>
    %c0_69 = arith.constant 0 : index
    %c0_70 = arith.constant 0 : index
    %c0_71 = arith.constant 0 : index
    %140 = vector.load %arg15[%c0_69, %c0_70, %c0_71] : memref<2x128x32xf32, #tpu.memory_space<vmem>>, vector<1x128x32xf32>
    %141 = vector.shape_cast %140 : vector<1x128x32xf32> to vector<128x32xf32>
    %cst_72 = arith.constant dense<0.000000e+00> : vector<48x32xf32>
    %142 = tpu.matmul %139, %141, %cst_72 {dimension_numbers = #tpu.dot_dimension_numbers<[1], [0], [0], [1], [0, 0, 1, 1], [], []>} : vector<48x128xf32>, vector<128x32xf32>, vector<48x32xf32> -> vector<48x32xf32>
    %c0_73 = arith.constant 0 : index
    %c0_74 = arith.constant 0 : index
    %c0_75 = arith.constant 0 : index
    %143 = vector.load %arg16[%c0_73, %c0_74, %c0_75] : memref<2x1x32xf32, #tpu.memory_space<vmem>>, vector<1x1x32xf32>
    %144 = vector.shape_cast %143 : vector<1x1x32xf32> to vector<1x32xf32>
    %145 = vector.broadcast %144 : vector<1x32xf32> to vector<48x32xf32>
    %146 = arith.addf %142, %145 : vector<48x32xf32>
    %147 = arith.addf %98, %146 : vector<48x32xf32>
    %c1 = arith.constant 1 : index
    %c0_76 = arith.constant 0 : index
    %c0_77 = arith.constant 0 : index
    %148 = vector.load %arg5[%c1, %c0_76, %c0_77] : memref<2x1x32xf32, #tpu.memory_space<vmem>>, vector<1x1x32xf32>
    %149 = vector.shape_cast %148 : vector<1x1x32xf32> to vector<1x32xf32>
    %c1_78 = arith.constant 1 : index
    %c0_79 = arith.constant 0 : index
    %c0_80 = arith.constant 0 : index
    %150 = vector.load %arg6[%c1_78, %c0_79, %c0_80] : memref<2x1x32xf32, #tpu.memory_space<vmem>>, vector<1x1x32xf32>
    %151 = vector.shape_cast %150 : vector<1x1x32xf32> to vector<1x32xf32>
    %cst_81 = arith.constant dense<0.000000e+00> : vector<48xf32>
    %152 = vector.multi_reduction <add>, %147, %cst_81 [1] : vector<48x32xf32> to vector<48xf32>
    %153 = vector.shape_cast %152 : vector<48xf32> to vector<48x1xf32>
    %cst_82 = arith.constant 3.200000e+01 : f32
    %154 = vector.broadcast %cst_82 : f32 to vector<48x1xf32>
    %155 = arith.divf %153, %154 : vector<48x1xf32>
    %156 = vector.broadcast %155 : vector<48x1xf32> to vector<48x32xf32>
    %157 = arith.subf %147, %156 : vector<48x32xf32>
    %158 = arith.mulf %157, %157 : vector<48x32xf32>
    %cst_83 = arith.constant dense<0.000000e+00> : vector<48xf32>
    %159 = vector.multi_reduction <add>, %158, %cst_83 [1] : vector<48x32xf32> to vector<48xf32>
    %160 = vector.shape_cast %159 : vector<48xf32> to vector<48x1xf32>
    %cst_84 = arith.constant 3.200000e+01 : f32
    %161 = vector.broadcast %cst_84 : f32 to vector<48x1xf32>
    %162 = arith.divf %160, %161 : vector<48x1xf32>
    %163 = vector.broadcast %155 : vector<48x1xf32> to vector<48x32xf32>
    %164 = arith.subf %147, %163 : vector<48x32xf32>
    %cst_85 = arith.constant 9.99999974E-6 : f32
    %165 = vector.broadcast %cst_85 : f32 to vector<48x1xf32>
    %166 = arith.addf %162, %165 : vector<48x1xf32>
    %167 = math.rsqrt %166 : vector<48x1xf32>
    %168 = vector.broadcast %167 : vector<48x1xf32> to vector<48x32xf32>
    %169 = arith.mulf %164, %168 : vector<48x32xf32>
    %170 = vector.broadcast %149 : vector<1x32xf32> to vector<48x32xf32>
    %171 = arith.mulf %169, %170 : vector<48x32xf32>
    %172 = vector.broadcast %151 : vector<1x32xf32> to vector<48x32xf32>
    %173 = arith.addf %171, %172 : vector<48x32xf32>
    %c1_86 = arith.constant 1 : index
    %c0_87 = arith.constant 0 : index
    %c0_88 = arith.constant 0 : index
    %174 = vector.load %arg7[%c1_86, %c0_87, %c0_88] : memref<2x32x96xf32, #tpu.memory_space<vmem>>, vector<1x32x96xf32>
    %175 = vector.shape_cast %174 : vector<1x32x96xf32> to vector<32x96xf32>
    %cst_89 = arith.constant dense<0.000000e+00> : vector<48x96xf32>
    %176 = tpu.matmul %173, %175, %cst_89 {dimension_numbers = #tpu.dot_dimension_numbers<[1], [0], [0], [1], [0, 0, 1, 1], [], []>} : vector<48x32xf32>, vector<32x96xf32>, vector<48x96xf32> -> vector<48x96xf32>
    %c1_90 = arith.constant 1 : index
    %c0_91 = arith.constant 0 : index
    %c0_92 = arith.constant 0 : index
    %177 = vector.load %arg8[%c1_90, %c0_91, %c0_92] : memref<2x1x96xf32, #tpu.memory_space<vmem>>, vector<1x1x96xf32>
    %178 = vector.shape_cast %177 : vector<1x1x96xf32> to vector<1x96xf32>
    %179 = vector.broadcast %178 : vector<1x96xf32> to vector<48x96xf32>
    %180 = arith.addf %176, %179 : vector<48x96xf32>
    %181 = vector.extract_strided_slice %180 {offsets = [0, 0], sizes = [48, 16], strides = [1, 1]} : vector<48x96xf32> to vector<48x16xf32>
    %182 = vector.shape_cast %181 : vector<48x16xf32> to vector<2x24x16xf32>
    %183 = vector.extract_strided_slice %180 {offsets = [0, 16], sizes = [48, 16], strides = [1, 1]} : vector<48x96xf32> to vector<48x16xf32>
    %184 = vector.shape_cast %183 : vector<48x16xf32> to vector<2x24x16xf32>
    %185 = tpu.concatenate %182, %184 in 0 : vector<2x24x16xf32>, vector<2x24x16xf32> -> vector<4x24x16xf32>
    %186 = vector.extract_strided_slice %180 {offsets = [0, 32], sizes = [48, 16], strides = [1, 1]} : vector<48x96xf32> to vector<48x16xf32>
    %187 = vector.shape_cast %186 : vector<48x16xf32> to vector<2x24x16xf32>
    %188 = vector.extract_strided_slice %180 {offsets = [0, 48], sizes = [48, 16], strides = [1, 1]} : vector<48x96xf32> to vector<48x16xf32>
    %189 = vector.shape_cast %188 : vector<48x16xf32> to vector<2x24x16xf32>
    %190 = tpu.concatenate %187, %189 in 0 : vector<2x24x16xf32>, vector<2x24x16xf32> -> vector<4x24x16xf32>
    %191 = vector.extract_strided_slice %180 {offsets = [0, 64], sizes = [48, 16], strides = [1, 1]} : vector<48x96xf32> to vector<48x16xf32>
    %192 = vector.shape_cast %191 : vector<48x16xf32> to vector<2x24x16xf32>
    %193 = vector.extract_strided_slice %180 {offsets = [0, 80], sizes = [48, 16], strides = [1, 1]} : vector<48x96xf32> to vector<48x16xf32>
    %194 = vector.shape_cast %193 : vector<48x16xf32> to vector<2x24x16xf32>
    %195 = tpu.concatenate %192, %194 in 0 : vector<2x24x16xf32>, vector<2x24x16xf32> -> vector<4x24x16xf32>
    %cst_93 = arith.constant dense<0.000000e+00> : vector<4x24x24xf32>
    %196 = tpu.matmul %185, %190, %cst_93 {dimension_numbers = #tpu.dot_dimension_numbers<[2], [2], [1], [1], [0, 0, 0, 1, 1, 1], [0], [0]>} : vector<4x24x16xf32>, vector<4x24x16xf32>, vector<4x24x24xf32> -> vector<4x24x24xf32>
    %cst_94 = arith.constant 2.500000e-01 : f32
    %197 = vector.broadcast %cst_94 : f32 to vector<4x24x24xf32>
    %198 = arith.mulf %196, %197 : vector<4x24x24xf32>
    %199 = vector.broadcast %21 : vector<1x1x24xf32> to vector<4x24x24xf32>
    %200 = arith.addf %198, %199 : vector<4x24x24xf32>
    %cst_95 = arith.constant dense<0xFF800000> : vector<4x24xf32>
    %201 = vector.multi_reduction <maximumf>, %200, %cst_95 [2] : vector<4x24x24xf32> to vector<4x24xf32>
    %202 = vector.shape_cast %201 : vector<4x24xf32> to vector<4x24x1xf32>
    %203 = vector.broadcast %202 : vector<4x24x1xf32> to vector<4x24x24xf32>
    %204 = arith.subf %200, %203 : vector<4x24x24xf32>
    %205 = math.exp %204 : vector<4x24x24xf32>
    %cst_96 = arith.constant dense<0.000000e+00> : vector<4x24xf32>
    %206 = vector.multi_reduction <add>, %205, %cst_96 [2] : vector<4x24x24xf32> to vector<4x24xf32>
    %207 = vector.shape_cast %206 : vector<4x24xf32> to vector<4x24x1xf32>
    %208 = tpu.reciprocal %207 {approx = true} : vector<4x24x1xf32> -> vector<4x24x1xf32>
    %209 = vector.broadcast %208 : vector<4x24x1xf32> to vector<4x24x24xf32>
    %210 = arith.mulf %205, %209 : vector<4x24x24xf32>
    %cst_97 = arith.constant dense<0.000000e+00> : vector<4x24x16xf32>
    %211 = tpu.matmul %210, %195, %cst_97 {dimension_numbers = #tpu.dot_dimension_numbers<[2], [1], [1], [2], [0, 0, 0, 1, 1, 2], [0], [0]>} : vector<4x24x24xf32>, vector<4x24x16xf32>, vector<4x24x16xf32> -> vector<4x24x16xf32>
    %212 = vector.extract_strided_slice %211 {offsets = [0, 0, 0], sizes = [2, 24, 16], strides = [1, 1, 1]} : vector<4x24x16xf32> to vector<2x24x16xf32>
    %213 = vector.shape_cast %212 : vector<2x24x16xf32> to vector<48x16xf32>
    %214 = vector.extract_strided_slice %211 {offsets = [2, 0, 0], sizes = [2, 24, 16], strides = [1, 1, 1]} : vector<4x24x16xf32> to vector<2x24x16xf32>
    %215 = vector.shape_cast %214 : vector<2x24x16xf32> to vector<48x16xf32>
    %216 = tpu.concatenate %213, %215 in 1 : vector<48x16xf32>, vector<48x16xf32> -> vector<48x32xf32>
    %c1_98 = arith.constant 1 : index
    %c0_99 = arith.constant 0 : index
    %c0_100 = arith.constant 0 : index
    %217 = vector.load %arg9[%c1_98, %c0_99, %c0_100] : memref<2x32x32xf32, #tpu.memory_space<vmem>>, vector<1x32x32xf32>
    %218 = vector.shape_cast %217 : vector<1x32x32xf32> to vector<32x32xf32>
    %cst_101 = arith.constant dense<0.000000e+00> : vector<48x32xf32>
    %219 = tpu.matmul %216, %218, %cst_101 {dimension_numbers = #tpu.dot_dimension_numbers<[1], [0], [0], [1], [0, 0, 1, 1], [], []>} : vector<48x32xf32>, vector<32x32xf32>, vector<48x32xf32> -> vector<48x32xf32>
    %c1_102 = arith.constant 1 : index
    %c0_103 = arith.constant 0 : index
    %c0_104 = arith.constant 0 : index
    %220 = vector.load %arg10[%c1_102, %c0_103, %c0_104] : memref<2x1x32xf32, #tpu.memory_space<vmem>>, vector<1x1x32xf32>
    %221 = vector.shape_cast %220 : vector<1x1x32xf32> to vector<1x32xf32>
    %222 = vector.broadcast %221 : vector<1x32xf32> to vector<48x32xf32>
    %223 = arith.addf %219, %222 : vector<48x32xf32>
    %224 = arith.addf %147, %223 : vector<48x32xf32>
    %c1_105 = arith.constant 1 : index
    %c0_106 = arith.constant 0 : index
    %c0_107 = arith.constant 0 : index
    %225 = vector.load %arg11[%c1_105, %c0_106, %c0_107] : memref<2x1x32xf32, #tpu.memory_space<vmem>>, vector<1x1x32xf32>
    %226 = vector.shape_cast %225 : vector<1x1x32xf32> to vector<1x32xf32>
    %c1_108 = arith.constant 1 : index
    %c0_109 = arith.constant 0 : index
    %c0_110 = arith.constant 0 : index
    %227 = vector.load %arg12[%c1_108, %c0_109, %c0_110] : memref<2x1x32xf32, #tpu.memory_space<vmem>>, vector<1x1x32xf32>
    %228 = vector.shape_cast %227 : vector<1x1x32xf32> to vector<1x32xf32>
    %cst_111 = arith.constant dense<0.000000e+00> : vector<48xf32>
    %229 = vector.multi_reduction <add>, %224, %cst_111 [1] : vector<48x32xf32> to vector<48xf32>
    %230 = vector.shape_cast %229 : vector<48xf32> to vector<48x1xf32>
    %cst_112 = arith.constant 3.200000e+01 : f32
    %231 = vector.broadcast %cst_112 : f32 to vector<48x1xf32>
    %232 = arith.divf %230, %231 : vector<48x1xf32>
    %233 = vector.broadcast %232 : vector<48x1xf32> to vector<48x32xf32>
    %234 = arith.subf %224, %233 : vector<48x32xf32>
    %235 = arith.mulf %234, %234 : vector<48x32xf32>
    %cst_113 = arith.constant dense<0.000000e+00> : vector<48xf32>
    %236 = vector.multi_reduction <add>, %235, %cst_113 [1] : vector<48x32xf32> to vector<48xf32>
    %237 = vector.shape_cast %236 : vector<48xf32> to vector<48x1xf32>
    %cst_114 = arith.constant 3.200000e+01 : f32
    %238 = vector.broadcast %cst_114 : f32 to vector<48x1xf32>
    %239 = arith.divf %237, %238 : vector<48x1xf32>
    %240 = vector.broadcast %232 : vector<48x1xf32> to vector<48x32xf32>
    %241 = arith.subf %224, %240 : vector<48x32xf32>
    %cst_115 = arith.constant 9.99999974E-6 : f32
    %242 = vector.broadcast %cst_115 : f32 to vector<48x1xf32>
    %243 = arith.addf %239, %242 : vector<48x1xf32>
    %244 = math.rsqrt %243 : vector<48x1xf32>
    %245 = vector.broadcast %244 : vector<48x1xf32> to vector<48x32xf32>
    %246 = arith.mulf %241, %245 : vector<48x32xf32>
    %247 = vector.broadcast %226 : vector<1x32xf32> to vector<48x32xf32>
    %248 = arith.mulf %246, %247 : vector<48x32xf32>
    %249 = vector.broadcast %228 : vector<1x32xf32> to vector<48x32xf32>
    %250 = arith.addf %248, %249 : vector<48x32xf32>
    %c1_116 = arith.constant 1 : index
    %c0_117 = arith.constant 0 : index
    %c0_118 = arith.constant 0 : index
    %251 = vector.load %arg13[%c1_116, %c0_117, %c0_118] : memref<2x32x128xf32, #tpu.memory_space<vmem>>, vector<1x32x128xf32>
    %252 = vector.shape_cast %251 : vector<1x32x128xf32> to vector<32x128xf32>
    %cst_119 = arith.constant dense<0.000000e+00> : vector<48x128xf32>
    %253 = tpu.matmul %250, %252, %cst_119 {dimension_numbers = #tpu.dot_dimension_numbers<[1], [0], [0], [1], [0, 0, 1, 1], [], []>} : vector<48x32xf32>, vector<32x128xf32>, vector<48x128xf32> -> vector<48x128xf32>
    %c1_120 = arith.constant 1 : index
    %c0_121 = arith.constant 0 : index
    %c0_122 = arith.constant 0 : index
    %254 = vector.load %arg14[%c1_120, %c0_121, %c0_122] : memref<2x1x128xf32, #tpu.memory_space<vmem>>, vector<1x1x128xf32>
    %255 = vector.shape_cast %254 : vector<1x1x128xf32> to vector<1x128xf32>
    %256 = vector.broadcast %255 : vector<1x128xf32> to vector<48x128xf32>
    %257 = arith.addf %253, %256 : vector<48x128xf32>
    %cst_123 = arith.constant 5.000000e-01 : f32
    %258 = vector.broadcast %cst_123 : f32 to vector<48x128xf32>
    %259 = arith.mulf %258, %257 : vector<48x128xf32>
    %cst_124 = arith.constant 0.707106769 : f32
    %260 = vector.broadcast %cst_124 : f32 to vector<48x128xf32>
    %261 = arith.mulf %257, %260 : vector<48x128xf32>
    %262 = math.erf %261 : vector<48x128xf32>
    %cst_125 = arith.constant 1.000000e+00 : f32
    %263 = vector.broadcast %cst_125 : f32 to vector<48x128xf32>
    %264 = arith.addf %263, %262 : vector<48x128xf32>
    %265 = arith.mulf %259, %264 : vector<48x128xf32>
    %c1_126 = arith.constant 1 : index
    %c0_127 = arith.constant 0 : index
    %c0_128 = arith.constant 0 : index
    %266 = vector.load %arg15[%c1_126, %c0_127, %c0_128] : memref<2x128x32xf32, #tpu.memory_space<vmem>>, vector<1x128x32xf32>
    %267 = vector.shape_cast %266 : vector<1x128x32xf32> to vector<128x32xf32>
    %cst_129 = arith.constant dense<0.000000e+00> : vector<48x32xf32>
    %268 = tpu.matmul %265, %267, %cst_129 {dimension_numbers = #tpu.dot_dimension_numbers<[1], [0], [0], [1], [0, 0, 1, 1], [], []>} : vector<48x128xf32>, vector<128x32xf32>, vector<48x32xf32> -> vector<48x32xf32>
    %c1_130 = arith.constant 1 : index
    %c0_131 = arith.constant 0 : index
    %c0_132 = arith.constant 0 : index
    %269 = vector.load %arg16[%c1_130, %c0_131, %c0_132] : memref<2x1x32xf32, #tpu.memory_space<vmem>>, vector<1x1x32xf32>
    %270 = vector.shape_cast %269 : vector<1x1x32xf32> to vector<1x32xf32>
    %271 = vector.broadcast %270 : vector<1x32xf32> to vector<48x32xf32>
    %272 = arith.addf %268, %271 : vector<48x32xf32>
    %273 = arith.addf %224, %272 : vector<48x32xf32>
    %274 = vector.shape_cast %273 : vector<48x32xf32> to vector<2x24x32xf32>
    %275 = vector.extract_strided_slice %274 {offsets = [0, 16, 0], sizes = [2, 1, 32], strides = [1, 1, 1]} : vector<2x24x32xf32> to vector<2x1x32xf32>
    %276 = vector.shape_cast %275 : vector<2x1x32xf32> to vector<2x32xf32>
    %c0_133 = arith.constant 0 : index
    %c0_134 = arith.constant 0 : index
    %277 = vector.load %arg17[%c0_133, %c0_134] : memref<1x32xf32, #tpu.memory_space<vmem>>, vector<1x32xf32>
    %c0_135 = arith.constant 0 : index
    %c0_136 = arith.constant 0 : index
    %278 = vector.load %arg18[%c0_135, %c0_136] : memref<1x32xf32, #tpu.memory_space<vmem>>, vector<1x32xf32>
    %cst_137 = arith.constant dense<0.000000e+00> : vector<2xf32>
    %279 = vector.multi_reduction <add>, %276, %cst_137 [1] : vector<2x32xf32> to vector<2xf32>
    %280 = vector.shape_cast %279 : vector<2xf32> to vector<2x1xf32>
    %cst_138 = arith.constant 3.200000e+01 : f32
    %281 = vector.broadcast %cst_138 : f32 to vector<2x1xf32>
    %282 = arith.divf %280, %281 : vector<2x1xf32>
    %283 = vector.broadcast %282 : vector<2x1xf32> to vector<2x32xf32>
    %284 = arith.subf %276, %283 : vector<2x32xf32>
    %285 = arith.mulf %284, %284 : vector<2x32xf32>
    %cst_139 = arith.constant dense<0.000000e+00> : vector<2xf32>
    %286 = vector.multi_reduction <add>, %285, %cst_139 [1] : vector<2x32xf32> to vector<2xf32>
    %287 = vector.shape_cast %286 : vector<2xf32> to vector<2x1xf32>
    %cst_140 = arith.constant 3.200000e+01 : f32
    %288 = vector.broadcast %cst_140 : f32 to vector<2x1xf32>
    %289 = arith.divf %287, %288 : vector<2x1xf32>
    %290 = vector.broadcast %282 : vector<2x1xf32> to vector<2x32xf32>
    %291 = arith.subf %276, %290 : vector<2x32xf32>
    %cst_141 = arith.constant 9.99999974E-6 : f32
    %292 = vector.broadcast %cst_141 : f32 to vector<2x1xf32>
    %293 = arith.addf %289, %292 : vector<2x1xf32>
    %294 = math.rsqrt %293 : vector<2x1xf32>
    %295 = vector.broadcast %294 : vector<2x1xf32> to vector<2x32xf32>
    %296 = arith.mulf %291, %295 : vector<2x32xf32>
    %297 = vector.broadcast %277 : vector<1x32xf32> to vector<2x32xf32>
    %298 = arith.mulf %296, %297 : vector<2x32xf32>
    %299 = vector.broadcast %278 : vector<1x32xf32> to vector<2x32xf32>
    %300 = arith.addf %298, %299 : vector<2x32xf32>
    %c0_142 = arith.constant 0 : index
    %c0_143 = arith.constant 0 : index
    %301 = vector.load %arg19[%c0_142, %c0_143] : memref<32x128xf32, #tpu.memory_space<vmem>>, vector<32x128xf32>
    %cst_144 = arith.constant dense<0.000000e+00> : vector<2x128xf32>
    %302 = tpu.matmul %300, %301, %cst_144 {dimension_numbers = #tpu.dot_dimension_numbers<[1], [0], [0], [1], [0, 0, 1, 1], [], []>} : vector<2x32xf32>, vector<32x128xf32>, vector<2x128xf32> -> vector<2x128xf32>
    %c0_145 = arith.constant 0 : index
    %c0_146 = arith.constant 0 : index
    %303 = vector.load %arg20[%c0_145, %c0_146] : memref<1x128xf32, #tpu.memory_space<vmem>>, vector<1x128xf32>
    %304 = vector.broadcast %303 : vector<1x128xf32> to vector<2x128xf32>
    %305 = arith.addf %302, %304 : vector<2x128xf32>
    %c0_147 = arith.constant 0 : index
    %c0_148 = arith.constant 0 : index
    %306 = vector.load %arg21[%c0_147, %c0_148] : memref<2x128xf32, #tpu.memory_space<vmem>>, vector<2x128xf32>
    tpu.vector_store %arg21[%c0_147, %c0_148], %305 {strides = array<i32>} : memref<2x128xf32, #tpu.memory_space<vmem>>, vector<2x128xf32>,
    return
  }
  func.func @transform_0(%arg0: i32) -> (i32, i32, i32) {
    %c0_i32 = arith.constant 0 : i32
    %c0_i32_0 = arith.constant 0 : i32
    %c0_i32_1 = arith.constant 0 : i32
    return %arg0, %c0_i32, %c0_i32_0 : i32, i32, i32
  }
  func.func @transform_1(%arg0: i32) -> (i32, i32) {
    %c0_i32 = arith.constant 0 : i32
    %c0_i32_0 = arith.constant 0 : i32
    %c0_i32_1 = arith.constant 0 : i32
    return %c0_i32, %c0_i32_0 : i32, i32
  }
  func.func @transform_2(%arg0: i32) -> (i32, i32) {
    %c0_i32 = arith.constant 0 : i32
    %c0_i32_0 = arith.constant 0 : i32
    %c0_i32_1 = arith.constant 0 : i32
    return %c0_i32, %c0_i32_0 : i32, i32
  }
  func.func @transform_3(%arg0: i32) -> (i32, i32) {
    %c0_i32 = arith.constant 0 : i32
    %c0_i32_0 = arith.constant 0 : i32
    %c0_i32_1 = arith.constant 0 : i32
    return %c0_i32, %c0_i32_0 : i32, i32
  }
  func.func @transform_4(%arg0: i32) -> (i32, i32, i32) {
    %c0_i32 = arith.constant 0 : i32
    %c0_i32_0 = arith.constant 0 : i32
    %c0_i32_1 = arith.constant 0 : i32
    %c0_i32_2 = arith.constant 0 : i32
    return %c0_i32, %c0_i32_0, %c0_i32_1 : i32, i32, i32
  }
  func.func @transform_5(%arg0: i32) -> (i32, i32, i32) {
    %c0_i32 = arith.constant 0 : i32
    %c0_i32_0 = arith.constant 0 : i32
    %c0_i32_1 = arith.constant 0 : i32
    %c0_i32_2 = arith.constant 0 : i32
    return %c0_i32, %c0_i32_0, %c0_i32_1 : i32, i32, i32
  }
  func.func @transform_6(%arg0: i32) -> (i32, i32, i32) {
    %c0_i32 = arith.constant 0 : i32
    %c0_i32_0 = arith.constant 0 : i32
    %c0_i32_1 = arith.constant 0 : i32
    %c0_i32_2 = arith.constant 0 : i32
    return %c0_i32, %c0_i32_0, %c0_i32_1 : i32, i32, i32
  }
  func.func @transform_7(%arg0: i32) -> (i32, i32, i32) {
    %c0_i32 = arith.constant 0 : i32
    %c0_i32_0 = arith.constant 0 : i32
    %c0_i32_1 = arith.constant 0 : i32
    %c0_i32_2 = arith.constant 0 : i32
    return %c0_i32, %c0_i32_0, %c0_i32_1 : i32, i32, i32
  }
  func.func @transform_8(%arg0: i32) -> (i32, i32, i32) {
    %c0_i32 = arith.constant 0 : i32
    %c0_i32_0 = arith.constant 0 : i32
    %c0_i32_1 = arith.constant 0 : i32
    %c0_i32_2 = arith.constant 0 : i32
    return %c0_i32, %c0_i32_0, %c0_i32_1 : i32, i32, i32
  }
  func.func @transform_9(%arg0: i32) -> (i32, i32, i32) {
    %c0_i32 = arith.constant 0 : i32
    %c0_i32_0 = arith.constant 0 : i32
    %c0_i32_1 = arith.constant 0 : i32
    %c0_i32_2 = arith.constant 0 : i32
    return %c0_i32, %c0_i32_0, %c0_i32_1 : i32, i32, i32
  }
  func.func @transform_10(%arg0: i32) -> (i32, i32, i32) {
    %c0_i32 = arith.constant 0 : i32
    %c0_i32_0 = arith.constant 0 : i32
    %c0_i32_1 = arith.constant 0 : i32
    %c0_i32_2 = arith.constant 0 : i32
    return %c0_i32, %c0_i32_0, %c0_i32_1 : i32, i32, i32
  }
  func.func @transform_11(%arg0: i32) -> (i32, i32, i32) {
    %c0_i32 = arith.constant 0 : i32
    %c0_i32_0 = arith.constant 0 : i32
    %c0_i32_1 = arith.constant 0 : i32
    %c0_i32_2 = arith.constant 0 : i32
    return %c0_i32, %c0_i32_0, %c0_i32_1 : i32, i32, i32
  }
  func.func @transform_12(%arg0: i32) -> (i32, i32, i32) {
    %c0_i32 = arith.constant 0 : i32
    %c0_i32_0 = arith.constant 0 : i32
    %c0_i32_1 = arith.constant 0 : i32
    %c0_i32_2 = arith.constant 0 : i32
    return %c0_i32, %c0_i32_0, %c0_i32_1 : i32, i32, i32
  }
  func.func @transform_13(%arg0: i32) -> (i32, i32, i32) {
    %c0_i32 = arith.constant 0 : i32
    %c0_i32_0 = arith.constant 0 : i32
    %c0_i32_1 = arith.constant 0 : i32
    %c0_i32_2 = arith.constant 0 : i32
    return %c0_i32, %c0_i32_0, %c0_i32_1 : i32, i32, i32
  }
  func.func @transform_14(%arg0: i32) -> (i32, i32, i32) {
    %c0_i32 = arith.constant 0 : i32
    %c0_i32_0 = arith.constant 0 : i32
    %c0_i32_1 = arith.constant 0 : i32
    %c0_i32_2 = arith.constant 0 : i32
    return %c0_i32, %c0_i32_0, %c0_i32_1 : i32, i32, i32
  }
  func.func @transform_15(%arg0: i32) -> (i32, i32, i32) {
    %c0_i32 = arith.constant 0 : i32
    %c0_i32_0 = arith.constant 0 : i32
    %c0_i32_1 = arith.constant 0 : i32
    %c0_i32_2 = arith.constant 0 : i32
    return %c0_i32, %c0_i32_0, %c0_i32_1 : i32, i32, i32
  }
  func.func @transform_16(%arg0: i32) -> (i32, i32) {
    %c0_i32 = arith.constant 0 : i32
    %c0_i32_0 = arith.constant 0 : i32
    %c0_i32_1 = arith.constant 0 : i32
    return %c0_i32, %c0_i32_0 : i32, i32
  }
  func.func @transform_17(%arg0: i32) -> (i32, i32) {
    %c0_i32 = arith.constant 0 : i32
    %c0_i32_0 = arith.constant 0 : i32
    %c0_i32_1 = arith.constant 0 : i32
    return %c0_i32, %c0_i32_0 : i32, i32
  }
  func.func @transform_18(%arg0: i32) -> (i32, i32) {
    %c0_i32 = arith.constant 0 : i32
    %c0_i32_0 = arith.constant 0 : i32
    %c0_i32_1 = arith.constant 0 : i32
    return %c0_i32, %c0_i32_0 : i32, i32
  }
  func.func @transform_19(%arg0: i32) -> (i32, i32) {
    %c0_i32 = arith.constant 0 : i32
    %c0_i32_0 = arith.constant 0 : i32
    %c0_i32_1 = arith.constant 0 : i32
    return %c0_i32, %c0_i32_0 : i32, i32
  }
  func.func @transform_20(%arg0: i32) -> (i32, i32) {
    %c0_i32 = arith.constant 0 : i32
    %c0_i32_0 = arith.constant 0 : i32
    return %arg0, %c0_i32 : i32, i32
  }
}

module attributes {stable_mosaic.version = 11 : i64} {
  func.func @_mae_fused_kernel(%arg0: i32, %arg1: memref<2x16x48xf32, #tpu.memory_space<vmem>>, %arg2: memref<48x32xf32, #tpu.memory_space<vmem>>, %arg3: memref<16x32xf32, #tpu.memory_space<vmem>>, %arg4: memref<8x32xf32, #tpu.memory_space<vmem>>, %arg5: memref<2x1x32xf32, #tpu.memory_space<vmem>>, %arg6: memref<2x1x32xf32, #tpu.memory_space<vmem>>, %arg7: memref<2x32x96xf32, #tpu.memory_space<vmem>>, %arg8: memref<2x1x96xf32, #tpu.memory_space<vmem>>, %arg9: memref<2x32x32xf32, #tpu.memory_space<vmem>>, %arg10: memref<2x1x32xf32, #tpu.memory_space<vmem>>, %arg11: memref<2x1x32xf32, #tpu.memory_space<vmem>>, %arg12: memref<2x1x32xf32, #tpu.memory_space<vmem>>, %arg13: memref<2x32x128xf32, #tpu.memory_space<vmem>>, %arg14: memref<2x1x128xf32, #tpu.memory_space<vmem>>, %arg15: memref<2x128x32xf32, #tpu.memory_space<vmem>>, %arg16: memref<2x1x32xf32, #tpu.memory_space<vmem>>, %arg17: memref<1x32xf32, #tpu.memory_space<vmem>>, %arg18: memref<1x32xf32, #tpu.memory_space<vmem>>, %arg19: memref<32x128xf32, #tpu.memory_space<vmem>>, %arg20: memref<1x128xf32, #tpu.memory_space<vmem>>, %arg21: memref<2x128xf32, #tpu.memory_space<vmem>>, %arg22: memref<2x24x32xf32, #tpu.memory_space<vmem>>) attributes {dimension_semantics = [#tpu.dimension_semantics<parallel>], iteration_bounds = array<i64: 1>, scalar_prefetch = 0 : i64, scratch_operands = 1 : i64, tpu.core_type = #tpu.core_type<tc>, window_params = [{transform_indices = @transform_0, window_bounds = array<i64: 2, 16, 48>}, {pipeline_mode = #tpu.pipeline_mode<synchronous>, transform_indices = @transform_1, window_bounds = array<i64: 48, 32>}, {pipeline_mode = #tpu.pipeline_mode<synchronous>, transform_indices = @transform_2, window_bounds = array<i64: 16, 32>}, {pipeline_mode = #tpu.pipeline_mode<synchronous>, transform_indices = @transform_3, window_bounds = array<i64: 8, 32>}, {pipeline_mode = #tpu.pipeline_mode<synchronous>, transform_indices = @transform_4, window_bounds = array<i64: 2, 1, 32>}, {pipeline_mode = #tpu.pipeline_mode<synchronous>, transform_indices = @transform_5, window_bounds = array<i64: 2, 1, 32>}, {pipeline_mode = #tpu.pipeline_mode<synchronous>, transform_indices = @transform_6, window_bounds = array<i64: 2, 32, 96>}, {pipeline_mode = #tpu.pipeline_mode<synchronous>, transform_indices = @transform_7, window_bounds = array<i64: 2, 1, 96>}, {pipeline_mode = #tpu.pipeline_mode<synchronous>, transform_indices = @transform_8, window_bounds = array<i64: 2, 32, 32>}, {pipeline_mode = #tpu.pipeline_mode<synchronous>, transform_indices = @transform_9, window_bounds = array<i64: 2, 1, 32>}, {pipeline_mode = #tpu.pipeline_mode<synchronous>, transform_indices = @transform_10, window_bounds = array<i64: 2, 1, 32>}, {pipeline_mode = #tpu.pipeline_mode<synchronous>, transform_indices = @transform_11, window_bounds = array<i64: 2, 1, 32>}, {pipeline_mode = #tpu.pipeline_mode<synchronous>, transform_indices = @transform_12, window_bounds = array<i64: 2, 32, 128>}, {pipeline_mode = #tpu.pipeline_mode<synchronous>, transform_indices = @transform_13, window_bounds = array<i64: 2, 1, 128>}, {pipeline_mode = #tpu.pipeline_mode<synchronous>, transform_indices = @transform_14, window_bounds = array<i64: 2, 128, 32>}, {pipeline_mode = #tpu.pipeline_mode<synchronous>, transform_indices = @transform_15, window_bounds = array<i64: 2, 1, 32>}, {pipeline_mode = #tpu.pipeline_mode<synchronous>, transform_indices = @transform_16, window_bounds = array<i64: 1, 32>}, {pipeline_mode = #tpu.pipeline_mode<synchronous>, transform_indices = @transform_17, window_bounds = array<i64: 1, 32>}, {pipeline_mode = #tpu.pipeline_mode<synchronous>, transform_indices = @transform_18, window_bounds = array<i64: 32, 128>}, {pipeline_mode = #tpu.pipeline_mode<synchronous>, transform_indices = @transform_19, window_bounds = array<i64: 1, 128>}, {transform_indices = @transform_20, window_bounds = array<i64: 2, 128>}]} {
    %c0 = arith.constant 0 : index
    %c0_0 = arith.constant 0 : index
    %c0_1 = arith.constant 0 : index
    %0 = vector.load %arg1[%c0, %c0_0, %c0_1] : memref<2x16x48xf32, #tpu.memory_space<vmem>>, vector<2x16x48xf32>
    %1 = vector.shape_cast %0 : vector<2x16x48xf32> to vector<32x48xf32>
    %c0_2 = arith.constant 0 : index
    %c0_3 = arith.constant 0 : index
    %2 = vector.load %arg2[%c0_2, %c0_3] : memref<48x32xf32, #tpu.memory_space<vmem>>, vector<48x32xf32>
    %cst = arith.constant dense<0.000000e+00> : vector<32x32xf32>
    %3 = tpu.matmul %1, %2, %cst {dimension_numbers = #tpu.dot_dimension_numbers<[1], [0], [0], [1], [0, 0, 1, 1], [], []>} : vector<32x48xf32>, vector<48x32xf32>, vector<32x32xf32> -> vector<32x32xf32>
    %4 = vector.shape_cast %3 : vector<32x32xf32> to vector<2x16x32xf32>
    %c0_4 = arith.constant 0 : index
    %c0_5 = arith.constant 0 : index
    %5 = vector.load %arg3[%c0_4, %c0_5] : memref<16x32xf32, #tpu.memory_space<vmem>>, vector<16x32xf32>
    %6 = vector.shape_cast %5 : vector<16x32xf32> to vector<1x16x32xf32>
    %7 = vector.broadcast %6 : vector<1x16x32xf32> to vector<2x16x32xf32>
    %8 = arith.addf %4, %7 : vector<2x16x32xf32>
    %c0_6 = arith.constant 0 : index
    %c0_7 = arith.constant 0 : index
    %c0_8 = arith.constant 0 : index
    %9 = vector.load %arg22[%c0_6, %c0_7, %c0_8] : memref<2x24x32xf32, #tpu.memory_space<vmem>>, vector<2x16x32xf32>
    tpu.vector_store %arg22[%c0_6, %c0_7, %c0_8], %8 {strides = array<i32>} : memref<2x24x32xf32, #tpu.memory_space<vmem>>, vector<2x16x32xf32>,
    %c0_9 = arith.constant 0 : index
    %c0_10 = arith.constant 0 : index
    %10 = vector.load %arg4[%c0_9, %c0_10] : memref<8x32xf32, #tpu.memory_space<vmem>>, vector<8x32xf32>
    %11 = vector.shape_cast %10 : vector<8x32xf32> to vector<1x8x32xf32>
    %12 = vector.broadcast %11 : vector<1x8x32xf32> to vector<2x8x32xf32>
    %c0_11 = arith.constant 0 : index
    %c16 = arith.constant 16 : index
    %c0_12 = arith.constant 0 : index
    %13 = vector.load %arg22[%c0_11, %c16, %c0_12] : memref<2x24x32xf32, #tpu.memory_space<vmem>>, vector<2x8x32xf32>
    tpu.vector_store %arg22[%c0_11, %c16, %c0_12], %12 {strides = array<i32>} : memref<2x24x32xf32, #tpu.memory_space<vmem>>, vector<2x8x32xf32>,
    %c0_13 = arith.constant 0 : index
    %c0_14 = arith.constant 0 : index
    %c0_15 = arith.constant 0 : index
    %14 = vector.load %arg22[%c0_13, %c0_14, %c0_15] : memref<2x24x32xf32, #tpu.memory_space<vmem>>, vector<2x24x32xf32>
    %15 = vector.shape_cast %14 : vector<2x24x32xf32> to vector<48x32xf32>
    %16 = tpu.iota {dimensions = array<i32: 2>} : vector<1x1x24xi32>
    %c17_i32 = arith.constant 17 : i32
    %17 = vector.broadcast %c17_i32 : i32 to vector<1x1x24xi32>
    %18 = arith.cmpi slt, %16, %17 : vector<1x1x24xi32>
    %cst_16 = arith.constant 0.000000e+00 : f32
    %cst_17 = arith.constant -1.000000e+30 : f32
    %19 = vector.broadcast %cst_16 : f32 to vector<1x1x24xf32>
    %20 = vector.broadcast %cst_17 : f32 to vector<1x1x24xf32>
    %21 = arith.select %18, %19, %20 : vector<1x1x24xi1>, vector<1x1x24xf32>
    %c0_18 = arith.constant 0 : index
    %c0_19 = arith.constant 0 : index
    %c0_20 = arith.constant 0 : index
    %22 = vector.load %arg5[%c0_18, %c0_19, %c0_20] : memref<2x1x32xf32, #tpu.memory_space<vmem>>, vector<1x1x32xf32>
    %23 = vector.shape_cast %22 : vector<1x1x32xf32> to vector<1x32xf32>
    %c0_21 = arith.constant 0 : index
    %c0_22 = arith.constant 0 : index
    %c0_23 = arith.constant 0 : index
    %24 = vector.load %arg6[%c0_21, %c0_22, %c0_23] : memref<2x1x32xf32, #tpu.memory_space<vmem>>, vector<1x1x32xf32>
    %25 = vector.shape_cast %24 : vector<1x1x32xf32> to vector<1x32xf32>
    %cst_24 = arith.constant dense<0.000000e+00> : vector<48xf32>
    %26 = vector.multi_reduction <add>, %15, %cst_24 [1] : vector<48x32xf32> to vector<48xf32>
    %27 = vector.shape_cast %26 : vector<48xf32> to vector<48x1xf32>
    %cst_25 = arith.constant 3.200000e+01 : f32
    %28 = vector.broadcast %cst_25 : f32 to vector<48x1xf32>
    %29 = arith.divf %27, %28 : vector<48x1xf32>
    %30 = vector.broadcast %29 : vector<48x1xf32> to vector<48x32xf32>
    %31 = arith.subf %15, %30 : vector<48x32xf32>
    %32 = arith.mulf %31, %31 : vector<48x32xf32>
    %cst_26 = arith.constant dense<0.000000e+00> : vector<48xf32>
    %33 = vector.multi_reduction <add>, %32, %cst_26 [1] : vector<48x32xf32> to vector<48xf32>
    %34 = vector.shape_cast %33 : vector<48xf32> to vector<48x1xf32>
    %cst_27 = arith.constant 3.200000e+01 : f32
    %35 = vector.broadcast %cst_27 : f32 to vector<48x1xf32>
    %36 = arith.divf %34, %35 : vector<48x1xf32>
    %37 = vector.broadcast %29 : vector<48x1xf32> to vector<48x32xf32>
    %38 = arith.subf %15, %37 : vector<48x32xf32>
    %cst_28 = arith.constant 9.99999974E-6 : f32
    %39 = vector.broadcast %cst_28 : f32 to vector<48x1xf32>
    %40 = arith.addf %36, %39 : vector<48x1xf32>
    %41 = math.rsqrt %40 : vector<48x1xf32>
    %42 = vector.broadcast %41 : vector<48x1xf32> to vector<48x32xf32>
    %43 = arith.mulf %38, %42 : vector<48x32xf32>
    %44 = vector.broadcast %23 : vector<1x32xf32> to vector<48x32xf32>
    %45 = arith.mulf %43, %44 : vector<48x32xf32>
    %46 = vector.broadcast %25 : vector<1x32xf32> to vector<48x32xf32>
    %47 = arith.addf %45, %46 : vector<48x32xf32>
    %c0_29 = arith.constant 0 : index
    %c0_30 = arith.constant 0 : index
    %c0_31 = arith.constant 0 : index
    %48 = vector.load %arg7[%c0_29, %c0_30, %c0_31] : memref<2x32x96xf32, #tpu.memory_space<vmem>>, vector<1x32x96xf32>
    %49 = vector.shape_cast %48 : vector<1x32x96xf32> to vector<32x96xf32>
    %cst_32 = arith.constant dense<0.000000e+00> : vector<48x96xf32>
    %50 = tpu.matmul %47, %49, %cst_32 {dimension_numbers = #tpu.dot_dimension_numbers<[1], [0], [0], [1], [0, 0, 1, 1], [], []>} : vector<48x32xf32>, vector<32x96xf32>, vector<48x96xf32> -> vector<48x96xf32>
    %c0_33 = arith.constant 0 : index
    %c0_34 = arith.constant 0 : index
    %c0_35 = arith.constant 0 : index
    %51 = vector.load %arg8[%c0_33, %c0_34, %c0_35] : memref<2x1x96xf32, #tpu.memory_space<vmem>>, vector<1x1x96xf32>
    %52 = vector.shape_cast %51 : vector<1x1x96xf32> to vector<1x96xf32>
    %53 = vector.broadcast %52 : vector<1x96xf32> to vector<48x96xf32>
    %54 = arith.addf %50, %53 : vector<48x96xf32>
    %55 = vector.extract_strided_slice %54 {offsets = [0, 0], sizes = [48, 16], strides = [1, 1]} : vector<48x96xf32> to vector<48x16xf32>
    %56 = vector.shape_cast %55 : vector<48x16xf32> to vector<2x24x16xf32>
    %57 = vector.extract_strided_slice %54 {offsets = [0, 16], sizes = [48, 16], strides = [1, 1]} : vector<48x96xf32> to vector<48x16xf32>
    %58 = vector.shape_cast %57 : vector<48x16xf32> to vector<2x24x16xf32>
    %59 = tpu.concatenate %56, %58 in 0 : vector<2x24x16xf32>, vector<2x24x16xf32> -> vector<4x24x16xf32>
    %60 = vector.extract_strided_slice %54 {offsets = [0, 32], sizes = [48, 16], strides = [1, 1]} : vector<48x96xf32> to vector<48x16xf32>
    %61 = vector.shape_cast %60 : vector<48x16xf32> to vector<2x24x16xf32>
    %62 = vector.extract_strided_slice %54 {offsets = [0, 48], sizes = [48, 16], strides = [1, 1]} : vector<48x96xf32> to vector<48x16xf32>
    %63 = vector.shape_cast %62 : vector<48x16xf32> to vector<2x24x16xf32>
    %64 = tpu.concatenate %61, %63 in 0 : vector<2x24x16xf32>, vector<2x24x16xf32> -> vector<4x24x16xf32>
    %65 = vector.extract_strided_slice %54 {offsets = [0, 64], sizes = [48, 16], strides = [1, 1]} : vector<48x96xf32> to vector<48x16xf32>
    %66 = vector.shape_cast %65 : vector<48x16xf32> to vector<2x24x16xf32>
    %67 = vector.extract_strided_slice %54 {offsets = [0, 80], sizes = [48, 16], strides = [1, 1]} : vector<48x96xf32> to vector<48x16xf32>
    %68 = vector.shape_cast %67 : vector<48x16xf32> to vector<2x24x16xf32>
    %69 = tpu.concatenate %66, %68 in 0 : vector<2x24x16xf32>, vector<2x24x16xf32> -> vector<4x24x16xf32>
    %cst_36 = arith.constant dense<0.000000e+00> : vector<4x24x24xf32>
    %70 = tpu.matmul %59, %64, %cst_36 {dimension_numbers = #tpu.dot_dimension_numbers<[2], [2], [1], [1], [0, 0, 0, 1, 1, 1], [0], [0]>} : vector<4x24x16xf32>, vector<4x24x16xf32>, vector<4x24x24xf32> -> vector<4x24x24xf32>
    %cst_37 = arith.constant 2.500000e-01 : f32
    %71 = vector.broadcast %cst_37 : f32 to vector<4x24x24xf32>
    %72 = arith.mulf %70, %71 : vector<4x24x24xf32>
    %73 = vector.broadcast %21 : vector<1x1x24xf32> to vector<4x24x24xf32>
    %74 = arith.addf %72, %73 : vector<4x24x24xf32>
    %cst_38 = arith.constant dense<0xFF800000> : vector<4x24xf32>
    %75 = vector.multi_reduction <maximumf>, %74, %cst_38 [2] : vector<4x24x24xf32> to vector<4x24xf32>
    %76 = vector.shape_cast %75 : vector<4x24xf32> to vector<4x24x1xf32>
    %77 = vector.broadcast %76 : vector<4x24x1xf32> to vector<4x24x24xf32>
    %78 = arith.subf %74, %77 : vector<4x24x24xf32>
    %79 = math.exp %78 : vector<4x24x24xf32>
    %cst_39 = arith.constant dense<0.000000e+00> : vector<4x24xf32>
    %80 = vector.multi_reduction <add>, %79, %cst_39 [2] : vector<4x24x24xf32> to vector<4x24xf32>
    %81 = vector.shape_cast %80 : vector<4x24xf32> to vector<4x24x1xf32>
    %82 = tpu.reciprocal %81 {approx = true} : vector<4x24x1xf32> -> vector<4x24x1xf32>
    %83 = vector.broadcast %82 : vector<4x24x1xf32> to vector<4x24x24xf32>
    %84 = arith.mulf %79, %83 : vector<4x24x24xf32>
    %cst_40 = arith.constant dense<0.000000e+00> : vector<4x24x16xf32>
    %85 = tpu.matmul %84, %69, %cst_40 {dimension_numbers = #tpu.dot_dimension_numbers<[2], [1], [1], [2], [0, 0, 0, 1, 1, 2], [0], [0]>} : vector<4x24x24xf32>, vector<4x24x16xf32>, vector<4x24x16xf32> -> vector<4x24x16xf32>
    %86 = vector.extract_strided_slice %85 {offsets = [0, 0, 0], sizes = [2, 24, 16], strides = [1, 1, 1]} : vector<4x24x16xf32> to vector<2x24x16xf32>
    %87 = vector.shape_cast %86 : vector<2x24x16xf32> to vector<48x16xf32>
    %88 = vector.extract_strided_slice %85 {offsets = [2, 0, 0], sizes = [2, 24, 16], strides = [1, 1, 1]} : vector<4x24x16xf32> to vector<2x24x16xf32>
    %89 = vector.shape_cast %88 : vector<2x24x16xf32> to vector<48x16xf32>
    %90 = tpu.concatenate %87, %89 in 1 : vector<48x16xf32>, vector<48x16xf32> -> vector<48x32xf32>
    %c0_41 = arith.constant 0 : index
    %c0_42 = arith.constant 0 : index
    %c0_43 = arith.constant 0 : index
    %91 = vector.load %arg9[%c0_41, %c0_42, %c0_43] : memref<2x32x32xf32, #tpu.memory_space<vmem>>, vector<1x32x32xf32>
    %92 = vector.shape_cast %91 : vector<1x32x32xf32> to vector<32x32xf32>
    %cst_44 = arith.constant dense<0.000000e+00> : vector<48x32xf32>
    %93 = tpu.matmul %90, %92, %cst_44 {dimension_numbers = #tpu.dot_dimension_numbers<[1], [0], [0], [1], [0, 0, 1, 1], [], []>} : vector<48x32xf32>, vector<32x32xf32>, vector<48x32xf32> -> vector<48x32xf32>
    %c0_45 = arith.constant 0 : index
    %c0_46 = arith.constant 0 : index
    %c0_47 = arith.constant 0 : index
    %94 = vector.load %arg10[%c0_45, %c0_46, %c0_47] : memref<2x1x32xf32, #tpu.memory_space<vmem>>, vector<1x1x32xf32>
    %95 = vector.shape_cast %94 : vector<1x1x32xf32> to vector<1x32xf32>
    %96 = vector.broadcast %95 : vector<1x32xf32> to vector<48x32xf32>
    %97 = arith.addf %93, %96 : vector<48x32xf32>
    %98 = arith.addf %15, %97 : vector<48x32xf32>
    %c0_48 = arith.constant 0 : index
    %c0_49 = arith.constant 0 : index
    %c0_50 = arith.constant 0 : index
    %99 = vector.load %arg11[%c0_48, %c0_49, %c0_50] : memref<2x1x32xf32, #tpu.memory_space<vmem>>, vector<1x1x32xf32>
    %100 = vector.shape_cast %99 : vector<1x1x32xf32> to vector<1x32xf32>
    %c0_51 = arith.constant 0 : index
    %c0_52 = arith.constant 0 : index
    %c0_53 = arith.constant 0 : index
    %101 = vector.load %arg12[%c0_51, %c0_52, %c0_53] : memref<2x1x32xf32, #tpu.memory_space<vmem>>, vector<1x1x32xf32>
    %102 = vector.shape_cast %101 : vector<1x1x32xf32> to vector<1x32xf32>
    %cst_54 = arith.constant dense<0.000000e+00> : vector<48xf32>
    %103 = vector.multi_reduction <add>, %98, %cst_54 [1] : vector<48x32xf32> to vector<48xf32>
    %104 = vector.shape_cast %103 : vector<48xf32> to vector<48x1xf32>
    %cst_55 = arith.constant 3.200000e+01 : f32
    %105 = vector.broadcast %cst_55 : f32 to vector<48x1xf32>
    %106 = arith.divf %104, %105 : vector<48x1xf32>
    %107 = vector.broadcast %106 : vector<48x1xf32> to vector<48x32xf32>
    %108 = arith.subf %98, %107 : vector<48x32xf32>
    %109 = arith.mulf %108, %108 : vector<48x32xf32>
    %cst_56 = arith.constant dense<0.000000e+00> : vector<48xf32>
    %110 = vector.multi_reduction <add>, %109, %cst_56 [1] : vector<48x32xf32> to vector<48xf32>
    %111 = vector.shape_cast %110 : vector<48xf32> to vector<48x1xf32>
    %cst_57 = arith.constant 3.200000e+01 : f32
    %112 = vector.broadcast %cst_57 : f32 to vector<48x1xf32>
    %113 = arith.divf %111, %112 : vector<48x1xf32>
    %114 = vector.broadcast %106 : vector<48x1xf32> to vector<48x32xf32>
    %115 = arith.subf %98, %114 : vector<48x32xf32>
    %cst_58 = arith.constant 9.99999974E-6 : f32
    %116 = vector.broadcast %cst_58 : f32 to vector<48x1xf32>
    %117 = arith.addf %113, %116 : vector<48x1xf32>
    %118 = math.rsqrt %117 : vector<48x1xf32>
    %119 = vector.broadcast %118 : vector<48x1xf32> to vector<48x32xf32>
    %120 = arith.mulf %115, %119 : vector<48x32xf32>
    %121 = vector.broadcast %100 : vector<1x32xf32> to vector<48x32xf32>
    %122 = arith.mulf %120, %121 : vector<48x32xf32>
    %123 = vector.broadcast %102 : vector<1x32xf32> to vector<48x32xf32>
    %124 = arith.addf %122, %123 : vector<48x32xf32>
    %c0_59 = arith.constant 0 : index
    %c0_60 = arith.constant 0 : index
    %c0_61 = arith.constant 0 : index
    %125 = vector.load %arg13[%c0_59, %c0_60, %c0_61] : memref<2x32x128xf32, #tpu.memory_space<vmem>>, vector<1x32x128xf32>
    %126 = vector.shape_cast %125 : vector<1x32x128xf32> to vector<32x128xf32>
    %cst_62 = arith.constant dense<0.000000e+00> : vector<48x128xf32>
    %127 = tpu.matmul %124, %126, %cst_62 {dimension_numbers = #tpu.dot_dimension_numbers<[1], [0], [0], [1], [0, 0, 1, 1], [], []>} : vector<48x32xf32>, vector<32x128xf32>, vector<48x128xf32> -> vector<48x128xf32>
    %c0_63 = arith.constant 0 : index
    %c0_64 = arith.constant 0 : index
    %c0_65 = arith.constant 0 : index
    %128 = vector.load %arg14[%c0_63, %c0_64, %c0_65] : memref<2x1x128xf32, #tpu.memory_space<vmem>>, vector<1x1x128xf32>
    %129 = vector.shape_cast %128 : vector<1x1x128xf32> to vector<1x128xf32>
    %130 = vector.broadcast %129 : vector<1x128xf32> to vector<48x128xf32>
    %131 = arith.addf %127, %130 : vector<48x128xf32>
    %cst_66 = arith.constant 5.000000e-01 : f32
    %132 = vector.broadcast %cst_66 : f32 to vector<48x128xf32>
    %133 = arith.mulf %132, %131 : vector<48x128xf32>
    %cst_67 = arith.constant 0.707106769 : f32
    %134 = vector.broadcast %cst_67 : f32 to vector<48x128xf32>
    %135 = arith.mulf %131, %134 : vector<48x128xf32>
    %136 = math.erf %135 : vector<48x128xf32>
    %cst_68 = arith.constant 1.000000e+00 : f32
    %137 = vector.broadcast %cst_68 : f32 to vector<48x128xf32>
    %138 = arith.addf %137, %136 : vector<48x128xf32>
    %139 = arith.mulf %133, %138 : vector<48x128xf32>
    %c0_69 = arith.constant 0 : index
    %c0_70 = arith.constant 0 : index
    %c0_71 = arith.constant 0 : index
    %140 = vector.load %arg15[%c0_69, %c0_70, %c0_71] : memref<2x128x32xf32, #tpu.memory_space<vmem>>, vector<1x128x32xf32>
    %141 = vector.shape_cast %140 : vector<1x128x32xf32> to vector<128x32xf32>
    %cst_72 = arith.constant dense<0.000000e+00> : vector<48x32xf32>
    %142 = tpu.matmul %139, %141, %cst_72 {dimension_numbers = #tpu.dot_dimension_numbers<[1], [0], [0], [1], [0, 0, 1, 1], [], []>} : vector<48x128xf32>, vector<128x32xf32>, vector<48x32xf32> -> vector<48x32xf32>
    %c0_73 = arith.constant 0 : index
    %c0_74 = arith.constant 0 : index
    %c0_75 = arith.constant 0 : index
    %143 = vector.load %arg16[%c0_73, %c0_74, %c0_75] : memref<2x1x32xf32, #tpu.memory_space<vmem>>, vector<1x1x32xf32>
    %144 = vector.shape_cast %143 : vector<1x1x32xf32> to vector<1x32xf32>
    %145 = vector.broadcast %144 : vector<1x32xf32> to vector<48x32xf32>
    %146 = arith.addf %142, %145 : vector<48x32xf32>
    %147 = arith.addf %98, %146 : vector<48x32xf32>
    %c1 = arith.constant 1 : index
    %c0_76 = arith.constant 0 : index
    %c0_77 = arith.constant 0 : index
    %148 = vector.load %arg5[%c1, %c0_76, %c0_77] : memref<2x1x32xf32, #tpu.memory_space<vmem>>, vector<1x1x32xf32>
    %149 = vector.shape_cast %148 : vector<1x1x32xf32> to vector<1x32xf32>
    %c1_78 = arith.constant 1 : index
    %c0_79 = arith.constant 0 : index
    %c0_80 = arith.constant 0 : index
    %150 = vector.load %arg6[%c1_78, %c0_79, %c0_80] : memref<2x1x32xf32, #tpu.memory_space<vmem>>, vector<1x1x32xf32>
    %151 = vector.shape_cast %150 : vector<1x1x32xf32> to vector<1x32xf32>
    %cst_81 = arith.constant dense<0.000000e+00> : vector<48xf32>
    %152 = vector.multi_reduction <add>, %147, %cst_81 [1] : vector<48x32xf32> to vector<48xf32>
    %153 = vector.shape_cast %152 : vector<48xf32> to vector<48x1xf32>
    %cst_82 = arith.constant 3.200000e+01 : f32
    %154 = vector.broadcast %cst_82 : f32 to vector<48x1xf32>
    %155 = arith.divf %153, %154 : vector<48x1xf32>
    %156 = vector.broadcast %155 : vector<48x1xf32> to vector<48x32xf32>
    %157 = arith.subf %147, %156 : vector<48x32xf32>
    %158 = arith.mulf %157, %157 : vector<48x32xf32>
    %cst_83 = arith.constant dense<0.000000e+00> : vector<48xf32>
    %159 = vector.multi_reduction <add>, %158, %cst_83 [1] : vector<48x32xf32> to vector<48xf32>
    %160 = vector.shape_cast %159 : vector<48xf32> to vector<48x1xf32>
    %cst_84 = arith.constant 3.200000e+01 : f32
    %161 = vector.broadcast %cst_84 : f32 to vector<48x1xf32>
    %162 = arith.divf %160, %161 : vector<48x1xf32>
    %163 = vector.broadcast %155 : vector<48x1xf32> to vector<48x32xf32>
    %164 = arith.subf %147, %163 : vector<48x32xf32>
    %cst_85 = arith.constant 9.99999974E-6 : f32
    %165 = vector.broadcast %cst_85 : f32 to vector<48x1xf32>
    %166 = arith.addf %162, %165 : vector<48x1xf32>
    %167 = math.rsqrt %166 : vector<48x1xf32>
    %168 = vector.broadcast %167 : vector<48x1xf32> to vector<48x32xf32>
    %169 = arith.mulf %164, %168 : vector<48x32xf32>
    %170 = vector.broadcast %149 : vector<1x32xf32> to vector<48x32xf32>
    %171 = arith.mulf %169, %170 : vector<48x32xf32>
    %172 = vector.broadcast %151 : vector<1x32xf32> to vector<48x32xf32>
    %173 = arith.addf %171, %172 : vector<48x32xf32>
    %c1_86 = arith.constant 1 : index
    %c0_87 = arith.constant 0 : index
    %c0_88 = arith.constant 0 : index
    %174 = vector.load %arg7[%c1_86, %c0_87, %c0_88] : memref<2x32x96xf32, #tpu.memory_space<vmem>>, vector<1x32x96xf32>
    %175 = vector.shape_cast %174 : vector<1x32x96xf32> to vector<32x96xf32>
    %cst_89 = arith.constant dense<0.000000e+00> : vector<48x96xf32>
    %176 = tpu.matmul %173, %175, %cst_89 {dimension_numbers = #tpu.dot_dimension_numbers<[1], [0], [0], [1], [0, 0, 1, 1], [], []>} : vector<48x32xf32>, vector<32x96xf32>, vector<48x96xf32> -> vector<48x96xf32>
    %c1_90 = arith.constant 1 : index
    %c0_91 = arith.constant 0 : index
    %c0_92 = arith.constant 0 : index
    %177 = vector.load %arg8[%c1_90, %c0_91, %c0_92] : memref<2x1x96xf32, #tpu.memory_space<vmem>>, vector<1x1x96xf32>
    %178 = vector.shape_cast %177 : vector<1x1x96xf32> to vector<1x96xf32>
    %179 = vector.broadcast %178 : vector<1x96xf32> to vector<48x96xf32>
    %180 = arith.addf %176, %179 : vector<48x96xf32>
    %181 = vector.extract_strided_slice %180 {offsets = [0, 0], sizes = [48, 16], strides = [1, 1]} : vector<48x96xf32> to vector<48x16xf32>
    %182 = vector.shape_cast %181 : vector<48x16xf32> to vector<2x24x16xf32>
    %183 = vector.extract_strided_slice %180 {offsets = [0, 16], sizes = [48, 16], strides = [1, 1]} : vector<48x96xf32> to vector<48x16xf32>
    %184 = vector.shape_cast %183 : vector<48x16xf32> to vector<2x24x16xf32>
    %185 = tpu.concatenate %182, %184 in 0 : vector<2x24x16xf32>, vector<2x24x16xf32> -> vector<4x24x16xf32>
    %186 = vector.extract_strided_slice %180 {offsets = [0, 32], sizes = [48, 16], strides = [1, 1]} : vector<48x96xf32> to vector<48x16xf32>
    %187 = vector.shape_cast %186 : vector<48x16xf32> to vector<2x24x16xf32>
    %188 = vector.extract_strided_slice %180 {offsets = [0, 48], sizes = [48, 16], strides = [1, 1]} : vector<48x96xf32> to vector<48x16xf32>
    %189 = vector.shape_cast %188 : vector<48x16xf32> to vector<2x24x16xf32>
    %190 = tpu.concatenate %187, %189 in 0 : vector<2x24x16xf32>, vector<2x24x16xf32> -> vector<4x24x16xf32>
    %191 = vector.extract_strided_slice %180 {offsets = [0, 64], sizes = [48, 16], strides = [1, 1]} : vector<48x96xf32> to vector<48x16xf32>
    %192 = vector.shape_cast %191 : vector<48x16xf32> to vector<2x24x16xf32>
    %193 = vector.extract_strided_slice %180 {offsets = [0, 80], sizes = [48, 16], strides = [1, 1]} : vector<48x96xf32> to vector<48x16xf32>
    %194 = vector.shape_cast %193 : vector<48x16xf32> to vector<2x24x16xf32>
    %195 = tpu.concatenate %192, %194 in 0 : vector<2x24x16xf32>, vector<2x24x16xf32> -> vector<4x24x16xf32>
    %cst_93 = arith.constant dense<0.000000e+00> : vector<4x24x24xf32>
    %196 = tpu.matmul %185, %190, %cst_93 {dimension_numbers = #tpu.dot_dimension_numbers<[2], [2], [1], [1], [0, 0, 0, 1, 1, 1], [0], [0]>} : vector<4x24x16xf32>, vector<4x24x16xf32>, vector<4x24x24xf32> -> vector<4x24x24xf32>
    %cst_94 = arith.constant 2.500000e-01 : f32
    %197 = vector.broadcast %cst_94 : f32 to vector<4x24x24xf32>
    %198 = arith.mulf %196, %197 : vector<4x24x24xf32>
    %199 = vector.broadcast %21 : vector<1x1x24xf32> to vector<4x24x24xf32>
    %200 = arith.addf %198, %199 : vector<4x24x24xf32>
    %cst_95 = arith.constant dense<0xFF800000> : vector<4x24xf32>
    %201 = vector.multi_reduction <maximumf>, %200, %cst_95 [2] : vector<4x24x24xf32> to vector<4x24xf32>
    %202 = vector.shape_cast %201 : vector<4x24xf32> to vector<4x24x1xf32>
    %203 = vector.broadcast %202 : vector<4x24x1xf32> to vector<4x24x24xf32>
    %204 = arith.subf %200, %203 : vector<4x24x24xf32>
    %205 = math.exp %204 : vector<4x24x24xf32>
    %cst_96 = arith.constant dense<0.000000e+00> : vector<4x24xf32>
    %206 = vector.multi_reduction <add>, %205, %cst_96 [2] : vector<4x24x24xf32> to vector<4x24xf32>
    %207 = vector.shape_cast %206 : vector<4x24xf32> to vector<4x24x1xf32>
    %208 = tpu.reciprocal %207 {approx = true} : vector<4x24x1xf32> -> vector<4x24x1xf32>
    %209 = vector.broadcast %208 : vector<4x24x1xf32> to vector<4x24x24xf32>
    %210 = arith.mulf %205, %209 : vector<4x24x24xf32>
    %cst_97 = arith.constant dense<0.000000e+00> : vector<4x24x16xf32>
    %211 = tpu.matmul %210, %195, %cst_97 {dimension_numbers = #tpu.dot_dimension_numbers<[2], [1], [1], [2], [0, 0, 0, 1, 1, 2], [0], [0]>} : vector<4x24x24xf32>, vector<4x24x16xf32>, vector<4x24x16xf32> -> vector<4x24x16xf32>
    %212 = vector.extract_strided_slice %211 {offsets = [0, 0, 0], sizes = [2, 24, 16], strides = [1, 1, 1]} : vector<4x24x16xf32> to vector<2x24x16xf32>
    %213 = vector.shape_cast %212 : vector<2x24x16xf32> to vector<48x16xf32>
    %214 = vector.extract_strided_slice %211 {offsets = [2, 0, 0], sizes = [2, 24, 16], strides = [1, 1, 1]} : vector<4x24x16xf32> to vector<2x24x16xf32>
    %215 = vector.shape_cast %214 : vector<2x24x16xf32> to vector<48x16xf32>
    %216 = tpu.concatenate %213, %215 in 1 : vector<48x16xf32>, vector<48x16xf32> -> vector<48x32xf32>
    %c1_98 = arith.constant 1 : index
    %c0_99 = arith.constant 0 : index
    %c0_100 = arith.constant 0 : index
    %217 = vector.load %arg9[%c1_98, %c0_99, %c0_100] : memref<2x32x32xf32, #tpu.memory_space<vmem>>, vector<1x32x32xf32>
    %218 = vector.shape_cast %217 : vector<1x32x32xf32> to vector<32x32xf32>
    %cst_101 = arith.constant dense<0.000000e+00> : vector<48x32xf32>
    %219 = tpu.matmul %216, %218, %cst_101 {dimension_numbers = #tpu.dot_dimension_numbers<[1], [0], [0], [1], [0, 0, 1, 1], [], []>} : vector<48x32xf32>, vector<32x32xf32>, vector<48x32xf32> -> vector<48x32xf32>
    %c1_102 = arith.constant 1 : index
    %c0_103 = arith.constant 0 : index
    %c0_104 = arith.constant 0 : index
    %220 = vector.load %arg10[%c1_102, %c0_103, %c0_104] : memref<2x1x32xf32, #tpu.memory_space<vmem>>, vector<1x1x32xf32>
    %221 = vector.shape_cast %220 : vector<1x1x32xf32> to vector<1x32xf32>
    %222 = vector.broadcast %221 : vector<1x32xf32> to vector<48x32xf32>
    %223 = arith.addf %219, %222 : vector<48x32xf32>
    %224 = arith.addf %147, %223 : vector<48x32xf32>
    %c1_105 = arith.constant 1 : index
    %c0_106 = arith.constant 0 : index
    %c0_107 = arith.constant 0 : index
    %225 = vector.load %arg11[%c1_105, %c0_106, %c0_107] : memref<2x1x32xf32, #tpu.memory_space<vmem>>, vector<1x1x32xf32>
    %226 = vector.shape_cast %225 : vector<1x1x32xf32> to vector<1x32xf32>
    %c1_108 = arith.constant 1 : index
    %c0_109 = arith.constant 0 : index
    %c0_110 = arith.constant 0 : index
    %227 = vector.load %arg12[%c1_108, %c0_109, %c0_110] : memref<2x1x32xf32, #tpu.memory_space<vmem>>, vector<1x1x32xf32>
    %228 = vector.shape_cast %227 : vector<1x1x32xf32> to vector<1x32xf32>
    %cst_111 = arith.constant dense<0.000000e+00> : vector<48xf32>
    %229 = vector.multi_reduction <add>, %224, %cst_111 [1] : vector<48x32xf32> to vector<48xf32>
    %230 = vector.shape_cast %229 : vector<48xf32> to vector<48x1xf32>
    %cst_112 = arith.constant 3.200000e+01 : f32
    %231 = vector.broadcast %cst_112 : f32 to vector<48x1xf32>
    %232 = arith.divf %230, %231 : vector<48x1xf32>
    %233 = vector.broadcast %232 : vector<48x1xf32> to vector<48x32xf32>
    %234 = arith.subf %224, %233 : vector<48x32xf32>
    %235 = arith.mulf %234, %234 : vector<48x32xf32>
    %cst_113 = arith.constant dense<0.000000e+00> : vector<48xf32>
    %236 = vector.multi_reduction <add>, %235, %cst_113 [1] : vector<48x32xf32> to vector<48xf32>
    %237 = vector.shape_cast %236 : vector<48xf32> to vector<48x1xf32>
    %cst_114 = arith.constant 3.200000e+01 : f32
    %238 = vector.broadcast %cst_114 : f32 to vector<48x1xf32>
    %239 = arith.divf %237, %238 : vector<48x1xf32>
    %240 = vector.broadcast %232 : vector<48x1xf32> to vector<48x32xf32>
    %241 = arith.subf %224, %240 : vector<48x32xf32>
    %cst_115 = arith.constant 9.99999974E-6 : f32
    %242 = vector.broadcast %cst_115 : f32 to vector<48x1xf32>
    %243 = arith.addf %239, %242 : vector<48x1xf32>
    %244 = math.rsqrt %243 : vector<48x1xf32>
    %245 = vector.broadcast %244 : vector<48x1xf32> to vector<48x32xf32>
    %246 = arith.mulf %241, %245 : vector<48x32xf32>
    %247 = vector.broadcast %226 : vector<1x32xf32> to vector<48x32xf32>
    %248 = arith.mulf %246, %247 : vector<48x32xf32>
    %249 = vector.broadcast %228 : vector<1x32xf32> to vector<48x32xf32>
    %250 = arith.addf %248, %249 : vector<48x32xf32>
    %c1_116 = arith.constant 1 : index
    %c0_117 = arith.constant 0 : index
    %c0_118 = arith.constant 0 : index
    %251 = vector.load %arg13[%c1_116, %c0_117, %c0_118] : memref<2x32x128xf32, #tpu.memory_space<vmem>>, vector<1x32x128xf32>
    %252 = vector.shape_cast %251 : vector<1x32x128xf32> to vector<32x128xf32>
    %cst_119 = arith.constant dense<0.000000e+00> : vector<48x128xf32>
    %253 = tpu.matmul %250, %252, %cst_119 {dimension_numbers = #tpu.dot_dimension_numbers<[1], [0], [0], [1], [0, 0, 1, 1], [], []>} : vector<48x32xf32>, vector<32x128xf32>, vector<48x128xf32> -> vector<48x128xf32>
    %c1_120 = arith.constant 1 : index
    %c0_121 = arith.constant 0 : index
    %c0_122 = arith.constant 0 : index
    %254 = vector.load %arg14[%c1_120, %c0_121, %c0_122] : memref<2x1x128xf32, #tpu.memory_space<vmem>>, vector<1x1x128xf32>
    %255 = vector.shape_cast %254 : vector<1x1x128xf32> to vector<1x128xf32>
    %256 = vector.broadcast %255 : vector<1x128xf32> to vector<48x128xf32>
    %257 = arith.addf %253, %256 : vector<48x128xf32>
    %cst_123 = arith.constant 5.000000e-01 : f32
    %258 = vector.broadcast %cst_123 : f32 to vector<48x128xf32>
    %259 = arith.mulf %258, %257 : vector<48x128xf32>
    %cst_124 = arith.constant 0.707106769 : f32
    %260 = vector.broadcast %cst_124 : f32 to vector<48x128xf32>
    %261 = arith.mulf %257, %260 : vector<48x128xf32>
    %262 = math.erf %261 : vector<48x128xf32>
    %cst_125 = arith.constant 1.000000e+00 : f32
    %263 = vector.broadcast %cst_125 : f32 to vector<48x128xf32>
    %264 = arith.addf %263, %262 : vector<48x128xf32>
    %265 = arith.mulf %259, %264 : vector<48x128xf32>
    %c1_126 = arith.constant 1 : index
    %c0_127 = arith.constant 0 : index
    %c0_128 = arith.constant 0 : index
    %266 = vector.load %arg15[%c1_126, %c0_127, %c0_128] : memref<2x128x32xf32, #tpu.memory_space<vmem>>, vector<1x128x32xf32>
    %267 = vector.shape_cast %266 : vector<1x128x32xf32> to vector<128x32xf32>
    %cst_129 = arith.constant dense<0.000000e+00> : vector<48x32xf32>
    %268 = tpu.matmul %265, %267, %cst_129 {dimension_numbers = #tpu.dot_dimension_numbers<[1], [0], [0], [1], [0, 0, 1, 1], [], []>} : vector<48x128xf32>, vector<128x32xf32>, vector<48x32xf32> -> vector<48x32xf32>
    %c1_130 = arith.constant 1 : index
    %c0_131 = arith.constant 0 : index
    %c0_132 = arith.constant 0 : index
    %269 = vector.load %arg16[%c1_130, %c0_131, %c0_132] : memref<2x1x32xf32, #tpu.memory_space<vmem>>, vector<1x1x32xf32>
    %270 = vector.shape_cast %269 : vector<1x1x32xf32> to vector<1x32xf32>
    %271 = vector.broadcast %270 : vector<1x32xf32> to vector<48x32xf32>
    %272 = arith.addf %268, %271 : vector<48x32xf32>
    %273 = arith.addf %224, %272 : vector<48x32xf32>
    %274 = vector.shape_cast %273 : vector<48x32xf32> to vector<2x24x32xf32>
    %275 = vector.extract_strided_slice %274 {offsets = [0, 16, 0], sizes = [2, 1, 32], strides = [1, 1, 1]} : vector<2x24x32xf32> to vector<2x1x32xf32>
    %276 = vector.shape_cast %275 : vector<2x1x32xf32> to vector<2x32xf32>
    %c0_133 = arith.constant 0 : index
    %c0_134 = arith.constant 0 : index
    %277 = vector.load %arg17[%c0_133, %c0_134] : memref<1x32xf32, #tpu.memory_space<vmem>>, vector<1x32xf32>
    %c0_135 = arith.constant 0 : index
    %c0_136 = arith.constant 0 : index
    %278 = vector.load %arg18[%c0_135, %c0_136] : memref<1x32xf32, #tpu.memory_space<vmem>>, vector<1x32xf32>
    %cst_137 = arith.constant dense<0.000000e+00> : vector<2xf32>
    %279 = vector.multi_reduction <add>, %276, %cst_137 [1] : vector<2x32xf32> to vector<2xf32>
    %280 = vector.shape_cast %279 : vector<2xf32> to vector<2x1xf32>
    %cst_138 = arith.constant 3.200000e+01 : f32
    %281 = vector.broadcast %cst_138 : f32 to vector<2x1xf32>
    %282 = arith.divf %280, %281 : vector<2x1xf32>
    %283 = vector.broadcast %282 : vector<2x1xf32> to vector<2x32xf32>
    %284 = arith.subf %276, %283 : vector<2x32xf32>
    %285 = arith.mulf %284, %284 : vector<2x32xf32>
    %cst_139 = arith.constant dense<0.000000e+00> : vector<2xf32>
    %286 = vector.multi_reduction <add>, %285, %cst_139 [1] : vector<2x32xf32> to vector<2xf32>
    %287 = vector.shape_cast %286 : vector<2xf32> to vector<2x1xf32>
    %cst_140 = arith.constant 3.200000e+01 : f32
    %288 = vector.broadcast %cst_140 : f32 to vector<2x1xf32>
    %289 = arith.divf %287, %288 : vector<2x1xf32>
    %290 = vector.broadcast %282 : vector<2x1xf32> to vector<2x32xf32>
    %291 = arith.subf %276, %290 : vector<2x32xf32>
    %cst_141 = arith.constant 9.99999974E-6 : f32
    %292 = vector.broadcast %cst_141 : f32 to vector<2x1xf32>
    %293 = arith.addf %289, %292 : vector<2x1xf32>
    %294 = math.rsqrt %293 : vector<2x1xf32>
    %295 = vector.broadcast %294 : vector<2x1xf32> to vector<2x32xf32>
    %296 = arith.mulf %291, %295 : vector<2x32xf32>
    %297 = vector.broadcast %277 : vector<1x32xf32> to vector<2x32xf32>
    %298 = arith.mulf %296, %297 : vector<2x32xf32>
    %299 = vector.broadcast %278 : vector<1x32xf32> to vector<2x32xf32>
    %300 = arith.addf %298, %299 : vector<2x32xf32>
    %c0_142 = arith.constant 0 : index
    %c0_143 = arith.constant 0 : index
    %301 = vector.load %arg19[%c0_142, %c0_143] : memref<32x128xf32, #tpu.memory_space<vmem>>, vector<32x128xf32>
    %cst_144 = arith.constant dense<0.000000e+00> : vector<2x128xf32>
    %302 = tpu.matmul %300, %301, %cst_144 {dimension_numbers = #tpu.dot_dimension_numbers<[1], [0], [0], [1], [0, 0, 1, 1], [], []>} : vector<2x32xf32>, vector<32x128xf32>, vector<2x128xf32> -> vector<2x128xf32>
    %c0_145 = arith.constant 0 : index
    %c0_146 = arith.constant 0 : index
    %303 = vector.load %arg20[%c0_145, %c0_146] : memref<1x128xf32, #tpu.memory_space<vmem>>, vector<1x128xf32>
    %304 = vector.broadcast %303 : vector<1x128xf32> to vector<2x128xf32>
    %305 = arith.addf %302, %304 : vector<2x128xf32>
    %c0_147 = arith.constant 0 : index
    %c0_148 = arith.constant 0 : index
    %306 = vector.load %arg21[%c0_147, %c0_148] : memref<2x128xf32, #tpu.memory_space<vmem>>, vector<2x128xf32>
    tpu.vector_store %arg21[%c0_147, %c0_148], %305 {strides = array<i32>} : memref<2x128xf32, #tpu.memory_space<vmem>>, vector<2x128xf32>,
    return
  }
  func.func @transform_0(%arg0: i32) -> (i32, i32, i32) {
    %c0_i32 = arith.constant 0 : i32
    %c0_i32_0 = arith.constant 0 : i32
    %c0_i32_1 = arith.constant 0 : i32
    return %arg0, %c0_i32, %c0_i32_0 : i32, i32, i32
  }
  func.func @transform_1(%arg0: i32) -> (i32, i32) {
    %c0_i32 = arith.constant 0 : i32
    %c0_i32_0 = arith.constant 0 : i32
    %c0_i32_1 = arith.constant 0 : i32
    return %c0_i32, %c0_i32_0 : i32, i32
  }
  func.func @transform_2(%arg0: i32) -> (i32, i32) {
    %c0_i32 = arith.constant 0 : i32
    %c0_i32_0 = arith.constant 0 : i32
    %c0_i32_1 = arith.constant 0 : i32
    return %c0_i32, %c0_i32_0 : i32, i32
  }
  func.func @transform_3(%arg0: i32) -> (i32, i32) {
    %c0_i32 = arith.constant 0 : i32
    %c0_i32_0 = arith.constant 0 : i32
    %c0_i32_1 = arith.constant 0 : i32
    return %c0_i32, %c0_i32_0 : i32, i32
  }
  func.func @transform_4(%arg0: i32) -> (i32, i32, i32) {
    %c0_i32 = arith.constant 0 : i32
    %c0_i32_0 = arith.constant 0 : i32
    %c0_i32_1 = arith.constant 0 : i32
    %c0_i32_2 = arith.constant 0 : i32
    return %c0_i32, %c0_i32_0, %c0_i32_1 : i32, i32, i32
  }
  func.func @transform_5(%arg0: i32) -> (i32, i32, i32) {
    %c0_i32 = arith.constant 0 : i32
    %c0_i32_0 = arith.constant 0 : i32
    %c0_i32_1 = arith.constant 0 : i32
    %c0_i32_2 = arith.constant 0 : i32
    return %c0_i32, %c0_i32_0, %c0_i32_1 : i32, i32, i32
  }
  func.func @transform_6(%arg0: i32) -> (i32, i32, i32) {
    %c0_i32 = arith.constant 0 : i32
    %c0_i32_0 = arith.constant 0 : i32
    %c0_i32_1 = arith.constant 0 : i32
    %c0_i32_2 = arith.constant 0 : i32
    return %c0_i32, %c0_i32_0, %c0_i32_1 : i32, i32, i32
  }
  func.func @transform_7(%arg0: i32) -> (i32, i32, i32) {
    %c0_i32 = arith.constant 0 : i32
    %c0_i32_0 = arith.constant 0 : i32
    %c0_i32_1 = arith.constant 0 : i32
    %c0_i32_2 = arith.constant 0 : i32
    return %c0_i32, %c0_i32_0, %c0_i32_1 : i32, i32, i32
  }
  func.func @transform_8(%arg0: i32) -> (i32, i32, i32) {
    %c0_i32 = arith.constant 0 : i32
    %c0_i32_0 = arith.constant 0 : i32
    %c0_i32_1 = arith.constant 0 : i32
    %c0_i32_2 = arith.constant 0 : i32
    return %c0_i32, %c0_i32_0, %c0_i32_1 : i32, i32, i32
  }
  func.func @transform_9(%arg0: i32) -> (i32, i32, i32) {
    %c0_i32 = arith.constant 0 : i32
    %c0_i32_0 = arith.constant 0 : i32
    %c0_i32_1 = arith.constant 0 : i32
    %c0_i32_2 = arith.constant 0 : i32
    return %c0_i32, %c0_i32_0, %c0_i32_1 : i32, i32, i32
  }
  func.func @transform_10(%arg0: i32) -> (i32, i32, i32) {
    %c0_i32 = arith.constant 0 : i32
    %c0_i32_0 = arith.constant 0 : i32
    %c0_i32_1 = arith.constant 0 : i32
    %c0_i32_2 = arith.constant 0 : i32
    return %c0_i32, %c0_i32_0, %c0_i32_1 : i32, i32, i32
  }
  func.func @transform_11(%arg0: i32) -> (i32, i32, i32) {
    %c0_i32 = arith.constant 0 : i32
    %c0_i32_0 = arith.constant 0 : i32
    %c0_i32_1 = arith.constant 0 : i32
    %c0_i32_2 = arith.constant 0 : i32
    return %c0_i32, %c0_i32_0, %c0_i32_1 : i32, i32, i32
  }
  func.func @transform_12(%arg0: i32) -> (i32, i32, i32) {
    %c0_i32 = arith.constant 0 : i32
    %c0_i32_0 = arith.constant 0 : i32
    %c0_i32_1 = arith.constant 0 : i32
    %c0_i32_2 = arith.constant 0 : i32
    return %c0_i32, %c0_i32_0, %c0_i32_1 : i32, i32, i32
  }
  func.func @transform_13(%arg0: i32) -> (i32, i32, i32) {
    %c0_i32 = arith.constant 0 : i32
    %c0_i32_0 = arith.constant 0 : i32
    %c0_i32_1 = arith.constant 0 : i32
    %c0_i32_2 = arith.constant 0 : i32
    return %c0_i32, %c0_i32_0, %c0_i32_1 : i32, i32, i32
  }
  func.func @transform_14(%arg0: i32) -> (i32, i32, i32) {
    %c0_i32 = arith.constant 0 : i32
    %c0_i32_0 = arith.constant 0 : i32
    %c0_i32_1 = arith.constant 0 : i32
    %c0_i32_2 = arith.constant 0 : i32
    return %c0_i32, %c0_i32_0, %c0_i32_1 : i32, i32, i32
  }
  func.func @transform_15(%arg0: i32) -> (i32, i32, i32) {
    %c0_i32 = arith.constant 0 : i32
    %c0_i32_0 = arith.constant 0 : i32
    %c0_i32_1 = arith.constant 0 : i32
    %c0_i32_2 = arith.constant 0 : i32
    return %c0_i32, %c0_i32_0, %c0_i32_1 : i32, i32, i32
  }
  func.func @transform_16(%arg0: i32) -> (i32, i32) {
    %c0_i32 = arith.constant 0 : i32
    %c0_i32_0 = arith.constant 0 : i32
    %c0_i32_1 = arith.constant 0 : i32
    return %c0_i32, %c0_i32_0 : i32, i32
  }
  func.func @transform_17(%arg0: i32) -> (i32, i32) {
    %c0_i32 = arith.constant 0 : i32
    %c0_i32_0 = arith.constant 0 : i32
    %c0_i32_1 = arith.constant 0 : i32
    return %c0_i32, %c0_i32_0 : i32, i32
  }
  func.func @transform_18(%arg0: i32) -> (i32, i32) {
    %c0_i32 = arith.constant 0 : i32
    %c0_i32_0 = arith.constant 0 : i32
    %c0_i32_1 = arith.constant 0 : i32
    return %c0_i32, %c0_i32_0 : i32, i32
  }
  func.func @transform_19(%arg0: i32) -> (i32, i32) {
    %c0_i32 = arith.constant 0 : i32
    %c0_i32_0 = arith.constant 0 : i32
    %c0_i32_1 = arith.constant 0 : i32
    return %c0_i32, %c0_i32_0 : i32, i32
  }
  func.func @transform_20(%arg0: i32) -> (i32, i32) {
    %c0_i32 = arith.constant 0 : i32
    %c0_i32_0 = arith.constant 0 : i32
    return %arg0, %c0_i32 : i32, i32
  }
}

</mosaic_0001>

<llo_original>
// kernel: tpu_custom_call.1
$region0: #{tpu_custom_call.1}
  #allocation0 [shape = 'u32[]', space=smem, size = 0x4, offset = 0x4, fixed_abs, tag = 'smem constant byte address 0x4 - core index']
  #allocation1 [shape = 'u32[144,128]{1,0:T(1,128)}', space=vmem, size = 0x12000, scoped, tag = 'internal scratch']
  #allocation2 [shape = 'f32[2,24,32]{2,1,0:T(8,128)}', space=vmem, size = 0x6000, scoped, tag = 'scratch operand']
  %s0 = inlined_call_operand.vmem [shape: f32[2,16,48], index: 0, kind: input, shape index: {}]
  %s1 = inlined_call_operand.vmem [shape: f32[48,32], index: 1, kind: input, shape index: {}]
  %s2 = inlined_call_operand.vmem [shape: f32[16,32], index: 2, kind: input, shape index: {}]
  %s3 = inlined_call_operand.vmem [shape: f32[8,32], index: 3, kind: input, shape index: {}]
  %s4 = inlined_call_operand.vmem [shape: f32[2,1,32], index: 4, kind: input, shape index: {}]
  %s5 = inlined_call_operand.vmem [shape: f32[2,1,32], index: 5, kind: input, shape index: {}]
  %s6 = inlined_call_operand.vmem [shape: f32[2,32,96], index: 6, kind: input, shape index: {}]
  %s7 = inlined_call_operand.vmem [shape: f32[2,1,96], index: 7, kind: input, shape index: {}]
  %s8 = inlined_call_operand.vmem [shape: f32[2,32,32], index: 8, kind: input, shape index: {}]
  %s9 = inlined_call_operand.vmem [shape: f32[2,1,32], index: 9, kind: input, shape index: {}]
  %s10 = inlined_call_operand.vmem [shape: f32[2,1,32], index: 10, kind: input, shape index: {}]
  %s11 = inlined_call_operand.vmem [shape: f32[2,1,32], index: 11, kind: input, shape index: {}]
  %s12 = inlined_call_operand.vmem [shape: f32[2,32,128], index: 12, kind: input, shape index: {}]
  %s13 = inlined_call_operand.vmem [shape: f32[2,1,128], index: 13, kind: input, shape index: {}]
  %s14 = inlined_call_operand.vmem [shape: f32[2,128,32], index: 14, kind: input, shape index: {}]
  %s15 = inlined_call_operand.vmem [shape: f32[2,1,32], index: 15, kind: input, shape index: {}]
  %s16 = inlined_call_operand.vmem [shape: f32[1,32], index: 16, kind: input, shape index: {}]
  %s17 = inlined_call_operand.vmem [shape: f32[1,32], index: 17, kind: input, shape index: {}]
  %s18 = inlined_call_operand.vmem [shape: f32[32,128], index: 18, kind: input, shape index: {}]
  %s19 = inlined_call_operand.vmem [shape: f32[1,128], index: 19, kind: input, shape index: {}]
  %s20 = inlined_call_operand.hbm [shape: f32[2,128], index: 20, kind: output, shape index: {}]
  %s21 = sld [smem:[#allocation0]]
  $region90: #{tpu_custom_call.1} parent=0
    _
  %s23 = ssub.s32 1, %s21
  %s24 = scalar_select 0, %s23, %s21
  $region1: #{tpu_custom_call.1} parent=0
    #allocation3 [shape = 'u8[1024]{0}', space=vmem, size = 0x400, scoped, tag = 'output window, operand 0, single buffered']
    #allocation4 [shape = 's32[1]{0}', space=sflag, size = 0x4, scoped, tag = 'scoped memory for tpu_custom_call.1']
    %25 = vsyncpa [#allocation4], 0
    // Predicated region
    $region2: #{tpu_custom_call.1} parent=1 // pred_check
      _
    $region3: #{tpu_custom_call.1} parent=1 // pred_check_branch
      %27 = sbr.rel (0) target = $region5
    $region4: #{tpu_custom_call.1} parent=1 // pred_region
      _
    $region5: #{tpu_custom_call.1} parent=1 // pred_fallthru
      _
    // Predicated region
    $region6: #{tpu_custom_call.1} parent=1 // pred_check
      _
    $region7: #{tpu_custom_call.1} parent=1 // pred_check_branch
      %29 = sbr.rel (0) target = $region9
    $region8: #{tpu_custom_call.1} parent=1 // pred_region
      _
    $region9: #{tpu_custom_call.1} parent=1 // pred_fallthru
      _
    // Predicated region
    $region10: #{tpu_custom_call.1} parent=1 // pred_check
      _
    $region11: #{tpu_custom_call.1} parent=1 // pred_check_branch
      %31 = sbr.rel (0) target = $region13
    $region12: #{tpu_custom_call.1} parent=1 // pred_region
      _
    $region13: #{tpu_custom_call.1} parent=1 // pred_fallthru
      _
    // Predicated region
    $region14: #{tpu_custom_call.1} parent=1 // pred_check
      _
    $region15: #{tpu_custom_call.1} parent=1 // pred_check_branch
      %33 = sbr.rel (0) target = $region17
    $region16: #{tpu_custom_call.1} parent=1 // pred_region
      _
    $region17: #{tpu_custom_call.1} parent=1 // pred_fallthru
      _
    // Predicated region
    $region18: #{tpu_custom_call.1} parent=1 // pred_check
      _
    $region19: #{tpu_custom_call.1} parent=1 // pred_check_branch
      %35 = sbr.rel (0) target = $region21
    $region20: #{tpu_custom_call.1} parent=1 // pred_region
      _
    $region21: #{tpu_custom_call.1} parent=1 // pred_fallthru
      _
    // Predicated region
    $region22: #{tpu_custom_call.1} parent=1 // pred_check
      _
    $region23: #{tpu_custom_call.1} parent=1 // pred_check_branch
      %37 = sbr.rel (0) target = $region25
    $region24: #{tpu_custom_call.1} parent=1 // pred_region
      _
    $region25: #{tpu_custom_call.1} parent=1 // pred_fallthru
      _
    // Predicated region
    $region26: #{tpu_custom_call.1} parent=1 // pred_check
      _
    $region27: #{tpu_custom_call.1} parent=1 // pred_check_branch
      %39 = sbr.rel (0) target = $region29
    $region28: #{tpu_custom_call.1} parent=1 // pred_region
      _
    $region29: #{tpu_custom_call.1} parent=1 // pred_fallthru
      _
    // Predicated region
    $region30: #{tpu_custom_call.1} parent=1 // pred_check
      _
    $region31: #{tpu_custom_call.1} parent=1 // pred_check_branch
      %41 = sbr.rel (0) target = $region33
    $region32: #{tpu_custom_call.1} parent=1 // pred_region
      _
    $region33: #{tpu_custom_call.1} parent=1 // pred_fallthru
      _
    // Predicated region
    $region34: #{tpu_custom_call.1} parent=1 // pred_check
      _
    $region35: #{tpu_custom_call.1} parent=1 // pred_check_branch
      %43 = sbr.rel (0) target = $region37
    $region36: #{tpu_custom_call.1} parent=1 // pred_region
      _
    $region37: #{tpu_custom_call.1} parent=1 // pred_fallthru
      _
    // Predicated region
    $region38: #{tpu_custom_call.1} parent=1 // pred_check
      _
    $region39: #{tpu_custom_call.1} parent=1 // pred_check_branch
      %45 = sbr.rel (0) target = $region41
    $region40: #{tpu_custom_call.1} parent=1 // pred_region
      _
    $region41: #{tpu_custom_call.1} parent=1 // pred_fallthru
      _
    // Predicated region
    $region42: #{tpu_custom_call.1} parent=1 // pred_check
      _
    $region43: #{tpu_custom_call.1} parent=1 // pred_check_branch
      %47 = sbr.rel (0) target = $region45
    $region44: #{tpu_custom_call.1} parent=1 // pred_region
      _
    $region45: #{tpu_custom_call.1} parent=1 // pred_fallthru
      _
    // Predicated region
    $region46: #{tpu_custom_call.1} parent=1 // pred_check
      _
    $region47: #{tpu_custom_call.1} parent=1 // pred_check_branch
      %49 = sbr.rel (0) target = $region49
    $region48: #{tpu_custom_call.1} parent=1 // pred_region
      _
    $region49: #{tpu_custom_call.1} parent=1 // pred_fallthru
      _
    // Predicated region
    $region50: #{tpu_custom_call.1} parent=1 // pred_check
      _
    $region51: #{tpu_custom_call.1} parent=1 // pred_check_branch
      %51 = sbr.rel (0) target = $region53
    $region52: #{tpu_custom_call.1} parent=1 // pred_region
      _
    $region53: #{tpu_custom_call.1} parent=1 // pred_fallthru
      _
    // Predicated region
    $region54: #{tpu_custom_call.1} parent=1 // pred_check
      _
    $region55: #{tpu_custom_call.1} parent=1 // pred_check_branch
      %53 = sbr.rel (0) target = $region57
    $region56: #{tpu_custom_call.1} parent=1 // pred_region
      _
    $region57: #{tpu_custom_call.1} parent=1 // pred_fallthru
      _
    // Predicated region
    $region58: #{tpu_custom_call.1} parent=1 // pred_check
      _
    $region59: #{tpu_custom_call.1} parent=1 // pred_check_branch
      %55 = sbr.rel (0) target = $region61
    $region60: #{tpu_custom_call.1} parent=1 // pred_region
      _
    $region61: #{tpu_custom_call.1} parent=1 // pred_fallthru
      _
    // Predicated region
    $region62: #{tpu_custom_call.1} parent=1 // pred_check
      _
    $region63: #{tpu_custom_call.1} parent=1 // pred_check_branch
      %57 = sbr.rel (0) target = $region65
    $region64: #{tpu_custom_call.1} parent=1 // pred_region
      _
    $region65: #{tpu_custom_call.1} parent=1 // pred_fallthru
      _
    // Predicated region
    $region66: #{tpu_custom_call.1} parent=1 // pred_check
      _
    $region67: #{tpu_custom_call.1} parent=1 // pred_check_branch
      %59 = sbr.rel (0) target = $region69
    $region68: #{tpu_custom_call.1} parent=1 // pred_region
      _
    $region69: #{tpu_custom_call.1} parent=1 // pred_fallthru
      _
    // Predicated region
    $region70: #{tpu_custom_call.1} parent=1 // pred_check
      _
    $region71: #{tpu_custom_call.1} parent=1 // pred_check_branch
      %61 = sbr.rel (0) target = $region73
    $region72: #{tpu_custom_call.1} parent=1 // pred_region
      _
    $region73: #{tpu_custom_call.1} parent=1 // pred_fallthru
      _
    // Predicated region
    $region74: #{tpu_custom_call.1} parent=1 // pred_check
      _
    $region75: #{tpu_custom_call.1} parent=1 // pred_check_branch
      %63 = sbr.rel (0) target = $region77
    $region76: #{tpu_custom_call.1} parent=1 // pred_region
      _
    $region77: #{tpu_custom_call.1} parent=1 // pred_fallthru
      _
    // Predicated region
    $region78: #{tpu_custom_call.1} parent=1 // pred_check
      _
    $region79: #{tpu_custom_call.1} parent=1 // pred_check_branch
      %65 = sbr.rel (0) target = $region81
    $region80: #{tpu_custom_call.1} parent=1 // pred_region
      _
    $region81: #{tpu_custom_call.1} parent=1 // pred_fallthru
      _
    %v66 = vld [vmem:[%s0] sm:$0xff]
    %v67 = vld [vmem:[%s0 + $0x8] sm:$0xff]
    %v68 = vld [vmem:[%s0 + $0x10] sm:$0xff]
    %v69 = vld [vmem:[%s0 + $0x18] sm:$0xff]
    %v70 = vld [vmem:[%s1] sm:$0xff]
    %v71 = vld [vmem:[%s1 + $0x8] sm:$0xff]
    %v72 = vld [vmem:[%s1 + $0x10] sm:$0xff]
    %v73 = vld [vmem:[%s1 + $0x18] sm:$0xff]
    %v74 = vld [vmem:[%s1 + $0x20] sm:$0xff]
    %v75 = vld [vmem:[%s1 + $0x28] sm:$0xff]
    %vm76 = vcmask 392192
    %v78 = vsel %vm76, %v66, 0
    %v81 = vsel %vm76, %v67, 0
    %v84 = vsel %vm76, %v68, 0
    %v87 = vsel %vm76, %v69, 0
    %89 = vmatprep.subr.mxu0 0.0
    %90 = vmatpush1.msra.mxu0 0.0
    %91 = vmatprep.subr.mxu0 0.0
    %92 = vmatpush1.msra.mxu0 0.0
    %93 = vmatprep.subr.mxu0 0.0
    %94 = vmatpush1.msra.mxu0 0.0
    %95 = vmatprep.subr.mxu0 0.0
    %96 = vmatpush1.msra.mxu0 0.0
    %97 = vmatprep.subr.mxu0 0.0
    %98 = vmatpush1.msra.mxu0 0.0
    %99 = vmatprep.subr.mxu0 0.0
    %100 = vmatpush1.msra.mxu0 0.0
    %101 = vmatprep.subr.mxu0 0.0
    %102 = vmatpush1.msra.mxu0 0.0
    %103 = vmatprep.subr.mxu0 0.0
    %104 = vmatpush1.msra.mxu0 0.0
    %105 = vmatprep.subr.mxu0 0.0
    %106 = vmatpush1.msra.mxu0 0.0
    %107 = vmatprep.subr.mxu0 0.0
    %108 = vmatpush1.msra.mxu0 0.0
    %109 = vmatprep.subr.mxu0 0.0
    %110 = vmatpush1.msra.mxu0 %v75
    %111 = vmatprep.subr.mxu0 0.0
    %112 = vmatpush1.msra.mxu0 %v74
    %113 = vmatprep.subr.mxu0 0.0
    %114 = vmatpush1.msra.mxu0 %v73
    %115 = vmatprep.subr.mxu0 0.0
    %116 = vmatpush1.msra.mxu0 %v72
    %117 = vmatprep.subr.mxu0 0.0
    %118 = vmatpush1.msra.mxu0 %v71
    %119 = vmatprep.subr.mxu0 0.0
    %120 = vmatpush1.msra.mxu0 %v70
    %121 = vmatprep.subr.mxu0 0.0
    %122 = vmatpush2.msra.mxu0 0.0
    %123 = vmatprep.subr.mxu0 0.0
    %124 = vmatpush2.msra.mxu0 0.0
    %125 = vmatprep.subr.mxu0 0.0
    %126 = vmatpush2.msra.mxu0 0.0
    %127 = vmatprep.subr.mxu0 0.0
    %128 = vmatpush2.msra.mxu0 0.0
    %129 = vmatprep.subr.mxu0 0.0
    %130 = vmatpush2.msra.mxu0 0.0
    %131 = vmatprep.subr.mxu0 0.0
    %132 = vmatpush2.msra.mxu0 0.0
    %133 = vmatprep.subr.mxu0 0.0
    %134 = vmatpush2.msra.mxu0 0.0
    %135 = vmatprep.subr.mxu0 0.0
    %136 = vmatpush2.msra.mxu0 0.0
    %137 = vmatprep.subr.mxu0 0.0
    %138 = vmatpush2.msra.mxu0 0.0
    %139 = vmatprep.subr.mxu0 0.0
    %140 = vmatpush2.msra.mxu0 0.0
    %141 = vmatprep.subr.mxu0 0.0
    %142 = vmatpush2.msra.mxu0 0.0
    %143 = vmatprep.subr.mxu0 0.0
    %144 = vmatpush2.msra.mxu0 0.0
    %145 = vmatprep.subr.mxu0 0.0
    %146 = vmatpush2.msra.mxu0 0.0
    %147 = vmatprep.subr.mxu0 0.0
    %148 = vmatpush2.msra.mxu0 0.0
    %149 = vmatprep.subr.mxu0 0.0
    %150 = vmatpush2.msra.mxu0 0.0
    %151 = vmatprep.subr.mxu0 0.0
    %152 = vmatpush2.msra.mxu0 0.0
    %153 = vmatprep.mubr.f32.mxu0 0.0
    %154 = vmatmul.mubr.f32.gmra.mxu0 %v78
    %v155 = vpop.f32.mrf.mxu0
    %v156 = vadd.f32 0.0, %v155
    %v157 = vpop.f32.mrf.mxu0
    %158 = vmatprep.mubr.f32.mxu0 0.0
    %159 = vmatmul.mubr.f32.gmra.mxu0 %v81
    %v160 = vpop.f32.mrf.mxu0
    %v161 = vadd.f32 0.0, %v160
    %v162 = vpop.f32.mrf.mxu0
    %163 = vmatprep.mubr.f32.mxu0 0.0
    %164 = vmatmul.mubr.f32.gmra.mxu0 %v84
    %v165 = vpop.f32.mrf.mxu0
    %v166 = vadd.f32 0.0, %v165
    %v167 = vpop.f32.mrf.mxu0
    %168 = vmatprep.mubr.f32.mxu0 0.0
    %169 = vmatmul.mubr.f32.gmra.mxu0 %v87
    %v170 = vpop.f32.mrf.mxu0
    %v171 = vadd.f32 0.0, %v170
    %v172 = vpop.f32.mrf.mxu0
    %173 = vdwg.mxu0
    %v174 = vld [vmem:[%s2] sm:$0xff]
    %v175 = vld [vmem:[%s2 + $0x8] sm:$0xff]
    %v176 = vadd.f32 %v156, %v174
    %v177 = vadd.f32 %v161, %v175
    %v178 = vadd.f32 %v166, %v174
    %v179 = vadd.f32 %v171, %v175
    %vm180 = vcmask 261120
    %181 = vst.msk [vmem:[#allocation2] sm:$0xff] %vm180, %v176
    %182 = vst.msk [vmem:[#allocation2 + $0x8] sm:$0xff] %vm180, %v177
    %183 = vst.msk [vmem:[#allocation2 + $0x18] sm:$0xff] %vm180, %v178
    %184 = vst.msk [vmem:[#allocation2 + $0x20] sm:$0xff] %vm180, %v179
    %v185 = vld [vmem:[%s3] sm:$0xff]
    %186 = vst.msk [vmem:[#allocation2 + $0x10] sm:$0xff] %vm180, %v185
    %187 = vst.msk [vmem:[#allocation2 + $0x28] sm:$0xff] %vm180, %v185
    %v188 = vld [vmem:[#allocation2] sm:$0xff]
    %v189 = vld [vmem:[#allocation2 + $0x8] sm:$0xff]
    %v190 = vld [vmem:[#allocation2 + $0x10] sm:$0xff]
    %v191 = vld [vmem:[#allocation2 + $0x18] sm:$0xff]
    %v192 = vld [vmem:[#allocation2 + $0x20] sm:$0xff]
    %v193 = vld [vmem:[#allocation2 + $0x28] sm:$0xff]
    %v194 = vlaneseq
    %v195 = vand.u32 %v194, 127
    %vm196 = vcmp.lt.s32.totalorder %v195, 17
    %v197 = vsel %vm196, 0.0, -1e+30
    %v198 = vld [vmem:[%s4] sm:$0x1]
    %v199 = vld [vmem:[%s5] sm:$0x1]
    %v200 = vsel %vm180, %v188, 0.0
    %201 = vadd.xlane.f32.xlu0 %v200
    %v202 = vpop.xlane.xlu0 %201
    %v203 = vsel %vm180, %v189, 0.0
    %204 = vadd.xlane.f32.xlu0 %v203
    %v205 = vpop.xlane.xlu0 %204
    %v206 = vsel %vm180, %v190, 0.0
    %207 = vadd.xlane.f32.xlu0 %v206
    %v208 = vpop.xlane.xlu0 %207
    %v209 = vsel %vm180, %v191, 0.0
    %210 = vadd.xlane.f32.xlu0 %v209
    %v211 = vpop.xlane.xlu0 %210
    %v212 = vsel %vm180, %v192, 0.0
    %213 = vadd.xlane.f32.xlu0 %v212
    %v214 = vpop.xlane.xlu0 %213
    %v215 = vsel %vm180, %v193, 0.0
    %216 = vadd.xlane.f32.xlu0 %v215
    %v217 = vpop.xlane.xlu0 %216
    %v218 = vrcp.pop 32.0
    %v219 = vmul.f32 %v202, %v218
    %v220 = vmul.f32 %v205, %v218
    %v221 = vmul.f32 %v208, %v218
    %v222 = vmul.f32 %v211, %v218
    %v223 = vmul.f32 %v214, %v218
    %v224 = vmul.f32 %v217, %v218
    %v225 = vsub.f32 %v188, %v219
    %v226 = vsub.f32 %v189, %v220
    %v227 = vsub.f32 %v190, %v221
    %v228 = vsub.f32 %v191, %v222
    %v229 = vsub.f32 %v192, %v223
    %v230 = vsub.f32 %v193, %v224
    %v231 = vmul.f32 %v225, %v225
    %v232 = vmul.f32 %v226, %v226
    %v233 = vmul.f32 %v227, %v227
    %v234 = vmul.f32 %v228, %v228
    %v235 = vmul.f32 %v229, %v229
    %v236 = vmul.f32 %v230, %v230
    %v237 = vsel %vm180, %v231, 0.0
    %238 = vadd.xlane.f32.xlu0 %v237
    %v239 = vpop.xlane.xlu0 %238
    %v240 = vsel %vm180, %v232, 0.0
    %241 = vadd.xlane.f32.xlu0 %v240
    %v242 = vpop.xlane.xlu0 %241
    %v243 = vsel %vm180, %v233, 0.0
    %244 = vadd.xlane.f32.xlu0 %v243
    %v245 = vpop.xlane.xlu0 %244
    %v246 = vsel %vm180, %v234, 0.0
    %247 = vadd.xlane.f32.xlu0 %v246
    %v248 = vpop.xlane.xlu0 %247
    %v249 = vsel %vm180, %v235, 0.0
    %250 = vadd.xlane.f32.xlu0 %v249
    %v251 = vpop.xlane.xlu0 %250
    %v252 = vsel %vm180, %v236, 0.0
    %253 = vadd.xlane.f32.xlu0 %v252
    %v254 = vpop.xlane.xlu0 %253
    %v255 = vmul.f32 %v239, %v218
    %v256 = vmul.f32 %v242, %v218
    %v257 = vmul.f32 %v245, %v218
    %v258 = vmul.f32 %v248, %v218
    %v259 = vmul.f32 %v251, %v218
    %v260 = vmul.f32 %v254, %v218
    %v261 = vadd.f32 %v255, 1e-05
    %v262 = vadd.f32 %v256, 1e-05
    %v263 = vadd.f32 %v257, 1e-05
    %v264 = vadd.f32 %v258, 1e-05
    %v265 = vadd.f32 %v259, 1e-05
    %v266 = vadd.f32 %v260, 1e-05
    %v267 = vrsqrt.pop %v261
    %v268 = vrsqrt.pop %v262
    %v269 = vrsqrt.pop %v263
    %v270 = vrsqrt.pop %v264
    %v271 = vrsqrt.pop %v265
    %v272 = vrsqrt.pop %v266
    %v273 = vmul.f32 %v225, %v267
    %v274 = vmul.f32 %v226, %v268
    %v275 = vmul.f32 %v227, %v269
    %v276 = vmul.f32 %v228, %v270
    %v277 = vmul.f32 %v229, %v271
    %v278 = vmul.f32 %v230, %v272
    %v280 = vlaneseq
    %v281 = vshrl.u32 %v280, 7
    %v282 = vsub.s32 0, %v281
    %v283 = vrot.slane %v198, %v282
    %v285 = vmul.f32 %v273, %v283
    %v286 = vmul.f32 %v274, %v283
    %v287 = vmul.f32 %v275, %v283
    %v288 = vmul.f32 %v276, %v283
    %v289 = vmul.f32 %v277, %v283
    %v290 = vmul.f32 %v278, %v283
    %v292 = vlaneseq
    %v293 = vshrl.u32 %v292, 7
    %v294 = vsub.s32 0, %v293
    %v295 = vrot.slane %v199, %v294
    %v297 = vadd.f32 %v285, %v295
    %v298 = vadd.f32 %v286, %v295
    %v299 = vadd.f32 %v287, %v295
    %v300 = vadd.f32 %v288, %v295
    %v301 = vadd.f32 %v289, %v295
    %v302 = vadd.f32 %v290, %v295
    %v303 = vld [vmem:[%s6] sm:$0xff]
    %v304 = vld [vmem:[%s6 + $0x8] sm:$0xff]
    %v305 = vld [vmem:[%s6 + $0x10] sm:$0xff]
    %v306 = vld [vmem:[%s6 + $0x18] sm:$0xff]
    %v307 = vld [vmem:[%s7] sm:$0x1]
    %v309 = vlaneseq
    %v310 = vshrl.u32 %v309, 7
    %v311 = vsub.s32 0, %v310
    %v312 = vrot.slane %v307, %v311
    %v315 = vsel %vm180, %v297, 0
    %v318 = vsel %vm180, %v298, 0
    %v321 = vsel %vm180, %v299, 0
    %v324 = vsel %vm180, %v300, 0
    %v327 = vsel %vm180, %v301, 0
    %v330 = vsel %vm180, %v302, 0
    %332 = vmatprep.subr.mxu0 0.0
    %333 = vmatpush1.msra.mxu0 0.0
    %334 = vmatprep.subr.mxu0 0.0
    %335 = vmatpush1.msra.mxu0 0.0
    %336 = vmatprep.subr.mxu0 0.0
    %337 = vmatpush1.msra.mxu0 0.0
    %338 = vmatprep.subr.mxu0 0.0
    %339 = vmatpush1.msra.mxu0 0.0
    %340 = vmatprep.subr.mxu0 0.0
    %341 = vmatpush1.msra.mxu0 0.0
    %342 = vmatprep.subr.mxu0 0.0
    %343 = vmatpush1.msra.mxu0 0.0
    %344 = vmatprep.subr.mxu0 0.0
    %345 = vmatpush1.msra.mxu0 0.0
    %346 = vmatprep.subr.mxu0 0.0
    %347 = vmatpush1.msra.mxu0 0.0
    %348 = vmatprep.subr.mxu0 0.0
    %349 = vmatpush1.msra.mxu0 0.0
    %350 = vmatprep.subr.mxu0 0.0
    %351 = vmatpush1.msra.mxu0 0.0
    %352 = vmatprep.subr.mxu0 0.0
    %353 = vmatpush1.msra.mxu0 0.0
    %354 = vmatprep.subr.mxu0 0.0
    %355 = vmatpush1.msra.mxu0 0.0
    %356 = vmatprep.subr.mxu0 0.0
    %357 = vmatpush1.msra.mxu0 %v306
    %358 = vmatprep.subr.mxu0 0.0
    %359 = vmatpush1.msra.mxu0 %v305
    %360 = vmatprep.subr.mxu0 0.0
    %361 = vmatpush1.msra.mxu0 %v304
    %362 = vmatprep.subr.mxu0 0.0
    %363 = vmatpush1.msra.mxu0 %v303
    %364 = vmatprep.subr.mxu0 0.0
    %365 = vmatpush2.msra.mxu0 0.0
    %366 = vmatprep.subr.mxu0 0.0
    %367 = vmatpush2.msra.mxu0 0.0
    %368 = vmatprep.subr.mxu0 0.0
    %369 = vmatpush2.msra.mxu0 0.0
    %370 = vmatprep.subr.mxu0 0.0
    %371 = vmatpush2.msra.mxu0 0.0
    %372 = vmatprep.subr.mxu0 0.0
    %373 = vmatpush2.msra.mxu0 0.0
    %374 = vmatprep.subr.mxu0 0.0
    %375 = vmatpush2.msra.mxu0 0.0
    %376 = vmatprep.subr.mxu0 0.0
    %377 = vmatpush2.msra.mxu0 0.0
    %378 = vmatprep.subr.mxu0 0.0
    %379 = vmatpush2.msra.mxu0 0.0
    %380 = vmatprep.subr.mxu0 0.0
    %381 = vmatpush2.msra.mxu0 0.0
    %382 = vmatprep.subr.mxu0 0.0
    %383 = vmatpush2.msra.mxu0 0.0
    %384 = vmatprep.subr.mxu0 0.0
    %385 = vmatpush2.msra.mxu0 0.0
    %386 = vmatprep.subr.mxu0 0.0
    %387 = vmatpush2.msra.mxu0 0.0
    %388 = vmatprep.subr.mxu0 0.0
    %389 = vmatpush2.msra.mxu0 0.0
    %390 = vmatprep.subr.mxu0 0.0
    %391 = vmatpush2.msra.mxu0 0.0
    %392 = vmatprep.subr.mxu0 0.0
    %393 = vmatpush2.msra.mxu0 0.0
    %394 = vmatprep.subr.mxu0 0.0
    %395 = vmatpush2.msra.mxu0 0.0
    %396 = vmatprep.mubr.f32.mxu0 0.0
    %397 = vmatmul.mubr.f32.gmra.mxu0 %v315
    %v398 = vpop.f32.mrf.mxu0
    %v399 = vadd.f32 %v312, %v398
    %v400 = vpop.f32.mrf.mxu0
    %401 = vmatprep.mubr.f32.mxu0 0.0
    %402 = vmatmul.mubr.f32.gmra.mxu0 %v318
    %v403 = vpop.f32.mrf.mxu0
    %v404 = vadd.f32 %v312, %v403
    %v405 = vpop.f32.mrf.mxu0
    %406 = vmatprep.mubr.f32.mxu0 0.0
    %407 = vmatmul.mubr.f32.gmra.mxu0 %v321
    %v408 = vpop.f32.mrf.mxu0
    %v409 = vadd.f32 %v312, %v408
    %v410 = vpop.f32.mrf.mxu0
    %411 = vmatprep.mubr.f32.mxu0 0.0
    %412 = vmatmul.mubr.f32.gmra.mxu0 %v324
    %v413 = vpop.f32.mrf.mxu0
    %v414 = vadd.f32 %v312, %v413
    %v415 = vpop.f32.mrf.mxu0
    %416 = vmatprep.mubr.f32.mxu0 0.0
    %417 = vmatmul.mubr.f32.gmra.mxu0 %v327
    %v418 = vpop.f32.mrf.mxu0
    %v419 = vadd.f32 %v312, %v418
    %v420 = vpop.f32.mrf.mxu0
    %421 = vmatprep.mubr.f32.mxu0 0.0
    %422 = vmatmul.mubr.f32.gmra.mxu0 %v330
    %v423 = vpop.f32.mrf.mxu0
    %v424 = vadd.f32 %v312, %v423
    %v425 = vpop.f32.mrf.mxu0
    %426 = vdwg.mxu0
    %433 = vrot.lane.b32.xlu0 %v399, 112
    %v434 = vpop.permute.xlu0 %433
    %435 = vrot.lane.b32.xlu0 %v404, 112
    %v436 = vpop.permute.xlu0 %435
    %437 = vrot.lane.b32.xlu0 %v409, 112
    %v438 = vpop.permute.xlu0 %437
    %439 = vrot.lane.b32.xlu0 %v414, 112
    %v440 = vpop.permute.xlu0 %439
    %441 = vrot.lane.b32.xlu0 %v419, 112
    %v442 = vpop.permute.xlu0 %441
    %443 = vrot.lane.b32.xlu0 %v424, 112
    %v444 = vpop.permute.xlu0 %443
    %445 = vrot.lane.b32.xlu0 %v399, 96
    %v446 = vpop.permute.xlu0 %445
    %447 = vrot.lane.b32.xlu0 %v404, 96
    %v448 = vpop.permute.xlu0 %447
    %449 = vrot.lane.b32.xlu0 %v409, 96
    %v450 = vpop.permute.xlu0 %449
    %vm451 = vcmask 130048
    %v452 = vsel %vm451, %v399, 0
    %v454 = vsel %vm451, %v404, 0
    %v456 = vsel %vm451, %v409, 0
    %v458 = vsel %vm451, %v446, 0
    %v460 = vsel %vm451, %v448, 0
    %v462 = vsel %vm451, %v450, 0
    %464 = vmatprep.subr.mxu0 0.0
    %465 = vmatpush1.xpose.msra.mxu0 0.0
    %466 = vmatprep.subr.mxu0 0.0
    %467 = vmatpush1.xpose.msra.mxu0 0.0
    %468 = vmatprep.subr.mxu0 0.0
    %469 = vmatpush1.xpose.msra.mxu0 0.0
    %470 = vmatprep.subr.mxu0 0.0
    %471 = vmatpush1.xpose.msra.mxu0 0.0
    %472 = vmatprep.subr.mxu0 0.0
    %473 = vmatpush1.xpose.msra.mxu0 0.0
    %474 = vmatprep.subr.mxu0 0.0
    %475 = vmatpush1.xpose.msra.mxu0 0.0
    %476 = vmatprep.subr.mxu0 0.0
    %477 = vmatpush1.xpose.msra.mxu0 0.0
    %478 = vmatprep.subr.mxu0 0.0
    %479 = vmatpush1.xpose.msra.mxu0 0.0
    %480 = vmatprep.subr.mxu0 0.0
    %481 = vmatpush1.xpose.msra.mxu0 0.0
    %482 = vmatprep.subr.mxu0 0.0
    %483 = vmatpush1.xpose.msra.mxu0 0.0
    %484 = vmatprep.subr.mxu0 0.0
    %485 = vmatpush1.xpose.msra.mxu0 0.0
    %486 = vmatprep.subr.mxu0 0.0
    %487 = vmatpush1.xpose.msra.mxu0 0.0
    %488 = vmatprep.subr.mxu0 0.0
    %489 = vmatpush1.xpose.msra.mxu0 0.0
    %490 = vmatprep.subr.mxu0 0.0
    %491 = vmatpush1.xpose.msra.mxu0 %v462
    %492 = vmatprep.subr.mxu0 0.0
    %493 = vmatpush1.xpose.msra.mxu0 %v460
    %494 = vmatprep.subr.mxu0 0.0
    %495 = vmatpush1.xpose.msra.mxu0 %v458
    %496 = vmatprep.subr.mxu0 0.0
    %497 = vmatpush2.xpose.msra.mxu0 0.0
    %498 = vmatprep.subr.mxu0 0.0
    %499 = vmatpush2.xpose.msra.mxu0 0.0
    %500 = vmatprep.subr.mxu0 0.0
    %501 = vmatpush2.xpose.msra.mxu0 0.0
    %502 = vmatprep.subr.mxu0 0.0
    %503 = vmatpush2.xpose.msra.mxu0 0.0
    %504 = vmatprep.subr.mxu0 0.0
    %505 = vmatpush2.xpose.msra.mxu0 0.0
    %506 = vmatprep.subr.mxu0 0.0
    %507 = vmatpush2.xpose.msra.mxu0 0.0
    %508 = vmatprep.subr.mxu0 0.0
    %509 = vmatpush2.xpose.msra.mxu0 0.0
    %510 = vmatprep.subr.mxu0 0.0
    %511 = vmatpush2.xpose.msra.mxu0 0.0
    %512 = vmatprep.subr.mxu0 0.0
    %513 = vmatpush2.xpose.msra.mxu0 0.0
    %514 = vmatprep.subr.mxu0 0.0
    %515 = vmatpush2.xpose.msra.mxu0 0.0
    %516 = vmatprep.subr.mxu0 0.0
    %517 = vmatpush2.xpose.msra.mxu0 0.0
    %518 = vmatprep.subr.mxu0 0.0
    %519 = vmatpush2.xpose.msra.mxu0 0.0
    %520 = vmatprep.subr.mxu0 0.0
    %521 = vmatpush2.xpose.msra.mxu0 0.0
    %522 = vmatprep.subr.mxu0 0.0
    %523 = vmatpush2.xpose.msra.mxu0 0.0
    %524 = vmatprep.subr.mxu0 0.0
    %525 = vmatpush2.xpose.msra.mxu0 0.0
    %526 = vmatprep.subr.mxu0 0.0
    %527 = vmatpush2.xpose.msra.mxu0 0.0
    %528 = vmatprep.mubr.f32.mxu0 0.0
    %529 = vmatmul.mubr.f32.gmra.mxu0 %v452
    %v530 = vpop.f32.mrf.mxu0
    %v531 = vadd.f32 0.0, %v530
    %v532 = vpop.f32.mrf.mxu0
    %533 = vmatprep.mubr.f32.mxu0 0.0
    %534 = vmatmul.mubr.f32.gmra.mxu0 %v454
    %v535 = vpop.f32.mrf.mxu0
    %v536 = vadd.f32 0.0, %v535
    %v537 = vpop.f32.mrf.mxu0
    %538 = vmatprep.mubr.f32.mxu0 0.0
    %539 = vmatmul.mubr.f32.gmra.mxu0 %v456
    %v540 = vpop.f32.mrf.mxu0
    %v541 = vadd.f32 0.0, %v540
    %v542 = vpop.f32.mrf.mxu0
    %543 = vdwg.mxu0
    %544 = vrot.lane.b32.xlu0 %v414, 96
    %v545 = vpop.permute.xlu0 %544
    %546 = vrot.lane.b32.xlu0 %v419, 96
    %v547 = vpop.permute.xlu0 %546
    %548 = vrot.lane.b32.xlu0 %v424, 96
    %v549 = vpop.permute.xlu0 %548
    %v550 = vsel %vm451, %v414, 0
    %v552 = vsel %vm451, %v419, 0
    %v554 = vsel %vm451, %v424, 0
    %v556 = vsel %vm451, %v545, 0
    %v558 = vsel %vm451, %v547, 0
    %v560 = vsel %vm451, %v549, 0
    %562 = vmatprep.subr.mxu0 0.0
    %563 = vmatpush1.xpose.msra.mxu0 0.0
    %564 = vmatprep.subr.mxu0 0.0
    %565 = vmatpush1.xpose.msra.mxu0 0.0
    %566 = vmatprep.subr.mxu0 0.0
    %567 = vmatpush1.xpose.msra.mxu0 0.0
    %568 = vmatprep.subr.mxu0 0.0
    %569 = vmatpush1.xpose.msra.mxu0 0.0
    %570 = vmatprep.subr.mxu0 0.0
    %571 = vmatpush1.xpose.msra.mxu0 0.0
    %572 = vmatprep.subr.mxu0 0.0
    %573 = vmatpush1.xpose.msra.mxu0 0.0
    %574 = vmatprep.subr.mxu0 0.0
    %575 = vmatpush1.xpose.msra.mxu0 0.0
    %576 = vmatprep.subr.mxu0 0.0
    %577 = vmatpush1.xpose.msra.mxu0 0.0
    %578 = vmatprep.subr.mxu0 0.0
    %579 = vmatpush1.xpose.msra.mxu0 0.0
    %580 = vmatprep.subr.mxu0 0.0
    %581 = vmatpush1.xpose.msra.mxu0 0.0
    %582 = vmatprep.subr.mxu0 0.0
    %583 = vmatpush1.xpose.msra.mxu0 0.0
    %584 = vmatprep.subr.mxu0 0.0
    %585 = vmatpush1.xpose.msra.mxu0 0.0
    %586 = vmatprep.subr.mxu0 0.0
    %587 = vmatpush1.xpose.msra.mxu0 0.0
    %588 = vmatprep.subr.mxu0 0.0
    %589 = vmatpush1.xpose.msra.mxu0 %v560
    %590 = vmatprep.subr.mxu0 0.0
    %591 = vmatpush1.xpose.msra.mxu0 %v558
    %592 = vmatprep.subr.mxu0 0.0
    %593 = vmatpush1.xpose.msra.mxu0 %v556
    %594 = vmatprep.subr.mxu0 0.0
    %595 = vmatpush2.xpose.msra.mxu0 0.0
    %596 = vmatprep.subr.mxu0 0.0
    %597 = vmatpush2.xpose.msra.mxu0 0.0
    %598 = vmatprep.subr.mxu0 0.0
    %599 = vmatpush2.xpose.msra.mxu0 0.0
    %600 = vmatprep.subr.mxu0 0.0
    %601 = vmatpush2.xpose.msra.mxu0 0.0
    %602 = vmatprep.subr.mxu0 0.0
    %603 = vmatpush2.xpose.msra.mxu0 0.0
    %604 = vmatprep.subr.mxu0 0.0
    %605 = vmatpush2.xpose.msra.mxu0 0.0
    %606 = vmatprep.subr.mxu0 0.0
    %607 = vmatpush2.xpose.msra.mxu0 0.0
    %608 = vmatprep.subr.mxu0 0.0
    %609 = vmatpush2.xpose.msra.mxu0 0.0
    %610 = vmatprep.subr.mxu0 0.0
    %611 = vmatpush2.xpose.msra.mxu0 0.0
    %612 = vmatprep.subr.mxu0 0.0
    %613 = vmatpush2.xpose.msra.mxu0 0.0
    %614 = vmatprep.subr.mxu0 0.0
    %615 = vmatpush2.xpose.msra.mxu0 0.0
    %616 = vmatprep.subr.mxu0 0.0
    %617 = vmatpush2.xpose.msra.mxu0 0.0
    %618 = vmatprep.subr.mxu0 0.0
    %619 = vmatpush2.xpose.msra.mxu0 0.0
    %620 = vmatprep.subr.mxu0 0.0
    %621 = vmatpush2.xpose.msra.mxu0 0.0
    %622 = vmatprep.subr.mxu0 0.0
    %623 = vmatpush2.xpose.msra.mxu0 0.0
    %624 = vmatprep.subr.mxu0 0.0
    %625 = vmatpush2.xpose.msra.mxu0 0.0
    %626 = vmatprep.mubr.f32.mxu0 0.0
    %627 = vmatmul.mubr.f32.gmra.mxu0 %v550
    %v628 = vpop.f32.mrf.mxu0
    %v629 = vadd.f32 0.0, %v628
    %v630 = vpop.f32.mrf.mxu0
    %631 = vmatprep.mubr.f32.mxu0 0.0
    %632 = vmatmul.mubr.f32.gmra.mxu0 %v552
    %v633 = vpop.f32.mrf.mxu0
    %v634 = vadd.f32 0.0, %v633
    %v635 = vpop.f32.mrf.mxu0
    %636 = vmatprep.mubr.f32.mxu0 0.0
    %637 = vmatmul.mubr.f32.gmra.mxu0 %v554
    %v638 = vpop.f32.mrf.mxu0
    %v639 = vadd.f32 0.0, %v638
    %v640 = vpop.f32.mrf.mxu0
    %641 = vdwg.mxu0
    %642 = vrot.lane.b32.xlu0 %v434, 96
    %v643 = vpop.permute.xlu0 %642
    %644 = vrot.lane.b32.xlu0 %v436, 96
    %v645 = vpop.permute.xlu0 %644
    %646 = vrot.lane.b32.xlu0 %v438, 96
    %v647 = vpop.permute.xlu0 %646
    %v648 = vsel %vm451, %v434, 0
    %v650 = vsel %vm451, %v436, 0
    %v652 = vsel %vm451, %v438, 0
    %v654 = vsel %vm451, %v643, 0
    %v656 = vsel %vm451, %v645, 0
    %v658 = vsel %vm451, %v647, 0
    %660 = vmatprep.subr.mxu0 0.0
    %661 = vmatpush1.xpose.msra.mxu0 0.0
    %662 = vmatprep.subr.mxu0 0.0
    %663 = vmatpush1.xpose.msra.mxu0 0.0
    %664 = vmatprep.subr.mxu0 0.0
    %665 = vmatpush1.xpose.msra.mxu0 0.0
    %666 = vmatprep.subr.mxu0 0.0
    %667 = vmatpush1.xpose.msra.mxu0 0.0
    %668 = vmatprep.subr.mxu0 0.0
    %669 = vmatpush1.xpose.msra.mxu0 0.0
    %670 = vmatprep.subr.mxu0 0.0
    %671 = vmatpush1.xpose.msra.mxu0 0.0
    %672 = vmatprep.subr.mxu0 0.0
    %673 = vmatpush1.xpose.msra.mxu0 0.0
    %674 = vmatprep.subr.mxu0 0.0
    %675 = vmatpush1.xpose.msra.mxu0 0.0
    %676 = vmatprep.subr.mxu0 0.0
    %677 = vmatpush1.xpose.msra.mxu0 0.0
    %678 = vmatprep.subr.mxu0 0.0
    %679 = vmatpush1.xpose.msra.mxu0 0.0
    %680 = vmatprep.subr.mxu0 0.0
    %681 = vmatpush1.xpose.msra.mxu0 0.0
    %682 = vmatprep.subr.mxu0 0.0
    %683 = vmatpush1.xpose.msra.mxu0 0.0
    %684 = vmatprep.subr.mxu0 0.0
    %685 = vmatpush1.xpose.msra.mxu0 0.0
    %686 = vmatprep.subr.mxu0 0.0
    %687 = vmatpush1.xpose.msra.mxu0 %v658
    %688 = vmatprep.subr.mxu0 0.0
    %689 = vmatpush1.xpose.msra.mxu0 %v656
    %690 = vmatprep.subr.mxu0 0.0
    %691 = vmatpush1.xpose.msra.mxu0 %v654
    %692 = vmatprep.subr.mxu0 0.0
    %693 = vmatpush2.xpose.msra.mxu0 0.0
    %694 = vmatprep.subr.mxu0 0.0
    %695 = vmatpush2.xpose.msra.mxu0 0.0
    %696 = vmatprep.subr.mxu0 0.0
    %697 = vmatpush2.xpose.msra.mxu0 0.0
    %698 = vmatprep.subr.mxu0 0.0
    %699 = vmatpush2.xpose.msra.mxu0 0.0
    %700 = vmatprep.subr.mxu0 0.0
    %701 = vmatpush2.xpose.msra.mxu0 0.0
    %702 = vmatprep.subr.mxu0 0.0
    %703 = vmatpush2.xpose.msra.mxu0 0.0
    %704 = vmatprep.subr.mxu0 0.0
    %705 = vmatpush2.xpose.msra.mxu0 0.0
    %706 = vmatprep.subr.mxu0 0.0
    %707 = vmatpush2.xpose.msra.mxu0 0.0
    %708 = vmatprep.subr.mxu0 0.0
    %709 = vmatpush2.xpose.msra.mxu0 0.0
    %710 = vmatprep.subr.mxu0 0.0
    %711 = vmatpush2.xpose.msra.mxu0 0.0
    %712 = vmatprep.subr.mxu0 0.0
    %713 = vmatpush2.xpose.msra.mxu0 0.0
    %714 = vmatprep.subr.mxu0 0.0
    %715 = vmatpush2.xpose.msra.mxu0 0.0
    %716 = vmatprep.subr.mxu0 0.0
    %717 = vmatpush2.xpose.msra.mxu0 0.0
    %718 = vmatprep.subr.mxu0 0.0
    %719 = vmatpush2.xpose.msra.mxu0 0.0
    %720 = vmatprep.subr.mxu0 0.0
    %721 = vmatpush2.xpose.msra.mxu0 0.0
    %722 = vmatprep.subr.mxu0 0.0
    %723 = vmatpush2.xpose.msra.mxu0 0.0
    %724 = vmatprep.mubr.f32.mxu0 0.0
    %725 = vmatmul.mubr.f32.gmra.mxu0 %v648
    %v726 = vpop.f32.mrf.mxu0
    %v727 = vadd.f32 0.0, %v726
    %v728 = vpop.f32.mrf.mxu0
    %729 = vmatprep.mubr.f32.mxu0 0.0
    %730 = vmatmul.mubr.f32.gmra.mxu0 %v650
    %v731 = vpop.f32.mrf.mxu0
    %v732 = vadd.f32 0.0, %v731
    %v733 = vpop.f32.mrf.mxu0
    %734 = vmatprep.mubr.f32.mxu0 0.0
    %735 = vmatmul.mubr.f32.gmra.mxu0 %v652
    %v736 = vpop.f32.mrf.mxu0
    %v737 = vadd.f32 0.0, %v736
    %v738 = vpop.f32.mrf.mxu0
    %739 = vdwg.mxu0
    %740 = vrot.lane.b32.xlu0 %v440, 96
    %v741 = vpop.permute.xlu0 %740
    %742 = vrot.lane.b32.xlu0 %v442, 96
    %v743 = vpop.permute.xlu0 %742
    %744 = vrot.lane.b32.xlu0 %v444, 96
    %v745 = vpop.permute.xlu0 %744
    %v746 = vsel %vm451, %v440, 0
    %v748 = vsel %vm451, %v442, 0
    %v750 = vsel %vm451, %v444, 0
    %v752 = vsel %vm451, %v741, 0
    %v754 = vsel %vm451, %v743, 0
    %v756 = vsel %vm451, %v745, 0
    %758 = vmatprep.subr.mxu0 0.0
    %759 = vmatpush1.xpose.msra.mxu0 0.0
    %760 = vmatprep.subr.mxu0 0.0
    %761 = vmatpush1.xpose.msra.mxu0 0.0
    %762 = vmatprep.subr.mxu0 0.0
    %763 = vmatpush1.xpose.msra.mxu0 0.0
    %764 = vmatprep.subr.mxu0 0.0
    %765 = vmatpush1.xpose.msra.mxu0 0.0
    %766 = vmatprep.subr.mxu0 0.0
    %767 = vmatpush1.xpose.msra.mxu0 0.0
    %768 = vmatprep.subr.mxu0 0.0
    %769 = vmatpush1.xpose.msra.mxu0 0.0
    %770 = vmatprep.subr.mxu0 0.0
    %771 = vmatpush1.xpose.msra.mxu0 0.0
    %772 = vmatprep.subr.mxu0 0.0
    %773 = vmatpush1.xpose.msra.mxu0 0.0
    %774 = vmatprep.subr.mxu0 0.0
    %775 = vmatpush1.xpose.msra.mxu0 0.0
    %776 = vmatprep.subr.mxu0 0.0
    %777 = vmatpush1.xpose.msra.mxu0 0.0
    %778 = vmatprep.subr.mxu0 0.0
    %779 = vmatpush1.xpose.msra.mxu0 0.0
    %780 = vmatprep.subr.mxu0 0.0
    %781 = vmatpush1.xpose.msra.mxu0 0.0
    %782 = vmatprep.subr.mxu0 0.0
    %783 = vmatpush1.xpose.msra.mxu0 0.0
    %784 = vmatprep.subr.mxu0 0.0
    %785 = vmatpush1.xpose.msra.mxu0 %v756
    %786 = vmatprep.subr.mxu0 0.0
    %787 = vmatpush1.xpose.msra.mxu0 %v754
    %788 = vmatprep.subr.mxu0 0.0
    %789 = vmatpush1.xpose.msra.mxu0 %v752
    %790 = vmatprep.subr.mxu0 0.0
    %791 = vmatpush2.xpose.msra.mxu0 0.0
    %792 = vmatprep.subr.mxu0 0.0
    %793 = vmatpush2.xpose.msra.mxu0 0.0
    %794 = vmatprep.subr.mxu0 0.0
    %795 = vmatpush2.xpose.msra.mxu0 0.0
    %796 = vmatprep.subr.mxu0 0.0
    %797 = vmatpush2.xpose.msra.mxu0 0.0
    %798 = vmatprep.subr.mxu0 0.0
    %799 = vmatpush2.xpose.msra.mxu0 0.0
    %800 = vmatprep.subr.mxu0 0.0
    %801 = vmatpush2.xpose.msra.mxu0 0.0
    %802 = vmatprep.subr.mxu0 0.0
    %803 = vmatpush2.xpose.msra.mxu0 0.0
    %804 = vmatprep.subr.mxu0 0.0
    %805 = vmatpush2.xpose.msra.mxu0 0.0
    %806 = vmatprep.subr.mxu0 0.0
    %807 = vmatpush2.xpose.msra.mxu0 0.0
    %808 = vmatprep.subr.mxu0 0.0
    %809 = vmatpush2.xpose.msra.mxu0 0.0
    %810 = vmatprep.subr.mxu0 0.0
    %811 = vmatpush2.xpose.msra.mxu0 0.0
    %812 = vmatprep.subr.mxu0 0.0
    %813 = vmatpush2.xpose.msra.mxu0 0.0
    %814 = vmatprep.subr.mxu0 0.0
    %815 = vmatpush2.xpose.msra.mxu0 0.0
    %816 = vmatprep.subr.mxu0 0.0
    %817 = vmatpush2.xpose.msra.mxu0 0.0
    %818 = vmatprep.subr.mxu0 0.0
    %819 = vmatpush2.xpose.msra.mxu0 0.0
    %820 = vmatprep.subr.mxu0 0.0
    %821 = vmatpush2.xpose.msra.mxu0 0.0
    %822 = vmatprep.mubr.f32.mxu0 0.0
    %823 = vmatmul.mubr.f32.gmra.mxu0 %v746
    %v824 = vpop.f32.mrf.mxu0
    %v825 = vadd.f32 0.0, %v824
    %v826 = vpop.f32.mrf.mxu0
    %827 = vmatprep.mubr.f32.mxu0 0.0
    %828 = vmatmul.mubr.f32.gmra.mxu0 %v748
    %v829 = vpop.f32.mrf.mxu0
    %v830 = vadd.f32 0.0, %v829
    %v831 = vpop.f32.mrf.mxu0
    %832 = vmatprep.mubr.f32.mxu0 0.0
    %833 = vmatmul.mubr.f32.gmra.mxu0 %v750
    %v834 = vpop.f32.mrf.mxu0
    %v835 = vadd.f32 0.0, %v834
    %v836 = vpop.f32.mrf.mxu0
    %837 = vdwg.mxu0
    %v838 = vmul.f32 %v531, 0.25
    %v839 = vmul.f32 %v536, 0.25
    %v840 = vmul.f32 %v541, 0.25
    %v841 = vmul.f32 %v629, 0.25
    %v842 = vmul.f32 %v634, 0.25
    %v843 = vmul.f32 %v639, 0.25
    %v844 = vmul.f32 %v727, 0.25
    %v845 = vmul.f32 %v732, 0.25
    %v846 = vmul.f32 %v737, 0.25
    %v847 = vmul.f32 %v825, 0.25
    %v848 = vmul.f32 %v830, 0.25
    %v849 = vmul.f32 %v835, 0.25
    %v850 = vadd.f32 %v838, %v197
    %v851 = vadd.f32 %v839, %v197
    %v852 = vadd.f32 %v840, %v197
    %v853 = vadd.f32 %v841, %v197
    %v854 = vadd.f32 %v842, %v197
    %v855 = vadd.f32 %v843, %v197
    %v856 = vadd.f32 %v844, %v197
    %v857 = vadd.f32 %v845, %v197
    %v858 = vadd.f32 %v846, %v197
    %v859 = vadd.f32 %v847, %v197
    %v860 = vadd.f32 %v848, %v197
    %v861 = vadd.f32 %v849, %v197
    %vm862 = vcmask 195584
    %v863 = vsel %vm862, %v850, -inf
    %864 = vmax.xlane.f32.xlu0 %v863
    %v865 = vpop.xlane.xlu0 %864
    %v866 = vsel %vm862, %v851, -inf
    %867 = vmax.xlane.f32.xlu0 %v866
    %v868 = vpop.xlane.xlu0 %867
    %v869 = vsel %vm862, %v852, -inf
    %870 = vmax.xlane.f32.xlu0 %v869
    %v871 = vpop.xlane.xlu0 %870
    %v872 = vsel %vm862, %v853, -inf
    %873 = vmax.xlane.f32.xlu0 %v872
    %v874 = vpop.xlane.xlu0 %873
    %v875 = vsel %vm862, %v854, -inf
    %876 = vmax.xlane.f32.xlu0 %v875
    %v877 = vpop.xlane.xlu0 %876
    %v878 = vsel %vm862, %v855, -inf
    %879 = vmax.xlane.f32.xlu0 %v878
    %v880 = vpop.xlane.xlu0 %879
    %v881 = vsel %vm862, %v856, -inf
    %882 = vmax.xlane.f32.xlu0 %v881
    %v883 = vpop.xlane.xlu0 %882
    %v884 = vsel %vm862, %v857, -inf
    %885 = vmax.xlane.f32.xlu0 %v884
    %v886 = vpop.xlane.xlu0 %885
    %v887 = vsel %vm862, %v858, -inf
    %888 = vmax.xlane.f32.xlu0 %v887
    %v889 = vpop.xlane.xlu0 %888
    %v890 = vsel %vm862, %v859, -inf
    %891 = vmax.xlane.f32.xlu0 %v890
    %v892 = vpop.xlane.xlu0 %891
    %v893 = vsel %vm862, %v860, -inf
    %894 = vmax.xlane.f32.xlu0 %v893
    %v895 = vpop.xlane.xlu0 %894
    %v896 = vsel %vm862, %v861, -inf
    %897 = vmax.xlane.f32.xlu0 %v896
    %v898 = vpop.xlane.xlu0 %897
    %v899 = vsub.f32 %v850, %v865
    %v900 = vsub.f32 %v851, %v868
    %v901 = vsub.f32 %v852, %v871
    %v902 = vsub.f32 %v853, %v874
    %v903 = vsub.f32 %v854, %v877
    %v904 = vsub.f32 %v855, %v880
    %v905 = vsub.f32 %v856, %v883
    %v906 = vsub.f32 %v857, %v886
    %v907 = vsub.f32 %v858, %v889
    %v908 = vsub.f32 %v859, %v892
    %v909 = vsub.f32 %v860, %v895
    %v910 = vsub.f32 %v861, %v898
    %v911 = vmul.f32 %v899, 1.442695
    %v912 = vpow.pop %v911
    %v913 = vmul.f32 %v900, 1.442695
    %v914 = vpow.pop %v913
    %v915 = vmul.f32 %v901, 1.442695
    %v916 = vpow.pop %v915
    %v917 = vmul.f32 %v902, 1.442695
    %v918 = vpow.pop %v917
    %v919 = vmul.f32 %v903, 1.442695
    %v920 = vpow.pop %v919
    %v921 = vmul.f32 %v904, 1.442695
    %v922 = vpow.pop %v921
    %v923 = vmul.f32 %v905, 1.442695
    %v924 = vpow.pop %v923
    %v925 = vmul.f32 %v906, 1.442695
    %v926 = vpow.pop %v925
    %v927 = vmul.f32 %v907, 1.442695
    %v928 = vpow.pop %v927
    %v929 = vmul.f32 %v908, 1.442695
    %v930 = vpow.pop %v929
    %v931 = vmul.f32 %v909, 1.442695
    %v932 = vpow.pop %v931
    %v933 = vmul.f32 %v910, 1.442695
    %v934 = vpow.pop %v933
    %v935 = vsel %vm862, %v912, 0.0
    %936 = vadd.xlane.f32.xlu0 %v935
    %v937 = vpop.xlane.xlu0 %936
    %v938 = vsel %vm862, %v914, 0.0
    %939 = vadd.xlane.f32.xlu0 %v938
    %v940 = vpop.xlane.xlu0 %939
    %v941 = vsel %vm862, %v916, 0.0
    %942 = vadd.xlane.f32.xlu0 %v941
    %v943 = vpop.xlane.xlu0 %942
    %v944 = vsel %vm862, %v918, 0.0
    %945 = vadd.xlane.f32.xlu0 %v944
    %v946 = vpop.xlane.xlu0 %945
    %v947 = vsel %vm862, %v920, 0.0
    %948 = vadd.xlane.f32.xlu0 %v947
    %v949 = vpop.xlane.xlu0 %948
    %v950 = vsel %vm862, %v922, 0.0
    %951 = vadd.xlane.f32.xlu0 %v950
    %v952 = vpop.xlane.xlu0 %951
    %v953 = vsel %vm862, %v924, 0.0
    %954 = vadd.xlane.f32.xlu0 %v953
    %v955 = vpop.xlane.xlu0 %954
    %v956 = vsel %vm862, %v926, 0.0
    %957 = vadd.xlane.f32.xlu0 %v956
    %v958 = vpop.xlane.xlu0 %957
    %v959 = vsel %vm862, %v928, 0.0
    %960 = vadd.xlane.f32.xlu0 %v959
    %v961 = vpop.xlane.xlu0 %960
    %v962 = vsel %vm862, %v930, 0.0
    %963 = vadd.xlane.f32.xlu0 %v962
    %v964 = vpop.xlane.xlu0 %963
    %v965 = vsel %vm862, %v932, 0.0
    %966 = vadd.xlane.f32.xlu0 %v965
    %v967 = vpop.xlane.xlu0 %966
    %v968 = vsel %vm862, %v934, 0.0
    %969 = vadd.xlane.f32.xlu0 %v968
    %v970 = vpop.xlane.xlu0 %969
    %v971 = vrcp.pop %v937
    %v972 = vrcp.pop %v940
    %v973 = vrcp.pop %v943
    %v974 = vrcp.pop %v946
    %v975 = vrcp.pop %v949
    %v976 = vrcp.pop %v952
    %v977 = vrcp.pop %v955
    %v978 = vrcp.pop %v958
    %v979 = vrcp.pop %v961
    %v980 = vrcp.pop %v964
    %v981 = vrcp.pop %v967
    %v982 = vrcp.pop %v970
    %v983 = vmul.f32 %v912, %v971
    %v984 = vmul.f32 %v914, %v972
    %v985 = vmul.f32 %v916, %v973
    %v986 = vmul.f32 %v918, %v974
    %v987 = vmul.f32 %v920, %v975
    %v988 = vmul.f32 %v922, %v976
    %v989 = vmul.f32 %v924, %v977
    %v990 = vmul.f32 %v926, %v978
    %v991 = vmul.f32 %v928, %v979
    %v992 = vmul.f32 %v930, %v980
    %v993 = vmul.f32 %v932, %v981
    %v994 = vmul.f32 %v934, %v982
    %995 = vrot.lane.b32.xlu0 %v399, 64
    %v996 = vpop.permute.xlu0 %995
    %997 = vrot.lane.b32.xlu0 %v404, 64
    %v998 = vpop.permute.xlu0 %997
    %999 = vrot.lane.b32.xlu0 %v409, 64
    %v1000 = vpop.permute.xlu0 %999
    %v1005 = vsel %vm862, %v983, 0
    %v1008 = vsel %vm862, %v984, 0
    %v1011 = vsel %vm862, %v985, 0
    %1013 = vmatprep.subr.mxu0 0.0
    %1014 = vmatpush1.msra.mxu0 0.0
    %1015 = vmatprep.subr.mxu0 0.0
    %1016 = vmatpush1.msra.mxu0 0.0
    %1017 = vmatprep.subr.mxu0 0.0
    %1018 = vmatpush1.msra.mxu0 0.0
    %1019 = vmatprep.subr.mxu0 0.0
    %1020 = vmatpush1.msra.mxu0 0.0
    %1021 = vmatprep.subr.mxu0 0.0
    %1022 = vmatpush1.msra.mxu0 0.0
    %1023 = vmatprep.subr.mxu0 0.0
    %1024 = vmatpush1.msra.mxu0 0.0
    %1025 = vmatprep.subr.mxu0 0.0
    %1026 = vmatpush1.msra.mxu0 0.0
    %1027 = vmatprep.subr.mxu0 0.0
    %1028 = vmatpush1.msra.mxu0 0.0
    %1029 = vmatprep.subr.mxu0 0.0
    %1030 = vmatpush1.msra.mxu0 0.0
    %1031 = vmatprep.subr.mxu0 0.0
    %1032 = vmatpush1.msra.mxu0 0.0
    %1033 = vmatprep.subr.mxu0 0.0
    %1034 = vmatpush1.msra.mxu0 0.0
    %1035 = vmatprep.subr.mxu0 0.0
    %1036 = vmatpush1.msra.mxu0 0.0
    %1037 = vmatprep.subr.mxu0 0.0
    %1038 = vmatpush1.msra.mxu0 0.0
    %1039 = vmatprep.subr.mxu0 0.0
    %1040 = vmatpush1.msra.mxu0 %v1000
    %1041 = vmatprep.subr.mxu0 0.0
    %1042 = vmatpush1.msra.mxu0 %v998
    %1043 = vmatprep.subr.mxu0 0.0
    %1044 = vmatpush1.msra.mxu0 %v996
    %1045 = vmatprep.subr.mxu0 0.0
    %1046 = vmatpush2.msra.mxu0 0.0
    %1047 = vmatprep.subr.mxu0 0.0
    %1048 = vmatpush2.msra.mxu0 0.0
    %1049 = vmatprep.subr.mxu0 0.0
    %1050 = vmatpush2.msra.mxu0 0.0
    %1051 = vmatprep.subr.mxu0 0.0
    %1052 = vmatpush2.msra.mxu0 0.0
    %1053 = vmatprep.subr.mxu0 0.0
    %1054 = vmatpush2.msra.mxu0 0.0
    %1055 = vmatprep.subr.mxu0 0.0
    %1056 = vmatpush2.msra.mxu0 0.0
    %1057 = vmatprep.subr.mxu0 0.0
    %1058 = vmatpush2.msra.mxu0 0.0
    %1059 = vmatprep.subr.mxu0 0.0
    %1060 = vmatpush2.msra.mxu0 0.0
    %1061 = vmatprep.subr.mxu0 0.0
    %1062 = vmatpush2.msra.mxu0 0.0
    %1063 = vmatprep.subr.mxu0 0.0
    %1064 = vmatpush2.msra.mxu0 0.0
    %1065 = vmatprep.subr.mxu0 0.0
    %1066 = vmatpush2.msra.mxu0 0.0
    %1067 = vmatprep.subr.mxu0 0.0
    %1068 = vmatpush2.msra.mxu0 0.0
    %1069 = vmatprep.subr.mxu0 0.0
    %1070 = vmatpush2.msra.mxu0 0.0
    %1071 = vmatprep.subr.mxu0 0.0
    %1072 = vmatpush2.msra.mxu0 0.0
    %1073 = vmatprep.subr.mxu0 0.0
    %1074 = vmatpush2.msra.mxu0 0.0
    %1075 = vmatprep.subr.mxu0 0.0
    %1076 = vmatpush2.msra.mxu0 0.0
    %1077 = vmatprep.mubr.f32.mxu0 0.0
    %1078 = vmatmul.mubr.f32.gmra.mxu0 %v1005
    %v1079 = vpop.f32.mrf.mxu0
    %v1080 = vadd.f32 0.0, %v1079
    %v1081 = vpop.f32.mrf.mxu0
    %1082 = vmatprep.mubr.f32.mxu0 0.0
    %1083 = vmatmul.mubr.f32.gmra.mxu0 %v1008
    %v1084 = vpop.f32.mrf.mxu0
    %v1085 = vadd.f32 0.0, %v1084
    %v1086 = vpop.f32.mrf.mxu0
    %1087 = vmatprep.mubr.f32.mxu0 0.0
    %1088 = vmatmul.mubr.f32.gmra.mxu0 %v1011
    %v1089 = vpop.f32.mrf.mxu0
    %v1090 = vadd.f32 0.0, %v1089
    %v1091 = vpop.f32.mrf.mxu0
    %1092 = vdwg.mxu0
    %1093 = vrot.lane.b32.xlu0 %v414, 64
    %v1094 = vpop.permute.xlu0 %1093
    %1095 = vrot.lane.b32.xlu0 %v419, 64
    %v1096 = vpop.permute.xlu0 %1095
    %1097 = vrot.lane.b32.xlu0 %v424, 64
    %v1098 = vpop.permute.xlu0 %1097
    %v1103 = vsel %vm862, %v986, 0
    %v1106 = vsel %vm862, %v987, 0
    %v1109 = vsel %vm862, %v988, 0
    %1111 = vmatprep.subr.mxu0 0.0
    %1112 = vmatpush1.msra.mxu0 0.0
    %1113 = vmatprep.subr.mxu0 0.0
    %1114 = vmatpush1.msra.mxu0 0.0
    %1115 = vmatprep.subr.mxu0 0.0
    %1116 = vmatpush1.msra.mxu0 0.0
    %1117 = vmatprep.subr.mxu0 0.0
    %1118 = vmatpush1.msra.mxu0 0.0
    %1119 = vmatprep.subr.mxu0 0.0
    %1120 = vmatpush1.msra.mxu0 0.0
    %1121 = vmatprep.subr.mxu0 0.0
    %1122 = vmatpush1.msra.mxu0 0.0
    %1123 = vmatprep.subr.mxu0 0.0
    %1124 = vmatpush1.msra.mxu0 0.0
    %1125 = vmatprep.subr.mxu0 0.0
    %1126 = vmatpush1.msra.mxu0 0.0
    %1127 = vmatprep.subr.mxu0 0.0
    %1128 = vmatpush1.msra.mxu0 0.0
    %1129 = vmatprep.subr.mxu0 0.0
    %1130 = vmatpush1.msra.mxu0 0.0
    %1131 = vmatprep.subr.mxu0 0.0
    %1132 = vmatpush1.msra.mxu0 0.0
    %1133 = vmatprep.subr.mxu0 0.0
    %1134 = vmatpush1.msra.mxu0 0.0
    %1135 = vmatprep.subr.mxu0 0.0
    %1136 = vmatpush1.msra.mxu0 0.0
    %1137 = vmatprep.subr.mxu0 0.0
    %1138 = vmatpush1.msra.mxu0 %v1098
    %1139 = vmatprep.subr.mxu0 0.0
    %1140 = vmatpush1.msra.mxu0 %v1096
    %1141 = vmatprep.subr.mxu0 0.0
    %1142 = vmatpush1.msra.mxu0 %v1094
    %1143 = vmatprep.subr.mxu0 0.0
    %1144 = vmatpush2.msra.mxu0 0.0
    %1145 = vmatprep.subr.mxu0 0.0
    %1146 = vmatpush2.msra.mxu0 0.0
    %1147 = vmatprep.subr.mxu0 0.0
    %1148 = vmatpush2.msra.mxu0 0.0
    %1149 = vmatprep.subr.mxu0 0.0
    %1150 = vmatpush2.msra.mxu0 0.0
    %1151 = vmatprep.subr.mxu0 0.0
    %1152 = vmatpush2.msra.mxu0 0.0
    %1153 = vmatprep.subr.mxu0 0.0
    %1154 = vmatpush2.msra.mxu0 0.0
    %1155 = vmatprep.subr.mxu0 0.0
    %1156 = vmatpush2.msra.mxu0 0.0
    %1157 = vmatprep.subr.mxu0 0.0
    %1158 = vmatpush2.msra.mxu0 0.0
    %1159 = vmatprep.subr.mxu0 0.0
    %1160 = vmatpush2.msra.mxu0 0.0
    %1161 = vmatprep.subr.mxu0 0.0
    %1162 = vmatpush2.msra.mxu0 0.0
    %1163 = vmatprep.subr.mxu0 0.0
    %1164 = vmatpush2.msra.mxu0 0.0
    %1165 = vmatprep.subr.mxu0 0.0
    %1166 = vmatpush2.msra.mxu0 0.0
    %1167 = vmatprep.subr.mxu0 0.0
    %1168 = vmatpush2.msra.mxu0 0.0
    %1169 = vmatprep.subr.mxu0 0.0
    %1170 = vmatpush2.msra.mxu0 0.0
    %1171 = vmatprep.subr.mxu0 0.0
    %1172 = vmatpush2.msra.mxu0 0.0
    %1173 = vmatprep.subr.mxu0 0.0
    %1174 = vmatpush2.msra.mxu0 0.0
    %1175 = vmatprep.mubr.f32.mxu0 0.0
    %1176 = vmatmul.mubr.f32.gmra.mxu0 %v1103
    %v1177 = vpop.f32.mrf.mxu0
    %v1178 = vadd.f32 0.0, %v1177
    %v1179 = vpop.f32.mrf.mxu0
    %1180 = vmatprep.mubr.f32.mxu0 0.0
    %1181 = vmatmul.mubr.f32.gmra.mxu0 %v1106
    %v1182 = vpop.f32.mrf.mxu0
    %v1183 = vadd.f32 0.0, %v1182
    %v1184 = vpop.f32.mrf.mxu0
    %1185 = vmatprep.mubr.f32.mxu0 0.0
    %1186 = vmatmul.mubr.f32.gmra.mxu0 %v1109
    %v1187 = vpop.f32.mrf.mxu0
    %v1188 = vadd.f32 0.0, %v1187
    %v1189 = vpop.f32.mrf.mxu0
    %1190 = vdwg.mxu0
    %1191 = vrot.lane.b32.xlu0 %v434, 64
    %v1192 = vpop.permute.xlu0 %1191
    %1193 = vrot.lane.b32.xlu0 %v436, 64
    %v1194 = vpop.permute.xlu0 %1193
    %1195 = vrot.lane.b32.xlu0 %v438, 64
    %v1196 = vpop.permute.xlu0 %1195
    %v1201 = vsel %vm862, %v989, 0
    %v1204 = vsel %vm862, %v990, 0
    %v1207 = vsel %vm862, %v991, 0
    %1209 = vmatprep.subr.mxu0 0.0
    %1210 = vmatpush1.msra.mxu0 0.0
    %1211 = vmatprep.subr.mxu0 0.0
    %1212 = vmatpush1.msra.mxu0 0.0
    %1213 = vmatprep.subr.mxu0 0.0
    %1214 = vmatpush1.msra.mxu0 0.0
    %1215 = vmatprep.subr.mxu0 0.0
    %1216 = vmatpush1.msra.mxu0 0.0
    %1217 = vmatprep.subr.mxu0 0.0
    %1218 = vmatpush1.msra.mxu0 0.0
    %1219 = vmatprep.subr.mxu0 0.0
    %1220 = vmatpush1.msra.mxu0 0.0
    %1221 = vmatprep.subr.mxu0 0.0
    %1222 = vmatpush1.msra.mxu0 0.0
    %1223 = vmatprep.subr.mxu0 0.0
    %1224 = vmatpush1.msra.mxu0 0.0
    %1225 = vmatprep.subr.mxu0 0.0
    %1226 = vmatpush1.msra.mxu0 0.0
    %1227 = vmatprep.subr.mxu0 0.0
    %1228 = vmatpush1.msra.mxu0 0.0
    %1229 = vmatprep.subr.mxu0 0.0
    %1230 = vmatpush1.msra.mxu0 0.0
    %1231 = vmatprep.subr.mxu0 0.0
    %1232 = vmatpush1.msra.mxu0 0.0
    %1233 = vmatprep.subr.mxu0 0.0
    %1234 = vmatpush1.msra.mxu0 0.0
    %1235 = vmatprep.subr.mxu0 0.0
    %1236 = vmatpush1.msra.mxu0 %v1196
    %1237 = vmatprep.subr.mxu0 0.0
    %1238 = vmatpush1.msra.mxu0 %v1194
    %1239 = vmatprep.subr.mxu0 0.0
    %1240 = vmatpush1.msra.mxu0 %v1192
    %1241 = vmatprep.subr.mxu0 0.0
    %1242 = vmatpush2.msra.mxu0 0.0
    %1243 = vmatprep.subr.mxu0 0.0
    %1244 = vmatpush2.msra.mxu0 0.0
    %1245 = vmatprep.subr.mxu0 0.0
    %1246 = vmatpush2.msra.mxu0 0.0
    %1247 = vmatprep.subr.mxu0 0.0
    %1248 = vmatpush2.msra.mxu0 0.0
    %1249 = vmatprep.subr.mxu0 0.0
    %1250 = vmatpush2.msra.mxu0 0.0
    %1251 = vmatprep.subr.mxu0 0.0
    %1252 = vmatpush2.msra.mxu0 0.0
    %1253 = vmatprep.subr.mxu0 0.0
    %1254 = vmatpush2.msra.mxu0 0.0
    %1255 = vmatprep.subr.mxu0 0.0
    %1256 = vmatpush2.msra.mxu0 0.0
    %1257 = vmatprep.subr.mxu0 0.0
    %1258 = vmatpush2.msra.mxu0 0.0
    %1259 = vmatprep.subr.mxu0 0.0
    %1260 = vmatpush2.msra.mxu0 0.0
    %1261 = vmatprep.subr.mxu0 0.0
    %1262 = vmatpush2.msra.mxu0 0.0
    %1263 = vmatprep.subr.mxu0 0.0
    %1264 = vmatpush2.msra.mxu0 0.0
    %1265 = vmatprep.subr.mxu0 0.0
    %1266 = vmatpush2.msra.mxu0 0.0
    %1267 = vmatprep.subr.mxu0 0.0
    %1268 = vmatpush2.msra.mxu0 0.0
    %1269 = vmatprep.subr.mxu0 0.0
    %1270 = vmatpush2.msra.mxu0 0.0
    %1271 = vmatprep.subr.mxu0 0.0
    %1272 = vmatpush2.msra.mxu0 0.0
    %1273 = vmatprep.mubr.f32.mxu0 0.0
    %1274 = vmatmul.mubr.f32.gmra.mxu0 %v1201
    %v1275 = vpop.f32.mrf.mxu0
    %v1276 = vadd.f32 0.0, %v1275
    %v1277 = vpop.f32.mrf.mxu0
    %1278 = vmatprep.mubr.f32.mxu0 0.0
    %1279 = vmatmul.mubr.f32.gmra.mxu0 %v1204
    %v1280 = vpop.f32.mrf.mxu0
    %v1281 = vadd.f32 0.0, %v1280
    %v1282 = vpop.f32.mrf.mxu0
    %1283 = vmatprep.mubr.f32.mxu0 0.0
    %1284 = vmatmul.mubr.f32.gmra.mxu0 %v1207
    %v1285 = vpop.f32.mrf.mxu0
    %v1286 = vadd.f32 0.0, %v1285
    %v1287 = vpop.f32.mrf.mxu0
    %1288 = vdwg.mxu0
    %1289 = vrot.lane.b32.xlu0 %v440, 64
    %v1290 = vpop.permute.xlu0 %1289
    %1291 = vrot.lane.b32.xlu0 %v442, 64
    %v1292 = vpop.permute.xlu0 %1291
    %1293 = vrot.lane.b32.xlu0 %v444, 64
    %v1294 = vpop.permute.xlu0 %1293
    %v1299 = vsel %vm862, %v992, 0
    %v1302 = vsel %vm862, %v993, 0
    %v1305 = vsel %vm862, %v994, 0
    %1307 = vmatprep.subr.mxu0 0.0
    %1308 = vmatpush1.msra.mxu0 0.0
    %1309 = vmatprep.subr.mxu0 0.0
    %1310 = vmatpush1.msra.mxu0 0.0
    %1311 = vmatprep.subr.mxu0 0.0
    %1312 = vmatpush1.msra.mxu0 0.0
    %1313 = vmatprep.subr.mxu0 0.0
    %1314 = vmatpush1.msra.mxu0 0.0
    %1315 = vmatprep.subr.mxu0 0.0
    %1316 = vmatpush1.msra.mxu0 0.0
    %1317 = vmatprep.subr.mxu0 0.0
    %1318 = vmatpush1.msra.mxu0 0.0
    %1319 = vmatprep.subr.mxu0 0.0
    %1320 = vmatpush1.msra.mxu0 0.0
    %1321 = vmatprep.subr.mxu0 0.0
    %1322 = vmatpush1.msra.mxu0 0.0
    %1323 = vmatprep.subr.mxu0 0.0
    %1324 = vmatpush1.msra.mxu0 0.0
    %1325 = vmatprep.subr.mxu0 0.0
    %1326 = vmatpush1.msra.mxu0 0.0
    %1327 = vmatprep.subr.mxu0 0.0
    %1328 = vmatpush1.msra.mxu0 0.0
    %1329 = vmatprep.subr.mxu0 0.0
    %1330 = vmatpush1.msra.mxu0 0.0
    %1331 = vmatprep.subr.mxu0 0.0
    %1332 = vmatpush1.msra.mxu0 0.0
    %1333 = vmatprep.subr.mxu0 0.0
    %1334 = vmatpush1.msra.mxu0 %v1294
    %1335 = vmatprep.subr.mxu0 0.0
    %1336 = vmatpush1.msra.mxu0 %v1292
    %1337 = vmatprep.subr.mxu0 0.0
    %1338 = vmatpush1.msra.mxu0 %v1290
    %1339 = vmatprep.subr.mxu0 0.0
    %1340 = vmatpush2.msra.mxu0 0.0
    %1341 = vmatprep.subr.mxu0 0.0
    %1342 = vmatpush2.msra.mxu0 0.0
    %1343 = vmatprep.subr.mxu0 0.0
    %1344 = vmatpush2.msra.mxu0 0.0
    %1345 = vmatprep.subr.mxu0 0.0
    %1346 = vmatpush2.msra.mxu0 0.0
    %1347 = vmatprep.subr.mxu0 0.0
    %1348 = vmatpush2.msra.mxu0 0.0
    %1349 = vmatprep.subr.mxu0 0.0
    %1350 = vmatpush2.msra.mxu0 0.0
    %1351 = vmatprep.subr.mxu0 0.0
    %1352 = vmatpush2.msra.mxu0 0.0
    %1353 = vmatprep.subr.mxu0 0.0
    %1354 = vmatpush2.msra.mxu0 0.0
    %1355 = vmatprep.subr.mxu0 0.0
    %1356 = vmatpush2.msra.mxu0 0.0
    %1357 = vmatprep.subr.mxu0 0.0
    %1358 = vmatpush2.msra.mxu0 0.0
    %1359 = vmatprep.subr.mxu0 0.0
    %1360 = vmatpush2.msra.mxu0 0.0
    %1361 = vmatprep.subr.mxu0 0.0
    %1362 = vmatpush2.msra.mxu0 0.0
    %1363 = vmatprep.subr.mxu0 0.0
    %1364 = vmatpush2.msra.mxu0 0.0
    %1365 = vmatprep.subr.mxu0 0.0
    %1366 = vmatpush2.msra.mxu0 0.0
    %1367 = vmatprep.subr.mxu0 0.0
    %1368 = vmatpush2.msra.mxu0 0.0
    %1369 = vmatprep.subr.mxu0 0.0
    %1370 = vmatpush2.msra.mxu0 0.0
    %1371 = vmatprep.mubr.f32.mxu0 0.0
    %1372 = vmatmul.mubr.f32.gmra.mxu0 %v1299
    %v1373 = vpop.f32.mrf.mxu0
    %v1374 = vadd.f32 0.0, %v1373
    %v1375 = vpop.f32.mrf.mxu0
    %1376 = vmatprep.mubr.f32.mxu0 0.0
    %1377 = vmatmul.mubr.f32.gmra.mxu0 %v1302
    %v1378 = vpop.f32.mrf.mxu0
    %v1379 = vadd.f32 0.0, %v1378
    %v1380 = vpop.f32.mrf.mxu0
    %1381 = vmatprep.mubr.f32.mxu0 0.0
    %1382 = vmatmul.mubr.f32.gmra.mxu0 %v1305
    %v1383 = vpop.f32.mrf.mxu0
    %v1384 = vadd.f32 0.0, %v1383
    %v1385 = vpop.f32.mrf.mxu0
    %1386 = vdwg.mxu0
    %1393 = vrot.lane.b32.xlu0 %v1276, 16
    %v1394 = vpop.permute.xlu0 %1393
    %1395 = vrot.lane.b32.xlu0 %v1281, 16
    %v1396 = vpop.permute.xlu0 %1395
    %1397 = vrot.lane.b32.xlu0 %v1286, 16
    %v1398 = vpop.permute.xlu0 %1397
    %1399 = vrot.lane.b32.xlu0 %v1374, 16
    %v1400 = vpop.permute.xlu0 %1399
    %1401 = vrot.lane.b32.xlu0 %v1379, 16
    %v1402 = vpop.permute.xlu0 %1401
    %1403 = vrot.lane.b32.xlu0 %v1384, 16
    %v1404 = vpop.permute.xlu0 %1403
    %v1411 = vsel %vm451, %v1080, %v1394
    %v1412 = vsel %vm451, %v1085, %v1396
    %v1413 = vsel %vm451, %v1090, %v1398
    %v1414 = vsel %vm451, %v1178, %v1400
    %v1415 = vsel %vm451, %v1183, %v1402
    %v1416 = vsel %vm451, %v1188, %v1404
    %v1417 = vld [vmem:[%s8] sm:$0xff]
    %v1418 = vld [vmem:[%s8 + $0x8] sm:$0xff]
    %v1419 = vld [vmem:[%s8 + $0x10] sm:$0xff]
    %v1420 = vld [vmem:[%s8 + $0x18] sm:$0xff]
    %v1421 = vld [vmem:[%s9] sm:$0x1]
    %v1423 = vlaneseq
    %v1424 = vshrl.u32 %v1423, 7
    %v1425 = vsub.s32 0, %v1424
    %v1426 = vrot.slane %v1421, %v1425
    %v1429 = vsel %vm180, %v1411, 0
    %v1432 = vsel %vm180, %v1412, 0
    %v1435 = vsel %vm180, %v1413, 0
    %v1438 = vsel %vm180, %v1414, 0
    %v1441 = vsel %vm180, %v1415, 0
    %v1444 = vsel %vm180, %v1416, 0
    %1446 = vmatprep.subr.mxu0 0.0
    %1447 = vmatpush1.msra.mxu0 0.0
    %1448 = vmatprep.subr.mxu0 0.0
    %1449 = vmatpush1.msra.mxu0 0.0
    %1450 = vmatprep.subr.mxu0 0.0
    %1451 = vmatpush1.msra.mxu0 0.0
    %1452 = vmatprep.subr.mxu0 0.0
    %1453 = vmatpush1.msra.mxu0 0.0
    %1454 = vmatprep.subr.mxu0 0.0
    %1455 = vmatpush1.msra.mxu0 0.0
    %1456 = vmatprep.subr.mxu0 0.0
    %1457 = vmatpush1.msra.mxu0 0.0
    %1458 = vmatprep.subr.mxu0 0.0
    %1459 = vmatpush1.msra.mxu0 0.0
    %1460 = vmatprep.subr.mxu0 0.0
    %1461 = vmatpush1.msra.mxu0 0.0
    %1462 = vmatprep.subr.mxu0 0.0
    %1463 = vmatpush1.msra.mxu0 0.0
    %1464 = vmatprep.subr.mxu0 0.0
    %1465 = vmatpush1.msra.mxu0 0.0
    %1466 = vmatprep.subr.mxu0 0.0
    %1467 = vmatpush1.msra.mxu0 0.0
    %1468 = vmatprep.subr.mxu0 0.0
    %1469 = vmatpush1.msra.mxu0 0.0
    %1470 = vmatprep.subr.mxu0 0.0
    %1471 = vmatpush1.msra.mxu0 %v1420
    %1472 = vmatprep.subr.mxu0 0.0
    %1473 = vmatpush1.msra.mxu0 %v1419
    %1474 = vmatprep.subr.mxu0 0.0
    %1475 = vmatpush1.msra.mxu0 %v1418
    %1476 = vmatprep.subr.mxu0 0.0
    %1477 = vmatpush1.msra.mxu0 %v1417
    %1478 = vmatprep.subr.mxu0 0.0
    %1479 = vmatpush2.msra.mxu0 0.0
    %1480 = vmatprep.subr.mxu0 0.0
    %1481 = vmatpush2.msra.mxu0 0.0
    %1482 = vmatprep.subr.mxu0 0.0
    %1483 = vmatpush2.msra.mxu0 0.0
    %1484 = vmatprep.subr.mxu0 0.0
    %1485 = vmatpush2.msra.mxu0 0.0
    %1486 = vmatprep.subr.mxu0 0.0
    %1487 = vmatpush2.msra.mxu0 0.0
    %1488 = vmatprep.subr.mxu0 0.0
    %1489 = vmatpush2.msra.mxu0 0.0
    %1490 = vmatprep.subr.mxu0 0.0
    %1491 = vmatpush2.msra.mxu0 0.0
    %1492 = vmatprep.subr.mxu0 0.0
    %1493 = vmatpush2.msra.mxu0 0.0
    %1494 = vmatprep.subr.mxu0 0.0
    %1495 = vmatpush2.msra.mxu0 0.0
    %1496 = vmatprep.subr.mxu0 0.0
    %1497 = vmatpush2.msra.mxu0 0.0
    %1498 = vmatprep.subr.mxu0 0.0
    %1499 = vmatpush2.msra.mxu0 0.0
    %1500 = vmatprep.subr.mxu0 0.0
    %1501 = vmatpush2.msra.mxu0 0.0
    %1502 = vmatprep.subr.mxu0 0.0
    %1503 = vmatpush2.msra.mxu0 0.0
    %1504 = vmatprep.subr.mxu0 0.0
    %1505 = vmatpush2.msra.mxu0 0.0
    %1506 = vmatprep.subr.mxu0 0.0
    %1507 = vmatpush2.msra.mxu0 0.0
    %1508 = vmatprep.subr.mxu0 0.0
    %1509 = vmatpush2.msra.mxu0 0.0
    %1510 = vmatprep.mubr.f32.mxu0 0.0
    %1511 = vmatmul.mubr.f32.gmra.mxu0 %v1429
    %v1512 = vpop.f32.mrf.mxu0
    %v1513 = vadd.f32 %v1426, %v1512
    %v1514 = vpop.f32.mrf.mxu0
    %1515 = vmatprep.mubr.f32.mxu0 0.0
    %1516 = vmatmul.mubr.f32.gmra.mxu0 %v1432
    %v1517 = vpop.f32.mrf.mxu0
    %v1518 = vadd.f32 %v1426, %v1517
    %v1519 = vpop.f32.mrf.mxu0
    %1520 = vmatprep.mubr.f32.mxu0 0.0
    %1521 = vmatmul.mubr.f32.gmra.mxu0 %v1435
    %v1522 = vpop.f32.mrf.mxu0
    %v1523 = vadd.f32 %v1426, %v1522
    %v1524 = vpop.f32.mrf.mxu0
    %1525 = vmatprep.mubr.f32.mxu0 0.0
    %1526 = vmatmul.mubr.f32.gmra.mxu0 %v1438
    %v1527 = vpop.f32.mrf.mxu0
    %v1528 = vadd.f32 %v1426, %v1527
    %v1529 = vpop.f32.mrf.mxu0
    %1530 = vmatprep.mubr.f32.mxu0 0.0
    %1531 = vmatmul.mubr.f32.gmra.mxu0 %v1441
    %v1532 = vpop.f32.mrf.mxu0
    %v1533 = vadd.f32 %v1426, %v1532
    %v1534 = vpop.f32.mrf.mxu0
    %1535 = vmatprep.mubr.f32.mxu0 0.0
    %1536 = vmatmul.mubr.f32.gmra.mxu0 %v1444
    %v1537 = vpop.f32.mrf.mxu0
    %v1538 = vadd.f32 %v1426, %v1537
    %v1539 = vpop.f32.mrf.mxu0
    %1540 = vdwg.mxu0
    %v1541 = vadd.f32 %v188, %v1513
    %v1542 = vadd.f32 %v189, %v1518
    %v1543 = vadd.f32 %v190, %v1523
    %v1544 = vadd.f32 %v191, %v1528
    %v1545 = vadd.f32 %v192, %v1533
    %v1546 = vadd.f32 %v193, %v1538
    %v1547 = vld [vmem:[%s10] sm:$0x1]
    %v1548 = vld [vmem:[%s11] sm:$0x1]
    %v1549 = vsel %vm180, %v1541, 0.0
    %1550 = vadd.xlane.f32.xlu0 %v1549
    %v1551 = vpop.xlane.xlu0 %1550
    %v1552 = vsel %vm180, %v1542, 0.0
    %1553 = vadd.xlane.f32.xlu0 %v1552
    %v1554 = vpop.xlane.xlu0 %1553
    %v1555 = vsel %vm180, %v1543, 0.0
    %1556 = vadd.xlane.f32.xlu0 %v1555
    %v1557 = vpop.xlane.xlu0 %1556
    %v1558 = vsel %vm180, %v1544, 0.0
    %1559 = vadd.xlane.f32.xlu0 %v1558
    %v1560 = vpop.xlane.xlu0 %1559
    %v1561 = vsel %vm180, %v1545, 0.0
    %1562 = vadd.xlane.f32.xlu0 %v1561
    %v1563 = vpop.xlane.xlu0 %1562
    %v1564 = vsel %vm180, %v1546, 0.0
    %1565 = vadd.xlane.f32.xlu0 %v1564
    %v1566 = vpop.xlane.xlu0 %1565
    %v1567 = vmul.f32 %v1551, %v218
    %v1568 = vmul.f32 %v1554, %v218
    %v1569 = vmul.f32 %v1557, %v218
    %v1570 = vmul.f32 %v1560, %v218
    %v1571 = vmul.f32 %v1563, %v218
    %v1572 = vmul.f32 %v1566, %v218
    %v1573 = vsub.f32 %v1541, %v1567
    %v1574 = vsub.f32 %v1542, %v1568
    %v1575 = vsub.f32 %v1543, %v1569
    %v1576 = vsub.f32 %v1544, %v1570
    %v1577 = vsub.f32 %v1545, %v1571
    %v1578 = vsub.f32 %v1546, %v1572
    %v1579 = vmul.f32 %v1573, %v1573
    %v1580 = vmul.f32 %v1574, %v1574
    %v1581 = vmul.f32 %v1575, %v1575
    %v1582 = vmul.f32 %v1576, %v1576
    %v1583 = vmul.f32 %v1577, %v1577
    %v1584 = vmul.f32 %v1578, %v1578
    %v1585 = vsel %vm180, %v1579, 0.0
    %1586 = vadd.xlane.f32.xlu0 %v1585
    %v1587 = vpop.xlane.xlu0 %1586
    %v1588 = vsel %vm180, %v1580, 0.0
    %1589 = vadd.xlane.f32.xlu0 %v1588
    %v1590 = vpop.xlane.xlu0 %1589
    %v1591 = vsel %vm180, %v1581, 0.0
    %1592 = vadd.xlane.f32.xlu0 %v1591
    %v1593 = vpop.xlane.xlu0 %1592
    %v1594 = vsel %vm180, %v1582, 0.0
    %1595 = vadd.xlane.f32.xlu0 %v1594
    %v1596 = vpop.xlane.xlu0 %1595
    %v1597 = vsel %vm180, %v1583, 0.0
    %1598 = vadd.xlane.f32.xlu0 %v1597
    %v1599 = vpop.xlane.xlu0 %1598
    %v1600 = vsel %vm180, %v1584, 0.0
    %1601 = vadd.xlane.f32.xlu0 %v1600
    %v1602 = vpop.xlane.xlu0 %1601
    %v1603 = vmul.f32 %v1587, %v218
    %v1604 = vmul.f32 %v1590, %v218
    %v1605 = vmul.f32 %v1593, %v218
    %v1606 = vmul.f32 %v1596, %v218
    %v1607 = vmul.f32 %v1599, %v218
    %v1608 = vmul.f32 %v1602, %v218
    %v1609 = vadd.f32 %v1603, 1e-05
    %v1610 = vadd.f32 %v1604, 1e-05
    %v1611 = vadd.f32 %v1605, 1e-05
    %v1612 = vadd.f32 %v1606, 1e-05
    %v1613 = vadd.f32 %v1607, 1e-05
    %v1614 = vadd.f32 %v1608, 1e-05
    %v1615 = vrsqrt.pop %v1609
    %v1616 = vrsqrt.pop %v1610
    %v1617 = vrsqrt.pop %v1611
    %v1618 = vrsqrt.pop %v1612
    %v1619 = vrsqrt.pop %v1613
    %v1620 = vrsqrt.pop %v1614
    %v1621 = vmul.f32 %v1573, %v1615
    %v1622 = vmul.f32 %v1574, %v1616
    %v1623 = vmul.f32 %v1575, %v1617
    %v1624 = vmul.f32 %v1576, %v1618
    %v1625 = vmul.f32 %v1577, %v1619
    %v1626 = vmul.f32 %v1578, %v1620
    %v1628 = vlaneseq
    %v1629 = vshrl.u32 %v1628, 7
    %v1630 = vsub.s32 0, %v1629
    %v1631 = vrot.slane %v1547, %v1630
    %v1633 = vmul.f32 %v1621, %v1631
    %v1634 = vmul.f32 %v1622, %v1631
    %v1635 = vmul.f32 %v1623, %v1631
    %v1636 = vmul.f32 %v1624, %v1631
    %v1637 = vmul.f32 %v1625, %v1631
    %v1638 = vmul.f32 %v1626, %v1631
    %v1640 = vlaneseq
    %v1641 = vshrl.u32 %v1640, 7
    %v1642 = vsub.s32 0, %v1641
    %v1643 = vrot.slane %v1548, %v1642
    %v1645 = vadd.f32 %v1633, %v1643
    %v1646 = vadd.f32 %v1634, %v1643
    %v1647 = vadd.f32 %v1635, %v1643
    %v1648 = vadd.f32 %v1636, %v1643
    %v1649 = vadd.f32 %v1637, %v1643
    %v1650 = vadd.f32 %v1638, %v1643
    %v1651 = vld [vmem:[%s12] sm:$0xff]
    %v1652 = vld [vmem:[%s12 + $0x8] sm:$0xff]
    %v1653 = vld [vmem:[%s12 + $0x10] sm:$0xff]
    %v1654 = vld [vmem:[%s12 + $0x18] sm:$0xff]
    %v1655 = vld [vmem:[%s13] sm:$0x1]
    %v1657 = vlaneseq
    %v1658 = vshrl.u32 %v1657, 7
    %v1659 = vsub.s32 0, %v1658
    %v1660 = vrot.slane %v1655, %v1659
    %v1663 = vsel %vm180, %v1645, 0
    %v1666 = vsel %vm180, %v1646, 0
    %v1669 = vsel %vm180, %v1647, 0
    %v1672 = vsel %vm180, %v1648, 0
    %v1675 = vsel %vm180, %v1649, 0
    %v1678 = vsel %vm180, %v1650, 0
    %1680 = vmatprep.subr.mxu0 0.0
    %1681 = vmatpush1.msra.mxu0 0.0
    %1682 = vmatprep.subr.mxu0 0.0
    %1683 = vmatpush1.msra.mxu0 0.0
    %1684 = vmatprep.subr.mxu0 0.0
    %1685 = vmatpush1.msra.mxu0 0.0
    %1686 = vmatprep.subr.mxu0 0.0
    %1687 = vmatpush1.msra.mxu0 0.0
    %1688 = vmatprep.subr.mxu0 0.0
    %1689 = vmatpush1.msra.mxu0 0.0
    %1690 = vmatprep.subr.mxu0 0.0
    %1691 = vmatpush1.msra.mxu0 0.0
    %1692 = vmatprep.subr.mxu0 0.0
    %1693 = vmatpush1.msra.mxu0 0.0
    %1694 = vmatprep.subr.mxu0 0.0
    %1695 = vmatpush1.msra.mxu0 0.0
    %1696 = vmatprep.subr.mxu0 0.0
    %1697 = vmatpush1.msra.mxu0 0.0
    %1698 = vmatprep.subr.mxu0 0.0
    %1699 = vmatpush1.msra.mxu0 0.0
    %1700 = vmatprep.subr.mxu0 0.0
    %1701 = vmatpush1.msra.mxu0 0.0
    %1702 = vmatprep.subr.mxu0 0.0
    %1703 = vmatpush1.msra.mxu0 0.0
    %1704 = vmatprep.subr.mxu0 0.0
    %1705 = vmatpush1.msra.mxu0 %v1654
    %1706 = vmatprep.subr.mxu0 0.0
    %1707 = vmatpush1.msra.mxu0 %v1653
    %1708 = vmatprep.subr.mxu0 0.0
    %1709 = vmatpush1.msra.mxu0 %v1652
    %1710 = vmatprep.subr.mxu0 0.0
    %1711 = vmatpush1.msra.mxu0 %v1651
    %1712 = vmatprep.subr.mxu0 0.0
    %1713 = vmatpush2.msra.mxu0 0.0
    %1714 = vmatprep.subr.mxu0 0.0
    %1715 = vmatpush2.msra.mxu0 0.0
    %1716 = vmatprep.subr.mxu0 0.0
    %1717 = vmatpush2.msra.mxu0 0.0
    %1718 = vmatprep.subr.mxu0 0.0
    %1719 = vmatpush2.msra.mxu0 0.0
    %1720 = vmatprep.subr.mxu0 0.0
    %1721 = vmatpush2.msra.mxu0 0.0
    %1722 = vmatprep.subr.mxu0 0.0
    %1723 = vmatpush2.msra.mxu0 0.0
    %1724 = vmatprep.subr.mxu0 0.0
    %1725 = vmatpush2.msra.mxu0 0.0
    %1726 = vmatprep.subr.mxu0 0.0
    %1727 = vmatpush2.msra.mxu0 0.0
    %1728 = vmatprep.subr.mxu0 0.0
    %1729 = vmatpush2.msra.mxu0 0.0
    %1730 = vmatprep.subr.mxu0 0.0
    %1731 = vmatpush2.msra.mxu0 0.0
    %1732 = vmatprep.subr.mxu0 0.0
    %1733 = vmatpush2.msra.mxu0 0.0
    %1734 = vmatprep.subr.mxu0 0.0
    %1735 = vmatpush2.msra.mxu0 0.0
    %1736 = vmatprep.subr.mxu0 0.0
    %1737 = vmatpush2.msra.mxu0 0.0
    %1738 = vmatprep.subr.mxu0 0.0
    %1739 = vmatpush2.msra.mxu0 0.0
    %1740 = vmatprep.subr.mxu0 0.0
    %1741 = vmatpush2.msra.mxu0 0.0
    %1742 = vmatprep.subr.mxu0 0.0
    %1743 = vmatpush2.msra.mxu0 0.0
    %1744 = vmatprep.mubr.f32.mxu0 0.0
    %1745 = vmatmul.mubr.f32.gmra.mxu0 %v1663
    %v1746 = vpop.f32.mrf.mxu0
    %v1747 = vadd.f32 %v1660, %v1746
    %v1748 = vpop.f32.mrf.mxu0
    %1749 = vmatprep.mubr.f32.mxu0 0.0
    %1750 = vmatmul.mubr.f32.gmra.mxu0 %v1666
    %v1751 = vpop.f32.mrf.mxu0
    %v1752 = vadd.f32 %v1660, %v1751
    %v1753 = vpop.f32.mrf.mxu0
    %1754 = vmatprep.mubr.f32.mxu0 0.0
    %1755 = vmatmul.mubr.f32.gmra.mxu0 %v1669
    %v1756 = vpop.f32.mrf.mxu0
    %v1757 = vadd.f32 %v1660, %v1756
    %v1758 = vpop.f32.mrf.mxu0
    %1759 = vmatprep.mubr.f32.mxu0 0.0
    %1760 = vmatmul.mubr.f32.gmra.mxu0 %v1672
    %v1761 = vpop.f32.mrf.mxu0
    %v1762 = vadd.f32 %v1660, %v1761
    %v1763 = vpop.f32.mrf.mxu0
    %1764 = vmatprep.mubr.f32.mxu0 0.0
    %1765 = vmatmul.mubr.f32.gmra.mxu0 %v1675
    %v1766 = vpop.f32.mrf.mxu0
    %v1767 = vadd.f32 %v1660, %v1766
    %v1768 = vpop.f32.mrf.mxu0
    %1769 = vmatprep.mubr.f32.mxu0 0.0
    %1770 = vmatmul.mubr.f32.gmra.mxu0 %v1678
    %v1771 = vpop.f32.mrf.mxu0
    %v1772 = vadd.f32 %v1660, %v1771
    %v1773 = vpop.f32.mrf.mxu0
    %1774 = vdwg.mxu0
    %v1775 = vmul.f32 %v1747, 0.5
    %v1776 = vmul.f32 %v1752, 0.5
    %v1777 = vmul.f32 %v1757, 0.5
    %v1778 = vmul.f32 %v1762, 0.5
    %v1779 = vmul.f32 %v1767, 0.5
    %v1780 = vmul.f32 %v1772, 0.5
    %v1781 = vmul.f32 %v1747, 0.70710677
    %v1782 = vmul.f32 %v1752, 0.70710677
    %v1783 = vmul.f32 %v1757, 0.70710677
    %v1784 = vmul.f32 %v1762, 0.70710677
    %v1785 = vmul.f32 %v1767, 0.70710677
    %v1786 = vmul.f32 %v1772, 0.70710677
    %v1787 = verf.f32.pop %v1781
    %v1788 = verf.f32.pop %v1782
    %v1789 = verf.f32.pop %v1783
    %v1790 = verf.f32.pop %v1784
    %v1791 = verf.f32.pop %v1785
    %v1792 = verf.f32.pop %v1786
    %v1793 = vadd.f32 %v1787, 1.0
    %v1794 = vadd.f32 %v1788, 1.0
    %v1795 = vadd.f32 %v1789, 1.0
    %v1796 = vadd.f32 %v1790, 1.0
    %v1797 = vadd.f32 %v1791, 1.0
    %v1798 = vadd.f32 %v1792, 1.0
    %v1799 = vmul.f32 %v1775, %v1793
    %v1800 = vmul.f32 %v1776, %v1794
    %v1801 = vmul.f32 %v1777, %v1795
    %v1802 = vmul.f32 %v1778, %v1796
    %v1803 = vmul.f32 %v1779, %v1797
    %v1804 = vmul.f32 %v1780, %v1798
    %v1805 = vld [vmem:[%s14] sm:$0xff]
    %v1806 = vld [vmem:[%s14 + $0x8] sm:$0xff]
    %v1807 = vld [vmem:[%s14 + $0x10] sm:$0xff]
    %v1808 = vld [vmem:[%s14 + $0x18] sm:$0xff]
    %v1809 = vld [vmem:[%s14 + $0x20] sm:$0xff]
    %v1810 = vld [vmem:[%s14 + $0x28] sm:$0xff]
    %v1811 = vld [vmem:[%s14 + $0x30] sm:$0xff]
    %v1812 = vld [vmem:[%s14 + $0x38] sm:$0xff]
    %v1813 = vld [vmem:[%s14 + $0x40] sm:$0xff]
    %v1814 = vld [vmem:[%s14 + $0x48] sm:$0xff]
    %v1815 = vld [vmem:[%s14 + $0x50] sm:$0xff]
    %v1816 = vld [vmem:[%s14 + $0x58] sm:$0xff]
    %v1817 = vld [vmem:[%s14 + $0x60] sm:$0xff]
    %v1818 = vld [vmem:[%s14 + $0x68] sm:$0xff]
    %v1819 = vld [vmem:[%s14 + $0x70] sm:$0xff]
    %v1820 = vld [vmem:[%s14 + $0x78] sm:$0xff]
    %v1821 = vld [vmem:[%s15] sm:$0x1]
    %v1823 = vlaneseq
    %v1824 = vshrl.u32 %v1823, 7
    %v1825 = vsub.s32 0, %v1824
    %v1826 = vrot.slane %v1821, %v1825
    %1828 = vmatprep.subr.mxu0 0.0
    %1829 = vmatpush1.msra.mxu0 %v1820
    %1830 = vmatprep.subr.mxu0 0.0
    %1831 = vmatpush1.msra.mxu0 %v1819
    %1832 = vmatprep.subr.mxu0 0.0
    %1833 = vmatpush1.msra.mxu0 %v1818
    %1834 = vmatprep.subr.mxu0 0.0
    %1835 = vmatpush1.msra.mxu0 %v1817
    %1836 = vmatprep.subr.mxu0 0.0
    %1837 = vmatpush1.msra.mxu0 %v1816
    %1838 = vmatprep.subr.mxu0 0.0
    %1839 = vmatpush1.msra.mxu0 %v1815
    %1840 = vmatprep.subr.mxu0 0.0
    %1841 = vmatpush1.msra.mxu0 %v1814
    %1842 = vmatprep.subr.mxu0 0.0
    %1843 = vmatpush1.msra.mxu0 %v1813
    %1844 = vmatprep.subr.mxu0 0.0
    %1845 = vmatpush1.msra.mxu0 %v1812
    %1846 = vmatprep.subr.mxu0 0.0
    %1847 = vmatpush1.msra.mxu0 %v1811
    %1848 = vmatprep.subr.mxu0 0.0
    %1849 = vmatpush1.msra.mxu0 %v1810
    %1850 = vmatprep.subr.mxu0 0.0
    %1851 = vmatpush1.msra.mxu0 %v1809
    %1852 = vmatprep.subr.mxu0 0.0
    %1853 = vmatpush1.msra.mxu0 %v1808
    %1854 = vmatprep.subr.mxu0 0.0
    %1855 = vmatpush1.msra.mxu0 %v1807
    %1856 = vmatprep.subr.mxu0 0.0
    %1857 = vmatpush1.msra.mxu0 %v1806
    %1858 = vmatprep.subr.mxu0 0.0
    %1859 = vmatpush1.msra.mxu0 %v1805
    %1860 = vmatprep.subr.mxu0 0.0
    %1861 = vmatpush2.msra.mxu0 0.0
    %1862 = vmatprep.subr.mxu0 0.0
    %1863 = vmatpush2.msra.mxu0 0.0
    %1864 = vmatprep.subr.mxu0 0.0
    %1865 = vmatpush2.msra.mxu0 0.0
    %1866 = vmatprep.subr.mxu0 0.0
    %1867 = vmatpush2.msra.mxu0 0.0
    %1868 = vmatprep.subr.mxu0 0.0
    %1869 = vmatpush2.msra.mxu0 0.0
    %1870 = vmatprep.subr.mxu0 0.0
    %1871 = vmatpush2.msra.mxu0 0.0
    %1872 = vmatprep.subr.mxu0 0.0
    %1873 = vmatpush2.msra.mxu0 0.0
    %1874 = vmatprep.subr.mxu0 0.0
    %1875 = vmatpush2.msra.mxu0 0.0
    %1876 = vmatprep.subr.mxu0 0.0
    %1877 = vmatpush2.msra.mxu0 0.0
    %1878 = vmatprep.subr.mxu0 0.0
    %1879 = vmatpush2.msra.mxu0 0.0
    %1880 = vmatprep.subr.mxu0 0.0
    %1881 = vmatpush2.msra.mxu0 0.0
    %1882 = vmatprep.subr.mxu0 0.0
    %1883 = vmatpush2.msra.mxu0 0.0
    %1884 = vmatprep.subr.mxu0 0.0
    %1885 = vmatpush2.msra.mxu0 0.0
    %1886 = vmatprep.subr.mxu0 0.0
    %1887 = vmatpush2.msra.mxu0 0.0
    %1888 = vmatprep.subr.mxu0 0.0
    %1889 = vmatpush2.msra.mxu0 0.0
    %1890 = vmatprep.subr.mxu0 0.0
    %1891 = vmatpush2.msra.mxu0 0.0
    %1892 = vmatprep.mubr.f32.mxu0 0.0
    %1893 = vmatmul.mubr.f32.gmra.mxu0 %v1799
    %v1894 = vpop.f32.mrf.mxu0
    %v1895 = vadd.f32 %v1826, %v1894
    %v1896 = vpop.f32.mrf.mxu0
    %1897 = vmatprep.mubr.f32.mxu0 0.0
    %1898 = vmatmul.mubr.f32.gmra.mxu0 %v1800
    %v1899 = vpop.f32.mrf.mxu0
    %v1900 = vadd.f32 %v1826, %v1899
    %v1901 = vpop.f32.mrf.mxu0
    %1902 = vmatprep.mubr.f32.mxu0 0.0
    %1903 = vmatmul.mubr.f32.gmra.mxu0 %v1801
    %v1904 = vpop.f32.mrf.mxu0
    %v1905 = vadd.f32 %v1826, %v1904
    %v1906 = vpop.f32.mrf.mxu0
    %1907 = vmatprep.mubr.f32.mxu0 0.0
    %1908 = vmatmul.mubr.f32.gmra.mxu0 %v1802
    %v1909 = vpop.f32.mrf.mxu0
    %v1910 = vadd.f32 %v1826, %v1909
    %v1911 = vpop.f32.mrf.mxu0
    %1912 = vmatprep.mubr.f32.mxu0 0.0
    %1913 = vmatmul.mubr.f32.gmra.mxu0 %v1803
    %v1914 = vpop.f32.mrf.mxu0
    %v1915 = vadd.f32 %v1826, %v1914
    %v1916 = vpop.f32.mrf.mxu0
    %1917 = vmatprep.mubr.f32.mxu0 0.0
    %1918 = vmatmul.mubr.f32.gmra.mxu0 %v1804
    %v1919 = vpop.f32.mrf.mxu0
    %v1920 = vadd.f32 %v1826, %v1919
    %v1921 = vpop.f32.mrf.mxu0
    %1922 = vdwg.mxu0
    %v1923 = vadd.f32 %v1541, %v1895
    %v1924 = vadd.f32 %v1542, %v1900
    %v1925 = vadd.f32 %v1543, %v1905
    %v1926 = vadd.f32 %v1544, %v1910
    %v1927 = vadd.f32 %v1545, %v1915
    %v1928 = vadd.f32 %v1546, %v1920
    %s1929 = scalar_lea.vmem %s4, 1
    %v1930 = vld [vmem:[%s1929] sm:$0x1]
    %s1931 = scalar_lea.vmem %s5, 1
    %v1932 = vld [vmem:[%s1931] sm:$0x1]
    %v1933 = vsel %vm180, %v1923, 0.0
    %1934 = vadd.xlane.f32.xlu0 %v1933
    %v1935 = vpop.xlane.xlu0 %1934
    %v1936 = vsel %vm180, %v1924, 0.0
    %1937 = vadd.xlane.f32.xlu0 %v1936
    %v1938 = vpop.xlane.xlu0 %1937
    %v1939 = vsel %vm180, %v1925, 0.0
    %1940 = vadd.xlane.f32.xlu0 %v1939
    %v1941 = vpop.xlane.xlu0 %1940
    %v1942 = vsel %vm180, %v1926, 0.0
    %1943 = vadd.xlane.f32.xlu0 %v1942
    %v1944 = vpop.xlane.xlu0 %1943
    %v1945 = vsel %vm180, %v1927, 0.0
    %1946 = vadd.xlane.f32.xlu0 %v1945
    %v1947 = vpop.xlane.xlu0 %1946
    %v1948 = vsel %vm180, %v1928, 0.0
    %1949 = vadd.xlane.f32.xlu0 %v1948
    %v1950 = vpop.xlane.xlu0 %1949
    %v1951 = vmul.f32 %v1935, %v218
    %v1952 = vmul.f32 %v1938, %v218
    %v1953 = vmul.f32 %v1941, %v218
    %v1954 = vmul.f32 %v1944, %v218
    %v1955 = vmul.f32 %v1947, %v218
    %v1956 = vmul.f32 %v1950, %v218
    %v1957 = vsub.f32 %v1923, %v1951
    %v1958 = vsub.f32 %v1924, %v1952
    %v1959 = vsub.f32 %v1925, %v1953
    %v1960 = vsub.f32 %v1926, %v1954
    %v1961 = vsub.f32 %v1927, %v1955
    %v1962 = vsub.f32 %v1928, %v1956
    %v1963 = vmul.f32 %v1957, %v1957
    %v1964 = vmul.f32 %v1958, %v1958
    %v1965 = vmul.f32 %v1959, %v1959
    %v1966 = vmul.f32 %v1960, %v1960
    %v1967 = vmul.f32 %v1961, %v1961
    %v1968 = vmul.f32 %v1962, %v1962
    %v1969 = vsel %vm180, %v1963, 0.0
    %1970 = vadd.xlane.f32.xlu0 %v1969
    %v1971 = vpop.xlane.xlu0 %1970
    %v1972 = vsel %vm180, %v1964, 0.0
    %1973 = vadd.xlane.f32.xlu0 %v1972
    %v1974 = vpop.xlane.xlu0 %1973
    %v1975 = vsel %vm180, %v1965, 0.0
    %1976 = vadd.xlane.f32.xlu0 %v1975
    %v1977 = vpop.xlane.xlu0 %1976
    %v1978 = vsel %vm180, %v1966, 0.0
    %1979 = vadd.xlane.f32.xlu0 %v1978
    %v1980 = vpop.xlane.xlu0 %1979
    %v1981 = vsel %vm180, %v1967, 0.0
    %1982 = vadd.xlane.f32.xlu0 %v1981
    %v1983 = vpop.xlane.xlu0 %1982
    %v1984 = vsel %vm180, %v1968, 0.0
    %1985 = vadd.xlane.f32.xlu0 %v1984
    %v1986 = vpop.xlane.xlu0 %1985
    %v1987 = vmul.f32 %v1971, %v218
    %v1988 = vmul.f32 %v1974, %v218
    %v1989 = vmul.f32 %v1977, %v218
    %v1990 = vmul.f32 %v1980, %v218
    %v1991 = vmul.f32 %v1983, %v218
    %v1992 = vmul.f32 %v1986, %v218
    %v1993 = vadd.f32 %v1987, 1e-05
    %v1994 = vadd.f32 %v1988, 1e-05
    %v1995 = vadd.f32 %v1989, 1e-05
    %v1996 = vadd.f32 %v1990, 1e-05
    %v1997 = vadd.f32 %v1991, 1e-05
    %v1998 = vadd.f32 %v1992, 1e-05
    %v1999 = vrsqrt.pop %v1993
    %v2000 = vrsqrt.pop %v1994
    %v2001 = vrsqrt.pop %v1995
    %v2002 = vrsqrt.pop %v1996
    %v2003 = vrsqrt.pop %v1997
    %v2004 = vrsqrt.pop %v1998
    %v2005 = vmul.f32 %v1957, %v1999
    %v2006 = vmul.f32 %v1958, %v2000
    %v2007 = vmul.f32 %v1959, %v2001
    %v2008 = vmul.f32 %v1960, %v2002
    %v2009 = vmul.f32 %v1961, %v2003
    %v2010 = vmul.f32 %v1962, %v2004
    %v2012 = vlaneseq
    %v2013 = vshrl.u32 %v2012, 7
    %v2014 = vsub.s32 0, %v2013
    %v2015 = vrot.slane %v1930, %v2014
    %v2017 = vmul.f32 %v2005, %v2015
    %v2018 = vmul.f32 %v2006, %v2015
    %v2019 = vmul.f32 %v2007, %v2015
    %v2020 = vmul.f32 %v2008, %v2015
    %v2021 = vmul.f32 %v2009, %v2015
    %v2022 = vmul.f32 %v2010, %v2015
    %v2024 = vlaneseq
    %v2025 = vshrl.u32 %v2024, 7
    %v2026 = vsub.s32 0, %v2025
    %v2027 = vrot.slane %v1932, %v2026
    %v2029 = vadd.f32 %v2017, %v2027
    %v2030 = vadd.f32 %v2018, %v2027
    %v2031 = vadd.f32 %v2019, %v2027
    %v2032 = vadd.f32 %v2020, %v2027
    %v2033 = vadd.f32 %v2021, %v2027
    %v2034 = vadd.f32 %v2022, %v2027
    %s2035 = scalar_lea.vmem %s6, 32
    %v2036 = vld [vmem:[%s2035] sm:$0xff]
    %v2037 = vld [vmem:[%s2035 + $0x8] sm:$0xff]
    %v2038 = vld [vmem:[%s2035 + $0x10] sm:$0xff]
    %v2039 = vld [vmem:[%s2035 + $0x18] sm:$0xff]
    %s2040 = scalar_lea.vmem %s7, 1
    %v2041 = vld [vmem:[%s2040] sm:$0x1]
    %v2043 = vlaneseq
    %v2044 = vshrl.u32 %v2043, 7
    %v2045 = vsub.s32 0, %v2044
    %v2046 = vrot.slane %v2041, %v2045
    %v2049 = vsel %vm180, %v2029, 0
    %v2052 = vsel %vm180, %v2030, 0
    %v2055 = vsel %vm180, %v2031, 0
    %v2058 = vsel %vm180, %v2032, 0
    %v2061 = vsel %vm180, %v2033, 0
    %v2064 = vsel %vm180, %v2034, 0
    %2066 = vmatprep.subr.mxu0 0.0
    %2067 = vmatpush1.msra.mxu0 0.0
    %2068 = vmatprep.subr.mxu0 0.0
    %2069 = vmatpush1.msra.mxu0 0.0
    %2070 = vmatprep.subr.mxu0 0.0
    %2071 = vmatpush1.msra.mxu0 0.0
    %2072 = vmatprep.subr.mxu0 0.0
    %2073 = vmatpush1.msra.mxu0 0.0
    %2074 = vmatprep.subr.mxu0 0.0
    %2075 = vmatpush1.msra.mxu0 0.0
    %2076 = vmatprep.subr.mxu0 0.0
    %2077 = vmatpush1.msra.mxu0 0.0
    %2078 = vmatprep.subr.mxu0 0.0
    %2079 = vmatpush1.msra.mxu0 0.0
    %2080 = vmatprep.subr.mxu0 0.0
    %2081 = vmatpush1.msra.mxu0 0.0
    %2082 = vmatprep.subr.mxu0 0.0
    %2083 = vmatpush1.msra.mxu0 0.0
    %2084 = vmatprep.subr.mxu0 0.0
    %2085 = vmatpush1.msra.mxu0 0.0
    %2086 = vmatprep.subr.mxu0 0.0
    %2087 = vmatpush1.msra.mxu0 0.0
    %2088 = vmatprep.subr.mxu0 0.0
    %2089 = vmatpush1.msra.mxu0 0.0
    %2090 = vmatprep.subr.mxu0 0.0
    %2091 = vmatpush1.msra.mxu0 %v2039
    %2092 = vmatprep.subr.mxu0 0.0
    %2093 = vmatpush1.msra.mxu0 %v2038
    %2094 = vmatprep.subr.mxu0 0.0
    %2095 = vmatpush1.msra.mxu0 %v2037
    %2096 = vmatprep.subr.mxu0 0.0
    %2097 = vmatpush1.msra.mxu0 %v2036
    %2098 = vmatprep.subr.mxu0 0.0
    %2099 = vmatpush2.msra.mxu0 0.0
    %2100 = vmatprep.subr.mxu0 0.0
    %2101 = vmatpush2.msra.mxu0 0.0
    %2102 = vmatprep.subr.mxu0 0.0
    %2103 = vmatpush2.msra.mxu0 0.0
    %2104 = vmatprep.subr.mxu0 0.0
    %2105 = vmatpush2.msra.mxu0 0.0
    %2106 = vmatprep.subr.mxu0 0.0
    %2107 = vmatpush2.msra.mxu0 0.0
    %2108 = vmatprep.subr.mxu0 0.0
    %2109 = vmatpush2.msra.mxu0 0.0
    %2110 = vmatprep.subr.mxu0 0.0
    %2111 = vmatpush2.msra.mxu0 0.0
    %2112 = vmatprep.subr.mxu0 0.0
    %2113 = vmatpush2.msra.mxu0 0.0
    %2114 = vmatprep.subr.mxu0 0.0
    %2115 = vmatpush2.msra.mxu0 0.0
    %2116 = vmatprep.subr.mxu0 0.0
    %2117 = vmatpush2.msra.mxu0 0.0
    %2118 = vmatprep.subr.mxu0 0.0
    %2119 = vmatpush2.msra.mxu0 0.0
    %2120 = vmatprep.subr.mxu0 0.0
    %2121 = vmatpush2.msra.mxu0 0.0
    %2122 = vmatprep.subr.mxu0 0.0
    %2123 = vmatpush2.msra.mxu0 0.0
    %2124 = vmatprep.subr.mxu0 0.0
    %2125 = vmatpush2.msra.mxu0 0.0
    %2126 = vmatprep.subr.mxu0 0.0
    %2127 = vmatpush2.msra.mxu0 0.0
    %2128 = vmatprep.subr.mxu0 0.0
    %2129 = vmatpush2.msra.mxu0 0.0
    %2130 = vmatprep.mubr.f32.mxu0 0.0
    %2131 = vmatmul.mubr.f32.gmra.mxu0 %v2049
    %v2132 = vpop.f32.mrf.mxu0
    %v2133 = vadd.f32 %v2046, %v2132
    %v2134 = vpop.f32.mrf.mxu0
    %2135 = vmatprep.mubr.f32.mxu0 0.0
    %2136 = vmatmul.mubr.f32.gmra.mxu0 %v2052
    %v2137 = vpop.f32.mrf.mxu0
    %v2138 = vadd.f32 %v2046, %v2137
    %v2139 = vpop.f32.mrf.mxu0
    %2140 = vmatprep.mubr.f32.mxu0 0.0
    %2141 = vmatmul.mubr.f32.gmra.mxu0 %v2055
    %v2142 = vpop.f32.mrf.mxu0
    %v2143 = vadd.f32 %v2046, %v2142
    %v2144 = vpop.f32.mrf.mxu0
    %2145 = vmatprep.mubr.f32.mxu0 0.0
    %2146 = vmatmul.mubr.f32.gmra.mxu0 %v2058
    %v2147 = vpop.f32.mrf.mxu0
    %v2148 = vadd.f32 %v2046, %v2147
    %v2149 = vpop.f32.mrf.mxu0
    %2150 = vmatprep.mubr.f32.mxu0 0.0
    %2151 = vmatmul.mubr.f32.gmra.mxu0 %v2061
    %v2152 = vpop.f32.mrf.mxu0
    %v2153 = vadd.f32 %v2046, %v2152
    %v2154 = vpop.f32.mrf.mxu0
    %2155 = vmatprep.mubr.f32.mxu0 0.0
    %2156 = vmatmul.mubr.f32.gmra.mxu0 %v2064
    %v2157 = vpop.f32.mrf.mxu0
    %v2158 = vadd.f32 %v2046, %v2157
    %v2159 = vpop.f32.mrf.mxu0
    %2160 = vdwg.mxu0
    %2167 = vrot.lane.b32.xlu0 %v2133, 112
    %v2168 = vpop.permute.xlu0 %2167
    %2169 = vrot.lane.b32.xlu0 %v2138, 112
    %v2170 = vpop.permute.xlu0 %2169
    %2171 = vrot.lane.b32.xlu0 %v2143, 112
    %v2172 = vpop.permute.xlu0 %2171
    %2173 = vrot.lane.b32.xlu0 %v2148, 112
    %v2174 = vpop.permute.xlu0 %2173
    %2175 = vrot.lane.b32.xlu0 %v2153, 112
    %v2176 = vpop.permute.xlu0 %2175
    %2177 = vrot.lane.b32.xlu0 %v2158, 112
    %v2178 = vpop.permute.xlu0 %2177
    %2179 = vrot.lane.b32.xlu0 %v2133, 96
    %v2180 = vpop.permute.xlu0 %2179
    %2181 = vrot.lane.b32.xlu0 %v2138, 96
    %v2182 = vpop.permute.xlu0 %2181
    %2183 = vrot.lane.b32.xlu0 %v2143, 96
    %v2184 = vpop.permute.xlu0 %2183
    %v2185 = vsel %vm451, %v2133, 0
    %v2187 = vsel %vm451, %v2138, 0
    %v2189 = vsel %vm451, %v2143, 0
    %v2191 = vsel %vm451, %v2180, 0
    %v2193 = vsel %vm451, %v2182, 0
    %v2195 = vsel %vm451, %v2184, 0
    %2197 = vmatprep.subr.mxu0 0.0
    %2198 = vmatpush1.xpose.msra.mxu0 0.0
    %2199 = vmatprep.subr.mxu0 0.0
    %2200 = vmatpush1.xpose.msra.mxu0 0.0
    %2201 = vmatprep.subr.mxu0 0.0
    %2202 = vmatpush1.xpose.msra.mxu0 0.0
    %2203 = vmatprep.subr.mxu0 0.0
    %2204 = vmatpush1.xpose.msra.mxu0 0.0
    %2205 = vmatprep.subr.mxu0 0.0
    %2206 = vmatpush1.xpose.msra.mxu0 0.0
    %2207 = vmatprep.subr.mxu0 0.0
    %2208 = vmatpush1.xpose.msra.mxu0 0.0
    %2209 = vmatprep.subr.mxu0 0.0
    %2210 = vmatpush1.xpose.msra.mxu0 0.0
    %2211 = vmatprep.subr.mxu0 0.0
    %2212 = vmatpush1.xpose.msra.mxu0 0.0
    %2213 = vmatprep.subr.mxu0 0.0
    %2214 = vmatpush1.xpose.msra.mxu0 0.0
    %2215 = vmatprep.subr.mxu0 0.0
    %2216 = vmatpush1.xpose.msra.mxu0 0.0
    %2217 = vmatprep.subr.mxu0 0.0
    %2218 = vmatpush1.xpose.msra.mxu0 0.0
    %2219 = vmatprep.subr.mxu0 0.0
    %2220 = vmatpush1.xpose.msra.mxu0 0.0
    %2221 = vmatprep.subr.mxu0 0.0
    %2222 = vmatpush1.xpose.msra.mxu0 0.0
    %2223 = vmatprep.subr.mxu0 0.0
    %2224 = vmatpush1.xpose.msra.mxu0 %v2195
    %2225 = vmatprep.subr.mxu0 0.0
    %2226 = vmatpush1.xpose.msra.mxu0 %v2193
    %2227 = vmatprep.subr.mxu0 0.0
    %2228 = vmatpush1.xpose.msra.mxu0 %v2191
    %2229 = vmatprep.subr.mxu0 0.0
    %2230 = vmatpush2.xpose.msra.mxu0 0.0
    %2231 = vmatprep.subr.mxu0 0.0
    %2232 = vmatpush2.xpose.msra.mxu0 0.0
    %2233 = vmatprep.subr.mxu0 0.0
    %2234 = vmatpush2.xpose.msra.mxu0 0.0
    %2235 = vmatprep.subr.mxu0 0.0
    %2236 = vmatpush2.xpose.msra.mxu0 0.0
    %2237 = vmatprep.subr.mxu0 0.0
    %2238 = vmatpush2.xpose.msra.mxu0 0.0
    %2239 = vmatprep.subr.mxu0 0.0
    %2240 = vmatpush2.xpose.msra.mxu0 0.0
    %2241 = vmatprep.subr.mxu0 0.0
    %2242 = vmatpush2.xpose.msra.mxu0 0.0
    %2243 = vmatprep.subr.mxu0 0.0
    %2244 = vmatpush2.xpose.msra.mxu0 0.0
    %2245 = vmatprep.subr.mxu0 0.0
    %2246 = vmatpush2.xpose.msra.mxu0 0.0
    %2247 = vmatprep.subr.mxu0 0.0
    %2248 = vmatpush2.xpose.msra.mxu0 0.0
    %2249 = vmatprep.subr.mxu0 0.0
    %2250 = vmatpush2.xpose.msra.mxu0 0.0
    %2251 = vmatprep.subr.mxu0 0.0
    %2252 = vmatpush2.xpose.msra.mxu0 0.0
    %2253 = vmatprep.subr.mxu0 0.0
    %2254 = vmatpush2.xpose.msra.mxu0 0.0
    %2255 = vmatprep.subr.mxu0 0.0
    %2256 = vmatpush2.xpose.msra.mxu0 0.0
    %2257 = vmatprep.subr.mxu0 0.0
    %2258 = vmatpush2.xpose.msra.mxu0 0.0
    %2259 = vmatprep.subr.mxu0 0.0
    %2260 = vmatpush2.xpose.msra.mxu0 0.0
    %2261 = vmatprep.mubr.f32.mxu0 0.0
    %2262 = vmatmul.mubr.f32.gmra.mxu0 %v2185
    %v2263 = vpop.f32.mrf.mxu0
    %v2264 = vadd.f32 0.0, %v2263
    %v2265 = vpop.f32.mrf.mxu0
    %2266 = vmatprep.mubr.f32.mxu0 0.0
    %2267 = vmatmul.mubr.f32.gmra.mxu0 %v2187
    %v2268 = vpop.f32.mrf.mxu0
    %v2269 = vadd.f32 0.0, %v2268
    %v2270 = vpop.f32.mrf.mxu0
    %2271 = vmatprep.mubr.f32.mxu0 0.0
    %2272 = vmatmul.mubr.f32.gmra.mxu0 %v2189
    %v2273 = vpop.f32.mrf.mxu0
    %v2274 = vadd.f32 0.0, %v2273
    %v2275 = vpop.f32.mrf.mxu0
    %2276 = vdwg.mxu0
    %2277 = vrot.lane.b32.xlu0 %v2148, 96
    %v2278 = vpop.permute.xlu0 %2277
    %2279 = vrot.lane.b32.xlu0 %v2153, 96
    %v2280 = vpop.permute.xlu0 %2279
    %2281 = vrot.lane.b32.xlu0 %v2158, 96
    %v2282 = vpop.permute.xlu0 %2281
    %v2283 = vsel %vm451, %v2148, 0
    %v2285 = vsel %vm451, %v2153, 0
    %v2287 = vsel %vm451, %v2158, 0
    %v2289 = vsel %vm451, %v2278, 0
    %v2291 = vsel %vm451, %v2280, 0
    %v2293 = vsel %vm451, %v2282, 0
    %2295 = vmatprep.subr.mxu0 0.0
    %2296 = vmatpush1.xpose.msra.mxu0 0.0
    %2297 = vmatprep.subr.mxu0 0.0
    %2298 = vmatpush1.xpose.msra.mxu0 0.0
    %2299 = vmatprep.subr.mxu0 0.0
    %2300 = vmatpush1.xpose.msra.mxu0 0.0
    %2301 = vmatprep.subr.mxu0 0.0
    %2302 = vmatpush1.xpose.msra.mxu0 0.0
    %2303 = vmatprep.subr.mxu0 0.0
    %2304 = vmatpush1.xpose.msra.mxu0 0.0
    %2305 = vmatprep.subr.mxu0 0.0
    %2306 = vmatpush1.xpose.msra.mxu0 0.0
    %2307 = vmatprep.subr.mxu0 0.0
    %2308 = vmatpush1.xpose.msra.mxu0 0.0
    %2309 = vmatprep.subr.mxu0 0.0
    %2310 = vmatpush1.xpose.msra.mxu0 0.0
    %2311 = vmatprep.subr.mxu0 0.0
    %2312 = vmatpush1.xpose.msra.mxu0 0.0
    %2313 = vmatprep.subr.mxu0 0.0
    %2314 = vmatpush1.xpose.msra.mxu0 0.0
    %2315 = vmatprep.subr.mxu0 0.0
    %2316 = vmatpush1.xpose.msra.mxu0 0.0
    %2317 = vmatprep.subr.mxu0 0.0
    %2318 = vmatpush1.xpose.msra.mxu0 0.0
    %2319 = vmatprep.subr.mxu0 0.0
    %2320 = vmatpush1.xpose.msra.mxu0 0.0
    %2321 = vmatprep.subr.mxu0 0.0
    %2322 = vmatpush1.xpose.msra.mxu0 %v2293
    %2323 = vmatprep.subr.mxu0 0.0
    %2324 = vmatpush1.xpose.msra.mxu0 %v2291
    %2325 = vmatprep.subr.mxu0 0.0
    %2326 = vmatpush1.xpose.msra.mxu0 %v2289
    %2327 = vmatprep.subr.mxu0 0.0
    %2328 = vmatpush2.xpose.msra.mxu0 0.0
    %2329 = vmatprep.subr.mxu0 0.0
    %2330 = vmatpush2.xpose.msra.mxu0 0.0
    %2331 = vmatprep.subr.mxu0 0.0
    %2332 = vmatpush2.xpose.msra.mxu0 0.0
    %2333 = vmatprep.subr.mxu0 0.0
    %2334 = vmatpush2.xpose.msra.mxu0 0.0
    %2335 = vmatprep.subr.mxu0 0.0
    %2336 = vmatpush2.xpose.msra.mxu0 0.0
    %2337 = vmatprep.subr.mxu0 0.0
    %2338 = vmatpush2.xpose.msra.mxu0 0.0
    %2339 = vmatprep.subr.mxu0 0.0
    %2340 = vmatpush2.xpose.msra.mxu0 0.0
    %2341 = vmatprep.subr.mxu0 0.0
    %2342 = vmatpush2.xpose.msra.mxu0 0.0
    %2343 = vmatprep.subr.mxu0 0.0
    %2344 = vmatpush2.xpose.msra.mxu0 0.0
    %2345 = vmatprep.subr.mxu0 0.0
    %2346 = vmatpush2.xpose.msra.mxu0 0.0
    %2347 = vmatprep.subr.mxu0 0.0
    %2348 = vmatpush2.xpose.msra.mxu0 0.0
    %2349 = vmatprep.subr.mxu0 0.0
    %2350 = vmatpush2.xpose.msra.mxu0 0.0
    %2351 = vmatprep.subr.mxu0 0.0
    %2352 = vmatpush2.xpose.msra.mxu0 0.0
    %2353 = vmatprep.subr.mxu0 0.0
    %2354 = vmatpush2.xpose.msra.mxu0 0.0
    %2355 = vmatprep.subr.mxu0 0.0
    %2356 = vmatpush2.xpose.msra.mxu0 0.0
    %2357 = vmatprep.subr.mxu0 0.0
    %2358 = vmatpush2.xpose.msra.mxu0 0.0
    %2359 = vmatprep.mubr.f32.mxu0 0.0
    %2360 = vmatmul.mubr.f32.gmra.mxu0 %v2283
    %v2361 = vpop.f32.mrf.mxu0
    %v2362 = vadd.f32 0.0, %v2361
    %v2363 = vpop.f32.mrf.mxu0
    %2364 = vmatprep.mubr.f32.mxu0 0.0
    %2365 = vmatmul.mubr.f32.gmra.mxu0 %v2285
    %v2366 = vpop.f32.mrf.mxu0
    %v2367 = vadd.f32 0.0, %v2366
    %v2368 = vpop.f32.mrf.mxu0
    %2369 = vmatprep.mubr.f32.mxu0 0.0
    %2370 = vmatmul.mubr.f32.gmra.mxu0 %v2287
    %v2371 = vpop.f32.mrf.mxu0
    %v2372 = vadd.f32 0.0, %v2371
    %v2373 = vpop.f32.mrf.mxu0
    %2374 = vdwg.mxu0
    %2375 = vrot.lane.b32.xlu0 %v2168, 96
    %v2376 = vpop.permute.xlu0 %2375
    %2377 = vrot.lane.b32.xlu0 %v2170, 96
    %v2378 = vpop.permute.xlu0 %2377
    %2379 = vrot.lane.b32.xlu0 %v2172, 96
    %v2380 = vpop.permute.xlu0 %2379
    %v2381 = vsel %vm451, %v2168, 0
    %v2383 = vsel %vm451, %v2170, 0
    %v2385 = vsel %vm451, %v2172, 0
    %v2387 = vsel %vm451, %v2376, 0
    %v2389 = vsel %vm451, %v2378, 0
    %v2391 = vsel %vm451, %v2380, 0
    %2393 = vmatprep.subr.mxu0 0.0
    %2394 = vmatpush1.xpose.msra.mxu0 0.0
    %2395 = vmatprep.subr.mxu0 0.0
    %2396 = vmatpush1.xpose.msra.mxu0 0.0
    %2397 = vmatprep.subr.mxu0 0.0
    %2398 = vmatpush1.xpose.msra.mxu0 0.0
    %2399 = vmatprep.subr.mxu0 0.0
    %2400 = vmatpush1.xpose.msra.mxu0 0.0
    %2401 = vmatprep.subr.mxu0 0.0
    %2402 = vmatpush1.xpose.msra.mxu0 0.0
    %2403 = vmatprep.subr.mxu0 0.0
    %2404 = vmatpush1.xpose.msra.mxu0 0.0
    %2405 = vmatprep.subr.mxu0 0.0
    %2406 = vmatpush1.xpose.msra.mxu0 0.0
    %2407 = vmatprep.subr.mxu0 0.0
    %2408 = vmatpush1.xpose.msra.mxu0 0.0
    %2409 = vmatprep.subr.mxu0 0.0
    %2410 = vmatpush1.xpose.msra.mxu0 0.0
    %2411 = vmatprep.subr.mxu0 0.0
    %2412 = vmatpush1.xpose.msra.mxu0 0.0
    %2413 = vmatprep.subr.mxu0 0.0
    %2414 = vmatpush1.xpose.msra.mxu0 0.0
    %2415 = vmatprep.subr.mxu0 0.0
    %2416 = vmatpush1.xpose.msra.mxu0 0.0
    %2417 = vmatprep.subr.mxu0 0.0
    %2418 = vmatpush1.xpose.msra.mxu0 0.0
    %2419 = vmatprep.subr.mxu0 0.0
    %2420 = vmatpush1.xpose.msra.mxu0 %v2391
    %2421 = vmatprep.subr.mxu0 0.0
    %2422 = vmatpush1.xpose.msra.mxu0 %v2389
    %2423 = vmatprep.subr.mxu0 0.0
    %2424 = vmatpush1.xpose.msra.mxu0 %v2387
    %2425 = vmatprep.subr.mxu0 0.0
    %2426 = vmatpush2.xpose.msra.mxu0 0.0
    %2427 = vmatprep.subr.mxu0 0.0
    %2428 = vmatpush2.xpose.msra.mxu0 0.0
    %2429 = vmatprep.subr.mxu0 0.0
    %2430 = vmatpush2.xpose.msra.mxu0 0.0
    %2431 = vmatprep.subr.mxu0 0.0
    %2432 = vmatpush2.xpose.msra.mxu0 0.0
    %2433 = vmatprep.subr.mxu0 0.0
    %2434 = vmatpush2.xpose.msra.mxu0 0.0
    %2435 = vmatprep.subr.mxu0 0.0
    %2436 = vmatpush2.xpose.msra.mxu0 0.0
    %2437 = vmatprep.subr.mxu0 0.0
    %2438 = vmatpush2.xpose.msra.mxu0 0.0
    %2439 = vmatprep.subr.mxu0 0.0
    %2440 = vmatpush2.xpose.msra.mxu0 0.0
    %2441 = vmatprep.subr.mxu0 0.0
    %2442 = vmatpush2.xpose.msra.mxu0 0.0
    %2443 = vmatprep.subr.mxu0 0.0
    %2444 = vmatpush2.xpose.msra.mxu0 0.0
    %2445 = vmatprep.subr.mxu0 0.0
    %2446 = vmatpush2.xpose.msra.mxu0 0.0
    %2447 = vmatprep.subr.mxu0 0.0
    %2448 = vmatpush2.xpose.msra.mxu0 0.0
    %2449 = vmatprep.subr.mxu0 0.0
    %2450 = vmatpush2.xpose.msra.mxu0 0.0
    %2451 = vmatprep.subr.mxu0 0.0
    %2452 = vmatpush2.xpose.msra.mxu0 0.0
    %2453 = vmatprep.subr.mxu0 0.0
    %2454 = vmatpush2.xpose.msra.mxu0 0.0
    %2455 = vmatprep.subr.mxu0 0.0
    %2456 = vmatpush2.xpose.msra.mxu0 0.0
    %2457 = vmatprep.mubr.f32.mxu0 0.0
    %2458 = vmatmul.mubr.f32.gmra.mxu0 %v2381
    %v2459 = vpop.f32.mrf.mxu0
    %v2460 = vadd.f32 0.0, %v2459
    %v2461 = vpop.f32.mrf.mxu0
    %2462 = vmatprep.mubr.f32.mxu0 0.0
    %2463 = vmatmul.mubr.f32.gmra.mxu0 %v2383
    %v2464 = vpop.f32.mrf.mxu0
    %v2465 = vadd.f32 0.0, %v2464
    %v2466 = vpop.f32.mrf.mxu0
    %2467 = vmatprep.mubr.f32.mxu0 0.0
    %2468 = vmatmul.mubr.f32.gmra.mxu0 %v2385
    %v2469 = vpop.f32.mrf.mxu0
    %v2470 = vadd.f32 0.0, %v2469
    %v2471 = vpop.f32.mrf.mxu0
    %2472 = vdwg.mxu0
    %2473 = vrot.lane.b32.xlu0 %v2174, 96
    %v2474 = vpop.permute.xlu0 %2473
    %2475 = vrot.lane.b32.xlu0 %v2176, 96
    %v2476 = vpop.permute.xlu0 %2475
    %2477 = vrot.lane.b32.xlu0 %v2178, 96
    %v2478 = vpop.permute.xlu0 %2477
    %v2479 = vsel %vm451, %v2174, 0
    %v2481 = vsel %vm451, %v2176, 0
    %v2483 = vsel %vm451, %v2178, 0
    %v2485 = vsel %vm451, %v2474, 0
    %v2487 = vsel %vm451, %v2476, 0
    %v2489 = vsel %vm451, %v2478, 0
    %2491 = vmatprep.subr.mxu0 0.0
    %2492 = vmatpush1.xpose.msra.mxu0 0.0
    %2493 = vmatprep.subr.mxu0 0.0
    %2494 = vmatpush1.xpose.msra.mxu0 0.0
    %2495 = vmatprep.subr.mxu0 0.0
    %2496 = vmatpush1.xpose.msra.mxu0 0.0
    %2497 = vmatprep.subr.mxu0 0.0
    %2498 = vmatpush1.xpose.msra.mxu0 0.0
    %2499 = vmatprep.subr.mxu0 0.0
    %2500 = vmatpush1.xpose.msra.mxu0 0.0
    %2501 = vmatprep.subr.mxu0 0.0
    %2502 = vmatpush1.xpose.msra.mxu0 0.0
    %2503 = vmatprep.subr.mxu0 0.0
    %2504 = vmatpush1.xpose.msra.mxu0 0.0
    %2505 = vmatprep.subr.mxu0 0.0
    %2506 = vmatpush1.xpose.msra.mxu0 0.0
    %2507 = vmatprep.subr.mxu0 0.0
    %2508 = vmatpush1.xpose.msra.mxu0 0.0
    %2509 = vmatprep.subr.mxu0 0.0
    %2510 = vmatpush1.xpose.msra.mxu0 0.0
    %2511 = vmatprep.subr.mxu0 0.0
    %2512 = vmatpush1.xpose.msra.mxu0 0.0
    %2513 = vmatprep.subr.mxu0 0.0
    %2514 = vmatpush1.xpose.msra.mxu0 0.0
    %2515 = vmatprep.subr.mxu0 0.0
    %2516 = vmatpush1.xpose.msra.mxu0 0.0
    %2517 = vmatprep.subr.mxu0 0.0
    %2518 = vmatpush1.xpose.msra.mxu0 %v2489
    %2519 = vmatprep.subr.mxu0 0.0
    %2520 = vmatpush1.xpose.msra.mxu0 %v2487
    %2521 = vmatprep.subr.mxu0 0.0
    %2522 = vmatpush1.xpose.msra.mxu0 %v2485
    %2523 = vmatprep.subr.mxu0 0.0
    %2524 = vmatpush2.xpose.msra.mxu0 0.0
    %2525 = vmatprep.subr.mxu0 0.0
    %2526 = vmatpush2.xpose.msra.mxu0 0.0
    %2527 = vmatprep.subr.mxu0 0.0
    %2528 = vmatpush2.xpose.msra.mxu0 0.0
    %2529 = vmatprep.subr.mxu0 0.0
    %2530 = vmatpush2.xpose.msra.mxu0 0.0
    %2531 = vmatprep.subr.mxu0 0.0
    %2532 = vmatpush2.xpose.msra.mxu0 0.0
    %2533 = vmatprep.subr.mxu0 0.0
    %2534 = vmatpush2.xpose.msra.mxu0 0.0
    %2535 = vmatprep.subr.mxu0 0.0
    %2536 = vmatpush2.xpose.msra.mxu0 0.0
    %2537 = vmatprep.subr.mxu0 0.0
    %2538 = vmatpush2.xpose.msra.mxu0 0.0
    %2539 = vmatprep.subr.mxu0 0.0
    %2540 = vmatpush2.xpose.msra.mxu0 0.0
    %2541 = vmatprep.subr.mxu0 0.0
    %2542 = vmatpush2.xpose.msra.mxu0 0.0
    %2543 = vmatprep.subr.mxu0 0.0
    %2544 = vmatpush2.xpose.msra.mxu0 0.0
    %2545 = vmatprep.subr.mxu0 0.0
    %2546 = vmatpush2.xpose.msra.mxu0 0.0
    %2547 = vmatprep.subr.mxu0 0.0
    %2548 = vmatpush2.xpose.msra.mxu0 0.0
    %2549 = vmatprep.subr.mxu0 0.0
    %2550 = vmatpush2.xpose.msra.mxu0 0.0
    %2551 = vmatprep.subr.mxu0 0.0
    %2552 = vmatpush2.xpose.msra.mxu0 0.0
    %2553 = vmatprep.subr.mxu0 0.0
    %2554 = vmatpush2.xpose.msra.mxu0 0.0
    %2555 = vmatprep.mubr.f32.mxu0 0.0
    %2556 = vmatmul.mubr.f32.gmra.mxu0 %v2479
    %v2557 = vpop.f32.mrf.mxu0
    %v2558 = vadd.f32 0.0, %v2557
    %v2559 = vpop.f32.mrf.mxu0
    %2560 = vmatprep.mubr.f32.mxu0 0.0
    %2561 = vmatmul.mubr.f32.gmra.mxu0 %v2481
    %v2562 = vpop.f32.mrf.mxu0
    %v2563 = vadd.f32 0.0, %v2562
    %v2564 = vpop.f32.mrf.mxu0
    %2565 = vmatprep.mubr.f32.mxu0 0.0
    %2566 = vmatmul.mubr.f32.gmra.mxu0 %v2483
    %v2567 = vpop.f32.mrf.mxu0
    %v2568 = vadd.f32 0.0, %v2567
    %v2569 = vpop.f32.mrf.mxu0
    %2570 = vdwg.mxu0
    %v2571 = vmul.f32 %v2264, 0.25
    %v2572 = vmul.f32 %v2269, 0.25
    %v2573 = vmul.f32 %v2274, 0.25
    %v2574 = vmul.f32 %v2362, 0.25
    %v2575 = vmul.f32 %v2367, 0.25
    %v2576 = vmul.f32 %v2372, 0.25
    %v2577 = vmul.f32 %v2460, 0.25
    %v2578 = vmul.f32 %v2465, 0.25
    %v2579 = vmul.f32 %v2470, 0.25
    %v2580 = vmul.f32 %v2558, 0.25
    %v2581 = vmul.f32 %v2563, 0.25
    %v2582 = vmul.f32 %v2568, 0.25
    %v2583 = vadd.f32 %v2571, %v197
    %v2584 = vadd.f32 %v2572, %v197
    %v2585 = vadd.f32 %v2573, %v197
    %v2586 = vadd.f32 %v2574, %v197
    %v2587 = vadd.f32 %v2575, %v197
    %v2588 = vadd.f32 %v2576, %v197
    %v2589 = vadd.f32 %v2577, %v197
    %v2590 = vadd.f32 %v2578, %v197
    %v2591 = vadd.f32 %v2579, %v197
    %v2592 = vadd.f32 %v2580, %v197
    %v2593 = vadd.f32 %v2581, %v197
    %v2594 = vadd.f32 %v2582, %v197
    %v2595 = vsel %vm862, %v2583, -inf
    %2596 = vmax.xlane.f32.xlu0 %v2595
    %v2597 = vpop.xlane.xlu0 %2596
    %v2598 = vsel %vm862, %v2584, -inf
    %2599 = vmax.xlane.f32.xlu0 %v2598
    %v2600 = vpop.xlane.xlu0 %2599
    %v2601 = vsel %vm862, %v2585, -inf
    %2602 = vmax.xlane.f32.xlu0 %v2601
    %v2603 = vpop.xlane.xlu0 %2602
    %v2604 = vsel %vm862, %v2586, -inf
    %2605 = vmax.xlane.f32.xlu0 %v2604
    %v2606 = vpop.xlane.xlu0 %2605
    %v2607 = vsel %vm862, %v2587, -inf
    %2608 = vmax.xlane.f32.xlu0 %v2607
    %v2609 = vpop.xlane.xlu0 %2608
    %v2610 = vsel %vm862, %v2588, -inf
    %2611 = vmax.xlane.f32.xlu0 %v2610
    %v2612 = vpop.xlane.xlu0 %2611
    %v2613 = vsel %vm862, %v2589, -inf
    %2614 = vmax.xlane.f32.xlu0 %v2613
    %v2615 = vpop.xlane.xlu0 %2614
    %v2616 = vsel %vm862, %v2590, -inf
    %2617 = vmax.xlane.f32.xlu0 %v2616
    %v2618 = vpop.xlane.xlu0 %2617
    %v2619 = vsel %vm862, %v2591, -inf
    %2620 = vmax.xlane.f32.xlu0 %v2619
    %v2621 = vpop.xlane.xlu0 %2620
    %v2622 = vsel %vm862, %v2592, -inf
    %2623 = vmax.xlane.f32.xlu0 %v2622
    %v2624 = vpop.xlane.xlu0 %2623
    %v2625 = vsel %vm862, %v2593, -inf
    %2626 = vmax.xlane.f32.xlu0 %v2625
    %v2627 = vpop.xlane.xlu0 %2626
    %v2628 = vsel %vm862, %v2594, -inf
    %2629 = vmax.xlane.f32.xlu0 %v2628
    %v2630 = vpop.xlane.xlu0 %2629
    %v2631 = vsub.f32 %v2583, %v2597
    %v2632 = vsub.f32 %v2584, %v2600
    %v2633 = vsub.f32 %v2585, %v2603
    %v2634 = vsub.f32 %v2586, %v2606
    %v2635 = vsub.f32 %v2587, %v2609
    %v2636 = vsub.f32 %v2588, %v2612
    %v2637 = vsub.f32 %v2589, %v2615
    %v2638 = vsub.f32 %v2590, %v2618
    %v2639 = vsub.f32 %v2591, %v2621
    %v2640 = vsub.f32 %v2592, %v2624
    %v2641 = vsub.f32 %v2593, %v2627
    %v2642 = vsub.f32 %v2594, %v2630
    %v2643 = vmul.f32 %v2631, 1.442695
    %v2644 = vpow.pop %v2643
    %v2645 = vmul.f32 %v2632, 1.442695
    %v2646 = vpow.pop %v2645
    %v2647 = vmul.f32 %v2633, 1.442695
    %v2648 = vpow.pop %v2647
    %v2649 = vmul.f32 %v2634, 1.442695
    %v2650 = vpow.pop %v2649
    %v2651 = vmul.f32 %v2635, 1.442695
    %v2652 = vpow.pop %v2651
    %v2653 = vmul.f32 %v2636, 1.442695
    %v2654 = vpow.pop %v2653
    %v2655 = vmul.f32 %v2637, 1.442695
    %v2656 = vpow.pop %v2655
    %v2657 = vmul.f32 %v2638, 1.442695
    %v2658 = vpow.pop %v2657
    %v2659 = vmul.f32 %v2639, 1.442695
    %v2660 = vpow.pop %v2659
    %v2661 = vmul.f32 %v2640, 1.442695
    %v2662 = vpow.pop %v2661
    %v2663 = vmul.f32 %v2641, 1.442695
    %v2664 = vpow.pop %v2663
    %v2665 = vmul.f32 %v2642, 1.442695
    %v2666 = vpow.pop %v2665
    %v2667 = vsel %vm862, %v2644, 0.0
    %2668 = vadd.xlane.f32.xlu0 %v2667
    %v2669 = vpop.xlane.xlu0 %2668
    %v2670 = vsel %vm862, %v2646, 0.0
    %2671 = vadd.xlane.f32.xlu0 %v2670
    %v2672 = vpop.xlane.xlu0 %2671
    %v2673 = vsel %vm862, %v2648, 0.0
    %2674 = vadd.xlane.f32.xlu0 %v2673
    %v2675 = vpop.xlane.xlu0 %2674
    %v2676 = vsel %vm862, %v2650, 0.0
    %2677 = vadd.xlane.f32.xlu0 %v2676
    %v2678 = vpop.xlane.xlu0 %2677
    %v2679 = vsel %vm862, %v2652, 0.0
    %2680 = vadd.xlane.f32.xlu0 %v2679
    %v2681 = vpop.xlane.xlu0 %2680
    %v2682 = vsel %vm862, %v2654, 0.0
    %2683 = vadd.xlane.f32.xlu0 %v2682
    %v2684 = vpop.xlane.xlu0 %2683
    %v2685 = vsel %vm862, %v2656, 0.0
    %2686 = vadd.xlane.f32.xlu0 %v2685
    %v2687 = vpop.xlane.xlu0 %2686
    %v2688 = vsel %vm862, %v2658, 0.0
    %2689 = vadd.xlane.f32.xlu0 %v2688
    %v2690 = vpop.xlane.xlu0 %2689
    %v2691 = vsel %vm862, %v2660, 0.0
    %2692 = vadd.xlane.f32.xlu0 %v2691
    %v2693 = vpop.xlane.xlu0 %2692
    %v2694 = vsel %vm862, %v2662, 0.0
    %2695 = vadd.xlane.f32.xlu0 %v2694
    %v2696 = vpop.xlane.xlu0 %2695
    %v2697 = vsel %vm862, %v2664, 0.0
    %2698 = vadd.xlane.f32.xlu0 %v2697
    %v2699 = vpop.xlane.xlu0 %2698
    %v2700 = vsel %vm862, %v2666, 0.0
    %2701 = vadd.xlane.f32.xlu0 %v2700
    %v2702 = vpop.xlane.xlu0 %2701
    %v2703 = vrcp.pop %v2669
    %v2704 = vrcp.pop %v2672
    %v2705 = vrcp.pop %v2675
    %v2706 = vrcp.pop %v2678
    %v2707 = vrcp.pop %v2681
    %v2708 = vrcp.pop %v2684
    %v2709 = vrcp.pop %v2687
    %v2710 = vrcp.pop %v2690
    %v2711 = vrcp.pop %v2693
    %v2712 = vrcp.pop %v2696
    %v2713 = vrcp.pop %v2699
    %v2714 = vrcp.pop %v2702
    %v2715 = vmul.f32 %v2644, %v2703
    %v2716 = vmul.f32 %v2646, %v2704
    %v2717 = vmul.f32 %v2648, %v2705
    %v2718 = vmul.f32 %v2650, %v2706
    %v2719 = vmul.f32 %v2652, %v2707
    %v2720 = vmul.f32 %v2654, %v2708
    %v2721 = vmul.f32 %v2656, %v2709
    %v2722 = vmul.f32 %v2658, %v2710
    %v2723 = vmul.f32 %v2660, %v2711
    %v2724 = vmul.f32 %v2662, %v2712
    %v2725 = vmul.f32 %v2664, %v2713
    %v2726 = vmul.f32 %v2666, %v2714
    %2727 = vrot.lane.b32.xlu0 %v2133, 64
    %v2728 = vpop.permute.xlu0 %2727
    %2729 = vrot.lane.b32.xlu0 %v2138, 64
    %v2730 = vpop.permute.xlu0 %2729
    %2731 = vrot.lane.b32.xlu0 %v2143, 64
    %v2732 = vpop.permute.xlu0 %2731
    %v2737 = vsel %vm862, %v2715, 0
    %v2740 = vsel %vm862, %v2716, 0
    %v2743 = vsel %vm862, %v2717, 0
    %2745 = vmatprep.subr.mxu0 0.0
    %2746 = vmatpush1.msra.mxu0 0.0
    %2747 = vmatprep.subr.mxu0 0.0
    %2748 = vmatpush1.msra.mxu0 0.0
    %2749 = vmatprep.subr.mxu0 0.0
    %2750 = vmatpush1.msra.mxu0 0.0
    %2751 = vmatprep.subr.mxu0 0.0
    %2752 = vmatpush1.msra.mxu0 0.0
    %2753 = vmatprep.subr.mxu0 0.0
    %2754 = vmatpush1.msra.mxu0 0.0
    %2755 = vmatprep.subr.mxu0 0.0
    %2756 = vmatpush1.msra.mxu0 0.0
    %2757 = vmatprep.subr.mxu0 0.0
    %2758 = vmatpush1.msra.mxu0 0.0
    %2759 = vmatprep.subr.mxu0 0.0
    %2760 = vmatpush1.msra.mxu0 0.0
    %2761 = vmatprep.subr.mxu0 0.0
    %2762 = vmatpush1.msra.mxu0 0.0
    %2763 = vmatprep.subr.mxu0 0.0
    %2764 = vmatpush1.msra.mxu0 0.0
    %2765 = vmatprep.subr.mxu0 0.0
    %2766 = vmatpush1.msra.mxu0 0.0
    %2767 = vmatprep.subr.mxu0 0.0
    %2768 = vmatpush1.msra.mxu0 0.0
    %2769 = vmatprep.subr.mxu0 0.0
    %2770 = vmatpush1.msra.mxu0 0.0
    %2771 = vmatprep.subr.mxu0 0.0
    %2772 = vmatpush1.msra.mxu0 %v2732
    %2773 = vmatprep.subr.mxu0 0.0
    %2774 = vmatpush1.msra.mxu0 %v2730
    %2775 = vmatprep.subr.mxu0 0.0
    %2776 = vmatpush1.msra.mxu0 %v2728
    %2777 = vmatprep.subr.mxu0 0.0
    %2778 = vmatpush2.msra.mxu0 0.0
    %2779 = vmatprep.subr.mxu0 0.0
    %2780 = vmatpush2.msra.mxu0 0.0
    %2781 = vmatprep.subr.mxu0 0.0
    %2782 = vmatpush2.msra.mxu0 0.0
    %2783 = vmatprep.subr.mxu0 0.0
    %2784 = vmatpush2.msra.mxu0 0.0
    %2785 = vmatprep.subr.mxu0 0.0
    %2786 = vmatpush2.msra.mxu0 0.0
    %2787 = vmatprep.subr.mxu0 0.0
    %2788 = vmatpush2.msra.mxu0 0.0
    %2789 = vmatprep.subr.mxu0 0.0
    %2790 = vmatpush2.msra.mxu0 0.0
    %2791 = vmatprep.subr.mxu0 0.0
    %2792 = vmatpush2.msra.mxu0 0.0
    %2793 = vmatprep.subr.mxu0 0.0
    %2794 = vmatpush2.msra.mxu0 0.0
    %2795 = vmatprep.subr.mxu0 0.0
    %2796 = vmatpush2.msra.mxu0 0.0
    %2797 = vmatprep.subr.mxu0 0.0
    %2798 = vmatpush2.msra.mxu0 0.0
    %2799 = vmatprep.subr.mxu0 0.0
    %2800 = vmatpush2.msra.mxu0 0.0
    %2801 = vmatprep.subr.mxu0 0.0
    %2802 = vmatpush2.msra.mxu0 0.0
    %2803 = vmatprep.subr.mxu0 0.0
    %2804 = vmatpush2.msra.mxu0 0.0
    %2805 = vmatprep.subr.mxu0 0.0
    %2806 = vmatpush2.msra.mxu0 0.0
    %2807 = vmatprep.subr.mxu0 0.0
    %2808 = vmatpush2.msra.mxu0 0.0
    %2809 = vmatprep.mubr.f32.mxu0 0.0
    %2810 = vmatmul.mubr.f32.gmra.mxu0 %v2737
    %v2811 = vpop.f32.mrf.mxu0
    %v2812 = vadd.f32 0.0, %v2811
    %v2813 = vpop.f32.mrf.mxu0
    %2814 = vmatprep.mubr.f32.mxu0 0.0
    %2815 = vmatmul.mubr.f32.gmra.mxu0 %v2740
    %v2816 = vpop.f32.mrf.mxu0
    %v2817 = vadd.f32 0.0, %v2816
    %v2818 = vpop.f32.mrf.mxu0
    %2819 = vmatprep.mubr.f32.mxu0 0.0
    %2820 = vmatmul.mubr.f32.gmra.mxu0 %v2743
    %v2821 = vpop.f32.mrf.mxu0
    %v2822 = vadd.f32 0.0, %v2821
    %v2823 = vpop.f32.mrf.mxu0
    %2824 = vdwg.mxu0
    %2825 = vrot.lane.b32.xlu0 %v2148, 64
    %v2826 = vpop.permute.xlu0 %2825
    %2827 = vrot.lane.b32.xlu0 %v2153, 64
    %v2828 = vpop.permute.xlu0 %2827
    %2829 = vrot.lane.b32.xlu0 %v2158, 64
    %v2830 = vpop.permute.xlu0 %2829
    %v2835 = vsel %vm862, %v2718, 0
    %v2838 = vsel %vm862, %v2719, 0
    %v2841 = vsel %vm862, %v2720, 0
    %2843 = vmatprep.subr.mxu0 0.0
    %2844 = vmatpush1.msra.mxu0 0.0
    %2845 = vmatprep.subr.mxu0 0.0
    %2846 = vmatpush1.msra.mxu0 0.0
    %2847 = vmatprep.subr.mxu0 0.0
    %2848 = vmatpush1.msra.mxu0 0.0
    %2849 = vmatprep.subr.mxu0 0.0
    %2850 = vmatpush1.msra.mxu0 0.0
    %2851 = vmatprep.subr.mxu0 0.0
    %2852 = vmatpush1.msra.mxu0 0.0
    %2853 = vmatprep.subr.mxu0 0.0
    %2854 = vmatpush1.msra.mxu0 0.0
    %2855 = vmatprep.subr.mxu0 0.0
    %2856 = vmatpush1.msra.mxu0 0.0
    %2857 = vmatprep.subr.mxu0 0.0
    %2858 = vmatpush1.msra.mxu0 0.0
    %2859 = vmatprep.subr.mxu0 0.0
    %2860 = vmatpush1.msra.mxu0 0.0
    %2861 = vmatprep.subr.mxu0 0.0
    %2862 = vmatpush1.msra.mxu0 0.0
    %2863 = vmatprep.subr.mxu0 0.0
    %2864 = vmatpush1.msra.mxu0 0.0
    %2865 = vmatprep.subr.mxu0 0.0
    %2866 = vmatpush1.msra.mxu0 0.0
    %2867 = vmatprep.subr.mxu0 0.0
    %2868 = vmatpush1.msra.mxu0 0.0
    %2869 = vmatprep.subr.mxu0 0.0
    %2870 = vmatpush1.msra.mxu0 %v2830
    %2871 = vmatprep.subr.mxu0 0.0
    %2872 = vmatpush1.msra.mxu0 %v2828
    %2873 = vmatprep.subr.mxu0 0.0
    %2874 = vmatpush1.msra.mxu0 %v2826
    %2875 = vmatprep.subr.mxu0 0.0
    %2876 = vmatpush2.msra.mxu0 0.0
    %2877 = vmatprep.subr.mxu0 0.0
    %2878 = vmatpush2.msra.mxu0 0.0
    %2879 = vmatprep.subr.mxu0 0.0
    %2880 = vmatpush2.msra.mxu0 0.0
    %2881 = vmatprep.subr.mxu0 0.0
    %2882 = vmatpush2.msra.mxu0 0.0
    %2883 = vmatprep.subr.mxu0 0.0
    %2884 = vmatpush2.msra.mxu0 0.0
    %2885 = vmatprep.subr.mxu0 0.0
    %2886 = vmatpush2.msra.mxu0 0.0
    %2887 = vmatprep.subr.mxu0 0.0
    %2888 = vmatpush2.msra.mxu0 0.0
    %2889 = vmatprep.subr.mxu0 0.0
    %2890 = vmatpush2.msra.mxu0 0.0
    %2891 = vmatprep.subr.mxu0 0.0
    %2892 = vmatpush2.msra.mxu0 0.0
    %2893 = vmatprep.subr.mxu0 0.0
    %2894 = vmatpush2.msra.mxu0 0.0
    %2895 = vmatprep.subr.mxu0 0.0
    %2896 = vmatpush2.msra.mxu0 0.0
    %2897 = vmatprep.subr.mxu0 0.0
    %2898 = vmatpush2.msra.mxu0 0.0
    %2899 = vmatprep.subr.mxu0 0.0
    %2900 = vmatpush2.msra.mxu0 0.0
    %2901 = vmatprep.subr.mxu0 0.0
    %2902 = vmatpush2.msra.mxu0 0.0
    %2903 = vmatprep.subr.mxu0 0.0
    %2904 = vmatpush2.msra.mxu0 0.0
    %2905 = vmatprep.subr.mxu0 0.0
    %2906 = vmatpush2.msra.mxu0 0.0
    %2907 = vmatprep.mubr.f32.mxu0 0.0
    %2908 = vmatmul.mubr.f32.gmra.mxu0 %v2835
    %v2909 = vpop.f32.mrf.mxu0
    %v2910 = vadd.f32 0.0, %v2909
    %v2911 = vpop.f32.mrf.mxu0
    %2912 = vmatprep.mubr.f32.mxu0 0.0
    %2913 = vmatmul.mubr.f32.gmra.mxu0 %v2838
    %v2914 = vpop.f32.mrf.mxu0
    %v2915 = vadd.f32 0.0, %v2914
    %v2916 = vpop.f32.mrf.mxu0
    %2917 = vmatprep.mubr.f32.mxu0 0.0
    %2918 = vmatmul.mubr.f32.gmra.mxu0 %v2841
    %v2919 = vpop.f32.mrf.mxu0
    %v2920 = vadd.f32 0.0, %v2919
    %v2921 = vpop.f32.mrf.mxu0
    %2922 = vdwg.mxu0
    %2923 = vrot.lane.b32.xlu0 %v2168, 64
    %v2924 = vpop.permute.xlu0 %2923
    %2925 = vrot.lane.b32.xlu0 %v2170, 64
    %v2926 = vpop.permute.xlu0 %2925
    %2927 = vrot.lane.b32.xlu0 %v2172, 64
    %v2928 = vpop.permute.xlu0 %2927
    %v2933 = vsel %vm862, %v2721, 0
    %v2936 = vsel %vm862, %v2722, 0
    %v2939 = vsel %vm862, %v2723, 0
    %2941 = vmatprep.subr.mxu0 0.0
    %2942 = vmatpush1.msra.mxu0 0.0
    %2943 = vmatprep.subr.mxu0 0.0
    %2944 = vmatpush1.msra.mxu0 0.0
    %2945 = vmatprep.subr.mxu0 0.0
    %2946 = vmatpush1.msra.mxu0 0.0
    %2947 = vmatprep.subr.mxu0 0.0
    %2948 = vmatpush1.msra.mxu0 0.0
    %2949 = vmatprep.subr.mxu0 0.0
    %2950 = vmatpush1.msra.mxu0 0.0
    %2951 = vmatprep.subr.mxu0 0.0
    %2952 = vmatpush1.msra.mxu0 0.0
    %2953 = vmatprep.subr.mxu0 0.0
    %2954 = vmatpush1.msra.mxu0 0.0
    %2955 = vmatprep.subr.mxu0 0.0
    %2956 = vmatpush1.msra.mxu0 0.0
    %2957 = vmatprep.subr.mxu0 0.0
    %2958 = vmatpush1.msra.mxu0 0.0
    %2959 = vmatprep.subr.mxu0 0.0
    %2960 = vmatpush1.msra.mxu0 0.0
    %2961 = vmatprep.subr.mxu0 0.0
    %2962 = vmatpush1.msra.mxu0 0.0
    %2963 = vmatprep.subr.mxu0 0.0
    %2964 = vmatpush1.msra.mxu0 0.0
    %2965 = vmatprep.subr.mxu0 0.0
    %2966 = vmatpush1.msra.mxu0 0.0
    %2967 = vmatprep.subr.mxu0 0.0
    %2968 = vmatpush1.msra.mxu0 %v2928
    %2969 = vmatprep.subr.mxu0 0.0
    %2970 = vmatpush1.msra.mxu0 %v2926
    %2971 = vmatprep.subr.mxu0 0.0
    %2972 = vmatpush1.msra.mxu0 %v2924
    %2973 = vmatprep.subr.mxu0 0.0
    %2974 = vmatpush2.msra.mxu0 0.0
    %2975 = vmatprep.subr.mxu0 0.0
    %2976 = vmatpush2.msra.mxu0 0.0
    %2977 = vmatprep.subr.mxu0 0.0
    %2978 = vmatpush2.msra.mxu0 0.0
    %2979 = vmatprep.subr.mxu0 0.0
    %2980 = vmatpush2.msra.mxu0 0.0
    %2981 = vmatprep.subr.mxu0 0.0
    %2982 = vmatpush2.msra.mxu0 0.0
    %2983 = vmatprep.subr.mxu0 0.0
    %2984 = vmatpush2.msra.mxu0 0.0
    %2985 = vmatprep.subr.mxu0 0.0
    %2986 = vmatpush2.msra.mxu0 0.0
    %2987 = vmatprep.subr.mxu0 0.0
    %2988 = vmatpush2.msra.mxu0 0.0
    %2989 = vmatprep.subr.mxu0 0.0
    %2990 = vmatpush2.msra.mxu0 0.0
    %2991 = vmatprep.subr.mxu0 0.0
    %2992 = vmatpush2.msra.mxu0 0.0
    %2993 = vmatprep.subr.mxu0 0.0
    %2994 = vmatpush2.msra.mxu0 0.0
    %2995 = vmatprep.subr.mxu0 0.0
    %2996 = vmatpush2.msra.mxu0 0.0
    %2997 = vmatprep.subr.mxu0 0.0
    %2998 = vmatpush2.msra.mxu0 0.0
    %2999 = vmatprep.subr.mxu0 0.0
    %3000 = vmatpush2.msra.mxu0 0.0
    %3001 = vmatprep.subr.mxu0 0.0
    %3002 = vmatpush2.msra.mxu0 0.0
    %3003 = vmatprep.subr.mxu0 0.0
    %3004 = vmatpush2.msra.mxu0 0.0
    %3005 = vmatprep.mubr.f32.mxu0 0.0
    %3006 = vmatmul.mubr.f32.gmra.mxu0 %v2933
    %v3007 = vpop.f32.mrf.mxu0
    %v3008 = vadd.f32 0.0, %v3007
    %v3009 = vpop.f32.mrf.mxu0
    %3010 = vmatprep.mubr.f32.mxu0 0.0
    %3011 = vmatmul.mubr.f32.gmra.mxu0 %v2936
    %v3012 = vpop.f32.mrf.mxu0
    %v3013 = vadd.f32 0.0, %v3012
    %v3014 = vpop.f32.mrf.mxu0
    %3015 = vmatprep.mubr.f32.mxu0 0.0
    %3016 = vmatmul.mubr.f32.gmra.mxu0 %v2939
    %v3017 = vpop.f32.mrf.mxu0
    %v3018 = vadd.f32 0.0, %v3017
    %v3019 = vpop.f32.mrf.mxu0
    %3020 = vdwg.mxu0
    %3021 = vrot.lane.b32.xlu0 %v2174, 64
    %v3022 = vpop.permute.xlu0 %3021
    %3023 = vrot.lane.b32.xlu0 %v2176, 64
    %v3024 = vpop.permute.xlu0 %3023
    %3025 = vrot.lane.b32.xlu0 %v2178, 64
    %v3026 = vpop.permute.xlu0 %3025
    %v3031 = vsel %vm862, %v2724, 0
    %v3034 = vsel %vm862, %v2725, 0
    %v3037 = vsel %vm862, %v2726, 0
    %3039 = vmatprep.subr.mxu0 0.0
    %3040 = vmatpush1.msra.mxu0 0.0
    %3041 = vmatprep.subr.mxu0 0.0
    %3042 = vmatpush1.msra.mxu0 0.0
    %3043 = vmatprep.subr.mxu0 0.0
    %3044 = vmatpush1.msra.mxu0 0.0
    %3045 = vmatprep.subr.mxu0 0.0
    %3046 = vmatpush1.msra.mxu0 0.0
    %3047 = vmatprep.subr.mxu0 0.0
    %3048 = vmatpush1.msra.mxu0 0.0
    %3049 = vmatprep.subr.mxu0 0.0
    %3050 = vmatpush1.msra.mxu0 0.0
    %3051 = vmatprep.subr.mxu0 0.0
    %3052 = vmatpush1.msra.mxu0 0.0
    %3053 = vmatprep.subr.mxu0 0.0
    %3054 = vmatpush1.msra.mxu0 0.0
    %3055 = vmatprep.subr.mxu0 0.0
    %3056 = vmatpush1.msra.mxu0 0.0
    %3057 = vmatprep.subr.mxu0 0.0
    %3058 = vmatpush1.msra.mxu0 0.0
    %3059 = vmatprep.subr.mxu0 0.0
    %3060 = vmatpush1.msra.mxu0 0.0
    %3061 = vmatprep.subr.mxu0 0.0
    %3062 = vmatpush1.msra.mxu0 0.0
    %3063 = vmatprep.subr.mxu0 0.0
    %3064 = vmatpush1.msra.mxu0 0.0
    %3065 = vmatprep.subr.mxu0 0.0
    %3066 = vmatpush1.msra.mxu0 %v3026
    %3067 = vmatprep.subr.mxu0 0.0
    %3068 = vmatpush1.msra.mxu0 %v3024
    %3069 = vmatprep.subr.mxu0 0.0
    %3070 = vmatpush1.msra.mxu0 %v3022
    %3071 = vmatprep.subr.mxu0 0.0
    %3072 = vmatpush2.msra.mxu0 0.0
    %3073 = vmatprep.subr.mxu0 0.0
    %3074 = vmatpush2.msra.mxu0 0.0
    %3075 = vmatprep.subr.mxu0 0.0
    %3076 = vmatpush2.msra.mxu0 0.0
    %3077 = vmatprep.subr.mxu0 0.0
    %3078 = vmatpush2.msra.mxu0 0.0
    %3079 = vmatprep.subr.mxu0 0.0
    %3080 = vmatpush2.msra.mxu0 0.0
    %3081 = vmatprep.subr.mxu0 0.0
    %3082 = vmatpush2.msra.mxu0 0.0
    %3083 = vmatprep.subr.mxu0 0.0
    %3084 = vmatpush2.msra.mxu0 0.0
    %3085 = vmatprep.subr.mxu0 0.0
    %3086 = vmatpush2.msra.mxu0 0.0
    %3087 = vmatprep.subr.mxu0 0.0
    %3088 = vmatpush2.msra.mxu0 0.0
    %3089 = vmatprep.subr.mxu0 0.0
    %3090 = vmatpush2.msra.mxu0 0.0
    %3091 = vmatprep.subr.mxu0 0.0
    %3092 = vmatpush2.msra.mxu0 0.0
    %3093 = vmatprep.subr.mxu0 0.0
    %3094 = vmatpush2.msra.mxu0 0.0
    %3095 = vmatprep.subr.mxu0 0.0
    %3096 = vmatpush2.msra.mxu0 0.0
    %3097 = vmatprep.subr.mxu0 0.0
    %3098 = vmatpush2.msra.mxu0 0.0
    %3099 = vmatprep.subr.mxu0 0.0
    %3100 = vmatpush2.msra.mxu0 0.0
    %3101 = vmatprep.subr.mxu0 0.0
    %3102 = vmatpush2.msra.mxu0 0.0
    %3103 = vmatprep.mubr.f32.mxu0 0.0
    %3104 = vmatmul.mubr.f32.gmra.mxu0 %v3031
    %v3105 = vpop.f32.mrf.mxu0
    %v3106 = vadd.f32 0.0, %v3105
    %v3107 = vpop.f32.mrf.mxu0
    %3108 = vmatprep.mubr.f32.mxu0 0.0
    %3109 = vmatmul.mubr.f32.gmra.mxu0 %v3034
    %v3110 = vpop.f32.mrf.mxu0
    %v3111 = vadd.f32 0.0, %v3110
    %v3112 = vpop.f32.mrf.mxu0
    %3113 = vmatprep.mubr.f32.mxu0 0.0
    %3114 = vmatmul.mubr.f32.gmra.mxu0 %v3037
    %v3115 = vpop.f32.mrf.mxu0
    %v3116 = vadd.f32 0.0, %v3115
    %v3117 = vpop.f32.mrf.mxu0
    %3118 = vdwg.mxu0
    %3125 = vrot.lane.b32.xlu0 %v3008, 16
    %v3126 = vpop.permute.xlu0 %3125
    %3127 = vrot.lane.b32.xlu0 %v3013, 16
    %v3128 = vpop.permute.xlu0 %3127
    %3129 = vrot.lane.b32.xlu0 %v3018, 16
    %v3130 = vpop.permute.xlu0 %3129
    %3131 = vrot.lane.b32.xlu0 %v3106, 16
    %v3132 = vpop.permute.xlu0 %3131
    %3133 = vrot.lane.b32.xlu0 %v3111, 16
    %v3134 = vpop.permute.xlu0 %3133
    %3135 = vrot.lane.b32.xlu0 %v3116, 16
    %v3136 = vpop.permute.xlu0 %3135
    %v3143 = vsel %vm451, %v2812, %v3126
    %v3144 = vsel %vm451, %v2817, %v3128
    %v3145 = vsel %vm451, %v2822, %v3130
    %v3146 = vsel %vm451, %v2910, %v3132
    %v3147 = vsel %vm451, %v2915, %v3134
    %v3148 = vsel %vm451, %v2920, %v3136
    %s3149 = scalar_lea.vmem %s8, 32
    %v3150 = vld [vmem:[%s3149] sm:$0xff]
    %v3151 = vld [vmem:[%s3149 + $0x8] sm:$0xff]
    %v3152 = vld [vmem:[%s3149 + $0x10] sm:$0xff]
    %v3153 = vld [vmem:[%s3149 + $0x18] sm:$0xff]
    %s3154 = scalar_lea.vmem %s9, 1
    %v3155 = vld [vmem:[%s3154] sm:$0x1]
    %v3157 = vlaneseq
    %v3158 = vshrl.u32 %v3157, 7
    %v3159 = vsub.s32 0, %v3158
    %v3160 = vrot.slane %v3155, %v3159
    %v3163 = vsel %vm180, %v3143, 0
    %v3166 = vsel %vm180, %v3144, 0
    %v3169 = vsel %vm180, %v3145, 0
    %v3172 = vsel %vm180, %v3146, 0
    %v3175 = vsel %vm180, %v3147, 0
    %v3178 = vsel %vm180, %v3148, 0
    %3180 = vmatprep.subr.mxu0 0.0
    %3181 = vmatpush1.msra.mxu0 0.0
    %3182 = vmatprep.subr.mxu0 0.0
    %3183 = vmatpush1.msra.mxu0 0.0
    %3184 = vmatprep.subr.mxu0 0.0
    %3185 = vmatpush1.msra.mxu0 0.0
    %3186 = vmatprep.subr.mxu0 0.0
    %3187 = vmatpush1.msra.mxu0 0.0
    %3188 = vmatprep.subr.mxu0 0.0
    %3189 = vmatpush1.msra.mxu0 0.0
    %3190 = vmatprep.subr.mxu0 0.0
    %3191 = vmatpush1.msra.mxu0 0.0
    %3192 = vmatprep.subr.mxu0 0.0
    %3193 = vmatpush1.msra.mxu0 0.0
    %3194 = vmatprep.subr.mxu0 0.0
    %3195 = vmatpush1.msra.mxu0 0.0
    %3196 = vmatprep.subr.mxu0 0.0
    %3197 = vmatpush1.msra.mxu0 0.0
    %3198 = vmatprep.subr.mxu0 0.0
    %3199 = vmatpush1.msra.mxu0 0.0
    %3200 = vmatprep.subr.mxu0 0.0
    %3201 = vmatpush1.msra.mxu0 0.0
    %3202 = vmatprep.subr.mxu0 0.0
    %3203 = vmatpush1.msra.mxu0 0.0
    %3204 = vmatprep.subr.mxu0 0.0
    %3205 = vmatpush1.msra.mxu0 %v3153
    %3206 = vmatprep.subr.mxu0 0.0
    %3207 = vmatpush1.msra.mxu0 %v3152
    %3208 = vmatprep.subr.mxu0 0.0
    %3209 = vmatpush1.msra.mxu0 %v3151
    %3210 = vmatprep.subr.mxu0 0.0
    %3211 = vmatpush1.msra.mxu0 %v3150
    %3212 = vmatprep.subr.mxu0 0.0
    %3213 = vmatpush2.msra.mxu0 0.0
    %3214 = vmatprep.subr.mxu0 0.0
    %3215 = vmatpush2.msra.mxu0 0.0
    %3216 = vmatprep.subr.mxu0 0.0
    %3217 = vmatpush2.msra.mxu0 0.0
    %3218 = vmatprep.subr.mxu0 0.0
    %3219 = vmatpush2.msra.mxu0 0.0
    %3220 = vmatprep.subr.mxu0 0.0
    %3221 = vmatpush2.msra.mxu0 0.0
    %3222 = vmatprep.subr.mxu0 0.0
    %3223 = vmatpush2.msra.mxu0 0.0
    %3224 = vmatprep.subr.mxu0 0.0
    %3225 = vmatpush2.msra.mxu0 0.0
    %3226 = vmatprep.subr.mxu0 0.0
    %3227 = vmatpush2.msra.mxu0 0.0
    %3228 = vmatprep.subr.mxu0 0.0
    %3229 = vmatpush2.msra.mxu0 0.0
    %3230 = vmatprep.subr.mxu0 0.0
    %3231 = vmatpush2.msra.mxu0 0.0
    %3232 = vmatprep.subr.mxu0 0.0
    %3233 = vmatpush2.msra.mxu0 0.0
    %3234 = vmatprep.subr.mxu0 0.0
    %3235 = vmatpush2.msra.mxu0 0.0
    %3236 = vmatprep.subr.mxu0 0.0
    %3237 = vmatpush2.msra.mxu0 0.0
    %3238 = vmatprep.subr.mxu0 0.0
    %3239 = vmatpush2.msra.mxu0 0.0
    %3240 = vmatprep.subr.mxu0 0.0
    %3241 = vmatpush2.msra.mxu0 0.0
    %3242 = vmatprep.subr.mxu0 0.0
    %3243 = vmatpush2.msra.mxu0 0.0
    %3244 = vmatprep.mubr.f32.mxu0 0.0
    %3245 = vmatmul.mubr.f32.gmra.mxu0 %v3163
    %v3246 = vpop.f32.mrf.mxu0
    %v3247 = vadd.f32 %v3160, %v3246
    %v3248 = vpop.f32.mrf.mxu0
    %3249 = vmatprep.mubr.f32.mxu0 0.0
    %3250 = vmatmul.mubr.f32.gmra.mxu0 %v3166
    %v3251 = vpop.f32.mrf.mxu0
    %v3252 = vadd.f32 %v3160, %v3251
    %v3253 = vpop.f32.mrf.mxu0
    %3254 = vmatprep.mubr.f32.mxu0 0.0
    %3255 = vmatmul.mubr.f32.gmra.mxu0 %v3169
    %v3256 = vpop.f32.mrf.mxu0
    %v3257 = vadd.f32 %v3160, %v3256
    %v3258 = vpop.f32.mrf.mxu0
    %3259 = vmatprep.mubr.f32.mxu0 0.0
    %3260 = vmatmul.mubr.f32.gmra.mxu0 %v3172
    %v3261 = vpop.f32.mrf.mxu0
    %v3262 = vadd.f32 %v3160, %v3261
    %v3263 = vpop.f32.mrf.mxu0
    %3264 = vmatprep.mubr.f32.mxu0 0.0
    %3265 = vmatmul.mubr.f32.gmra.mxu0 %v3175
    %v3266 = vpop.f32.mrf.mxu0
    %v3267 = vadd.f32 %v3160, %v3266
    %v3268 = vpop.f32.mrf.mxu0
    %3269 = vmatprep.mubr.f32.mxu0 0.0
    %3270 = vmatmul.mubr.f32.gmra.mxu0 %v3178
    %v3271 = vpop.f32.mrf.mxu0
    %v3272 = vadd.f32 %v3160, %v3271
    %v3273 = vpop.f32.mrf.mxu0
    %3274 = vdwg.mxu0
    %v3275 = vadd.f32 %v1923, %v3247
    %v3276 = vadd.f32 %v1924, %v3252
    %v3277 = vadd.f32 %v1925, %v3257
    %v3278 = vadd.f32 %v1926, %v3262
    %v3279 = vadd.f32 %v1927, %v3267
    %v3280 = vadd.f32 %v1928, %v3272
    %s3281 = scalar_lea.vmem %s10, 1
    %v3282 = vld [vmem:[%s3281] sm:$0x1]
    %s3283 = scalar_lea.vmem %s11, 1
    %v3284 = vld [vmem:[%s3283] sm:$0x1]
    %v3285 = vsel %vm180, %v3275, 0.0
    %3286 = vadd.xlane.f32.xlu0 %v3285
    %v3287 = vpop.xlane.xlu0 %3286
    %v3288 = vsel %vm180, %v3276, 0.0
    %3289 = vadd.xlane.f32.xlu0 %v3288
    %v3290 = vpop.xlane.xlu0 %3289
    %v3291 = vsel %vm180, %v3277, 0.0
    %3292 = vadd.xlane.f32.xlu0 %v3291
    %v3293 = vpop.xlane.xlu0 %3292
    %v3294 = vsel %vm180, %v3278, 0.0
    %3295 = vadd.xlane.f32.xlu0 %v3294
    %v3296 = vpop.xlane.xlu0 %3295
    %v3297 = vsel %vm180, %v3279, 0.0
    %3298 = vadd.xlane.f32.xlu0 %v3297
    %v3299 = vpop.xlane.xlu0 %3298
    %v3300 = vsel %vm180, %v3280, 0.0
    %3301 = vadd.xlane.f32.xlu0 %v3300
    %v3302 = vpop.xlane.xlu0 %3301
    %v3303 = vmul.f32 %v3287, %v218
    %v3304 = vmul.f32 %v3290, %v218
    %v3305 = vmul.f32 %v3293, %v218
    %v3306 = vmul.f32 %v3296, %v218
    %v3307 = vmul.f32 %v3299, %v218
    %v3308 = vmul.f32 %v3302, %v218
    %v3309 = vsub.f32 %v3275, %v3303
    %v3310 = vsub.f32 %v3276, %v3304
    %v3311 = vsub.f32 %v3277, %v3305
    %v3312 = vsub.f32 %v3278, %v3306
    %v3313 = vsub.f32 %v3279, %v3307
    %v3314 = vsub.f32 %v3280, %v3308
    %v3315 = vmul.f32 %v3309, %v3309
    %v3316 = vmul.f32 %v3310, %v3310
    %v3317 = vmul.f32 %v3311, %v3311
    %v3318 = vmul.f32 %v3312, %v3312
    %v3319 = vmul.f32 %v3313, %v3313
    %v3320 = vmul.f32 %v3314, %v3314
    %v3321 = vsel %vm180, %v3315, 0.0
    %3322 = vadd.xlane.f32.xlu0 %v3321
    %v3323 = vpop.xlane.xlu0 %3322
    %v3324 = vsel %vm180, %v3316, 0.0
    %3325 = vadd.xlane.f32.xlu0 %v3324
    %v3326 = vpop.xlane.xlu0 %3325
    %v3327 = vsel %vm180, %v3317, 0.0
    %3328 = vadd.xlane.f32.xlu0 %v3327
    %v3329 = vpop.xlane.xlu0 %3328
    %v3330 = vsel %vm180, %v3318, 0.0
    %3331 = vadd.xlane.f32.xlu0 %v3330
    %v3332 = vpop.xlane.xlu0 %3331
    %v3333 = vsel %vm180, %v3319, 0.0
    %3334 = vadd.xlane.f32.xlu0 %v3333
    %v3335 = vpop.xlane.xlu0 %3334
    %v3336 = vsel %vm180, %v3320, 0.0
    %3337 = vadd.xlane.f32.xlu0 %v3336
    %v3338 = vpop.xlane.xlu0 %3337
    %v3339 = vmul.f32 %v3323, %v218
    %v3340 = vmul.f32 %v3326, %v218
    %v3341 = vmul.f32 %v3329, %v218
    %v3342 = vmul.f32 %v3332, %v218
    %v3343 = vmul.f32 %v3335, %v218
    %v3344 = vmul.f32 %v3338, %v218
    %v3345 = vadd.f32 %v3339, 1e-05
    %v3346 = vadd.f32 %v3340, 1e-05
    %v3347 = vadd.f32 %v3341, 1e-05
    %v3348 = vadd.f32 %v3342, 1e-05
    %v3349 = vadd.f32 %v3343, 1e-05
    %v3350 = vadd.f32 %v3344, 1e-05
    %v3351 = vrsqrt.pop %v3345
    %v3352 = vrsqrt.pop %v3346
    %v3353 = vrsqrt.pop %v3347
    %v3354 = vrsqrt.pop %v3348
    %v3355 = vrsqrt.pop %v3349
    %v3356 = vrsqrt.pop %v3350
    %v3357 = vmul.f32 %v3309, %v3351
    %v3358 = vmul.f32 %v3310, %v3352
    %v3359 = vmul.f32 %v3311, %v3353
    %v3360 = vmul.f32 %v3312, %v3354
    %v3361 = vmul.f32 %v3313, %v3355
    %v3362 = vmul.f32 %v3314, %v3356
    %v3364 = vlaneseq
    %v3365 = vshrl.u32 %v3364, 7
    %v3366 = vsub.s32 0, %v3365
    %v3367 = vrot.slane %v3282, %v3366
    %v3369 = vmul.f32 %v3357, %v3367
    %v3370 = vmul.f32 %v3358, %v3367
    %v3371 = vmul.f32 %v3359, %v3367
    %v3372 = vmul.f32 %v3360, %v3367
    %v3373 = vmul.f32 %v3361, %v3367
    %v3374 = vmul.f32 %v3362, %v3367
    %v3376 = vlaneseq
    %v3377 = vshrl.u32 %v3376, 7
    %v3378 = vsub.s32 0, %v3377
    %v3379 = vrot.slane %v3284, %v3378
    %v3381 = vadd.f32 %v3369, %v3379
    %v3382 = vadd.f32 %v3370, %v3379
    %v3383 = vadd.f32 %v3371, %v3379
    %v3384 = vadd.f32 %v3372, %v3379
    %v3385 = vadd.f32 %v3373, %v3379
    %v3386 = vadd.f32 %v3374, %v3379
    %s3387 = scalar_lea.vmem %s12, 32
    %v3388 = vld [vmem:[%s3387] sm:$0xff]
    %v3389 = vld [vmem:[%s3387 + $0x8] sm:$0xff]
    %v3390 = vld [vmem:[%s3387 + $0x10] sm:$0xff]
    %v3391 = vld [vmem:[%s3387 + $0x18] sm:$0xff]
    %s3392 = scalar_lea.vmem %s13, 1
    %v3393 = vld [vmem:[%s3392] sm:$0x1]
    %v3395 = vlaneseq
    %v3396 = vshrl.u32 %v3395, 7
    %v3397 = vsub.s32 0, %v3396
    %v3398 = vrot.slane %v3393, %v3397
    %v3401 = vsel %vm180, %v3381, 0
    %v3404 = vsel %vm180, %v3382, 0
    %v3407 = vsel %vm180, %v3383, 0
    %v3410 = vsel %vm180, %v3384, 0
    %v3413 = vsel %vm180, %v3385, 0
    %v3416 = vsel %vm180, %v3386, 0
    %3418 = vmatprep.subr.mxu0 0.0
    %3419 = vmatpush1.msra.mxu0 0.0
    %3420 = vmatprep.subr.mxu0 0.0
    %3421 = vmatpush1.msra.mxu0 0.0
    %3422 = vmatprep.subr.mxu0 0.0
    %3423 = vmatpush1.msra.mxu0 0.0
    %3424 = vmatprep.subr.mxu0 0.0
    %3425 = vmatpush1.msra.mxu0 0.0
    %3426 = vmatprep.subr.mxu0 0.0
    %3427 = vmatpush1.msra.mxu0 0.0
    %3428 = vmatprep.subr.mxu0 0.0
    %3429 = vmatpush1.msra.mxu0 0.0
    %3430 = vmatprep.subr.mxu0 0.0
    %3431 = vmatpush1.msra.mxu0 0.0
    %3432 = vmatprep.subr.mxu0 0.0
    %3433 = vmatpush1.msra.mxu0 0.0
    %3434 = vmatprep.subr.mxu0 0.0
    %3435 = vmatpush1.msra.mxu0 0.0
    %3436 = vmatprep.subr.mxu0 0.0
    %3437 = vmatpush1.msra.mxu0 0.0
    %3438 = vmatprep.subr.mxu0 0.0
    %3439 = vmatpush1.msra.mxu0 0.0
    %3440 = vmatprep.subr.mxu0 0.0
    %3441 = vmatpush1.msra.mxu0 0.0
    %3442 = vmatprep.subr.mxu0 0.0
    %3443 = vmatpush1.msra.mxu0 %v3391
    %3444 = vmatprep.subr.mxu0 0.0
    %3445 = vmatpush1.msra.mxu0 %v3390
    %3446 = vmatprep.subr.mxu0 0.0
    %3447 = vmatpush1.msra.mxu0 %v3389
    %3448 = vmatprep.subr.mxu0 0.0
    %3449 = vmatpush1.msra.mxu0 %v3388
    %3450 = vmatprep.subr.mxu0 0.0
    %3451 = vmatpush2.msra.mxu0 0.0
    %3452 = vmatprep.subr.mxu0 0.0
    %3453 = vmatpush2.msra.mxu0 0.0
    %3454 = vmatprep.subr.mxu0 0.0
    %3455 = vmatpush2.msra.mxu0 0.0
    %3456 = vmatprep.subr.mxu0 0.0
    %3457 = vmatpush2.msra.mxu0 0.0
    %3458 = vmatprep.subr.mxu0 0.0
    %3459 = vmatpush2.msra.mxu0 0.0
    %3460 = vmatprep.subr.mxu0 0.0
    %3461 = vmatpush2.msra.mxu0 0.0
    %3462 = vmatprep.subr.mxu0 0.0
    %3463 = vmatpush2.msra.mxu0 0.0
    %3464 = vmatprep.subr.mxu0 0.0
    %3465 = vmatpush2.msra.mxu0 0.0
    %3466 = vmatprep.subr.mxu0 0.0
    %3467 = vmatpush2.msra.mxu0 0.0
    %3468 = vmatprep.subr.mxu0 0.0
    %3469 = vmatpush2.msra.mxu0 0.0
    %3470 = vmatprep.subr.mxu0 0.0
    %3471 = vmatpush2.msra.mxu0 0.0
    %3472 = vmatprep.subr.mxu0 0.0
    %3473 = vmatpush2.msra.mxu0 0.0
    %3474 = vmatprep.subr.mxu0 0.0
    %3475 = vmatpush2.msra.mxu0 0.0
    %3476 = vmatprep.subr.mxu0 0.0
    %3477 = vmatpush2.msra.mxu0 0.0
    %3478 = vmatprep.subr.mxu0 0.0
    %3479 = vmatpush2.msra.mxu0 0.0
    %3480 = vmatprep.subr.mxu0 0.0
    %3481 = vmatpush2.msra.mxu0 0.0
    %3482 = vmatprep.mubr.f32.mxu0 0.0
    %3483 = vmatmul.mubr.f32.gmra.mxu0 %v3401
    %v3484 = vpop.f32.mrf.mxu0
    %v3485 = vadd.f32 %v3398, %v3484
    %v3486 = vpop.f32.mrf.mxu0
    %3487 = vmatprep.mubr.f32.mxu0 0.0
    %3488 = vmatmul.mubr.f32.gmra.mxu0 %v3404
    %v3489 = vpop.f32.mrf.mxu0
    %v3490 = vadd.f32 %v3398, %v3489
    %v3491 = vpop.f32.mrf.mxu0
    %3492 = vmatprep.mubr.f32.mxu0 0.0
    %3493 = vmatmul.mubr.f32.gmra.mxu0 %v3407
    %v3494 = vpop.f32.mrf.mxu0
    %v3495 = vadd.f32 %v3398, %v3494
    %v3496 = vpop.f32.mrf.mxu0
    %3497 = vmatprep.mubr.f32.mxu0 0.0
    %3498 = vmatmul.mubr.f32.gmra.mxu0 %v3410
    %v3499 = vpop.f32.mrf.mxu0
    %v3500 = vadd.f32 %v3398, %v3499
    %v3501 = vpop.f32.mrf.mxu0
    %3502 = vmatprep.mubr.f32.mxu0 0.0
    %3503 = vmatmul.mubr.f32.gmra.mxu0 %v3413
    %v3504 = vpop.f32.mrf.mxu0
    %v3505 = vadd.f32 %v3398, %v3504
    %v3506 = vpop.f32.mrf.mxu0
    %3507 = vmatprep.mubr.f32.mxu0 0.0
    %3508 = vmatmul.mubr.f32.gmra.mxu0 %v3416
    %v3509 = vpop.f32.mrf.mxu0
    %v3510 = vadd.f32 %v3398, %v3509
    %v3511 = vpop.f32.mrf.mxu0
    %3512 = vdwg.mxu0
    %v3513 = vmul.f32 %v3485, 0.5
    %v3514 = vmul.f32 %v3490, 0.5
    %v3515 = vmul.f32 %v3495, 0.5
    %v3516 = vmul.f32 %v3500, 0.5
    %v3517 = vmul.f32 %v3505, 0.5
    %v3518 = vmul.f32 %v3510, 0.5
    %v3519 = vmul.f32 %v3485, 0.70710677
    %v3520 = vmul.f32 %v3490, 0.70710677
    %v3521 = vmul.f32 %v3495, 0.70710677
    %v3522 = vmul.f32 %v3500, 0.70710677
    %v3523 = vmul.f32 %v3505, 0.70710677
    %v3524 = vmul.f32 %v3510, 0.70710677
    %v3525 = verf.f32.pop %v3519
    %v3526 = verf.f32.pop %v3520
    %v3527 = verf.f32.pop %v3521
    %v3528 = verf.f32.pop %v3522
    %v3529 = verf.f32.pop %v3523
    %v3530 = verf.f32.pop %v3524
    %v3531 = vadd.f32 %v3525, 1.0
    %v3532 = vadd.f32 %v3526, 1.0
    %v3533 = vadd.f32 %v3527, 1.0
    %v3534 = vadd.f32 %v3528, 1.0
    %v3535 = vadd.f32 %v3529, 1.0
    %v3536 = vadd.f32 %v3530, 1.0
    %v3537 = vmul.f32 %v3513, %v3531
    %v3538 = vmul.f32 %v3514, %v3532
    %v3539 = vmul.f32 %v3515, %v3533
    %v3540 = vmul.f32 %v3516, %v3534
    %v3541 = vmul.f32 %v3517, %v3535
    %v3542 = vmul.f32 %v3518, %v3536
    %s3543 = scalar_lea.vmem %s14, 128
    %v3544 = vld [vmem:[%s3543] sm:$0xff]
    %v3545 = vld [vmem:[%s3543 + $0x8] sm:$0xff]
    %v3546 = vld [vmem:[%s3543 + $0x10] sm:$0xff]
    %v3547 = vld [vmem:[%s3543 + $0x18] sm:$0xff]
    %v3548 = vld [vmem:[%s3543 + $0x20] sm:$0xff]
    %v3549 = vld [vmem:[%s3543 + $0x28] sm:$0xff]
    %v3550 = vld [vmem:[%s3543 + $0x30] sm:$0xff]
    %v3551 = vld [vmem:[%s3543 + $0x38] sm:$0xff]
    %v3552 = vld [vmem:[%s3543 + $0x40] sm:$0xff]
    %v3553 = vld [vmem:[%s3543 + $0x48] sm:$0xff]
    %v3554 = vld [vmem:[%s3543 + $0x50] sm:$0xff]
    %v3555 = vld [vmem:[%s3543 + $0x58] sm:$0xff]
    %v3556 = vld [vmem:[%s3543 + $0x60] sm:$0xff]
    %v3557 = vld [vmem:[%s3543 + $0x68] sm:$0xff]
    %v3558 = vld [vmem:[%s3543 + $0x70] sm:$0xff]
    %v3559 = vld [vmem:[%s3543 + $0x78] sm:$0xff]
    %s3560 = scalar_lea.vmem %s15, 1
    %v3561 = vld [vmem:[%s3560] sm:$0x1]
    %v3563 = vlaneseq
    %v3564 = vshrl.u32 %v3563, 7
    %v3565 = vsub.s32 0, %v3564
    %v3566 = vrot.slane %v3561, %v3565
    %3568 = vmatprep.subr.mxu0 0.0
    %3569 = vmatpush1.msra.mxu0 %v3559
    %3570 = vmatprep.subr.mxu0 0.0
    %3571 = vmatpush1.msra.mxu0 %v3558
    %3572 = vmatprep.subr.mxu0 0.0
    %3573 = vmatpush1.msra.mxu0 %v3557
    %3574 = vmatprep.subr.mxu0 0.0
    %3575 = vmatpush1.msra.mxu0 %v3556
    %3576 = vmatprep.subr.mxu0 0.0
    %3577 = vmatpush1.msra.mxu0 %v3555
    %3578 = vmatprep.subr.mxu0 0.0
    %3579 = vmatpush1.msra.mxu0 %v3554
    %3580 = vmatprep.subr.mxu0 0.0
    %3581 = vmatpush1.msra.mxu0 %v3553
    %3582 = vmatprep.subr.mxu0 0.0
    %3583 = vmatpush1.msra.mxu0 %v3552
    %3584 = vmatprep.subr.mxu0 0.0
    %3585 = vmatpush1.msra.mxu0 %v3551
    %3586 = vmatprep.subr.mxu0 0.0
    %3587 = vmatpush1.msra.mxu0 %v3550
    %3588 = vmatprep.subr.mxu0 0.0
    %3589 = vmatpush1.msra.mxu0 %v3549
    %3590 = vmatprep.subr.mxu0 0.0
    %3591 = vmatpush1.msra.mxu0 %v3548
    %3592 = vmatprep.subr.mxu0 0.0
    %3593 = vmatpush1.msra.mxu0 %v3547
    %3594 = vmatprep.subr.mxu0 0.0
    %3595 = vmatpush1.msra.mxu0 %v3546
    %3596 = vmatprep.subr.mxu0 0.0
    %3597 = vmatpush1.msra.mxu0 %v3545
    %3598 = vmatprep.subr.mxu0 0.0
    %3599 = vmatpush1.msra.mxu0 %v3544
    %3600 = vmatprep.subr.mxu0 0.0
    %3601 = vmatpush2.msra.mxu0 0.0
    %3602 = vmatprep.subr.mxu0 0.0
    %3603 = vmatpush2.msra.mxu0 0.0
    %3604 = vmatprep.subr.mxu0 0.0
    %3605 = vmatpush2.msra.mxu0 0.0
    %3606 = vmatprep.subr.mxu0 0.0
    %3607 = vmatpush2.msra.mxu0 0.0
    %3608 = vmatprep.subr.mxu0 0.0
    %3609 = vmatpush2.msra.mxu0 0.0
    %3610 = vmatprep.subr.mxu0 0.0
    %3611 = vmatpush2.msra.mxu0 0.0
    %3612 = vmatprep.subr.mxu0 0.0
    %3613 = vmatpush2.msra.mxu0 0.0
    %3614 = vmatprep.subr.mxu0 0.0
    %3615 = vmatpush2.msra.mxu0 0.0
    %3616 = vmatprep.subr.mxu0 0.0
    %3617 = vmatpush2.msra.mxu0 0.0
    %3618 = vmatprep.subr.mxu0 0.0
    %3619 = vmatpush2.msra.mxu0 0.0
    %3620 = vmatprep.subr.mxu0 0.0
    %3621 = vmatpush2.msra.mxu0 0.0
    %3622 = vmatprep.subr.mxu0 0.0
    %3623 = vmatpush2.msra.mxu0 0.0
    %3624 = vmatprep.subr.mxu0 0.0
    %3625 = vmatpush2.msra.mxu0 0.0
    %3626 = vmatprep.subr.mxu0 0.0
    %3627 = vmatpush2.msra.mxu0 0.0
    %3628 = vmatprep.subr.mxu0 0.0
    %3629 = vmatpush2.msra.mxu0 0.0
    %3630 = vmatprep.subr.mxu0 0.0
    %3631 = vmatpush2.msra.mxu0 0.0
    %3632 = vmatprep.mubr.f32.mxu0 0.0
    %3633 = vmatmul.mubr.f32.gmra.mxu0 %v3537
    %v3634 = vpop.f32.mrf.mxu0
    %v3635 = vpop.f32.mrf.mxu0
    %3636 = vmatprep.mubr.f32.mxu0 0.0
    %3637 = vmatmul.mubr.f32.gmra.mxu0 %v3538
    %v3638 = vpop.f32.mrf.mxu0
    %v3639 = vpop.f32.mrf.mxu0
    %3640 = vmatprep.mubr.f32.mxu0 0.0
    %3641 = vmatmul.mubr.f32.gmra.mxu0 %v3539
    %v3642 = vpop.f32.mrf.mxu0
    %v3643 = vadd.f32 %v3566, %v3642
    %v3644 = vpop.f32.mrf.mxu0
    %3645 = vmatprep.mubr.f32.mxu0 0.0
    %3646 = vmatmul.mubr.f32.gmra.mxu0 %v3540
    %v3647 = vpop.f32.mrf.mxu0
    %v3648 = vpop.f32.mrf.mxu0
    %3649 = vmatprep.mubr.f32.mxu0 0.0
    %3650 = vmatmul.mubr.f32.gmra.mxu0 %v3541
    %v3651 = vpop.f32.mrf.mxu0
    %v3652 = vpop.f32.mrf.mxu0
    %3653 = vmatprep.mubr.f32.mxu0 0.0
    %3654 = vmatmul.mubr.f32.gmra.mxu0 %v3542
    %v3655 = vpop.f32.mrf.mxu0
    %v3656 = vadd.f32 %v3566, %v3655
    %v3657 = vpop.f32.mrf.mxu0
    %3658 = vdwg.mxu0
    %v3659 = vadd.f32 %v3277, %v3643
    %v3660 = vadd.f32 %v3280, %v3656
    %v3661 = vld [vmem:[%s16] sm:$0x1]
    %v3662 = vld [vmem:[%s17] sm:$0x1]
    %v3665 = vrot.slane %v3660, 7
    %vm3666 = vcmask 1041409
    %v3667 = vsel %vm3666, %v3665, %v3659
    %vm3669 = vcmask 254976
    %v3670 = vsel %vm3669, %v3667, 0.0
    %3671 = vadd.xlane.f32.xlu0 %v3670
    %v3672 = vpop.xlane.xlu0 %3671
    %v3673 = vmul.f32 %v3672, %v218
    %v3675 = vrot.slane %v3673, 1
    %v3678 = vsub.f32 %v3659, %v3673
    %v3679 = vsub.f32 %v3660, %v3675
    %v3680 = vmul.f32 %v3678, %v3678
    %v3681 = vmul.f32 %v3679, %v3679
    %v3684 = vrot.slane %v3681, 7
    %v3685 = vsel %vm3666, %v3684, %v3680
    %v3687 = vsel %vm3669, %v3685, 0.0
    %3688 = vadd.xlane.f32.xlu0 %v3687
    %v3689 = vpop.xlane.xlu0 %3688
    %v3690 = vmul.f32 %v3689, %v218
    %v3691 = vadd.f32 %v3690, 1e-05
    %v3692 = vrsqrt.pop %v3691
    %v3694 = vrot.slane %v3692, 1
    %v3697 = vmul.f32 %v3678, %v3692
    %v3698 = vmul.f32 %v3679, %v3694
    %v3700 = vlaneseq
    %v3701 = vshrl.u32 %v3700, 7
    %v3702 = vsub.s32 0, %v3701
    %v3703 = vrot.slane %v3661, %v3702
    %v3705 = vmul.f32 %v3697, %v3703
    %v3706 = vmul.f32 %v3698, %v3703
    %v3708 = vlaneseq
    %v3709 = vshrl.u32 %v3708, 7
    %v3710 = vsub.s32 0, %v3709
    %v3711 = vrot.slane %v3662, %v3710
    %v3713 = vadd.f32 %v3705, %v3711
    %v3714 = vadd.f32 %v3706, %v3711
    %v3715 = vld [vmem:[%s18] sm:$0xff]
    %v3716 = vld [vmem:[%s18 + $0x8] sm:$0xff]
    %v3717 = vld [vmem:[%s18 + $0x10] sm:$0xff]
    %v3718 = vld [vmem:[%s18 + $0x18] sm:$0xff]
    %v3719 = vld [vmem:[%s19] sm:$0x1]
    %v3721 = vlaneseq
    %v3722 = vshrl.u32 %v3721, 7
    %v3723 = vsub.s32 0, %v3722
    %v3724 = vrot.slane %v3719, %v3723
    %v3728 = vrot.slane %v3714, 7
    %v3729 = vsel %vm3666, %v3728, %v3713
    %v3730 = vsel %vm180, %v3729, 0
    %3732 = vmatprep.subr.mxu0 0.0
    %3733 = vmatpush1.msra.mxu0 0.0
    %3734 = vmatprep.subr.mxu0 0.0
    %3735 = vmatpush1.msra.mxu0 0.0
    %3736 = vmatprep.subr.mxu0 0.0
    %3737 = vmatpush1.msra.mxu0 0.0
    %3738 = vmatprep.subr.mxu0 0.0
    %3739 = vmatpush1.msra.mxu0 0.0
    %3740 = vmatprep.subr.mxu0 0.0
    %3741 = vmatpush1.msra.mxu0 0.0
    %3742 = vmatprep.subr.mxu0 0.0
    %3743 = vmatpush1.msra.mxu0 0.0
    %3744 = vmatprep.subr.mxu0 0.0
    %3745 = vmatpush1.msra.mxu0 0.0
    %3746 = vmatprep.subr.mxu0 0.0
    %3747 = vmatpush1.msra.mxu0 0.0
    %3748 = vmatprep.subr.mxu0 0.0
    %3749 = vmatpush1.msra.mxu0 0.0
    %3750 = vmatprep.subr.mxu0 0.0
    %3751 = vmatpush1.msra.mxu0 0.0
    %3752 = vmatprep.subr.mxu0 0.0
    %3753 = vmatpush1.msra.mxu0 0.0
    %3754 = vmatprep.subr.mxu0 0.0
    %3755 = vmatpush1.msra.mxu0 0.0
    %3756 = vmatprep.subr.mxu0 0.0
    %3757 = vmatpush1.msra.mxu0 %v3718
    %3758 = vmatprep.subr.mxu0 0.0
    %3759 = vmatpush1.msra.mxu0 %v3717
    %3760 = vmatprep.subr.mxu0 0.0
    %3761 = vmatpush1.msra.mxu0 %v3716
    %3762 = vmatprep.subr.mxu0 0.0
    %3763 = vmatpush1.msra.mxu0 %v3715
    %3764 = vmatprep.subr.mxu0 0.0
    %3765 = vmatpush2.msra.mxu0 0.0
    %3766 = vmatprep.subr.mxu0 0.0
    %3767 = vmatpush2.msra.mxu0 0.0
    %3768 = vmatprep.subr.mxu0 0.0
    %3769 = vmatpush2.msra.mxu0 0.0
    %3770 = vmatprep.subr.mxu0 0.0
    %3771 = vmatpush2.msra.mxu0 0.0
    %3772 = vmatprep.subr.mxu0 0.0
    %3773 = vmatpush2.msra.mxu0 0.0
    %3774 = vmatprep.subr.mxu0 0.0
    %3775 = vmatpush2.msra.mxu0 0.0
    %3776 = vmatprep.subr.mxu0 0.0
    %3777 = vmatpush2.msra.mxu0 0.0
    %3778 = vmatprep.subr.mxu0 0.0
    %3779 = vmatpush2.msra.mxu0 0.0
    %3780 = vmatprep.subr.mxu0 0.0
    %3781 = vmatpush2.msra.mxu0 0.0
    %3782 = vmatprep.subr.mxu0 0.0
    %3783 = vmatpush2.msra.mxu0 0.0
    %3784 = vmatprep.subr.mxu0 0.0
    %3785 = vmatpush2.msra.mxu0 0.0
    %3786 = vmatprep.subr.mxu0 0.0
    %3787 = vmatpush2.msra.mxu0 0.0
    %3788 = vmatprep.subr.mxu0 0.0
    %3789 = vmatpush2.msra.mxu0 0.0
    %3790 = vmatprep.subr.mxu0 0.0
    %3791 = vmatpush2.msra.mxu0 0.0
    %3792 = vmatprep.subr.mxu0 0.0
    %3793 = vmatpush2.msra.mxu0 0.0
    %3794 = vmatprep.subr.mxu0 0.0
    %3795 = vmatpush2.msra.mxu0 0.0
    %3796 = vmatprep.mubr.f32.mxu0 0.0
    %3797 = vmatmul.mubr.f32.gmra.mxu0 %v3730
    %v3798 = vpop.f32.mrf.mxu0
    %v3799 = vadd.f32 %v3724, %v3798
    %v3800 = vpop.f32.mrf.mxu0
    %3801 = vdwg.mxu0
    %3802 = vst [vmem:[#allocation3] sm:$0x3] %v3799
    // Predicated region
    $region82: #{tpu_custom_call.1} parent=1 // pred_check
      _
    $region83: #{tpu_custom_call.1} parent=1 // pred_check_branch
      %3804 = sbr.rel (0) target = $region85
    $region84: #{tpu_custom_call.1} parent=1 // pred_region
      %s3806 = ssub.s32 32, 32
      %3807 = vsyncadd [#allocation4], %s3806
      %s3809 = sshll.u32 [#allocation3], 4
      %s3810 = int_to_ptr.vmem [resolvable:$true] %s3809
      %3812 = dma.vmem_to_hbm [thread:$0]  %s3810, 32, %s20, [#allocation4]
    $region85: #{tpu_custom_call.1} parent=1 // pred_fallthru
      _
    // Predicated region
    $region86: #{tpu_custom_call.1} parent=1 // pred_check
      _
    $region87: #{tpu_custom_call.1} parent=1 // pred_check_branch
      %3814 = sbr.rel (0) target = $region89
    $region88: #{tpu_custom_call.1} parent=1 // pred_region
      %3815 = dma.done [#allocation4], 32
    $region89: #{tpu_custom_call.1} parent=1 // pred_fallthru
      _
    %3816 = vsyncpa [#allocation4], 1

// kernel: tpu_custom_call.1
$region0: #{tpu_custom_call.1}
  #allocation0 [shape = 'u32[]', space=smem, size = 0x4, offset = 0x4, fixed_abs, tag = 'smem constant byte address 0x4 - core index']
  #allocation1 [shape = 'u32[144,128]{1,0:T(1,128)}', space=vmem, size = 0x12000, scoped, tag = 'internal scratch']
  #allocation2 [shape = 'f32[2,24,32]{2,1,0:T(8,128)}', space=vmem, size = 0x6000, scoped, tag = 'scratch operand']
  %s0 = inlined_call_operand.vmem [shape: f32[2,16,48], index: 0, kind: input, shape index: {}]
  %s1 = inlined_call_operand.vmem [shape: f32[48,32], index: 1, kind: input, shape index: {}]
  %s2 = inlined_call_operand.vmem [shape: f32[16,32], index: 2, kind: input, shape index: {}]
  %s3 = inlined_call_operand.vmem [shape: f32[8,32], index: 3, kind: input, shape index: {}]
  %s4 = inlined_call_operand.vmem [shape: f32[2,1,32], index: 4, kind: input, shape index: {}]
  %s5 = inlined_call_operand.vmem [shape: f32[2,1,32], index: 5, kind: input, shape index: {}]
  %s6 = inlined_call_operand.vmem [shape: f32[2,32,96], index: 6, kind: input, shape index: {}]
  %s7 = inlined_call_operand.vmem [shape: f32[2,1,96], index: 7, kind: input, shape index: {}]
  %s8 = inlined_call_operand.vmem [shape: f32[2,32,32], index: 8, kind: input, shape index: {}]
  %s9 = inlined_call_operand.vmem [shape: f32[2,1,32], index: 9, kind: input, shape index: {}]
  %s10 = inlined_call_operand.vmem [shape: f32[2,1,32], index: 10, kind: input, shape index: {}]
  %s11 = inlined_call_operand.vmem [shape: f32[2,1,32], index: 11, kind: input, shape index: {}]
  %s12 = inlined_call_operand.vmem [shape: f32[2,32,128], index: 12, kind: input, shape index: {}]
  %s13 = inlined_call_operand.vmem [shape: f32[2,1,128], index: 13, kind: input, shape index: {}]
  %s14 = inlined_call_operand.vmem [shape: f32[2,128,32], index: 14, kind: input, shape index: {}]
  %s15 = inlined_call_operand.vmem [shape: f32[2,1,32], index: 15, kind: input, shape index: {}]
  %s16 = inlined_call_operand.vmem [shape: f32[1,32], index: 16, kind: input, shape index: {}]
  %s17 = inlined_call_operand.vmem [shape: f32[1,32], index: 17, kind: input, shape index: {}]
  %s18 = inlined_call_operand.vmem [shape: f32[32,128], index: 18, kind: input, shape index: {}]
  %s19 = inlined_call_operand.vmem [shape: f32[1,128], index: 19, kind: input, shape index: {}]
  %s20 = inlined_call_operand.hbm [shape: f32[2,128], index: 20, kind: output, shape index: {}]
  %s21 = sld [smem:[#allocation0]]
  $region90: #{tpu_custom_call.1} parent=0
    _
  %s23 = ssub.s32 1, %s21
  %s24 = scalar_select 0, %s23, %s21
  $region1: #{tpu_custom_call.1} parent=0
    #allocation3 [shape = 'u8[1024]{0}', space=vmem, size = 0x400, scoped, tag = 'output window, operand 0, single buffered']
    #allocation4 [shape = 's32[1]{0}', space=sflag, size = 0x4, scoped, tag = 'scoped memory for tpu_custom_call.1']
    %25 = vsyncpa [#allocation4], 0
    // Predicated region
    $region2: #{tpu_custom_call.1} parent=1 // pred_check
      _
    $region3: #{tpu_custom_call.1} parent=1 // pred_check_branch
      %27 = sbr.rel (0) target = $region5
    $region4: #{tpu_custom_call.1} parent=1 // pred_region
      _
    $region5: #{tpu_custom_call.1} parent=1 // pred_fallthru
      _
    // Predicated region
    $region6: #{tpu_custom_call.1} parent=1 // pred_check
      _
    $region7: #{tpu_custom_call.1} parent=1 // pred_check_branch
      %29 = sbr.rel (0) target = $region9
    $region8: #{tpu_custom_call.1} parent=1 // pred_region
      _
    $region9: #{tpu_custom_call.1} parent=1 // pred_fallthru
      _
    // Predicated region
    $region10: #{tpu_custom_call.1} parent=1 // pred_check
      _
    $region11: #{tpu_custom_call.1} parent=1 // pred_check_branch
      %31 = sbr.rel (0) target = $region13
    $region12: #{tpu_custom_call.1} parent=1 // pred_region
      _
    $region13: #{tpu_custom_call.1} parent=1 // pred_fallthru
      _
    // Predicated region
    $region14: #{tpu_custom_call.1} parent=1 // pred_check
      _
    $region15: #{tpu_custom_call.1} parent=1 // pred_check_branch
      %33 = sbr.rel (0) target = $region17
    $region16: #{tpu_custom_call.1} parent=1 // pred_region
      _
    $region17: #{tpu_custom_call.1} parent=1 // pred_fallthru
      _
    // Predicated region
    $region18: #{tpu_custom_call.1} parent=1 // pred_check
      _
    $region19: #{tpu_custom_call.1} parent=1 // pred_check_branch
      %35 = sbr.rel (0) target = $region21
    $region20: #{tpu_custom_call.1} parent=1 // pred_region
      _
    $region21: #{tpu_custom_call.1} parent=1 // pred_fallthru
      _
    // Predicated region
    $region22: #{tpu_custom_call.1} parent=1 // pred_check
      _
    $region23: #{tpu_custom_call.1} parent=1 // pred_check_branch
      %37 = sbr.rel (0) target = $region25
    $region24: #{tpu_custom_call.1} parent=1 // pred_region
      _
    $region25: #{tpu_custom_call.1} parent=1 // pred_fallthru
      _
    // Predicated region
    $region26: #{tpu_custom_call.1} parent=1 // pred_check
      _
    $region27: #{tpu_custom_call.1} parent=1 // pred_check_branch
      %39 = sbr.rel (0) target = $region29
    $region28: #{tpu_custom_call.1} parent=1 // pred_region
      _
    $region29: #{tpu_custom_call.1} parent=1 // pred_fallthru
      _
    // Predicated region
    $region30: #{tpu_custom_call.1} parent=1 // pred_check
      _
    $region31: #{tpu_custom_call.1} parent=1 // pred_check_branch
      %41 = sbr.rel (0) target = $region33
    $region32: #{tpu_custom_call.1} parent=1 // pred_region
      _
    $region33: #{tpu_custom_call.1} parent=1 // pred_fallthru
      _
    // Predicated region
    $region34: #{tpu_custom_call.1} parent=1 // pred_check
      _
    $region35: #{tpu_custom_call.1} parent=1 // pred_check_branch
      %43 = sbr.rel (0) target = $region37
    $region36: #{tpu_custom_call.1} parent=1 // pred_region
      _
    $region37: #{tpu_custom_call.1} parent=1 // pred_fallthru
      _
    // Predicated region
    $region38: #{tpu_custom_call.1} parent=1 // pred_check
      _
    $region39: #{tpu_custom_call.1} parent=1 // pred_check_branch
      %45 = sbr.rel (0) target = $region41
    $region40: #{tpu_custom_call.1} parent=1 // pred_region
      _
    $region41: #{tpu_custom_call.1} parent=1 // pred_fallthru
      _
    // Predicated region
    $region42: #{tpu_custom_call.1} parent=1 // pred_check
      _
    $region43: #{tpu_custom_call.1} parent=1 // pred_check_branch
      %47 = sbr.rel (0) target = $region45
    $region44: #{tpu_custom_call.1} parent=1 // pred_region
      _
    $region45: #{tpu_custom_call.1} parent=1 // pred_fallthru
      _
    // Predicated region
    $region46: #{tpu_custom_call.1} parent=1 // pred_check
      _
    $region47: #{tpu_custom_call.1} parent=1 // pred_check_branch
      %49 = sbr.rel (0) target = $region49
    $region48: #{tpu_custom_call.1} parent=1 // pred_region
      _
    $region49: #{tpu_custom_call.1} parent=1 // pred_fallthru
      _
    // Predicated region
    $region50: #{tpu_custom_call.1} parent=1 // pred_check
      _
    $region51: #{tpu_custom_call.1} parent=1 // pred_check_branch
      %51 = sbr.rel (0) target = $region53
    $region52: #{tpu_custom_call.1} parent=1 // pred_region
      _
    $region53: #{tpu_custom_call.1} parent=1 // pred_fallthru
      _
    // Predicated region
    $region54: #{tpu_custom_call.1} parent=1 // pred_check
      _
    $region55: #{tpu_custom_call.1} parent=1 // pred_check_branch
      %53 = sbr.rel (0) target = $region57
    $region56: #{tpu_custom_call.1} parent=1 // pred_region
      _
    $region57: #{tpu_custom_call.1} parent=1 // pred_fallthru
      _
    // Predicated region
    $region58: #{tpu_custom_call.1} parent=1 // pred_check
      _
    $region59: #{tpu_custom_call.1} parent=1 // pred_check_branch
      %55 = sbr.rel (0) target = $region61
    $region60: #{tpu_custom_call.1} parent=1 // pred_region
      _
    $region61: #{tpu_custom_call.1} parent=1 // pred_fallthru
      _
    // Predicated region
    $region62: #{tpu_custom_call.1} parent=1 // pred_check
      _
    $region63: #{tpu_custom_call.1} parent=1 // pred_check_branch
      %57 = sbr.rel (0) target = $region65
    $region64: #{tpu_custom_call.1} parent=1 // pred_region
      _
    $region65: #{tpu_custom_call.1} parent=1 // pred_fallthru
      _
    // Predicated region
    $region66: #{tpu_custom_call.1} parent=1 // pred_check
      _
    $region67: #{tpu_custom_call.1} parent=1 // pred_check_branch
      %59 = sbr.rel (0) target = $region69
    $region68: #{tpu_custom_call.1} parent=1 // pred_region
      _
    $region69: #{tpu_custom_call.1} parent=1 // pred_fallthru
      _
    // Predicated region
    $region70: #{tpu_custom_call.1} parent=1 // pred_check
      _
    $region71: #{tpu_custom_call.1} parent=1 // pred_check_branch
      %61 = sbr.rel (0) target = $region73
    $region72: #{tpu_custom_call.1} parent=1 // pred_region
      _
    $region73: #{tpu_custom_call.1} parent=1 // pred_fallthru
      _
    // Predicated region
    $region74: #{tpu_custom_call.1} parent=1 // pred_check
      _
    $region75: #{tpu_custom_call.1} parent=1 // pred_check_branch
      %63 = sbr.rel (0) target = $region77
    $region76: #{tpu_custom_call.1} parent=1 // pred_region
      _
    $region77: #{tpu_custom_call.1} parent=1 // pred_fallthru
      _
    // Predicated region
    $region78: #{tpu_custom_call.1} parent=1 // pred_check
      _
    $region79: #{tpu_custom_call.1} parent=1 // pred_check_branch
      %65 = sbr.rel (0) target = $region81
    $region80: #{tpu_custom_call.1} parent=1 // pred_region
      _
    $region81: #{tpu_custom_call.1} parent=1 // pred_fallthru
      _
    %v66 = vld [vmem:[%s0] sm:$0xff]
    %v67 = vld [vmem:[%s0 + $0x8] sm:$0xff]
    %v68 = vld [vmem:[%s0 + $0x10] sm:$0xff]
    %v69 = vld [vmem:[%s0 + $0x18] sm:$0xff]
    %v70 = vld [vmem:[%s1] sm:$0xff]
    %v71 = vld [vmem:[%s1 + $0x8] sm:$0xff]
    %v72 = vld [vmem:[%s1 + $0x10] sm:$0xff]
    %v73 = vld [vmem:[%s1 + $0x18] sm:$0xff]
    %v74 = vld [vmem:[%s1 + $0x20] sm:$0xff]
    %v75 = vld [vmem:[%s1 + $0x28] sm:$0xff]
    %vm76 = vcmask 392192
    %v78 = vsel %vm76, %v66, 0
    %v81 = vsel %vm76, %v67, 0
    %v84 = vsel %vm76, %v68, 0
    %v87 = vsel %vm76, %v69, 0
    %89 = vmatprep.subr.mxu0 0.0
    %90 = vmatpush1.msra.mxu0 0.0
    %91 = vmatprep.subr.mxu0 0.0
    %92 = vmatpush1.msra.mxu0 0.0
    %93 = vmatprep.subr.mxu0 0.0
    %94 = vmatpush1.msra.mxu0 0.0
    %95 = vmatprep.subr.mxu0 0.0
    %96 = vmatpush1.msra.mxu0 0.0
    %97 = vmatprep.subr.mxu0 0.0
    %98 = vmatpush1.msra.mxu0 0.0
    %99 = vmatprep.subr.mxu0 0.0
    %100 = vmatpush1.msra.mxu0 0.0
    %101 = vmatprep.subr.mxu0 0.0
    %102 = vmatpush1.msra.mxu0 0.0
    %103 = vmatprep.subr.mxu0 0.0
    %104 = vmatpush1.msra.mxu0 0.0
    %105 = vmatprep.subr.mxu0 0.0
    %106 = vmatpush1.msra.mxu0 0.0
    %107 = vmatprep.subr.mxu0 0.0
    %108 = vmatpush1.msra.mxu0 0.0
    %109 = vmatprep.subr.mxu0 0.0
    %110 = vmatpush1.msra.mxu0 %v75
    %111 = vmatprep.subr.mxu0 0.0
    %112 = vmatpush1.msra.mxu0 %v74
    %113 = vmatprep.subr.mxu0 0.0
    %114 = vmatpush1.msra.mxu0 %v73
    %115 = vmatprep.subr.mxu0 0.0
    %116 = vmatpush1.msra.mxu0 %v72
    %117 = vmatprep.subr.mxu0 0.0
    %118 = vmatpush1.msra.mxu0 %v71
    %119 = vmatprep.subr.mxu0 0.0
    %120 = vmatpush1.msra.mxu0 %v70
    %121 = vmatprep.subr.mxu0 0.0
    %122 = vmatpush2.msra.mxu0 0.0
    %123 = vmatprep.subr.mxu0 0.0
    %124 = vmatpush2.msra.mxu0 0.0
    %125 = vmatprep.subr.mxu0 0.0
    %126 = vmatpush2.msra.mxu0 0.0
    %127 = vmatprep.subr.mxu0 0.0
    %128 = vmatpush2.msra.mxu0 0.0
    %129 = vmatprep.subr.mxu0 0.0
    %130 = vmatpush2.msra.mxu0 0.0
    %131 = vmatprep.subr.mxu0 0.0
    %132 = vmatpush2.msra.mxu0 0.0
    %133 = vmatprep.subr.mxu0 0.0
    %134 = vmatpush2.msra.mxu0 0.0
    %135 = vmatprep.subr.mxu0 0.0
    %136 = vmatpush2.msra.mxu0 0.0
    %137 = vmatprep.subr.mxu0 0.0
    %138 = vmatpush2.msra.mxu0 0.0
    %139 = vmatprep.subr.mxu0 0.0
    %140 = vmatpush2.msra.mxu0 0.0
    %141 = vmatprep.subr.mxu0 0.0
    %142 = vmatpush2.msra.mxu0 0.0
    %143 = vmatprep.subr.mxu0 0.0
    %144 = vmatpush2.msra.mxu0 0.0
    %145 = vmatprep.subr.mxu0 0.0
    %146 = vmatpush2.msra.mxu0 0.0
    %147 = vmatprep.subr.mxu0 0.0
    %148 = vmatpush2.msra.mxu0 0.0
    %149 = vmatprep.subr.mxu0 0.0
    %150 = vmatpush2.msra.mxu0 0.0
    %151 = vmatprep.subr.mxu0 0.0
    %152 = vmatpush2.msra.mxu0 0.0
    %153 = vmatprep.mubr.f32.mxu0 0.0
    %154 = vmatmul.mubr.f32.gmra.mxu0 %v78
    %v155 = vpop.f32.mrf.mxu0
    %v156 = vadd.f32 0.0, %v155
    %v157 = vpop.f32.mrf.mxu0
    %158 = vmatprep.mubr.f32.mxu0 0.0
    %159 = vmatmul.mubr.f32.gmra.mxu0 %v81
    %v160 = vpop.f32.mrf.mxu0
    %v161 = vadd.f32 0.0, %v160
    %v162 = vpop.f32.mrf.mxu0
    %163 = vmatprep.mubr.f32.mxu0 0.0
    %164 = vmatmul.mubr.f32.gmra.mxu0 %v84
    %v165 = vpop.f32.mrf.mxu0
    %v166 = vadd.f32 0.0, %v165
    %v167 = vpop.f32.mrf.mxu0
    %168 = vmatprep.mubr.f32.mxu0 0.0
    %169 = vmatmul.mubr.f32.gmra.mxu0 %v87
    %v170 = vpop.f32.mrf.mxu0
    %v171 = vadd.f32 0.0, %v170
    %v172 = vpop.f32.mrf.mxu0
    %173 = vdwg.mxu0
    %v174 = vld [vmem:[%s2] sm:$0xff]
    %v175 = vld [vmem:[%s2 + $0x8] sm:$0xff]
    %v176 = vadd.f32 %v156, %v174
    %v177 = vadd.f32 %v161, %v175
    %v178 = vadd.f32 %v166, %v174
    %v179 = vadd.f32 %v171, %v175
    %vm180 = vcmask 261120
    %181 = vst.msk [vmem:[#allocation2] sm:$0xff] %vm180, %v176
    %182 = vst.msk [vmem:[#allocation2 + $0x8] sm:$0xff] %vm180, %v177
    %183 = vst.msk [vmem:[#allocation2 + $0x18] sm:$0xff] %vm180, %v178
    %184 = vst.msk [vmem:[#allocation2 + $0x20] sm:$0xff] %vm180, %v179
    %v185 = vld [vmem:[%s3] sm:$0xff]
    %186 = vst.msk [vmem:[#allocation2 + $0x10] sm:$0xff] %vm180, %v185
    %187 = vst.msk [vmem:[#allocation2 + $0x28] sm:$0xff] %vm180, %v185
    %v188 = vld [vmem:[#allocation2] sm:$0xff]
    %v189 = vld [vmem:[#allocation2 + $0x8] sm:$0xff]
    %v190 = vld [vmem:[#allocation2 + $0x10] sm:$0xff]
    %v191 = vld [vmem:[#allocation2 + $0x18] sm:$0xff]
    %v192 = vld [vmem:[#allocation2 + $0x20] sm:$0xff]
    %v193 = vld [vmem:[#allocation2 + $0x28] sm:$0xff]
    %v194 = vlaneseq
    %v195 = vand.u32 %v194, 127
    %vm196 = vcmp.lt.s32.totalorder %v195, 17
    %v197 = vsel %vm196, 0.0, -1e+30
    %v198 = vld [vmem:[%s4] sm:$0x1]
    %v199 = vld [vmem:[%s5] sm:$0x1]
    %v200 = vsel %vm180, %v188, 0.0
    %201 = vadd.xlane.f32.xlu0 %v200
    %v202 = vpop.xlane.xlu0 %201
    %v203 = vsel %vm180, %v189, 0.0
    %204 = vadd.xlane.f32.xlu0 %v203
    %v205 = vpop.xlane.xlu0 %204
    %v206 = vsel %vm180, %v190, 0.0
    %207 = vadd.xlane.f32.xlu0 %v206
    %v208 = vpop.xlane.xlu0 %207
    %v209 = vsel %vm180, %v191, 0.0
    %210 = vadd.xlane.f32.xlu0 %v209
    %v211 = vpop.xlane.xlu0 %210
    %v212 = vsel %vm180, %v192, 0.0
    %213 = vadd.xlane.f32.xlu0 %v212
    %v214 = vpop.xlane.xlu0 %213
    %v215 = vsel %vm180, %v193, 0.0
    %216 = vadd.xlane.f32.xlu0 %v215
    %v217 = vpop.xlane.xlu0 %216
    %v218 = vrcp.pop 32.0
    %v219 = vmul.f32 %v202, %v218
    %v220 = vmul.f32 %v205, %v218
    %v221 = vmul.f32 %v208, %v218
    %v222 = vmul.f32 %v211, %v218
    %v223 = vmul.f32 %v214, %v218
    %v224 = vmul.f32 %v217, %v218
    %v225 = vsub.f32 %v188, %v219
    %v226 = vsub.f32 %v189, %v220
    %v227 = vsub.f32 %v190, %v221
    %v228 = vsub.f32 %v191, %v222
    %v229 = vsub.f32 %v192, %v223
    %v230 = vsub.f32 %v193, %v224
    %v231 = vmul.f32 %v225, %v225
    %v232 = vmul.f32 %v226, %v226
    %v233 = vmul.f32 %v227, %v227
    %v234 = vmul.f32 %v228, %v228
    %v235 = vmul.f32 %v229, %v229
    %v236 = vmul.f32 %v230, %v230
    %v237 = vsel %vm180, %v231, 0.0
    %238 = vadd.xlane.f32.xlu0 %v237
    %v239 = vpop.xlane.xlu0 %238
    %v240 = vsel %vm180, %v232, 0.0
    %241 = vadd.xlane.f32.xlu0 %v240
    %v242 = vpop.xlane.xlu0 %241
    %v243 = vsel %vm180, %v233, 0.0
    %244 = vadd.xlane.f32.xlu0 %v243
    %v245 = vpop.xlane.xlu0 %244
    %v246 = vsel %vm180, %v234, 0.0
    %247 = vadd.xlane.f32.xlu0 %v246
    %v248 = vpop.xlane.xlu0 %247
    %v249 = vsel %vm180, %v235, 0.0
    %250 = vadd.xlane.f32.xlu0 %v249
    %v251 = vpop.xlane.xlu0 %250
    %v252 = vsel %vm180, %v236, 0.0
    %253 = vadd.xlane.f32.xlu0 %v252
    %v254 = vpop.xlane.xlu0 %253
    %v255 = vmul.f32 %v239, %v218
    %v256 = vmul.f32 %v242, %v218
    %v257 = vmul.f32 %v245, %v218
    %v258 = vmul.f32 %v248, %v218
    %v259 = vmul.f32 %v251, %v218
    %v260 = vmul.f32 %v254, %v218
    %v261 = vadd.f32 %v255, 1e-05
    %v262 = vadd.f32 %v256, 1e-05
    %v263 = vadd.f32 %v257, 1e-05
    %v264 = vadd.f32 %v258, 1e-05
    %v265 = vadd.f32 %v259, 1e-05
    %v266 = vadd.f32 %v260, 1e-05
    %v267 = vrsqrt.pop %v261
    %v268 = vrsqrt.pop %v262
    %v269 = vrsqrt.pop %v263
    %v270 = vrsqrt.pop %v264
    %v271 = vrsqrt.pop %v265
    %v272 = vrsqrt.pop %v266
    %v273 = vmul.f32 %v225, %v267
    %v274 = vmul.f32 %v226, %v268
    %v275 = vmul.f32 %v227, %v269
    %v276 = vmul.f32 %v228, %v270
    %v277 = vmul.f32 %v229, %v271
    %v278 = vmul.f32 %v230, %v272
    %v280 = vlaneseq
    %v281 = vshrl.u32 %v280, 7
    %v282 = vsub.s32 0, %v281
    %v283 = vrot.slane %v198, %v282
    %v285 = vmul.f32 %v273, %v283
    %v286 = vmul.f32 %v274, %v283
    %v287 = vmul.f32 %v275, %v283
    %v288 = vmul.f32 %v276, %v283
    %v289 = vmul.f32 %v277, %v283
    %v290 = vmul.f32 %v278, %v283
    %v292 = vlaneseq
    %v293 = vshrl.u32 %v292, 7
    %v294 = vsub.s32 0, %v293
    %v295 = vrot.slane %v199, %v294
    %v297 = vadd.f32 %v285, %v295
    %v298 = vadd.f32 %v286, %v295
    %v299 = vadd.f32 %v287, %v295
    %v300 = vadd.f32 %v288, %v295
    %v301 = vadd.f32 %v289, %v295
    %v302 = vadd.f32 %v290, %v295
    %v303 = vld [vmem:[%s6] sm:$0xff]
    %v304 = vld [vmem:[%s6 + $0x8] sm:$0xff]
    %v305 = vld [vmem:[%s6 + $0x10] sm:$0xff]
    %v306 = vld [vmem:[%s6 + $0x18] sm:$0xff]
    %v307 = vld [vmem:[%s7] sm:$0x1]
    %v309 = vlaneseq
    %v310 = vshrl.u32 %v309, 7
    %v311 = vsub.s32 0, %v310
    %v312 = vrot.slane %v307, %v311
    %v315 = vsel %vm180, %v297, 0
    %v318 = vsel %vm180, %v298, 0
    %v321 = vsel %vm180, %v299, 0
    %v324 = vsel %vm180, %v300, 0
    %v327 = vsel %vm180, %v301, 0
    %v330 = vsel %vm180, %v302, 0
    %332 = vmatprep.subr.mxu0 0.0
    %333 = vmatpush1.msra.mxu0 0.0
    %334 = vmatprep.subr.mxu0 0.0
    %335 = vmatpush1.msra.mxu0 0.0
    %336 = vmatprep.subr.mxu0 0.0
    %337 = vmatpush1.msra.mxu0 0.0
    %338 = vmatprep.subr.mxu0 0.0
    %339 = vmatpush1.msra.mxu0 0.0
    %340 = vmatprep.subr.mxu0 0.0
    %341 = vmatpush1.msra.mxu0 0.0
    %342 = vmatprep.subr.mxu0 0.0
    %343 = vmatpush1.msra.mxu0 0.0
    %344 = vmatprep.subr.mxu0 0.0
    %345 = vmatpush1.msra.mxu0 0.0
    %346 = vmatprep.subr.mxu0 0.0
    %347 = vmatpush1.msra.mxu0 0.0
    %348 = vmatprep.subr.mxu0 0.0
    %349 = vmatpush1.msra.mxu0 0.0
    %350 = vmatprep.subr.mxu0 0.0
    %351 = vmatpush1.msra.mxu0 0.0
    %352 = vmatprep.subr.mxu0 0.0
    %353 = vmatpush1.msra.mxu0 0.0
    %354 = vmatprep.subr.mxu0 0.0
    %355 = vmatpush1.msra.mxu0 0.0
    %356 = vmatprep.subr.mxu0 0.0
    %357 = vmatpush1.msra.mxu0 %v306
    %358 = vmatprep.subr.mxu0 0.0
    %359 = vmatpush1.msra.mxu0 %v305
    %360 = vmatprep.subr.mxu0 0.0
    %361 = vmatpush1.msra.mxu0 %v304
    %362 = vmatprep.subr.mxu0 0.0
    %363 = vmatpush1.msra.mxu0 %v303
    %364 = vmatprep.subr.mxu0 0.0
    %365 = vmatpush2.msra.mxu0 0.0
    %366 = vmatprep.subr.mxu0 0.0
    %367 = vmatpush2.msra.mxu0 0.0
    %368 = vmatprep.subr.mxu0 0.0
    %369 = vmatpush2.msra.mxu0 0.0
    %370 = vmatprep.subr.mxu0 0.0
    %371 = vmatpush2.msra.mxu0 0.0
    %372 = vmatprep.subr.mxu0 0.0
    %373 = vmatpush2.msra.mxu0 0.0
    %374 = vmatprep.subr.mxu0 0.0
    %375 = vmatpush2.msra.mxu0 0.0
    %376 = vmatprep.subr.mxu0 0.0
    %377 = vmatpush2.msra.mxu0 0.0
    %378 = vmatprep.subr.mxu0 0.0
    %379 = vmatpush2.msra.mxu0 0.0
    %380 = vmatprep.subr.mxu0 0.0
    %381 = vmatpush2.msra.mxu0 0.0
    %382 = vmatprep.subr.mxu0 0.0
    %383 = vmatpush2.msra.mxu0 0.0
    %384 = vmatprep.subr.mxu0 0.0
    %385 = vmatpush2.msra.mxu0 0.0
    %386 = vmatprep.subr.mxu0 0.0
    %387 = vmatpush2.msra.mxu0 0.0
    %388 = vmatprep.subr.mxu0 0.0
    %389 = vmatpush2.msra.mxu0 0.0
    %390 = vmatprep.subr.mxu0 0.0
    %391 = vmatpush2.msra.mxu0 0.0
    %392 = vmatprep.subr.mxu0 0.0
    %393 = vmatpush2.msra.mxu0 0.0
    %394 = vmatprep.subr.mxu0 0.0
    %395 = vmatpush2.msra.mxu0 0.0
    %396 = vmatprep.mubr.f32.mxu0 0.0
    %397 = vmatmul.mubr.f32.gmra.mxu0 %v315
    %v398 = vpop.f32.mrf.mxu0
    %v399 = vadd.f32 %v312, %v398
    %v400 = vpop.f32.mrf.mxu0
    %401 = vmatprep.mubr.f32.mxu0 0.0
    %402 = vmatmul.mubr.f32.gmra.mxu0 %v318
    %v403 = vpop.f32.mrf.mxu0
    %v404 = vadd.f32 %v312, %v403
    %v405 = vpop.f32.mrf.mxu0
    %406 = vmatprep.mubr.f32.mxu0 0.0
    %407 = vmatmul.mubr.f32.gmra.mxu0 %v321
    %v408 = vpop.f32.mrf.mxu0
    %v409 = vadd.f32 %v312, %v408
    %v410 = vpop.f32.mrf.mxu0
    %411 = vmatprep.mubr.f32.mxu0 0.0
    %412 = vmatmul.mubr.f32.gmra.mxu0 %v324
    %v413 = vpop.f32.mrf.mxu0
    %v414 = vadd.f32 %v312, %v413
    %v415 = vpop.f32.mrf.mxu0
    %416 = vmatprep.mubr.f32.mxu0 0.0
    %417 = vmatmul.mubr.f32.gmra.mxu0 %v327
    %v418 = vpop.f32.mrf.mxu0
    %v419 = vadd.f32 %v312, %v418
    %v420 = vpop.f32.mrf.mxu0
    %421 = vmatprep.mubr.f32.mxu0 0.0
    %422 = vmatmul.mubr.f32.gmra.mxu0 %v330
    %v423 = vpop.f32.mrf.mxu0
    %v424 = vadd.f32 %v312, %v423
    %v425 = vpop.f32.mrf.mxu0
    %426 = vdwg.mxu0
    %433 = vrot.lane.b32.xlu0 %v399, 112
    %v434 = vpop.permute.xlu0 %433
    %435 = vrot.lane.b32.xlu0 %v404, 112
    %v436 = vpop.permute.xlu0 %435
    %437 = vrot.lane.b32.xlu0 %v409, 112
    %v438 = vpop.permute.xlu0 %437
    %439 = vrot.lane.b32.xlu0 %v414, 112
    %v440 = vpop.permute.xlu0 %439
    %441 = vrot.lane.b32.xlu0 %v419, 112
    %v442 = vpop.permute.xlu0 %441
    %443 = vrot.lane.b32.xlu0 %v424, 112
    %v444 = vpop.permute.xlu0 %443
    %445 = vrot.lane.b32.xlu0 %v399, 96
    %v446 = vpop.permute.xlu0 %445
    %447 = vrot.lane.b32.xlu0 %v404, 96
    %v448 = vpop.permute.xlu0 %447
    %449 = vrot.lane.b32.xlu0 %v409, 96
    %v450 = vpop.permute.xlu0 %449
    %vm451 = vcmask 130048
    %v452 = vsel %vm451, %v399, 0
    %v454 = vsel %vm451, %v404, 0
    %v456 = vsel %vm451, %v409, 0
    %v458 = vsel %vm451, %v446, 0
    %v460 = vsel %vm451, %v448, 0
    %v462 = vsel %vm451, %v450, 0
    %464 = vmatprep.subr.mxu0 0.0
    %465 = vmatpush1.xpose.msra.mxu0 0.0
    %466 = vmatprep.subr.mxu0 0.0
    %467 = vmatpush1.xpose.msra.mxu0 0.0
    %468 = vmatprep.subr.mxu0 0.0
    %469 = vmatpush1.xpose.msra.mxu0 0.0
    %470 = vmatprep.subr.mxu0 0.0
    %471 = vmatpush1.xpose.msra.mxu0 0.0
    %472 = vmatprep.subr.mxu0 0.0
    %473 = vmatpush1.xpose.msra.mxu0 0.0
    %474 = vmatprep.subr.mxu0 0.0
    %475 = vmatpush1.xpose.msra.mxu0 0.0
    %476 = vmatprep.subr.mxu0 0.0
    %477 = vmatpush1.xpose.msra.mxu0 0.0
    %478 = vmatprep.subr.mxu0 0.0
    %479 = vmatpush1.xpose.msra.mxu0 0.0
    %480 = vmatprep.subr.mxu0 0.0
    %481 = vmatpush1.xpose.msra.mxu0 0.0
    %482 = vmatprep.subr.mxu0 0.0
    %483 = vmatpush1.xpose.msra.mxu0 0.0
    %484 = vmatprep.subr.mxu0 0.0
    %485 = vmatpush1.xpose.msra.mxu0 0.0
    %486 = vmatprep.subr.mxu0 0.0
    %487 = vmatpush1.xpose.msra.mxu0 0.0
    %488 = vmatprep.subr.mxu0 0.0
    %489 = vmatpush1.xpose.msra.mxu0 0.0
    %490 = vmatprep.subr.mxu0 0.0
    %491 = vmatpush1.xpose.msra.mxu0 %v462
    %492 = vmatprep.subr.mxu0 0.0
    %493 = vmatpush1.xpose.msra.mxu0 %v460
    %494 = vmatprep.subr.mxu0 0.0
    %495 = vmatpush1.xpose.msra.mxu0 %v458
    %496 = vmatprep.subr.mxu0 0.0
    %497 = vmatpush2.xpose.msra.mxu0 0.0
    %498 = vmatprep.subr.mxu0 0.0
    %499 = vmatpush2.xpose.msra.mxu0 0.0
    %500 = vmatprep.subr.mxu0 0.0
    %501 = vmatpush2.xpose.msra.mxu0 0.0
    %502 = vmatprep.subr.mxu0 0.0
    %503 = vmatpush2.xpose.msra.mxu0 0.0
    %504 = vmatprep.subr.mxu0 0.0
    %505 = vmatpush2.xpose.msra.mxu0 0.0
    %506 = vmatprep.subr.mxu0 0.0
    %507 = vmatpush2.xpose.msra.mxu0 0.0
    %508 = vmatprep.subr.mxu0 0.0
    %509 = vmatpush2.xpose.msra.mxu0 0.0
    %510 = vmatprep.subr.mxu0 0.0
    %511 = vmatpush2.xpose.msra.mxu0 0.0
    %512 = vmatprep.subr.mxu0 0.0
    %513 = vmatpush2.xpose.msra.mxu0 0.0
    %514 = vmatprep.subr.mxu0 0.0
    %515 = vmatpush2.xpose.msra.mxu0 0.0
    %516 = vmatprep.subr.mxu0 0.0
    %517 = vmatpush2.xpose.msra.mxu0 0.0
    %518 = vmatprep.subr.mxu0 0.0
    %519 = vmatpush2.xpose.msra.mxu0 0.0
    %520 = vmatprep.subr.mxu0 0.0
    %521 = vmatpush2.xpose.msra.mxu0 0.0
    %522 = vmatprep.subr.mxu0 0.0
    %523 = vmatpush2.xpose.msra.mxu0 0.0
    %524 = vmatprep.subr.mxu0 0.0
    %525 = vmatpush2.xpose.msra.mxu0 0.0
    %526 = vmatprep.subr.mxu0 0.0
    %527 = vmatpush2.xpose.msra.mxu0 0.0
    %528 = vmatprep.mubr.f32.mxu0 0.0
    %529 = vmatmul.mubr.f32.gmra.mxu0 %v452
    %v530 = vpop.f32.mrf.mxu0
    %v531 = vadd.f32 0.0, %v530
    %v532 = vpop.f32.mrf.mxu0
    %533 = vmatprep.mubr.f32.mxu0 0.0
    %534 = vmatmul.mubr.f32.gmra.mxu0 %v454
    %v535 = vpop.f32.mrf.mxu0
    %v536 = vadd.f32 0.0, %v535
    %v537 = vpop.f32.mrf.mxu0
    %538 = vmatprep.mubr.f32.mxu0 0.0
    %539 = vmatmul.mubr.f32.gmra.mxu0 %v456
    %v540 = vpop.f32.mrf.mxu0
    %v541 = vadd.f32 0.0, %v540
    %v542 = vpop.f32.mrf.mxu0
    %543 = vdwg.mxu0
    %544 = vrot.lane.b32.xlu0 %v414, 96
    %v545 = vpop.permute.xlu0 %544
    %546 = vrot.lane.b32.xlu0 %v419, 96
    %v547 = vpop.permute.xlu0 %546
    %548 = vrot.lane.b32.xlu0 %v424, 96
    %v549 = vpop.permute.xlu0 %548
    %v550 = vsel %vm451, %v414, 0
    %v552 = vsel %vm451, %v419, 0
    %v554 = vsel %vm451, %v424, 0
    %v556 = vsel %vm451, %v545, 0
    %v558 = vsel %vm451, %v547, 0
    %v560 = vsel %vm451, %v549, 0
    %562 = vmatprep.subr.mxu0 0.0
    %563 = vmatpush1.xpose.msra.mxu0 0.0
    %564 = vmatprep.subr.mxu0 0.0
    %565 = vmatpush1.xpose.msra.mxu0 0.0
    %566 = vmatprep.subr.mxu0 0.0
    %567 = vmatpush1.xpose.msra.mxu0 0.0
    %568 = vmatprep.subr.mxu0 0.0
    %569 = vmatpush1.xpose.msra.mxu0 0.0
    %570 = vmatprep.subr.mxu0 0.0
    %571 = vmatpush1.xpose.msra.mxu0 0.0
    %572 = vmatprep.subr.mxu0 0.0
    %573 = vmatpush1.xpose.msra.mxu0 0.0
    %574 = vmatprep.subr.mxu0 0.0
    %575 = vmatpush1.xpose.msra.mxu0 0.0
    %576 = vmatprep.subr.mxu0 0.0
    %577 = vmatpush1.xpose.msra.mxu0 0.0
    %578 = vmatprep.subr.mxu0 0.0
    %579 = vmatpush1.xpose.msra.mxu0 0.0
    %580 = vmatprep.subr.mxu0 0.0
    %581 = vmatpush1.xpose.msra.mxu0 0.0
    %582 = vmatprep.subr.mxu0 0.0
    %583 = vmatpush1.xpose.msra.mxu0 0.0
    %584 = vmatprep.subr.mxu0 0.0
    %585 = vmatpush1.xpose.msra.mxu0 0.0
    %586 = vmatprep.subr.mxu0 0.0
    %587 = vmatpush1.xpose.msra.mxu0 0.0
    %588 = vmatprep.subr.mxu0 0.0
    %589 = vmatpush1.xpose.msra.mxu0 %v560
    %590 = vmatprep.subr.mxu0 0.0
    %591 = vmatpush1.xpose.msra.mxu0 %v558
    %592 = vmatprep.subr.mxu0 0.0
    %593 = vmatpush1.xpose.msra.mxu0 %v556
    %594 = vmatprep.subr.mxu0 0.0
    %595 = vmatpush2.xpose.msra.mxu0 0.0
    %596 = vmatprep.subr.mxu0 0.0
    %597 = vmatpush2.xpose.msra.mxu0 0.0
    %598 = vmatprep.subr.mxu0 0.0
    %599 = vmatpush2.xpose.msra.mxu0 0.0
    %600 = vmatprep.subr.mxu0 0.0
    %601 = vmatpush2.xpose.msra.mxu0 0.0
    %602 = vmatprep.subr.mxu0 0.0
    %603 = vmatpush2.xpose.msra.mxu0 0.0
    %604 = vmatprep.subr.mxu0 0.0
    %605 = vmatpush2.xpose.msra.mxu0 0.0
    %606 = vmatprep.subr.mxu0 0.0
    %607 = vmatpush2.xpose.msra.mxu0 0.0
    %608 = vmatprep.subr.mxu0 0.0
    %609 = vmatpush2.xpose.msra.mxu0 0.0
    %610 = vmatprep.subr.mxu0 0.0
    %611 = vmatpush2.xpose.msra.mxu0 0.0
    %612 = vmatprep.subr.mxu0 0.0
    %613 = vmatpush2.xpose.msra.mxu0 0.0
    %614 = vmatprep.subr.mxu0 0.0
    %615 = vmatpush2.xpose.msra.mxu0 0.0
    %616 = vmatprep.subr.mxu0 0.0
    %617 = vmatpush2.xpose.msra.mxu0 0.0
    %618 = vmatprep.subr.mxu0 0.0
    %619 = vmatpush2.xpose.msra.mxu0 0.0
    %620 = vmatprep.subr.mxu0 0.0
    %621 = vmatpush2.xpose.msra.mxu0 0.0
    %622 = vmatprep.subr.mxu0 0.0
    %623 = vmatpush2.xpose.msra.mxu0 0.0
    %624 = vmatprep.subr.mxu0 0.0
    %625 = vmatpush2.xpose.msra.mxu0 0.0
    %626 = vmatprep.mubr.f32.mxu0 0.0
    %627 = vmatmul.mubr.f32.gmra.mxu0 %v550
    %v628 = vpop.f32.mrf.mxu0
    %v629 = vadd.f32 0.0, %v628
    %v630 = vpop.f32.mrf.mxu0
    %631 = vmatprep.mubr.f32.mxu0 0.0
    %632 = vmatmul.mubr.f32.gmra.mxu0 %v552
    %v633 = vpop.f32.mrf.mxu0
    %v634 = vadd.f32 0.0, %v633
    %v635 = vpop.f32.mrf.mxu0
    %636 = vmatprep.mubr.f32.mxu0 0.0
    %637 = vmatmul.mubr.f32.gmra.mxu0 %v554
    %v638 = vpop.f32.mrf.mxu0
    %v639 = vadd.f32 0.0, %v638
    %v640 = vpop.f32.mrf.mxu0
    %641 = vdwg.mxu0
    %642 = vrot.lane.b32.xlu0 %v434, 96
    %v643 = vpop.permute.xlu0 %642
    %644 = vrot.lane.b32.xlu0 %v436, 96
    %v645 = vpop.permute.xlu0 %644
    %646 = vrot.lane.b32.xlu0 %v438, 96
    %v647 = vpop.permute.xlu0 %646
    %v648 = vsel %vm451, %v434, 0
    %v650 = vsel %vm451, %v436, 0
    %v652 = vsel %vm451, %v438, 0
    %v654 = vsel %vm451, %v643, 0
    %v656 = vsel %vm451, %v645, 0
    %v658 = vsel %vm451, %v647, 0
    %660 = vmatprep.subr.mxu0 0.0
    %661 = vmatpush1.xpose.msra.mxu0 0.0
    %662 = vmatprep.subr.mxu0 0.0
    %663 = vmatpush1.xpose.msra.mxu0 0.0
    %664 = vmatprep.subr.mxu0 0.0
    %665 = vmatpush1.xpose.msra.mxu0 0.0
    %666 = vmatprep.subr.mxu0 0.0
    %667 = vmatpush1.xpose.msra.mxu0 0.0
    %668 = vmatprep.subr.mxu0 0.0
    %669 = vmatpush1.xpose.msra.mxu0 0.0
    %670 = vmatprep.subr.mxu0 0.0
    %671 = vmatpush1.xpose.msra.mxu0 0.0
    %672 = vmatprep.subr.mxu0 0.0
    %673 = vmatpush1.xpose.msra.mxu0 0.0
    %674 = vmatprep.subr.mxu0 0.0
    %675 = vmatpush1.xpose.msra.mxu0 0.0
    %676 = vmatprep.subr.mxu0 0.0
    %677 = vmatpush1.xpose.msra.mxu0 0.0
    %678 = vmatprep.subr.mxu0 0.0
    %679 = vmatpush1.xpose.msra.mxu0 0.0
    %680 = vmatprep.subr.mxu0 0.0
    %681 = vmatpush1.xpose.msra.mxu0 0.0
    %682 = vmatprep.subr.mxu0 0.0
    %683 = vmatpush1.xpose.msra.mxu0 0.0
    %684 = vmatprep.subr.mxu0 0.0
    %685 = vmatpush1.xpose.msra.mxu0 0.0
    %686 = vmatprep.subr.mxu0 0.0
    %687 = vmatpush1.xpose.msra.mxu0 %v658
    %688 = vmatprep.subr.mxu0 0.0
    %689 = vmatpush1.xpose.msra.mxu0 %v656
    %690 = vmatprep.subr.mxu0 0.0
    %691 = vmatpush1.xpose.msra.mxu0 %v654
    %692 = vmatprep.subr.mxu0 0.0
    %693 = vmatpush2.xpose.msra.mxu0 0.0
    %694 = vmatprep.subr.mxu0 0.0
    %695 = vmatpush2.xpose.msra.mxu0 0.0
    %696 = vmatprep.subr.mxu0 0.0
    %697 = vmatpush2.xpose.msra.mxu0 0.0
    %698 = vmatprep.subr.mxu0 0.0
    %699 = vmatpush2.xpose.msra.mxu0 0.0
    %700 = vmatprep.subr.mxu0 0.0
    %701 = vmatpush2.xpose.msra.mxu0 0.0
    %702 = vmatprep.subr.mxu0 0.0
    %703 = vmatpush2.xpose.msra.mxu0 0.0
    %704 = vmatprep.subr.mxu0 0.0
    %705 = vmatpush2.xpose.msra.mxu0 0.0
    %706 = vmatprep.subr.mxu0 0.0
    %707 = vmatpush2.xpose.msra.mxu0 0.0
    %708 = vmatprep.subr.mxu0 0.0
    %709 = vmatpush2.xpose.msra.mxu0 0.0
    %710 = vmatprep.subr.mxu0 0.0
    %711 = vmatpush2.xpose.msra.mxu0 0.0
    %712 = vmatprep.subr.mxu0 0.0
    %713 = vmatpush2.xpose.msra.mxu0 0.0
    %714 = vmatprep.subr.mxu0 0.0
    %715 = vmatpush2.xpose.msra.mxu0 0.0
    %716 = vmatprep.subr.mxu0 0.0
    %717 = vmatpush2.xpose.msra.mxu0 0.0
    %718 = vmatprep.subr.mxu0 0.0
    %719 = vmatpush2.xpose.msra.mxu0 0.0
    %720 = vmatprep.subr.mxu0 0.0
    %721 = vmatpush2.xpose.msra.mxu0 0.0
    %722 = vmatprep.subr.mxu0 0.0
    %723 = vmatpush2.xpose.msra.mxu0 0.0
    %724 = vmatprep.mubr.f32.mxu0 0.0
    %725 = vmatmul.mubr.f32.gmra.mxu0 %v648
    %v726 = vpop.f32.mrf.mxu0
    %v727 = vadd.f32 0.0, %v726
    %v728 = vpop.f32.mrf.mxu0
    %729 = vmatprep.mubr.f32.mxu0 0.0
    %730 = vmatmul.mubr.f32.gmra.mxu0 %v650
    %v731 = vpop.f32.mrf.mxu0
    %v732 = vadd.f32 0.0, %v731
    %v733 = vpop.f32.mrf.mxu0
    %734 = vmatprep.mubr.f32.mxu0 0.0
    %735 = vmatmul.mubr.f32.gmra.mxu0 %v652
    %v736 = vpop.f32.mrf.mxu0
    %v737 = vadd.f32 0.0, %v736
    %v738 = vpop.f32.mrf.mxu0
    %739 = vdwg.mxu0
    %740 = vrot.lane.b32.xlu0 %v440, 96
    %v741 = vpop.permute.xlu0 %740
    %742 = vrot.lane.b32.xlu0 %v442, 96
    %v743 = vpop.permute.xlu0 %742
    %744 = vrot.lane.b32.xlu0 %v444, 96
    %v745 = vpop.permute.xlu0 %744
    %v746 = vsel %vm451, %v440, 0
    %v748 = vsel %vm451, %v442, 0
    %v750 = vsel %vm451, %v444, 0
    %v752 = vsel %vm451, %v741, 0
    %v754 = vsel %vm451, %v743, 0
    %v756 = vsel %vm451, %v745, 0
    %758 = vmatprep.subr.mxu0 0.0
    %759 = vmatpush1.xpose.msra.mxu0 0.0
    %760 = vmatprep.subr.mxu0 0.0
    %761 = vmatpush1.xpose.msra.mxu0 0.0
    %762 = vmatprep.subr.mxu0 0.0
    %763 = vmatpush1.xpose.msra.mxu0 0.0
    %764 = vmatprep.subr.mxu0 0.0
    %765 = vmatpush1.xpose.msra.mxu0 0.0
    %766 = vmatprep.subr.mxu0 0.0
    %767 = vmatpush1.xpose.msra.mxu0 0.0
    %768 = vmatprep.subr.mxu0 0.0
    %769 = vmatpush1.xpose.msra.mxu0 0.0
    %770 = vmatprep.subr.mxu0 0.0
    %771 = vmatpush1.xpose.msra.mxu0 0.0
    %772 = vmatprep.subr.mxu0 0.0
    %773 = vmatpush1.xpose.msra.mxu0 0.0
    %774 = vmatprep.subr.mxu0 0.0
    %775 = vmatpush1.xpose.msra.mxu0 0.0
    %776 = vmatprep.subr.mxu0 0.0
    %777 = vmatpush1.xpose.msra.mxu0 0.0
    %778 = vmatprep.subr.mxu0 0.0
    %779 = vmatpush1.xpose.msra.mxu0 0.0
    %780 = vmatprep.subr.mxu0 0.0
    %781 = vmatpush1.xpose.msra.mxu0 0.0
    %782 = vmatprep.subr.mxu0 0.0
    %783 = vmatpush1.xpose.msra.mxu0 0.0
    %784 = vmatprep.subr.mxu0 0.0
    %785 = vmatpush1.xpose.msra.mxu0 %v756
    %786 = vmatprep.subr.mxu0 0.0
    %787 = vmatpush1.xpose.msra.mxu0 %v754
    %788 = vmatprep.subr.mxu0 0.0
    %789 = vmatpush1.xpose.msra.mxu0 %v752
    %790 = vmatprep.subr.mxu0 0.0
    %791 = vmatpush2.xpose.msra.mxu0 0.0
    %792 = vmatprep.subr.mxu0 0.0
    %793 = vmatpush2.xpose.msra.mxu0 0.0
    %794 = vmatprep.subr.mxu0 0.0
    %795 = vmatpush2.xpose.msra.mxu0 0.0
    %796 = vmatprep.subr.mxu0 0.0
    %797 = vmatpush2.xpose.msra.mxu0 0.0
    %798 = vmatprep.subr.mxu0 0.0
    %799 = vmatpush2.xpose.msra.mxu0 0.0
    %800 = vmatprep.subr.mxu0 0.0
    %801 = vmatpush2.xpose.msra.mxu0 0.0
    %802 = vmatprep.subr.mxu0 0.0
    %803 = vmatpush2.xpose.msra.mxu0 0.0
    %804 = vmatprep.subr.mxu0 0.0
    %805 = vmatpush2.xpose.msra.mxu0 0.0
    %806 = vmatprep.subr.mxu0 0.0
    %807 = vmatpush2.xpose.msra.mxu0 0.0
    %808 = vmatprep.subr.mxu0 0.0
    %809 = vmatpush2.xpose.msra.mxu0 0.0
    %810 = vmatprep.subr.mxu0 0.0
    %811 = vmatpush2.xpose.msra.mxu0 0.0
    %812 = vmatprep.subr.mxu0 0.0
    %813 = vmatpush2.xpose.msra.mxu0 0.0
    %814 = vmatprep.subr.mxu0 0.0
    %815 = vmatpush2.xpose.msra.mxu0 0.0
    %816 = vmatprep.subr.mxu0 0.0
    %817 = vmatpush2.xpose.msra.mxu0 0.0
    %818 = vmatprep.subr.mxu0 0.0
    %819 = vmatpush2.xpose.msra.mxu0 0.0
    %820 = vmatprep.subr.mxu0 0.0
    %821 = vmatpush2.xpose.msra.mxu0 0.0
    %822 = vmatprep.mubr.f32.mxu0 0.0
    %823 = vmatmul.mubr.f32.gmra.mxu0 %v746
    %v824 = vpop.f32.mrf.mxu0
    %v825 = vadd.f32 0.0, %v824
    %v826 = vpop.f32.mrf.mxu0
    %827 = vmatprep.mubr.f32.mxu0 0.0
    %828 = vmatmul.mubr.f32.gmra.mxu0 %v748
    %v829 = vpop.f32.mrf.mxu0
    %v830 = vadd.f32 0.0, %v829
    %v831 = vpop.f32.mrf.mxu0
    %832 = vmatprep.mubr.f32.mxu0 0.0
    %833 = vmatmul.mubr.f32.gmra.mxu0 %v750
    %v834 = vpop.f32.mrf.mxu0
    %v835 = vadd.f32 0.0, %v834
    %v836 = vpop.f32.mrf.mxu0
    %837 = vdwg.mxu0
    %v838 = vmul.f32 %v531, 0.25
    %v839 = vmul.f32 %v536, 0.25
    %v840 = vmul.f32 %v541, 0.25
    %v841 = vmul.f32 %v629, 0.25
    %v842 = vmul.f32 %v634, 0.25
    %v843 = vmul.f32 %v639, 0.25
    %v844 = vmul.f32 %v727, 0.25
    %v845 = vmul.f32 %v732, 0.25
    %v846 = vmul.f32 %v737, 0.25
    %v847 = vmul.f32 %v825, 0.25
    %v848 = vmul.f32 %v830, 0.25
    %v849 = vmul.f32 %v835, 0.25
    %v850 = vadd.f32 %v838, %v197
    %v851 = vadd.f32 %v839, %v197
    %v852 = vadd.f32 %v840, %v197
    %v853 = vadd.f32 %v841, %v197
    %v854 = vadd.f32 %v842, %v197
    %v855 = vadd.f32 %v843, %v197
    %v856 = vadd.f32 %v844, %v197
    %v857 = vadd.f32 %v845, %v197
    %v858 = vadd.f32 %v846, %v197
    %v859 = vadd.f32 %v847, %v197
    %v860 = vadd.f32 %v848, %v197
    %v861 = vadd.f32 %v849, %v197
    %vm862 = vcmask 195584
    %v863 = vsel %vm862, %v850, -inf
    %864 = vmax.xlane.f32.xlu0 %v863
    %v865 = vpop.xlane.xlu0 %864
    %v866 = vsel %vm862, %v851, -inf
    %867 = vmax.xlane.f32.xlu0 %v866
    %v868 = vpop.xlane.xlu0 %867
    %v869 = vsel %vm862, %v852, -inf
    %870 = vmax.xlane.f32.xlu0 %v869
    %v871 = vpop.xlane.xlu0 %870
    %v872 = vsel %vm862, %v853, -inf
    %873 = vmax.xlane.f32.xlu0 %v872
    %v874 = vpop.xlane.xlu0 %873
    %v875 = vsel %vm862, %v854, -inf
    %876 = vmax.xlane.f32.xlu0 %v875
    %v877 = vpop.xlane.xlu0 %876
    %v878 = vsel %vm862, %v855, -inf
    %879 = vmax.xlane.f32.xlu0 %v878
    %v880 = vpop.xlane.xlu0 %879
    %v881 = vsel %vm862, %v856, -inf
    %882 = vmax.xlane.f32.xlu0 %v881
    %v883 = vpop.xlane.xlu0 %882
    %v884 = vsel %vm862, %v857, -inf
    %885 = vmax.xlane.f32.xlu0 %v884
    %v886 = vpop.xlane.xlu0 %885
    %v887 = vsel %vm862, %v858, -inf
    %888 = vmax.xlane.f32.xlu0 %v887
    %v889 = vpop.xlane.xlu0 %888
    %v890 = vsel %vm862, %v859, -inf
    %891 = vmax.xlane.f32.xlu0 %v890
    %v892 = vpop.xlane.xlu0 %891
    %v893 = vsel %vm862, %v860, -inf
    %894 = vmax.xlane.f32.xlu0 %v893
    %v895 = vpop.xlane.xlu0 %894
    %v896 = vsel %vm862, %v861, -inf
    %897 = vmax.xlane.f32.xlu0 %v896
    %v898 = vpop.xlane.xlu0 %897
    %v899 = vsub.f32 %v850, %v865
    %v900 = vsub.f32 %v851, %v868
    %v901 = vsub.f32 %v852, %v871
    %v902 = vsub.f32 %v853, %v874
    %v903 = vsub.f32 %v854, %v877
    %v904 = vsub.f32 %v855, %v880
    %v905 = vsub.f32 %v856, %v883
    %v906 = vsub.f32 %v857, %v886
    %v907 = vsub.f32 %v858, %v889
    %v908 = vsub.f32 %v859, %v892
    %v909 = vsub.f32 %v860, %v895
    %v910 = vsub.f32 %v861, %v898
    %v911 = vmul.f32 %v899, 1.442695
    %v912 = vpow.pop %v911
    %v913 = vmul.f32 %v900, 1.442695
    %v914 = vpow.pop %v913
    %v915 = vmul.f32 %v901, 1.442695
    %v916 = vpow.pop %v915
    %v917 = vmul.f32 %v902, 1.442695
    %v918 = vpow.pop %v917
    %v919 = vmul.f32 %v903, 1.442695
    %v920 = vpow.pop %v919
    %v921 = vmul.f32 %v904, 1.442695
    %v922 = vpow.pop %v921
    %v923 = vmul.f32 %v905, 1.442695
    %v924 = vpow.pop %v923
    %v925 = vmul.f32 %v906, 1.442695
    %v926 = vpow.pop %v925
    %v927 = vmul.f32 %v907, 1.442695
    %v928 = vpow.pop %v927
    %v929 = vmul.f32 %v908, 1.442695
    %v930 = vpow.pop %v929
    %v931 = vmul.f32 %v909, 1.442695
    %v932 = vpow.pop %v931
    %v933 = vmul.f32 %v910, 1.442695
    %v934 = vpow.pop %v933
    %v935 = vsel %vm862, %v912, 0.0
    %936 = vadd.xlane.f32.xlu0 %v935
    %v937 = vpop.xlane.xlu0 %936
    %v938 = vsel %vm862, %v914, 0.0
    %939 = vadd.xlane.f32.xlu0 %v938
    %v940 = vpop.xlane.xlu0 %939
    %v941 = vsel %vm862, %v916, 0.0
    %942 = vadd.xlane.f32.xlu0 %v941
    %v943 = vpop.xlane.xlu0 %942
    %v944 = vsel %vm862, %v918, 0.0
    %945 = vadd.xlane.f32.xlu0 %v944
    %v946 = vpop.xlane.xlu0 %945
    %v947 = vsel %vm862, %v920, 0.0
    %948 = vadd.xlane.f32.xlu0 %v947
    %v949 = vpop.xlane.xlu0 %948
    %v950 = vsel %vm862, %v922, 0.0
    %951 = vadd.xlane.f32.xlu0 %v950
    %v952 = vpop.xlane.xlu0 %951
    %v953 = vsel %vm862, %v924, 0.0
    %954 = vadd.xlane.f32.xlu0 %v953
    %v955 = vpop.xlane.xlu0 %954
    %v956 = vsel %vm862, %v926, 0.0
    %957 = vadd.xlane.f32.xlu0 %v956
    %v958 = vpop.xlane.xlu0 %957
    %v959 = vsel %vm862, %v928, 0.0
    %960 = vadd.xlane.f32.xlu0 %v959
    %v961 = vpop.xlane.xlu0 %960
    %v962 = vsel %vm862, %v930, 0.0
    %963 = vadd.xlane.f32.xlu0 %v962
    %v964 = vpop.xlane.xlu0 %963
    %v965 = vsel %vm862, %v932, 0.0
    %966 = vadd.xlane.f32.xlu0 %v965
    %v967 = vpop.xlane.xlu0 %966
    %v968 = vsel %vm862, %v934, 0.0
    %969 = vadd.xlane.f32.xlu0 %v968
    %v970 = vpop.xlane.xlu0 %969
    %v971 = vrcp.pop %v937
    %v972 = vrcp.pop %v940
    %v973 = vrcp.pop %v943
    %v974 = vrcp.pop %v946
    %v975 = vrcp.pop %v949
    %v976 = vrcp.pop %v952
    %v977 = vrcp.pop %v955
    %v978 = vrcp.pop %v958
    %v979 = vrcp.pop %v961
    %v980 = vrcp.pop %v964
    %v981 = vrcp.pop %v967
    %v982 = vrcp.pop %v970
    %v983 = vmul.f32 %v912, %v971
    %v984 = vmul.f32 %v914, %v972
    %v985 = vmul.f32 %v916, %v973
    %v986 = vmul.f32 %v918, %v974
    %v987 = vmul.f32 %v920, %v975
    %v988 = vmul.f32 %v922, %v976
    %v989 = vmul.f32 %v924, %v977
    %v990 = vmul.f32 %v926, %v978
    %v991 = vmul.f32 %v928, %v979
    %v992 = vmul.f32 %v930, %v980
    %v993 = vmul.f32 %v932, %v981
    %v994 = vmul.f32 %v934, %v982
    %995 = vrot.lane.b32.xlu0 %v399, 64
    %v996 = vpop.permute.xlu0 %995
    %997 = vrot.lane.b32.xlu0 %v404, 64
    %v998 = vpop.permute.xlu0 %997
    %999 = vrot.lane.b32.xlu0 %v409, 64
    %v1000 = vpop.permute.xlu0 %999
    %v1005 = vsel %vm862, %v983, 0
    %v1008 = vsel %vm862, %v984, 0
    %v1011 = vsel %vm862, %v985, 0
    %1013 = vmatprep.subr.mxu0 0.0
    %1014 = vmatpush1.msra.mxu0 0.0
    %1015 = vmatprep.subr.mxu0 0.0
    %1016 = vmatpush1.msra.mxu0 0.0
    %1017 = vmatprep.subr.mxu0 0.0
    %1018 = vmatpush1.msra.mxu0 0.0
    %1019 = vmatprep.subr.mxu0 0.0
    %1020 = vmatpush1.msra.mxu0 0.0
    %1021 = vmatprep.subr.mxu0 0.0
    %1022 = vmatpush1.msra.mxu0 0.0
    %1023 = vmatprep.subr.mxu0 0.0
    %1024 = vmatpush1.msra.mxu0 0.0
    %1025 = vmatprep.subr.mxu0 0.0
    %1026 = vmatpush1.msra.mxu0 0.0
    %1027 = vmatprep.subr.mxu0 0.0
    %1028 = vmatpush1.msra.mxu0 0.0
    %1029 = vmatprep.subr.mxu0 0.0
    %1030 = vmatpush1.msra.mxu0 0.0
    %1031 = vmatprep.subr.mxu0 0.0
    %1032 = vmatpush1.msra.mxu0 0.0
    %1033 = vmatprep.subr.mxu0 0.0
    %1034 = vmatpush1.msra.mxu0 0.0
    %1035 = vmatprep.subr.mxu0 0.0
    %1036 = vmatpush1.msra.mxu0 0.0
    %1037 = vmatprep.subr.mxu0 0.0
    %1038 = vmatpush1.msra.mxu0 0.0
    %1039 = vmatprep.subr.mxu0 0.0
    %1040 = vmatpush1.msra.mxu0 %v1000
    %1041 = vmatprep.subr.mxu0 0.0
    %1042 = vmatpush1.msra.mxu0 %v998
    %1043 = vmatprep.subr.mxu0 0.0
    %1044 = vmatpush1.msra.mxu0 %v996
    %1045 = vmatprep.subr.mxu0 0.0
    %1046 = vmatpush2.msra.mxu0 0.0
    %1047 = vmatprep.subr.mxu0 0.0
    %1048 = vmatpush2.msra.mxu0 0.0
    %1049 = vmatprep.subr.mxu0 0.0
    %1050 = vmatpush2.msra.mxu0 0.0
    %1051 = vmatprep.subr.mxu0 0.0
    %1052 = vmatpush2.msra.mxu0 0.0
    %1053 = vmatprep.subr.mxu0 0.0
    %1054 = vmatpush2.msra.mxu0 0.0
    %1055 = vmatprep.subr.mxu0 0.0
    %1056 = vmatpush2.msra.mxu0 0.0
    %1057 = vmatprep.subr.mxu0 0.0
    %1058 = vmatpush2.msra.mxu0 0.0
    %1059 = vmatprep.subr.mxu0 0.0
    %1060 = vmatpush2.msra.mxu0 0.0
    %1061 = vmatprep.subr.mxu0 0.0
    %1062 = vmatpush2.msra.mxu0 0.0
    %1063 = vmatprep.subr.mxu0 0.0
    %1064 = vmatpush2.msra.mxu0 0.0
    %1065 = vmatprep.subr.mxu0 0.0
    %1066 = vmatpush2.msra.mxu0 0.0
    %1067 = vmatprep.subr.mxu0 0.0
    %1068 = vmatpush2.msra.mxu0 0.0
    %1069 = vmatprep.subr.mxu0 0.0
    %1070 = vmatpush2.msra.mxu0 0.0
    %1071 = vmatprep.subr.mxu0 0.0
    %1072 = vmatpush2.msra.mxu0 0.0
    %1073 = vmatprep.subr.mxu0 0.0
    %1074 = vmatpush2.msra.mxu0 0.0
    %1075 = vmatprep.subr.mxu0 0.0
    %1076 = vmatpush2.msra.mxu0 0.0
    %1077 = vmatprep.mubr.f32.mxu0 0.0
    %1078 = vmatmul.mubr.f32.gmra.mxu0 %v1005
    %v1079 = vpop.f32.mrf.mxu0
    %v1080 = vadd.f32 0.0, %v1079
    %v1081 = vpop.f32.mrf.mxu0
    %1082 = vmatprep.mubr.f32.mxu0 0.0
    %1083 = vmatmul.mubr.f32.gmra.mxu0 %v1008
    %v1084 = vpop.f32.mrf.mxu0
    %v1085 = vadd.f32 0.0, %v1084
    %v1086 = vpop.f32.mrf.mxu0
    %1087 = vmatprep.mubr.f32.mxu0 0.0
    %1088 = vmatmul.mubr.f32.gmra.mxu0 %v1011
    %v1089 = vpop.f32.mrf.mxu0
    %v1090 = vadd.f32 0.0, %v1089
    %v1091 = vpop.f32.mrf.mxu0
    %1092 = vdwg.mxu0
    %1093 = vrot.lane.b32.xlu0 %v414, 64
    %v1094 = vpop.permute.xlu0 %1093
    %1095 = vrot.lane.b32.xlu0 %v419, 64
    %v1096 = vpop.permute.xlu0 %1095
    %1097 = vrot.lane.b32.xlu0 %v424, 64
    %v1098 = vpop.permute.xlu0 %1097
    %v1103 = vsel %vm862, %v986, 0
    %v1106 = vsel %vm862, %v987, 0
    %v1109 = vsel %vm862, %v988, 0
    %1111 = vmatprep.subr.mxu0 0.0
    %1112 = vmatpush1.msra.mxu0 0.0
    %1113 = vmatprep.subr.mxu0 0.0
    %1114 = vmatpush1.msra.mxu0 0.0
    %1115 = vmatprep.subr.mxu0 0.0
    %1116 = vmatpush1.msra.mxu0 0.0
    %1117 = vmatprep.subr.mxu0 0.0
    %1118 = vmatpush1.msra.mxu0 0.0
    %1119 = vmatprep.subr.mxu0 0.0
    %1120 = vmatpush1.msra.mxu0 0.0
    %1121 = vmatprep.subr.mxu0 0.0
    %1122 = vmatpush1.msra.mxu0 0.0
    %1123 = vmatprep.subr.mxu0 0.0
    %1124 = vmatpush1.msra.mxu0 0.0
    %1125 = vmatprep.subr.mxu0 0.0
    %1126 = vmatpush1.msra.mxu0 0.0
    %1127 = vmatprep.subr.mxu0 0.0
    %1128 = vmatpush1.msra.mxu0 0.0
    %1129 = vmatprep.subr.mxu0 0.0
    %1130 = vmatpush1.msra.mxu0 0.0
    %1131 = vmatprep.subr.mxu0 0.0
    %1132 = vmatpush1.msra.mxu0 0.0
    %1133 = vmatprep.subr.mxu0 0.0
    %1134 = vmatpush1.msra.mxu0 0.0
    %1135 = vmatprep.subr.mxu0 0.0
    %1136 = vmatpush1.msra.mxu0 0.0
    %1137 = vmatprep.subr.mxu0 0.0
    %1138 = vmatpush1.msra.mxu0 %v1098
    %1139 = vmatprep.subr.mxu0 0.0
    %1140 = vmatpush1.msra.mxu0 %v1096
    %1141 = vmatprep.subr.mxu0 0.0
    %1142 = vmatpush1.msra.mxu0 %v1094
    %1143 = vmatprep.subr.mxu0 0.0
    %1144 = vmatpush2.msra.mxu0 0.0
    %1145 = vmatprep.subr.mxu0 0.0
    %1146 = vmatpush2.msra.mxu0 0.0
    %1147 = vmatprep.subr.mxu0 0.0
    %1148 = vmatpush2.msra.mxu0 0.0
    %1149 = vmatprep.subr.mxu0 0.0
    %1150 = vmatpush2.msra.mxu0 0.0
    %1151 = vmatprep.subr.mxu0 0.0
    %1152 = vmatpush2.msra.mxu0 0.0
    %1153 = vmatprep.subr.mxu0 0.0
    %1154 = vmatpush2.msra.mxu0 0.0
    %1155 = vmatprep.subr.mxu0 0.0
    %1156 = vmatpush2.msra.mxu0 0.0
    %1157 = vmatprep.subr.mxu0 0.0
    %1158 = vmatpush2.msra.mxu0 0.0
    %1159 = vmatprep.subr.mxu0 0.0
    %1160 = vmatpush2.msra.mxu0 0.0
    %1161 = vmatprep.subr.mxu0 0.0
    %1162 = vmatpush2.msra.mxu0 0.0
    %1163 = vmatprep.subr.mxu0 0.0
    %1164 = vmatpush2.msra.mxu0 0.0
    %1165 = vmatprep.subr.mxu0 0.0
    %1166 = vmatpush2.msra.mxu0 0.0
    %1167 = vmatprep.subr.mxu0 0.0
    %1168 = vmatpush2.msra.mxu0 0.0
    %1169 = vmatprep.subr.mxu0 0.0
    %1170 = vmatpush2.msra.mxu0 0.0
    %1171 = vmatprep.subr.mxu0 0.0
    %1172 = vmatpush2.msra.mxu0 0.0
    %1173 = vmatprep.subr.mxu0 0.0
    %1174 = vmatpush2.msra.mxu0 0.0
    %1175 = vmatprep.mubr.f32.mxu0 0.0
    %1176 = vmatmul.mubr.f32.gmra.mxu0 %v1103
    %v1177 = vpop.f32.mrf.mxu0
    %v1178 = vadd.f32 0.0, %v1177
    %v1179 = vpop.f32.mrf.mxu0
    %1180 = vmatprep.mubr.f32.mxu0 0.0
    %1181 = vmatmul.mubr.f32.gmra.mxu0 %v1106
    %v1182 = vpop.f32.mrf.mxu0
    %v1183 = vadd.f32 0.0, %v1182
    %v1184 = vpop.f32.mrf.mxu0
    %1185 = vmatprep.mubr.f32.mxu0 0.0
    %1186 = vmatmul.mubr.f32.gmra.mxu0 %v1109
    %v1187 = vpop.f32.mrf.mxu0
    %v1188 = vadd.f32 0.0, %v1187
    %v1189 = vpop.f32.mrf.mxu0
    %1190 = vdwg.mxu0
    %1191 = vrot.lane.b32.xlu0 %v434, 64
    %v1192 = vpop.permute.xlu0 %1191
    %1193 = vrot.lane.b32.xlu0 %v436, 64
    %v1194 = vpop.permute.xlu0 %1193
    %1195 = vrot.lane.b32.xlu0 %v438, 64
    %v1196 = vpop.permute.xlu0 %1195
    %v1201 = vsel %vm862, %v989, 0
    %v1204 = vsel %vm862, %v990, 0
    %v1207 = vsel %vm862, %v991, 0
    %1209 = vmatprep.subr.mxu0 0.0
    %1210 = vmatpush1.msra.mxu0 0.0
    %1211 = vmatprep.subr.mxu0 0.0
    %1212 = vmatpush1.msra.mxu0 0.0
    %1213 = vmatprep.subr.mxu0 0.0
    %1214 = vmatpush1.msra.mxu0 0.0
    %1215 = vmatprep.subr.mxu0 0.0
    %1216 = vmatpush1.msra.mxu0 0.0
    %1217 = vmatprep.subr.mxu0 0.0
    %1218 = vmatpush1.msra.mxu0 0.0
    %1219 = vmatprep.subr.mxu0 0.0
    %1220 = vmatpush1.msra.mxu0 0.0
    %1221 = vmatprep.subr.mxu0 0.0
    %1222 = vmatpush1.msra.mxu0 0.0
    %1223 = vmatprep.subr.mxu0 0.0
    %1224 = vmatpush1.msra.mxu0 0.0
    %1225 = vmatprep.subr.mxu0 0.0
    %1226 = vmatpush1.msra.mxu0 0.0
    %1227 = vmatprep.subr.mxu0 0.0
    %1228 = vmatpush1.msra.mxu0 0.0
    %1229 = vmatprep.subr.mxu0 0.0
    %1230 = vmatpush1.msra.mxu0 0.0
    %1231 = vmatprep.subr.mxu0 0.0
    %1232 = vmatpush1.msra.mxu0 0.0
    %1233 = vmatprep.subr.mxu0 0.0
    %1234 = vmatpush1.msra.mxu0 0.0
    %1235 = vmatprep.subr.mxu0 0.0
    %1236 = vmatpush1.msra.mxu0 %v1196
    %1237 = vmatprep.subr.mxu0 0.0
    %1238 = vmatpush1.msra.mxu0 %v1194
    %1239 = vmatprep.subr.mxu0 0.0
    %1240 = vmatpush1.msra.mxu0 %v1192
    %1241 = vmatprep.subr.mxu0 0.0
    %1242 = vmatpush2.msra.mxu0 0.0
    %1243 = vmatprep.subr.mxu0 0.0
    %1244 = vmatpush2.msra.mxu0 0.0
    %1245 = vmatprep.subr.mxu0 0.0
    %1246 = vmatpush2.msra.mxu0 0.0
    %1247 = vmatprep.subr.mxu0 0.0
    %1248 = vmatpush2.msra.mxu0 0.0
    %1249 = vmatprep.subr.mxu0 0.0
    %1250 = vmatpush2.msra.mxu0 0.0
    %1251 = vmatprep.subr.mxu0 0.0
    %1252 = vmatpush2.msra.mxu0 0.0
    %1253 = vmatprep.subr.mxu0 0.0
    %1254 = vmatpush2.msra.mxu0 0.0
    %1255 = vmatprep.subr.mxu0 0.0
    %1256 = vmatpush2.msra.mxu0 0.0
    %1257 = vmatprep.subr.mxu0 0.0
    %1258 = vmatpush2.msra.mxu0 0.0
    %1259 = vmatprep.subr.mxu0 0.0
    %1260 = vmatpush2.msra.mxu0 0.0
    %1261 = vmatprep.subr.mxu0 0.0
    %1262 = vmatpush2.msra.mxu0 0.0
    %1263 = vmatprep.subr.mxu0 0.0
    %1264 = vmatpush2.msra.mxu0 0.0
    %1265 = vmatprep.subr.mxu0 0.0
    %1266 = vmatpush2.msra.mxu0 0.0
    %1267 = vmatprep.subr.mxu0 0.0
    %1268 = vmatpush2.msra.mxu0 0.0
    %1269 = vmatprep.subr.mxu0 0.0
    %1270 = vmatpush2.msra.mxu0 0.0
    %1271 = vmatprep.subr.mxu0 0.0
    %1272 = vmatpush2.msra.mxu0 0.0
    %1273 = vmatprep.mubr.f32.mxu0 0.0
    %1274 = vmatmul.mubr.f32.gmra.mxu0 %v1201
    %v1275 = vpop.f32.mrf.mxu0
    %v1276 = vadd.f32 0.0, %v1275
    %v1277 = vpop.f32.mrf.mxu0
    %1278 = vmatprep.mubr.f32.mxu0 0.0
    %1279 = vmatmul.mubr.f32.gmra.mxu0 %v1204
    %v1280 = vpop.f32.mrf.mxu0
    %v1281 = vadd.f32 0.0, %v1280
    %v1282 = vpop.f32.mrf.mxu0
    %1283 = vmatprep.mubr.f32.mxu0 0.0
    %1284 = vmatmul.mubr.f32.gmra.mxu0 %v1207
    %v1285 = vpop.f32.mrf.mxu0
    %v1286 = vadd.f32 0.0, %v1285
    %v1287 = vpop.f32.mrf.mxu0
    %1288 = vdwg.mxu0
    %1289 = vrot.lane.b32.xlu0 %v440, 64
    %v1290 = vpop.permute.xlu0 %1289
    %1291 = vrot.lane.b32.xlu0 %v442, 64
    %v1292 = vpop.permute.xlu0 %1291
    %1293 = vrot.lane.b32.xlu0 %v444, 64
    %v1294 = vpop.permute.xlu0 %1293
    %v1299 = vsel %vm862, %v992, 0
    %v1302 = vsel %vm862, %v993, 0
    %v1305 = vsel %vm862, %v994, 0
    %1307 = vmatprep.subr.mxu0 0.0
    %1308 = vmatpush1.msra.mxu0 0.0
    %1309 = vmatprep.subr.mxu0 0.0
    %1310 = vmatpush1.msra.mxu0 0.0
    %1311 = vmatprep.subr.mxu0 0.0
    %1312 = vmatpush1.msra.mxu0 0.0
    %1313 = vmatprep.subr.mxu0 0.0
    %1314 = vmatpush1.msra.mxu0 0.0
    %1315 = vmatprep.subr.mxu0 0.0
    %1316 = vmatpush1.msra.mxu0 0.0
    %1317 = vmatprep.subr.mxu0 0.0
    %1318 = vmatpush1.msra.mxu0 0.0
    %1319 = vmatprep.subr.mxu0 0.0
    %1320 = vmatpush1.msra.mxu0 0.0
    %1321 = vmatprep.subr.mxu0 0.0
    %1322 = vmatpush1.msra.mxu0 0.0
    %1323 = vmatprep.subr.mxu0 0.0
    %1324 = vmatpush1.msra.mxu0 0.0
    %1325 = vmatprep.subr.mxu0 0.0
    %1326 = vmatpush1.msra.mxu0 0.0
    %1327 = vmatprep.subr.mxu0 0.0
    %1328 = vmatpush1.msra.mxu0 0.0
    %1329 = vmatprep.subr.mxu0 0.0
    %1330 = vmatpush1.msra.mxu0 0.0
    %1331 = vmatprep.subr.mxu0 0.0
    %1332 = vmatpush1.msra.mxu0 0.0
    %1333 = vmatprep.subr.mxu0 0.0
    %1334 = vmatpush1.msra.mxu0 %v1294
    %1335 = vmatprep.subr.mxu0 0.0
    %1336 = vmatpush1.msra.mxu0 %v1292
    %1337 = vmatprep.subr.mxu0 0.0
    %1338 = vmatpush1.msra.mxu0 %v1290
    %1339 = vmatprep.subr.mxu0 0.0
    %1340 = vmatpush2.msra.mxu0 0.0
    %1341 = vmatprep.subr.mxu0 0.0
    %1342 = vmatpush2.msra.mxu0 0.0
    %1343 = vmatprep.subr.mxu0 0.0
    %1344 = vmatpush2.msra.mxu0 0.0
    %1345 = vmatprep.subr.mxu0 0.0
    %1346 = vmatpush2.msra.mxu0 0.0
    %1347 = vmatprep.subr.mxu0 0.0
    %1348 = vmatpush2.msra.mxu0 0.0
    %1349 = vmatprep.subr.mxu0 0.0
    %1350 = vmatpush2.msra.mxu0 0.0
    %1351 = vmatprep.subr.mxu0 0.0
    %1352 = vmatpush2.msra.mxu0 0.0
    %1353 = vmatprep.subr.mxu0 0.0
    %1354 = vmatpush2.msra.mxu0 0.0
    %1355 = vmatprep.subr.mxu0 0.0
    %1356 = vmatpush2.msra.mxu0 0.0
    %1357 = vmatprep.subr.mxu0 0.0
    %1358 = vmatpush2.msra.mxu0 0.0
    %1359 = vmatprep.subr.mxu0 0.0
    %1360 = vmatpush2.msra.mxu0 0.0
    %1361 = vmatprep.subr.mxu0 0.0
    %1362 = vmatpush2.msra.mxu0 0.0
    %1363 = vmatprep.subr.mxu0 0.0
    %1364 = vmatpush2.msra.mxu0 0.0
    %1365 = vmatprep.subr.mxu0 0.0
    %1366 = vmatpush2.msra.mxu0 0.0
    %1367 = vmatprep.subr.mxu0 0.0
    %1368 = vmatpush2.msra.mxu0 0.0
    %1369 = vmatprep.subr.mxu0 0.0
    %1370 = vmatpush2.msra.mxu0 0.0
    %1371 = vmatprep.mubr.f32.mxu0 0.0
    %1372 = vmatmul.mubr.f32.gmra.mxu0 %v1299
    %v1373 = vpop.f32.mrf.mxu0
    %v1374 = vadd.f32 0.0, %v1373
    %v1375 = vpop.f32.mrf.mxu0
    %1376 = vmatprep.mubr.f32.mxu0 0.0
    %1377 = vmatmul.mubr.f32.gmra.mxu0 %v1302
    %v1378 = vpop.f32.mrf.mxu0
    %v1379 = vadd.f32 0.0, %v1378
    %v1380 = vpop.f32.mrf.mxu0
    %1381 = vmatprep.mubr.f32.mxu0 0.0
    %1382 = vmatmul.mubr.f32.gmra.mxu0 %v1305
    %v1383 = vpop.f32.mrf.mxu0
    %v1384 = vadd.f32 0.0, %v1383
    %v1385 = vpop.f32.mrf.mxu0
    %1386 = vdwg.mxu0
    %1393 = vrot.lane.b32.xlu0 %v1276, 16
    %v1394 = vpop.permute.xlu0 %1393
    %1395 = vrot.lane.b32.xlu0 %v1281, 16
    %v1396 = vpop.permute.xlu0 %1395
    %1397 = vrot.lane.b32.xlu0 %v1286, 16
    %v1398 = vpop.permute.xlu0 %1397
    %1399 = vrot.lane.b32.xlu0 %v1374, 16
    %v1400 = vpop.permute.xlu0 %1399
    %1401 = vrot.lane.b32.xlu0 %v1379, 16
    %v1402 = vpop.permute.xlu0 %1401
    %1403 = vrot.lane.b32.xlu0 %v1384, 16
    %v1404 = vpop.permute.xlu0 %1403
    %v1411 = vsel %vm451, %v1080, %v1394
    %v1412 = vsel %vm451, %v1085, %v1396
    %v1413 = vsel %vm451, %v1090, %v1398
    %v1414 = vsel %vm451, %v1178, %v1400
    %v1415 = vsel %vm451, %v1183, %v1402
    %v1416 = vsel %vm451, %v1188, %v1404
    %v1417 = vld [vmem:[%s8] sm:$0xff]
    %v1418 = vld [vmem:[%s8 + $0x8] sm:$0xff]
    %v1419 = vld [vmem:[%s8 + $0x10] sm:$0xff]
    %v1420 = vld [vmem:[%s8 + $0x18] sm:$0xff]
    %v1421 = vld [vmem:[%s9] sm:$0x1]
    %v1423 = vlaneseq
    %v1424 = vshrl.u32 %v1423, 7
    %v1425 = vsub.s32 0, %v1424
    %v1426 = vrot.slane %v1421, %v1425
    %v1429 = vsel %vm180, %v1411, 0
    %v1432 = vsel %vm180, %v1412, 0
    %v1435 = vsel %vm180, %v1413, 0
    %v1438 = vsel %vm180, %v1414, 0
    %v1441 = vsel %vm180, %v1415, 0
    %v1444 = vsel %vm180, %v1416, 0
    %1446 = vmatprep.subr.mxu0 0.0
    %1447 = vmatpush1.msra.mxu0 0.0
    %1448 = vmatprep.subr.mxu0 0.0
    %1449 = vmatpush1.msra.mxu0 0.0
    %1450 = vmatprep.subr.mxu0 0.0
    %1451 = vmatpush1.msra.mxu0 0.0
    %1452 = vmatprep.subr.mxu0 0.0
    %1453 = vmatpush1.msra.mxu0 0.0
    %1454 = vmatprep.subr.mxu0 0.0
    %1455 = vmatpush1.msra.mxu0 0.0
    %1456 = vmatprep.subr.mxu0 0.0
    %1457 = vmatpush1.msra.mxu0 0.0
    %1458 = vmatprep.subr.mxu0 0.0
    %1459 = vmatpush1.msra.mxu0 0.0
    %1460 = vmatprep.subr.mxu0 0.0
    %1461 = vmatpush1.msra.mxu0 0.0
    %1462 = vmatprep.subr.mxu0 0.0
    %1463 = vmatpush1.msra.mxu0 0.0
    %1464 = vmatprep.subr.mxu0 0.0
    %1465 = vmatpush1.msra.mxu0 0.0
    %1466 = vmatprep.subr.mxu0 0.0
    %1467 = vmatpush1.msra.mxu0 0.0
    %1468 = vmatprep.subr.mxu0 0.0
    %1469 = vmatpush1.msra.mxu0 0.0
    %1470 = vmatprep.subr.mxu0 0.0
    %1471 = vmatpush1.msra.mxu0 %v1420
    %1472 = vmatprep.subr.mxu0 0.0
    %1473 = vmatpush1.msra.mxu0 %v1419
    %1474 = vmatprep.subr.mxu0 0.0
    %1475 = vmatpush1.msra.mxu0 %v1418
    %1476 = vmatprep.subr.mxu0 0.0
    %1477 = vmatpush1.msra.mxu0 %v1417
    %1478 = vmatprep.subr.mxu0 0.0
    %1479 = vmatpush2.msra.mxu0 0.0
    %1480 = vmatprep.subr.mxu0 0.0
    %1481 = vmatpush2.msra.mxu0 0.0
    %1482 = vmatprep.subr.mxu0 0.0
    %1483 = vmatpush2.msra.mxu0 0.0
    %1484 = vmatprep.subr.mxu0 0.0
    %1485 = vmatpush2.msra.mxu0 0.0
    %1486 = vmatprep.subr.mxu0 0.0
    %1487 = vmatpush2.msra.mxu0 0.0
    %1488 = vmatprep.subr.mxu0 0.0
    %1489 = vmatpush2.msra.mxu0 0.0
    %1490 = vmatprep.subr.mxu0 0.0
    %1491 = vmatpush2.msra.mxu0 0.0
    %1492 = vmatprep.subr.mxu0 0.0
    %1493 = vmatpush2.msra.mxu0 0.0
    %1494 = vmatprep.subr.mxu0 0.0
    %1495 = vmatpush2.msra.mxu0 0.0
    %1496 = vmatprep.subr.mxu0 0.0
    %1497 = vmatpush2.msra.mxu0 0.0
    %1498 = vmatprep.subr.mxu0 0.0
    %1499 = vmatpush2.msra.mxu0 0.0
    %1500 = vmatprep.subr.mxu0 0.0
    %1501 = vmatpush2.msra.mxu0 0.0
    %1502 = vmatprep.subr.mxu0 0.0
    %1503 = vmatpush2.msra.mxu0 0.0
    %1504 = vmatprep.subr.mxu0 0.0
    %1505 = vmatpush2.msra.mxu0 0.0
    %1506 = vmatprep.subr.mxu0 0.0
    %1507 = vmatpush2.msra.mxu0 0.0
    %1508 = vmatprep.subr.mxu0 0.0
    %1509 = vmatpush2.msra.mxu0 0.0
    %1510 = vmatprep.mubr.f32.mxu0 0.0
    %1511 = vmatmul.mubr.f32.gmra.mxu0 %v1429
    %v1512 = vpop.f32.mrf.mxu0
    %v1513 = vadd.f32 %v1426, %v1512
    %v1514 = vpop.f32.mrf.mxu0
    %1515 = vmatprep.mubr.f32.mxu0 0.0
    %1516 = vmatmul.mubr.f32.gmra.mxu0 %v1432
    %v1517 = vpop.f32.mrf.mxu0
    %v1518 = vadd.f32 %v1426, %v1517
    %v1519 = vpop.f32.mrf.mxu0
    %1520 = vmatprep.mubr.f32.mxu0 0.0
    %1521 = vmatmul.mubr.f32.gmra.mxu0 %v1435
    %v1522 = vpop.f32.mrf.mxu0
    %v1523 = vadd.f32 %v1426, %v1522
    %v1524 = vpop.f32.mrf.mxu0
    %1525 = vmatprep.mubr.f32.mxu0 0.0
    %1526 = vmatmul.mubr.f32.gmra.mxu0 %v1438
    %v1527 = vpop.f32.mrf.mxu0
    %v1528 = vadd.f32 %v1426, %v1527
    %v1529 = vpop.f32.mrf.mxu0
    %1530 = vmatprep.mubr.f32.mxu0 0.0
    %1531 = vmatmul.mubr.f32.gmra.mxu0 %v1441
    %v1532 = vpop.f32.mrf.mxu0
    %v1533 = vadd.f32 %v1426, %v1532
    %v1534 = vpop.f32.mrf.mxu0
    %1535 = vmatprep.mubr.f32.mxu0 0.0
    %1536 = vmatmul.mubr.f32.gmra.mxu0 %v1444
    %v1537 = vpop.f32.mrf.mxu0
    %v1538 = vadd.f32 %v1426, %v1537
    %v1539 = vpop.f32.mrf.mxu0
    %1540 = vdwg.mxu0
    %v1541 = vadd.f32 %v188, %v1513
    %v1542 = vadd.f32 %v189, %v1518
    %v1543 = vadd.f32 %v190, %v1523
    %v1544 = vadd.f32 %v191, %v1528
    %v1545 = vadd.f32 %v192, %v1533
    %v1546 = vadd.f32 %v193, %v1538
    %v1547 = vld [vmem:[%s10] sm:$0x1]
    %v1548 = vld [vmem:[%s11] sm:$0x1]
    %v1549 = vsel %vm180, %v1541, 0.0
    %1550 = vadd.xlane.f32.xlu0 %v1549
    %v1551 = vpop.xlane.xlu0 %1550
    %v1552 = vsel %vm180, %v1542, 0.0
    %1553 = vadd.xlane.f32.xlu0 %v1552
    %v1554 = vpop.xlane.xlu0 %1553
    %v1555 = vsel %vm180, %v1543, 0.0
    %1556 = vadd.xlane.f32.xlu0 %v1555
    %v1557 = vpop.xlane.xlu0 %1556
    %v1558 = vsel %vm180, %v1544, 0.0
    %1559 = vadd.xlane.f32.xlu0 %v1558
    %v1560 = vpop.xlane.xlu0 %1559
    %v1561 = vsel %vm180, %v1545, 0.0
    %1562 = vadd.xlane.f32.xlu0 %v1561
    %v1563 = vpop.xlane.xlu0 %1562
    %v1564 = vsel %vm180, %v1546, 0.0
    %1565 = vadd.xlane.f32.xlu0 %v1564
    %v1566 = vpop.xlane.xlu0 %1565
    %v1567 = vmul.f32 %v1551, %v218
    %v1568 = vmul.f32 %v1554, %v218
    %v1569 = vmul.f32 %v1557, %v218
    %v1570 = vmul.f32 %v1560, %v218
    %v1571 = vmul.f32 %v1563, %v218
    %v1572 = vmul.f32 %v1566, %v218
    %v1573 = vsub.f32 %v1541, %v1567
    %v1574 = vsub.f32 %v1542, %v1568
    %v1575 = vsub.f32 %v1543, %v1569
    %v1576 = vsub.f32 %v1544, %v1570
    %v1577 = vsub.f32 %v1545, %v1571
    %v1578 = vsub.f32 %v1546, %v1572
    %v1579 = vmul.f32 %v1573, %v1573
    %v1580 = vmul.f32 %v1574, %v1574
    %v1581 = vmul.f32 %v1575, %v1575
    %v1582 = vmul.f32 %v1576, %v1576
    %v1583 = vmul.f32 %v1577, %v1577
    %v1584 = vmul.f32 %v1578, %v1578
    %v1585 = vsel %vm180, %v1579, 0.0
    %1586 = vadd.xlane.f32.xlu0 %v1585
    %v1587 = vpop.xlane.xlu0 %1586
    %v1588 = vsel %vm180, %v1580, 0.0
    %1589 = vadd.xlane.f32.xlu0 %v1588
    %v1590 = vpop.xlane.xlu0 %1589
    %v1591 = vsel %vm180, %v1581, 0.0
    %1592 = vadd.xlane.f32.xlu0 %v1591
    %v1593 = vpop.xlane.xlu0 %1592
    %v1594 = vsel %vm180, %v1582, 0.0
    %1595 = vadd.xlane.f32.xlu0 %v1594
    %v1596 = vpop.xlane.xlu0 %1595
    %v1597 = vsel %vm180, %v1583, 0.0
    %1598 = vadd.xlane.f32.xlu0 %v1597
    %v1599 = vpop.xlane.xlu0 %1598
    %v1600 = vsel %vm180, %v1584, 0.0
    %1601 = vadd.xlane.f32.xlu0 %v1600
    %v1602 = vpop.xlane.xlu0 %1601
    %v1603 = vmul.f32 %v1587, %v218
    %v1604 = vmul.f32 %v1590, %v218
    %v1605 = vmul.f32 %v1593, %v218
    %v1606 = vmul.f32 %v1596, %v218
    %v1607 = vmul.f32 %v1599, %v218
    %v1608 = vmul.f32 %v1602, %v218
    %v1609 = vadd.f32 %v1603, 1e-05
    %v1610 = vadd.f32 %v1604, 1e-05
    %v1611 = vadd.f32 %v1605, 1e-05
    %v1612 = vadd.f32 %v1606, 1e-05
    %v1613 = vadd.f32 %v1607, 1e-05
    %v1614 = vadd.f32 %v1608, 1e-05
    %v1615 = vrsqrt.pop %v1609
    %v1616 = vrsqrt.pop %v1610
    %v1617 = vrsqrt.pop %v1611
    %v1618 = vrsqrt.pop %v1612
    %v1619 = vrsqrt.pop %v1613
    %v1620 = vrsqrt.pop %v1614
    %v1621 = vmul.f32 %v1573, %v1615
    %v1622 = vmul.f32 %v1574, %v1616
    %v1623 = vmul.f32 %v1575, %v1617
    %v1624 = vmul.f32 %v1576, %v1618
    %v1625 = vmul.f32 %v1577, %v1619
    %v1626 = vmul.f32 %v1578, %v1620
    %v1628 = vlaneseq
    %v1629 = vshrl.u32 %v1628, 7
    %v1630 = vsub.s32 0, %v1629
    %v1631 = vrot.slane %v1547, %v1630
    %v1633 = vmul.f32 %v1621, %v1631
    %v1634 = vmul.f32 %v1622, %v1631
    %v1635 = vmul.f32 %v1623, %v1631
    %v1636 = vmul.f32 %v1624, %v1631
    %v1637 = vmul.f32 %v1625, %v1631
    %v1638 = vmul.f32 %v1626, %v1631
    %v1640 = vlaneseq
    %v1641 = vshrl.u32 %v1640, 7
    %v1642 = vsub.s32 0, %v1641
    %v1643 = vrot.slane %v1548, %v1642
    %v1645 = vadd.f32 %v1633, %v1643
    %v1646 = vadd.f32 %v1634, %v1643
    %v1647 = vadd.f32 %v1635, %v1643
    %v1648 = vadd.f32 %v1636, %v1643
    %v1649 = vadd.f32 %v1637, %v1643
    %v1650 = vadd.f32 %v1638, %v1643
    %v1651 = vld [vmem:[%s12] sm:$0xff]
    %v1652 = vld [vmem:[%s12 + $0x8] sm:$0xff]
    %v1653 = vld [vmem:[%s12 + $0x10] sm:$0xff]
    %v1654 = vld [vmem:[%s12 + $0x18] sm:$0xff]
    %v1655 = vld [vmem:[%s13] sm:$0x1]
    %v1657 = vlaneseq
    %v1658 = vshrl.u32 %v1657, 7
    %v1659 = vsub.s32 0, %v1658
    %v1660 = vrot.slane %v1655, %v1659
    %v1663 = vsel %vm180, %v1645, 0
    %v1666 = vsel %vm180, %v1646, 0
    %v1669 = vsel %vm180, %v1647, 0
    %v1672 = vsel %vm180, %v1648, 0
    %v1675 = vsel %vm180, %v1649, 0
    %v1678 = vsel %vm180, %v1650, 0
    %1680 = vmatprep.subr.mxu0 0.0
    %1681 = vmatpush1.msra.mxu0 0.0
    %1682 = vmatprep.subr.mxu0 0.0
    %1683 = vmatpush1.msra.mxu0 0.0
    %1684 = vmatprep.subr.mxu0 0.0
    %1685 = vmatpush1.msra.mxu0 0.0
    %1686 = vmatprep.subr.mxu0 0.0
    %1687 = vmatpush1.msra.mxu0 0.0
    %1688 = vmatprep.subr.mxu0 0.0
    %1689 = vmatpush1.msra.mxu0 0.0
    %1690 = vmatprep.subr.mxu0 0.0
    %1691 = vmatpush1.msra.mxu0 0.0
    %1692 = vmatprep.subr.mxu0 0.0
    %1693 = vmatpush1.msra.mxu0 0.0
    %1694 = vmatprep.subr.mxu0 0.0
    %1695 = vmatpush1.msra.mxu0 0.0
    %1696 = vmatprep.subr.mxu0 0.0
    %1697 = vmatpush1.msra.mxu0 0.0
    %1698 = vmatprep.subr.mxu0 0.0
    %1699 = vmatpush1.msra.mxu0 0.0
    %1700 = vmatprep.subr.mxu0 0.0
    %1701 = vmatpush1.msra.mxu0 0.0
    %1702 = vmatprep.subr.mxu0 0.0
    %1703 = vmatpush1.msra.mxu0 0.0
    %1704 = vmatprep.subr.mxu0 0.0
    %1705 = vmatpush1.msra.mxu0 %v1654
    %1706 = vmatprep.subr.mxu0 0.0
    %1707 = vmatpush1.msra.mxu0 %v1653
    %1708 = vmatprep.subr.mxu0 0.0
    %1709 = vmatpush1.msra.mxu0 %v1652
    %1710 = vmatprep.subr.mxu0 0.0
    %1711 = vmatpush1.msra.mxu0 %v1651
    %1712 = vmatprep.subr.mxu0 0.0
    %1713 = vmatpush2.msra.mxu0 0.0
    %1714 = vmatprep.subr.mxu0 0.0
    %1715 = vmatpush2.msra.mxu0 0.0
    %1716 = vmatprep.subr.mxu0 0.0
    %1717 = vmatpush2.msra.mxu0 0.0
    %1718 = vmatprep.subr.mxu0 0.0
    %1719 = vmatpush2.msra.mxu0 0.0
    %1720 = vmatprep.subr.mxu0 0.0
    %1721 = vmatpush2.msra.mxu0 0.0
    %1722 = vmatprep.subr.mxu0 0.0
    %1723 = vmatpush2.msra.mxu0 0.0
    %1724 = vmatprep.subr.mxu0 0.0
    %1725 = vmatpush2.msra.mxu0 0.0
    %1726 = vmatprep.subr.mxu0 0.0
    %1727 = vmatpush2.msra.mxu0 0.0
    %1728 = vmatprep.subr.mxu0 0.0
    %1729 = vmatpush2.msra.mxu0 0.0
    %1730 = vmatprep.subr.mxu0 0.0
    %1731 = vmatpush2.msra.mxu0 0.0
    %1732 = vmatprep.subr.mxu0 0.0
    %1733 = vmatpush2.msra.mxu0 0.0
    %1734 = vmatprep.subr.mxu0 0.0
    %1735 = vmatpush2.msra.mxu0 0.0
    %1736 = vmatprep.subr.mxu0 0.0
    %1737 = vmatpush2.msra.mxu0 0.0
    %1738 = vmatprep.subr.mxu0 0.0
    %1739 = vmatpush2.msra.mxu0 0.0
    %1740 = vmatprep.subr.mxu0 0.0
    %1741 = vmatpush2.msra.mxu0 0.0
    %1742 = vmatprep.subr.mxu0 0.0
    %1743 = vmatpush2.msra.mxu0 0.0
    %1744 = vmatprep.mubr.f32.mxu0 0.0
    %1745 = vmatmul.mubr.f32.gmra.mxu0 %v1663
    %v1746 = vpop.f32.mrf.mxu0
    %v1747 = vadd.f32 %v1660, %v1746
    %v1748 = vpop.f32.mrf.mxu0
    %1749 = vmatprep.mubr.f32.mxu0 0.0
    %1750 = vmatmul.mubr.f32.gmra.mxu0 %v1666
    %v1751 = vpop.f32.mrf.mxu0
    %v1752 = vadd.f32 %v1660, %v1751
    %v1753 = vpop.f32.mrf.mxu0
    %1754 = vmatprep.mubr.f32.mxu0 0.0
    %1755 = vmatmul.mubr.f32.gmra.mxu0 %v1669
    %v1756 = vpop.f32.mrf.mxu0
    %v1757 = vadd.f32 %v1660, %v1756
    %v1758 = vpop.f32.mrf.mxu0
    %1759 = vmatprep.mubr.f32.mxu0 0.0
    %1760 = vmatmul.mubr.f32.gmra.mxu0 %v1672
    %v1761 = vpop.f32.mrf.mxu0
    %v1762 = vadd.f32 %v1660, %v1761
    %v1763 = vpop.f32.mrf.mxu0
    %1764 = vmatprep.mubr.f32.mxu0 0.0
    %1765 = vmatmul.mubr.f32.gmra.mxu0 %v1675
    %v1766 = vpop.f32.mrf.mxu0
    %v1767 = vadd.f32 %v1660, %v1766
    %v1768 = vpop.f32.mrf.mxu0
    %1769 = vmatprep.mubr.f32.mxu0 0.0
    %1770 = vmatmul.mubr.f32.gmra.mxu0 %v1678
    %v1771 = vpop.f32.mrf.mxu0
    %v1772 = vadd.f32 %v1660, %v1771
    %v1773 = vpop.f32.mrf.mxu0
    %1774 = vdwg.mxu0
    %v1775 = vmul.f32 %v1747, 0.5
    %v1776 = vmul.f32 %v1752, 0.5
    %v1777 = vmul.f32 %v1757, 0.5
    %v1778 = vmul.f32 %v1762, 0.5
    %v1779 = vmul.f32 %v1767, 0.5
    %v1780 = vmul.f32 %v1772, 0.5
    %v1781 = vmul.f32 %v1747, 0.70710677
    %v1782 = vmul.f32 %v1752, 0.70710677
    %v1783 = vmul.f32 %v1757, 0.70710677
    %v1784 = vmul.f32 %v1762, 0.70710677
    %v1785 = vmul.f32 %v1767, 0.70710677
    %v1786 = vmul.f32 %v1772, 0.70710677
    %v1787 = verf.f32.pop %v1781
    %v1788 = verf.f32.pop %v1782
    %v1789 = verf.f32.pop %v1783
    %v1790 = verf.f32.pop %v1784
    %v1791 = verf.f32.pop %v1785
    %v1792 = verf.f32.pop %v1786
    %v1793 = vadd.f32 %v1787, 1.0
    %v1794 = vadd.f32 %v1788, 1.0
    %v1795 = vadd.f32 %v1789, 1.0
    %v1796 = vadd.f32 %v1790, 1.0
    %v1797 = vadd.f32 %v1791, 1.0
    %v1798 = vadd.f32 %v1792, 1.0
    %v1799 = vmul.f32 %v1775, %v1793
    %v1800 = vmul.f32 %v1776, %v1794
    %v1801 = vmul.f32 %v1777, %v1795
    %v1802 = vmul.f32 %v1778, %v1796
    %v1803 = vmul.f32 %v1779, %v1797
    %v1804 = vmul.f32 %v1780, %v1798
    %v1805 = vld [vmem:[%s14] sm:$0xff]
    %v1806 = vld [vmem:[%s14 + $0x8] sm:$0xff]
    %v1807 = vld [vmem:[%s14 + $0x10] sm:$0xff]
    %v1808 = vld [vmem:[%s14 + $0x18] sm:$0xff]
    %v1809 = vld [vmem:[%s14 + $0x20] sm:$0xff]
    %v1810 = vld [vmem:[%s14 + $0x28] sm:$0xff]
    %v1811 = vld [vmem:[%s14 + $0x30] sm:$0xff]
    %v1812 = vld [vmem:[%s14 + $0x38] sm:$0xff]
    %v1813 = vld [vmem:[%s14 + $0x40] sm:$0xff]
    %v1814 = vld [vmem:[%s14 + $0x48] sm:$0xff]
    %v1815 = vld [vmem:[%s14 + $0x50] sm:$0xff]
    %v1816 = vld [vmem:[%s14 + $0x58] sm:$0xff]
    %v1817 = vld [vmem:[%s14 + $0x60] sm:$0xff]
    %v1818 = vld [vmem:[%s14 + $0x68] sm:$0xff]
    %v1819 = vld [vmem:[%s14 + $0x70] sm:$0xff]
    %v1820 = vld [vmem:[%s14 + $0x78] sm:$0xff]
    %v1821 = vld [vmem:[%s15] sm:$0x1]
    %v1823 = vlaneseq
    %v1824 = vshrl.u32 %v1823, 7
    %v1825 = vsub.s32 0, %v1824
    %v1826 = vrot.slane %v1821, %v1825
    %1828 = vmatprep.subr.mxu0 0.0
    %1829 = vmatpush1.msra.mxu0 %v1820
    %1830 = vmatprep.subr.mxu0 0.0
    %1831 = vmatpush1.msra.mxu0 %v1819
    %1832 = vmatprep.subr.mxu0 0.0
    %1833 = vmatpush1.msra.mxu0 %v1818
    %1834 = vmatprep.subr.mxu0 0.0
    %1835 = vmatpush1.msra.mxu0 %v1817
    %1836 = vmatprep.subr.mxu0 0.0
    %1837 = vmatpush1.msra.mxu0 %v1816
    %1838 = vmatprep.subr.mxu0 0.0
    %1839 = vmatpush1.msra.mxu0 %v1815
    %1840 = vmatprep.subr.mxu0 0.0
    %1841 = vmatpush1.msra.mxu0 %v1814
    %1842 = vmatprep.subr.mxu0 0.0
    %1843 = vmatpush1.msra.mxu0 %v1813
    %1844 = vmatprep.subr.mxu0 0.0
    %1845 = vmatpush1.msra.mxu0 %v1812
    %1846 = vmatprep.subr.mxu0 0.0
    %1847 = vmatpush1.msra.mxu0 %v1811
    %1848 = vmatprep.subr.mxu0 0.0
    %1849 = vmatpush1.msra.mxu0 %v1810
    %1850 = vmatprep.subr.mxu0 0.0
    %1851 = vmatpush1.msra.mxu0 %v1809
    %1852 = vmatprep.subr.mxu0 0.0
    %1853 = vmatpush1.msra.mxu0 %v1808
    %1854 = vmatprep.subr.mxu0 0.0
    %1855 = vmatpush1.msra.mxu0 %v1807
    %1856 = vmatprep.subr.mxu0 0.0
    %1857 = vmatpush1.msra.mxu0 %v1806
    %1858 = vmatprep.subr.mxu0 0.0
    %1859 = vmatpush1.msra.mxu0 %v1805
    %1860 = vmatprep.subr.mxu0 0.0
    %1861 = vmatpush2.msra.mxu0 0.0
    %1862 = vmatprep.subr.mxu0 0.0
    %1863 = vmatpush2.msra.mxu0 0.0
    %1864 = vmatprep.subr.mxu0 0.0
    %1865 = vmatpush2.msra.mxu0 0.0
    %1866 = vmatprep.subr.mxu0 0.0
    %1867 = vmatpush2.msra.mxu0 0.0
    %1868 = vmatprep.subr.mxu0 0.0
    %1869 = vmatpush2.msra.mxu0 0.0
    %1870 = vmatprep.subr.mxu0 0.0
    %1871 = vmatpush2.msra.mxu0 0.0
    %1872 = vmatprep.subr.mxu0 0.0
    %1873 = vmatpush2.msra.mxu0 0.0
    %1874 = vmatprep.subr.mxu0 0.0
    %1875 = vmatpush2.msra.mxu0 0.0
    %1876 = vmatprep.subr.mxu0 0.0
    %1877 = vmatpush2.msra.mxu0 0.0
    %1878 = vmatprep.subr.mxu0 0.0
    %1879 = vmatpush2.msra.mxu0 0.0
    %1880 = vmatprep.subr.mxu0 0.0
    %1881 = vmatpush2.msra.mxu0 0.0
    %1882 = vmatprep.subr.mxu0 0.0
    %1883 = vmatpush2.msra.mxu0 0.0
    %1884 = vmatprep.subr.mxu0 0.0
    %1885 = vmatpush2.msra.mxu0 0.0
    %1886 = vmatprep.subr.mxu0 0.0
    %1887 = vmatpush2.msra.mxu0 0.0
    %1888 = vmatprep.subr.mxu0 0.0
    %1889 = vmatpush2.msra.mxu0 0.0
    %1890 = vmatprep.subr.mxu0 0.0
    %1891 = vmatpush2.msra.mxu0 0.0
    %1892 = vmatprep.mubr.f32.mxu0 0.0
    %1893 = vmatmul.mubr.f32.gmra.mxu0 %v1799
    %v1894 = vpop.f32.mrf.mxu0
    %v1895 = vadd.f32 %v1826, %v1894
    %v1896 = vpop.f32.mrf.mxu0
    %1897 = vmatprep.mubr.f32.mxu0 0.0
    %1898 = vmatmul.mubr.f32.gmra.mxu0 %v1800
    %v1899 = vpop.f32.mrf.mxu0
    %v1900 = vadd.f32 %v1826, %v1899
    %v1901 = vpop.f32.mrf.mxu0
    %1902 = vmatprep.mubr.f32.mxu0 0.0
    %1903 = vmatmul.mubr.f32.gmra.mxu0 %v1801
    %v1904 = vpop.f32.mrf.mxu0
    %v1905 = vadd.f32 %v1826, %v1904
    %v1906 = vpop.f32.mrf.mxu0
    %1907 = vmatprep.mubr.f32.mxu0 0.0
    %1908 = vmatmul.mubr.f32.gmra.mxu0 %v1802
    %v1909 = vpop.f32.mrf.mxu0
    %v1910 = vadd.f32 %v1826, %v1909
    %v1911 = vpop.f32.mrf.mxu0
    %1912 = vmatprep.mubr.f32.mxu0 0.0
    %1913 = vmatmul.mubr.f32.gmra.mxu0 %v1803
    %v1914 = vpop.f32.mrf.mxu0
    %v1915 = vadd.f32 %v1826, %v1914
    %v1916 = vpop.f32.mrf.mxu0
    %1917 = vmatprep.mubr.f32.mxu0 0.0
    %1918 = vmatmul.mubr.f32.gmra.mxu0 %v1804
    %v1919 = vpop.f32.mrf.mxu0
    %v1920 = vadd.f32 %v1826, %v1919
    %v1921 = vpop.f32.mrf.mxu0
    %1922 = vdwg.mxu0
    %v1923 = vadd.f32 %v1541, %v1895
    %v1924 = vadd.f32 %v1542, %v1900
    %v1925 = vadd.f32 %v1543, %v1905
    %v1926 = vadd.f32 %v1544, %v1910
    %v1927 = vadd.f32 %v1545, %v1915
    %v1928 = vadd.f32 %v1546, %v1920
    %s1929 = scalar_lea.vmem %s4, 1
    %v1930 = vld [vmem:[%s1929] sm:$0x1]
    %s1931 = scalar_lea.vmem %s5, 1
    %v1932 = vld [vmem:[%s1931] sm:$0x1]
    %v1933 = vsel %vm180, %v1923, 0.0
    %1934 = vadd.xlane.f32.xlu0 %v1933
    %v1935 = vpop.xlane.xlu0 %1934
    %v1936 = vsel %vm180, %v1924, 0.0
    %1937 = vadd.xlane.f32.xlu0 %v1936
    %v1938 = vpop.xlane.xlu0 %1937
    %v1939 = vsel %vm180, %v1925, 0.0
    %1940 = vadd.xlane.f32.xlu0 %v1939
    %v1941 = vpop.xlane.xlu0 %1940
    %v1942 = vsel %vm180, %v1926, 0.0
    %1943 = vadd.xlane.f32.xlu0 %v1942
    %v1944 = vpop.xlane.xlu0 %1943
    %v1945 = vsel %vm180, %v1927, 0.0
    %1946 = vadd.xlane.f32.xlu0 %v1945
    %v1947 = vpop.xlane.xlu0 %1946
    %v1948 = vsel %vm180, %v1928, 0.0
    %1949 = vadd.xlane.f32.xlu0 %v1948
    %v1950 = vpop.xlane.xlu0 %1949
    %v1951 = vmul.f32 %v1935, %v218
    %v1952 = vmul.f32 %v1938, %v218
    %v1953 = vmul.f32 %v1941, %v218
    %v1954 = vmul.f32 %v1944, %v218
    %v1955 = vmul.f32 %v1947, %v218
    %v1956 = vmul.f32 %v1950, %v218
    %v1957 = vsub.f32 %v1923, %v1951
    %v1958 = vsub.f32 %v1924, %v1952
    %v1959 = vsub.f32 %v1925, %v1953
    %v1960 = vsub.f32 %v1926, %v1954
    %v1961 = vsub.f32 %v1927, %v1955
    %v1962 = vsub.f32 %v1928, %v1956
    %v1963 = vmul.f32 %v1957, %v1957
    %v1964 = vmul.f32 %v1958, %v1958
    %v1965 = vmul.f32 %v1959, %v1959
    %v1966 = vmul.f32 %v1960, %v1960
    %v1967 = vmul.f32 %v1961, %v1961
    %v1968 = vmul.f32 %v1962, %v1962
    %v1969 = vsel %vm180, %v1963, 0.0
    %1970 = vadd.xlane.f32.xlu0 %v1969
    %v1971 = vpop.xlane.xlu0 %1970
    %v1972 = vsel %vm180, %v1964, 0.0
    %1973 = vadd.xlane.f32.xlu0 %v1972
    %v1974 = vpop.xlane.xlu0 %1973
    %v1975 = vsel %vm180, %v1965, 0.0
    %1976 = vadd.xlane.f32.xlu0 %v1975
    %v1977 = vpop.xlane.xlu0 %1976
    %v1978 = vsel %vm180, %v1966, 0.0
    %1979 = vadd.xlane.f32.xlu0 %v1978
    %v1980 = vpop.xlane.xlu0 %1979
    %v1981 = vsel %vm180, %v1967, 0.0
    %1982 = vadd.xlane.f32.xlu0 %v1981
    %v1983 = vpop.xlane.xlu0 %1982
    %v1984 = vsel %vm180, %v1968, 0.0
    %1985 = vadd.xlane.f32.xlu0 %v1984
    %v1986 = vpop.xlane.xlu0 %1985
    %v1987 = vmul.f32 %v1971, %v218
    %v1988 = vmul.f32 %v1974, %v218
    %v1989 = vmul.f32 %v1977, %v218
    %v1990 = vmul.f32 %v1980, %v218
    %v1991 = vmul.f32 %v1983, %v218
    %v1992 = vmul.f32 %v1986, %v218
    %v1993 = vadd.f32 %v1987, 1e-05
    %v1994 = vadd.f32 %v1988, 1e-05
    %v1995 = vadd.f32 %v1989, 1e-05
    %v1996 = vadd.f32 %v1990, 1e-05
    %v1997 = vadd.f32 %v1991, 1e-05
    %v1998 = vadd.f32 %v1992, 1e-05
    %v1999 = vrsqrt.pop %v1993
    %v2000 = vrsqrt.pop %v1994
    %v2001 = vrsqrt.pop %v1995
    %v2002 = vrsqrt.pop %v1996
    %v2003 = vrsqrt.pop %v1997
    %v2004 = vrsqrt.pop %v1998
    %v2005 = vmul.f32 %v1957, %v1999
    %v2006 = vmul.f32 %v1958, %v2000
    %v2007 = vmul.f32 %v1959, %v2001
    %v2008 = vmul.f32 %v1960, %v2002
    %v2009 = vmul.f32 %v1961, %v2003
    %v2010 = vmul.f32 %v1962, %v2004
    %v2012 = vlaneseq
    %v2013 = vshrl.u32 %v2012, 7
    %v2014 = vsub.s32 0, %v2013
    %v2015 = vrot.slane %v1930, %v2014
    %v2017 = vmul.f32 %v2005, %v2015
    %v2018 = vmul.f32 %v2006, %v2015
    %v2019 = vmul.f32 %v2007, %v2015
    %v2020 = vmul.f32 %v2008, %v2015
    %v2021 = vmul.f32 %v2009, %v2015
    %v2022 = vmul.f32 %v2010, %v2015
    %v2024 = vlaneseq
    %v2025 = vshrl.u32 %v2024, 7
    %v2026 = vsub.s32 0, %v2025
    %v2027 = vrot.slane %v1932, %v2026
    %v2029 = vadd.f32 %v2017, %v2027
    %v2030 = vadd.f32 %v2018, %v2027
    %v2031 = vadd.f32 %v2019, %v2027
    %v2032 = vadd.f32 %v2020, %v2027
    %v2033 = vadd.f32 %v2021, %v2027
    %v2034 = vadd.f32 %v2022, %v2027
    %s2035 = scalar_lea.vmem %s6, 32
    %v2036 = vld [vmem:[%s2035] sm:$0xff]
    %v2037 = vld [vmem:[%s2035 + $0x8] sm:$0xff]
    %v2038 = vld [vmem:[%s2035 + $0x10] sm:$0xff]
    %v2039 = vld [vmem:[%s2035 + $0x18] sm:$0xff]
    %s2040 = scalar_lea.vmem %s7, 1
    %v2041 = vld [vmem:[%s2040] sm:$0x1]
    %v2043 = vlaneseq
    %v2044 = vshrl.u32 %v2043, 7
    %v2045 = vsub.s32 0, %v2044
    %v2046 = vrot.slane %v2041, %v2045
    %v2049 = vsel %vm180, %v2029, 0
    %v2052 = vsel %vm180, %v2030, 0
    %v2055 = vsel %vm180, %v2031, 0
    %v2058 = vsel %vm180, %v2032, 0
    %v2061 = vsel %vm180, %v2033, 0
    %v2064 = vsel %vm180, %v2034, 0
    %2066 = vmatprep.subr.mxu0 0.0
    %2067 = vmatpush1.msra.mxu0 0.0
    %2068 = vmatprep.subr.mxu0 0.0
    %2069 = vmatpush1.msra.mxu0 0.0
    %2070 = vmatprep.subr.mxu0 0.0
    %2071 = vmatpush1.msra.mxu0 0.0
    %2072 = vmatprep.subr.mxu0 0.0
    %2073 = vmatpush1.msra.mxu0 0.0
    %2074 = vmatprep.subr.mxu0 0.0
    %2075 = vmatpush1.msra.mxu0 0.0
    %2076 = vmatprep.subr.mxu0 0.0
    %2077 = vmatpush1.msra.mxu0 0.0
    %2078 = vmatprep.subr.mxu0 0.0
    %2079 = vmatpush1.msra.mxu0 0.0
    %2080 = vmatprep.subr.mxu0 0.0
    %2081 = vmatpush1.msra.mxu0 0.0
    %2082 = vmatprep.subr.mxu0 0.0
    %2083 = vmatpush1.msra.mxu0 0.0
    %2084 = vmatprep.subr.mxu0 0.0
    %2085 = vmatpush1.msra.mxu0 0.0
    %2086 = vmatprep.subr.mxu0 0.0
    %2087 = vmatpush1.msra.mxu0 0.0
    %2088 = vmatprep.subr.mxu0 0.0
    %2089 = vmatpush1.msra.mxu0 0.0
    %2090 = vmatprep.subr.mxu0 0.0
    %2091 = vmatpush1.msra.mxu0 %v2039
    %2092 = vmatprep.subr.mxu0 0.0
    %2093 = vmatpush1.msra.mxu0 %v2038
    %2094 = vmatprep.subr.mxu0 0.0
    %2095 = vmatpush1.msra.mxu0 %v2037
    %2096 = vmatprep.subr.mxu0 0.0
    %2097 = vmatpush1.msra.mxu0 %v2036
    %2098 = vmatprep.subr.mxu0 0.0
    %2099 = vmatpush2.msra.mxu0 0.0
    %2100 = vmatprep.subr.mxu0 0.0
    %2101 = vmatpush2.msra.mxu0 0.0
    %2102 = vmatprep.subr.mxu0 0.0
    %2103 = vmatpush2.msra.mxu0 0.0
    %2104 = vmatprep.subr.mxu0 0.0
    %2105 = vmatpush2.msra.mxu0 0.0
    %2106 = vmatprep.subr.mxu0 0.0
    %2107 = vmatpush2.msra.mxu0 0.0
    %2108 = vmatprep.subr.mxu0 0.0
    %2109 = vmatpush2.msra.mxu0 0.0
    %2110 = vmatprep.subr.mxu0 0.0
    %2111 = vmatpush2.msra.mxu0 0.0
    %2112 = vmatprep.subr.mxu0 0.0
    %2113 = vmatpush2.msra.mxu0 0.0
    %2114 = vmatprep.subr.mxu0 0.0
    %2115 = vmatpush2.msra.mxu0 0.0
    %2116 = vmatprep.subr.mxu0 0.0
    %2117 = vmatpush2.msra.mxu0 0.0
    %2118 = vmatprep.subr.mxu0 0.0
    %2119 = vmatpush2.msra.mxu0 0.0
    %2120 = vmatprep.subr.mxu0 0.0
    %2121 = vmatpush2.msra.mxu0 0.0
    %2122 = vmatprep.subr.mxu0 0.0
    %2123 = vmatpush2.msra.mxu0 0.0
    %2124 = vmatprep.subr.mxu0 0.0
    %2125 = vmatpush2.msra.mxu0 0.0
    %2126 = vmatprep.subr.mxu0 0.0
    %2127 = vmatpush2.msra.mxu0 0.0
    %2128 = vmatprep.subr.mxu0 0.0
    %2129 = vmatpush2.msra.mxu0 0.0
    %2130 = vmatprep.mubr.f32.mxu0 0.0
    %2131 = vmatmul.mubr.f32.gmra.mxu0 %v2049
    %v2132 = vpop.f32.mrf.mxu0
    %v2133 = vadd.f32 %v2046, %v2132
    %v2134 = vpop.f32.mrf.mxu0
    %2135 = vmatprep.mubr.f32.mxu0 0.0
    %2136 = vmatmul.mubr.f32.gmra.mxu0 %v2052
    %v2137 = vpop.f32.mrf.mxu0
    %v2138 = vadd.f32 %v2046, %v2137
    %v2139 = vpop.f32.mrf.mxu0
    %2140 = vmatprep.mubr.f32.mxu0 0.0
    %2141 = vmatmul.mubr.f32.gmra.mxu0 %v2055
    %v2142 = vpop.f32.mrf.mxu0
    %v2143 = vadd.f32 %v2046, %v2142
    %v2144 = vpop.f32.mrf.mxu0
    %2145 = vmatprep.mubr.f32.mxu0 0.0
    %2146 = vmatmul.mubr.f32.gmra.mxu0 %v2058
    %v2147 = vpop.f32.mrf.mxu0
    %v2148 = vadd.f32 %v2046, %v2147
    %v2149 = vpop.f32.mrf.mxu0
    %2150 = vmatprep.mubr.f32.mxu0 0.0
    %2151 = vmatmul.mubr.f32.gmra.mxu0 %v2061
    %v2152 = vpop.f32.mrf.mxu0
    %v2153 = vadd.f32 %v2046, %v2152
    %v2154 = vpop.f32.mrf.mxu0
    %2155 = vmatprep.mubr.f32.mxu0 0.0
    %2156 = vmatmul.mubr.f32.gmra.mxu0 %v2064
    %v2157 = vpop.f32.mrf.mxu0
    %v2158 = vadd.f32 %v2046, %v2157
    %v2159 = vpop.f32.mrf.mxu0
    %2160 = vdwg.mxu0
    %2167 = vrot.lane.b32.xlu0 %v2133, 112
    %v2168 = vpop.permute.xlu0 %2167
    %2169 = vrot.lane.b32.xlu0 %v2138, 112
    %v2170 = vpop.permute.xlu0 %2169
    %2171 = vrot.lane.b32.xlu0 %v2143, 112
    %v2172 = vpop.permute.xlu0 %2171
    %2173 = vrot.lane.b32.xlu0 %v2148, 112
    %v2174 = vpop.permute.xlu0 %2173
    %2175 = vrot.lane.b32.xlu0 %v2153, 112
    %v2176 = vpop.permute.xlu0 %2175
    %2177 = vrot.lane.b32.xlu0 %v2158, 112
    %v2178 = vpop.permute.xlu0 %2177
    %2179 = vrot.lane.b32.xlu0 %v2133, 96
    %v2180 = vpop.permute.xlu0 %2179
    %2181 = vrot.lane.b32.xlu0 %v2138, 96
    %v2182 = vpop.permute.xlu0 %2181
    %2183 = vrot.lane.b32.xlu0 %v2143, 96
    %v2184 = vpop.permute.xlu0 %2183
    %v2185 = vsel %vm451, %v2133, 0
    %v2187 = vsel %vm451, %v2138, 0
    %v2189 = vsel %vm451, %v2143, 0
    %v2191 = vsel %vm451, %v2180, 0
    %v2193 = vsel %vm451, %v2182, 0
    %v2195 = vsel %vm451, %v2184, 0
    %2197 = vmatprep.subr.mxu0 0.0
    %2198 = vmatpush1.xpose.msra.mxu0 0.0
    %2199 = vmatprep.subr.mxu0 0.0
    %2200 = vmatpush1.xpose.msra.mxu0 0.0
    %2201 = vmatprep.subr.mxu0 0.0
    %2202 = vmatpush1.xpose.msra.mxu0 0.0
    %2203 = vmatprep.subr.mxu0 0.0
    %2204 = vmatpush1.xpose.msra.mxu0 0.0
    %2205 = vmatprep.subr.mxu0 0.0
    %2206 = vmatpush1.xpose.msra.mxu0 0.0
    %2207 = vmatprep.subr.mxu0 0.0
    %2208 = vmatpush1.xpose.msra.mxu0 0.0
    %2209 = vmatprep.subr.mxu0 0.0
    %2210 = vmatpush1.xpose.msra.mxu0 0.0
    %2211 = vmatprep.subr.mxu0 0.0
    %2212 = vmatpush1.xpose.msra.mxu0 0.0
    %2213 = vmatprep.subr.mxu0 0.0
    %2214 = vmatpush1.xpose.msra.mxu0 0.0
    %2215 = vmatprep.subr.mxu0 0.0
    %2216 = vmatpush1.xpose.msra.mxu0 0.0
    %2217 = vmatprep.subr.mxu0 0.0
    %2218 = vmatpush1.xpose.msra.mxu0 0.0
    %2219 = vmatprep.subr.mxu0 0.0
    %2220 = vmatpush1.xpose.msra.mxu0 0.0
    %2221 = vmatprep.subr.mxu0 0.0
    %2222 = vmatpush1.xpose.msra.mxu0 0.0
    %2223 = vmatprep.subr.mxu0 0.0
    %2224 = vmatpush1.xpose.msra.mxu0 %v2195
    %2225 = vmatprep.subr.mxu0 0.0
    %2226 = vmatpush1.xpose.msra.mxu0 %v2193
    %2227 = vmatprep.subr.mxu0 0.0
    %2228 = vmatpush1.xpose.msra.mxu0 %v2191
    %2229 = vmatprep.subr.mxu0 0.0
    %2230 = vmatpush2.xpose.msra.mxu0 0.0
    %2231 = vmatprep.subr.mxu0 0.0
    %2232 = vmatpush2.xpose.msra.mxu0 0.0
    %2233 = vmatprep.subr.mxu0 0.0
    %2234 = vmatpush2.xpose.msra.mxu0 0.0
    %2235 = vmatprep.subr.mxu0 0.0
    %2236 = vmatpush2.xpose.msra.mxu0 0.0
    %2237 = vmatprep.subr.mxu0 0.0
    %2238 = vmatpush2.xpose.msra.mxu0 0.0
    %2239 = vmatprep.subr.mxu0 0.0
    %2240 = vmatpush2.xpose.msra.mxu0 0.0
    %2241 = vmatprep.subr.mxu0 0.0
    %2242 = vmatpush2.xpose.msra.mxu0 0.0
    %2243 = vmatprep.subr.mxu0 0.0
    %2244 = vmatpush2.xpose.msra.mxu0 0.0
    %2245 = vmatprep.subr.mxu0 0.0
    %2246 = vmatpush2.xpose.msra.mxu0 0.0
    %2247 = vmatprep.subr.mxu0 0.0
    %2248 = vmatpush2.xpose.msra.mxu0 0.0
    %2249 = vmatprep.subr.mxu0 0.0
    %2250 = vmatpush2.xpose.msra.mxu0 0.0
    %2251 = vmatprep.subr.mxu0 0.0
    %2252 = vmatpush2.xpose.msra.mxu0 0.0
    %2253 = vmatprep.subr.mxu0 0.0
    %2254 = vmatpush2.xpose.msra.mxu0 0.0
    %2255 = vmatprep.subr.mxu0 0.0
    %2256 = vmatpush2.xpose.msra.mxu0 0.0
    %2257 = vmatprep.subr.mxu0 0.0
    %2258 = vmatpush2.xpose.msra.mxu0 0.0
    %2259 = vmatprep.subr.mxu0 0.0
    %2260 = vmatpush2.xpose.msra.mxu0 0.0
    %2261 = vmatprep.mubr.f32.mxu0 0.0
    %2262 = vmatmul.mubr.f32.gmra.mxu0 %v2185
    %v2263 = vpop.f32.mrf.mxu0
    %v2264 = vadd.f32 0.0, %v2263
    %v2265 = vpop.f32.mrf.mxu0
    %2266 = vmatprep.mubr.f32.mxu0 0.0
    %2267 = vmatmul.mubr.f32.gmra.mxu0 %v2187
    %v2268 = vpop.f32.mrf.mxu0
    %v2269 = vadd.f32 0.0, %v2268
    %v2270 = vpop.f32.mrf.mxu0
    %2271 = vmatprep.mubr.f32.mxu0 0.0
    %2272 = vmatmul.mubr.f32.gmra.mxu0 %v2189
    %v2273 = vpop.f32.mrf.mxu0
    %v2274 = vadd.f32 0.0, %v2273
    %v2275 = vpop.f32.mrf.mxu0
    %2276 = vdwg.mxu0
    %2277 = vrot.lane.b32.xlu0 %v2148, 96
    %v2278 = vpop.permute.xlu0 %2277
    %2279 = vrot.lane.b32.xlu0 %v2153, 96
    %v2280 = vpop.permute.xlu0 %2279
    %2281 = vrot.lane.b32.xlu0 %v2158, 96
    %v2282 = vpop.permute.xlu0 %2281
    %v2283 = vsel %vm451, %v2148, 0
    %v2285 = vsel %vm451, %v2153, 0
    %v2287 = vsel %vm451, %v2158, 0
    %v2289 = vsel %vm451, %v2278, 0
    %v2291 = vsel %vm451, %v2280, 0
    %v2293 = vsel %vm451, %v2282, 0
    %2295 = vmatprep.subr.mxu0 0.0
    %2296 = vmatpush1.xpose.msra.mxu0 0.0
    %2297 = vmatprep.subr.mxu0 0.0
    %2298 = vmatpush1.xpose.msra.mxu0 0.0
    %2299 = vmatprep.subr.mxu0 0.0
    %2300 = vmatpush1.xpose.msra.mxu0 0.0
    %2301 = vmatprep.subr.mxu0 0.0
    %2302 = vmatpush1.xpose.msra.mxu0 0.0
    %2303 = vmatprep.subr.mxu0 0.0
    %2304 = vmatpush1.xpose.msra.mxu0 0.0
    %2305 = vmatprep.subr.mxu0 0.0
    %2306 = vmatpush1.xpose.msra.mxu0 0.0
    %2307 = vmatprep.subr.mxu0 0.0
    %2308 = vmatpush1.xpose.msra.mxu0 0.0
    %2309 = vmatprep.subr.mxu0 0.0
    %2310 = vmatpush1.xpose.msra.mxu0 0.0
    %2311 = vmatprep.subr.mxu0 0.0
    %2312 = vmatpush1.xpose.msra.mxu0 0.0
    %2313 = vmatprep.subr.mxu0 0.0
    %2314 = vmatpush1.xpose.msra.mxu0 0.0
    %2315 = vmatprep.subr.mxu0 0.0
    %2316 = vmatpush1.xpose.msra.mxu0 0.0
    %2317 = vmatprep.subr.mxu0 0.0
    %2318 = vmatpush1.xpose.msra.mxu0 0.0
    %2319 = vmatprep.subr.mxu0 0.0
    %2320 = vmatpush1.xpose.msra.mxu0 0.0
    %2321 = vmatprep.subr.mxu0 0.0
    %2322 = vmatpush1.xpose.msra.mxu0 %v2293
    %2323 = vmatprep.subr.mxu0 0.0
    %2324 = vmatpush1.xpose.msra.mxu0 %v2291
    %2325 = vmatprep.subr.mxu0 0.0
    %2326 = vmatpush1.xpose.msra.mxu0 %v2289
    %2327 = vmatprep.subr.mxu0 0.0
    %2328 = vmatpush2.xpose.msra.mxu0 0.0
    %2329 = vmatprep.subr.mxu0 0.0
    %2330 = vmatpush2.xpose.msra.mxu0 0.0
    %2331 = vmatprep.subr.mxu0 0.0
    %2332 = vmatpush2.xpose.msra.mxu0 0.0
    %2333 = vmatprep.subr.mxu0 0.0
    %2334 = vmatpush2.xpose.msra.mxu0 0.0
    %2335 = vmatprep.subr.mxu0 0.0
    %2336 = vmatpush2.xpose.msra.mxu0 0.0
    %2337 = vmatprep.subr.mxu0 0.0
    %2338 = vmatpush2.xpose.msra.mxu0 0.0
    %2339 = vmatprep.subr.mxu0 0.0
    %2340 = vmatpush2.xpose.msra.mxu0 0.0
    %2341 = vmatprep.subr.mxu0 0.0
    %2342 = vmatpush2.xpose.msra.mxu0 0.0
    %2343 = vmatprep.subr.mxu0 0.0
    %2344 = vmatpush2.xpose.msra.mxu0 0.0
    %2345 = vmatprep.subr.mxu0 0.0
    %2346 = vmatpush2.xpose.msra.mxu0 0.0
    %2347 = vmatprep.subr.mxu0 0.0
    %2348 = vmatpush2.xpose.msra.mxu0 0.0
    %2349 = vmatprep.subr.mxu0 0.0
    %2350 = vmatpush2.xpose.msra.mxu0 0.0
    %2351 = vmatprep.subr.mxu0 0.0
    %2352 = vmatpush2.xpose.msra.mxu0 0.0
    %2353 = vmatprep.subr.mxu0 0.0
    %2354 = vmatpush2.xpose.msra.mxu0 0.0
    %2355 = vmatprep.subr.mxu0 0.0
    %2356 = vmatpush2.xpose.msra.mxu0 0.0
    %2357 = vmatprep.subr.mxu0 0.0
    %2358 = vmatpush2.xpose.msra.mxu0 0.0
    %2359 = vmatprep.mubr.f32.mxu0 0.0
    %2360 = vmatmul.mubr.f32.gmra.mxu0 %v2283
    %v2361 = vpop.f32.mrf.mxu0
    %v2362 = vadd.f32 0.0, %v2361
    %v2363 = vpop.f32.mrf.mxu0
    %2364 = vmatprep.mubr.f32.mxu0 0.0
    %2365 = vmatmul.mubr.f32.gmra.mxu0 %v2285
    %v2366 = vpop.f32.mrf.mxu0
    %v2367 = vadd.f32 0.0, %v2366
    %v2368 = vpop.f32.mrf.mxu0
    %2369 = vmatprep.mubr.f32.mxu0 0.0
    %2370 = vmatmul.mubr.f32.gmra.mxu0 %v2287
    %v2371 = vpop.f32.mrf.mxu0
    %v2372 = vadd.f32 0.0, %v2371
    %v2373 = vpop.f32.mrf.mxu0
    %2374 = vdwg.mxu0
    %2375 = vrot.lane.b32.xlu0 %v2168, 96
    %v2376 = vpop.permute.xlu0 %2375
    %2377 = vrot.lane.b32.xlu0 %v2170, 96
    %v2378 = vpop.permute.xlu0 %2377
    %2379 = vrot.lane.b32.xlu0 %v2172, 96
    %v2380 = vpop.permute.xlu0 %2379
    %v2381 = vsel %vm451, %v2168, 0
    %v2383 = vsel %vm451, %v2170, 0
    %v2385 = vsel %vm451, %v2172, 0
    %v2387 = vsel %vm451, %v2376, 0
    %v2389 = vsel %vm451, %v2378, 0
    %v2391 = vsel %vm451, %v2380, 0
    %2393 = vmatprep.subr.mxu0 0.0
    %2394 = vmatpush1.xpose.msra.mxu0 0.0
    %2395 = vmatprep.subr.mxu0 0.0
    %2396 = vmatpush1.xpose.msra.mxu0 0.0
    %2397 = vmatprep.subr.mxu0 0.0
    %2398 = vmatpush1.xpose.msra.mxu0 0.0
    %2399 = vmatprep.subr.mxu0 0.0
    %2400 = vmatpush1.xpose.msra.mxu0 0.0
    %2401 = vmatprep.subr.mxu0 0.0
    %2402 = vmatpush1.xpose.msra.mxu0 0.0
    %2403 = vmatprep.subr.mxu0 0.0
    %2404 = vmatpush1.xpose.msra.mxu0 0.0
    %2405 = vmatprep.subr.mxu0 0.0
    %2406 = vmatpush1.xpose.msra.mxu0 0.0
    %2407 = vmatprep.subr.mxu0 0.0
    %2408 = vmatpush1.xpose.msra.mxu0 0.0
    %2409 = vmatprep.subr.mxu0 0.0
    %2410 = vmatpush1.xpose.msra.mxu0 0.0
    %2411 = vmatprep.subr.mxu0 0.0
    %2412 = vmatpush1.xpose.msra.mxu0 0.0
    %2413 = vmatprep.subr.mxu0 0.0
    %2414 = vmatpush1.xpose.msra.mxu0 0.0
    %2415 = vmatprep.subr.mxu0 0.0
    %2416 = vmatpush1.xpose.msra.mxu0 0.0
    %2417 = vmatprep.subr.mxu0 0.0
    %2418 = vmatpush1.xpose.msra.mxu0 0.0
    %2419 = vmatprep.subr.mxu0 0.0
    %2420 = vmatpush1.xpose.msra.mxu0 %v2391
    %2421 = vmatprep.subr.mxu0 0.0
    %2422 = vmatpush1.xpose.msra.mxu0 %v2389
    %2423 = vmatprep.subr.mxu0 0.0
    %2424 = vmatpush1.xpose.msra.mxu0 %v2387
    %2425 = vmatprep.subr.mxu0 0.0
    %2426 = vmatpush2.xpose.msra.mxu0 0.0
    %2427 = vmatprep.subr.mxu0 0.0
    %2428 = vmatpush2.xpose.msra.mxu0 0.0
    %2429 = vmatprep.subr.mxu0 0.0
    %2430 = vmatpush2.xpose.msra.mxu0 0.0
    %2431 = vmatprep.subr.mxu0 0.0
    %2432 = vmatpush2.xpose.msra.mxu0 0.0
    %2433 = vmatprep.subr.mxu0 0.0
    %2434 = vmatpush2.xpose.msra.mxu0 0.0
    %2435 = vmatprep.subr.mxu0 0.0
    %2436 = vmatpush2.xpose.msra.mxu0 0.0
    %2437 = vmatprep.subr.mxu0 0.0
    %2438 = vmatpush2.xpose.msra.mxu0 0.0
    %2439 = vmatprep.subr.mxu0 0.0
    %2440 = vmatpush2.xpose.msra.mxu0 0.0
    %2441 = vmatprep.subr.mxu0 0.0
    %2442 = vmatpush2.xpose.msra.mxu0 0.0
    %2443 = vmatprep.subr.mxu0 0.0
    %2444 = vmatpush2.xpose.msra.mxu0 0.0
    %2445 = vmatprep.subr.mxu0 0.0
    %2446 = vmatpush2.xpose.msra.mxu0 0.0
    %2447 = vmatprep.subr.mxu0 0.0
    %2448 = vmatpush2.xpose.msra.mxu0 0.0
    %2449 = vmatprep.subr.mxu0 0.0
    %2450 = vmatpush2.xpose.msra.mxu0 0.0
    %2451 = vmatprep.subr.mxu0 0.0
    %2452 = vmatpush2.xpose.msra.mxu0 0.0
    %2453 = vmatprep.subr.mxu0 0.0
    %2454 = vmatpush2.xpose.msra.mxu0 0.0
    %2455 = vmatprep.subr.mxu0 0.0
    %2456 = vmatpush2.xpose.msra.mxu0 0.0
    %2457 = vmatprep.mubr.f32.mxu0 0.0
    %2458 = vmatmul.mubr.f32.gmra.mxu0 %v2381
    %v2459 = vpop.f32.mrf.mxu0
    %v2460 = vadd.f32 0.0, %v2459
    %v2461 = vpop.f32.mrf.mxu0
    %2462 = vmatprep.mubr.f32.mxu0 0.0
    %2463 = vmatmul.mubr.f32.gmra.mxu0 %v2383
    %v2464 = vpop.f32.mrf.mxu0
    %v2465 = vadd.f32 0.0, %v2464
    %v2466 = vpop.f32.mrf.mxu0
    %2467 = vmatprep.mubr.f32.mxu0 0.0
    %2468 = vmatmul.mubr.f32.gmra.mxu0 %v2385
    %v2469 = vpop.f32.mrf.mxu0
    %v2470 = vadd.f32 0.0, %v2469
    %v2471 = vpop.f32.mrf.mxu0
    %2472 = vdwg.mxu0
    %2473 = vrot.lane.b32.xlu0 %v2174, 96
    %v2474 = vpop.permute.xlu0 %2473
    %2475 = vrot.lane.b32.xlu0 %v2176, 96
    %v2476 = vpop.permute.xlu0 %2475
    %2477 = vrot.lane.b32.xlu0 %v2178, 96
    %v2478 = vpop.permute.xlu0 %2477
    %v2479 = vsel %vm451, %v2174, 0
    %v2481 = vsel %vm451, %v2176, 0
    %v2483 = vsel %vm451, %v2178, 0
    %v2485 = vsel %vm451, %v2474, 0
    %v2487 = vsel %vm451, %v2476, 0
    %v2489 = vsel %vm451, %v2478, 0
    %2491 = vmatprep.subr.mxu0 0.0
    %2492 = vmatpush1.xpose.msra.mxu0 0.0
    %2493 = vmatprep.subr.mxu0 0.0
    %2494 = vmatpush1.xpose.msra.mxu0 0.0
    %2495 = vmatprep.subr.mxu0 0.0
    %2496 = vmatpush1.xpose.msra.mxu0 0.0
    %2497 = vmatprep.subr.mxu0 0.0
    %2498 = vmatpush1.xpose.msra.mxu0 0.0
    %2499 = vmatprep.subr.mxu0 0.0
    %2500 = vmatpush1.xpose.msra.mxu0 0.0
    %2501 = vmatprep.subr.mxu0 0.0
    %2502 = vmatpush1.xpose.msra.mxu0 0.0
    %2503 = vmatprep.subr.mxu0 0.0
    %2504 = vmatpush1.xpose.msra.mxu0 0.0
    %2505 = vmatprep.subr.mxu0 0.0
    %2506 = vmatpush1.xpose.msra.mxu0 0.0
    %2507 = vmatprep.subr.mxu0 0.0
    %2508 = vmatpush1.xpose.msra.mxu0 0.0
    %2509 = vmatprep.subr.mxu0 0.0
    %2510 = vmatpush1.xpose.msra.mxu0 0.0
    %2511 = vmatprep.subr.mxu0 0.0
    %2512 = vmatpush1.xpose.msra.mxu0 0.0
    %2513 = vmatprep.subr.mxu0 0.0
    %2514 = vmatpush1.xpose.msra.mxu0 0.0
    %2515 = vmatprep.subr.mxu0 0.0
    %2516 = vmatpush1.xpose.msra.mxu0 0.0
    %2517 = vmatprep.subr.mxu0 0.0
    %2518 = vmatpush1.xpose.msra.mxu0 %v2489
    %2519 = vmatprep.subr.mxu0 0.0
    %2520 = vmatpush1.xpose.msra.mxu0 %v2487
    %2521 = vmatprep.subr.mxu0 0.0
    %2522 = vmatpush1.xpose.msra.mxu0 %v2485
    %2523 = vmatprep.subr.mxu0 0.0
    %2524 = vmatpush2.xpose.msra.mxu0 0.0
    %2525 = vmatprep.subr.mxu0 0.0
    %2526 = vmatpush2.xpose.msra.mxu0 0.0
    %2527 = vmatprep.subr.mxu0 0.0
    %2528 = vmatpush2.xpose.msra.mxu0 0.0
    %2529 = vmatprep.subr.mxu0 0.0
    %2530 = vmatpush2.xpose.msra.mxu0 0.0
    %2531 = vmatprep.subr.mxu0 0.0
    %2532 = vmatpush2.xpose.msra.mxu0 0.0
    %2533 = vmatprep.subr.mxu0 0.0
    %2534 = vmatpush2.xpose.msra.mxu0 0.0
    %2535 = vmatprep.subr.mxu0 0.0
    %2536 = vmatpush2.xpose.msra.mxu0 0.0
    %2537 = vmatprep.subr.mxu0 0.0
    %2538 = vmatpush2.xpose.msra.mxu0 0.0
    %2539 = vmatprep.subr.mxu0 0.0
    %2540 = vmatpush2.xpose.msra.mxu0 0.0
    %2541 = vmatprep.subr.mxu0 0.0
    %2542 = vmatpush2.xpose.msra.mxu0 0.0
    %2543 = vmatprep.subr.mxu0 0.0
    %2544 = vmatpush2.xpose.msra.mxu0 0.0
    %2545 = vmatprep.subr.mxu0 0.0
    %2546 = vmatpush2.xpose.msra.mxu0 0.0
    %2547 = vmatprep.subr.mxu0 0.0
    %2548 = vmatpush2.xpose.msra.mxu0 0.0
    %2549 = vmatprep.subr.mxu0 0.0
    %2550 = vmatpush2.xpose.msra.mxu0 0.0
    %2551 = vmatprep.subr.mxu0 0.0
    %2552 = vmatpush2.xpose.msra.mxu0 0.0
    %2553 = vmatprep.subr.mxu0 0.0
    %2554 = vmatpush2.xpose.msra.mxu0 0.0
    %2555 = vmatprep.mubr.f32.mxu0 0.0
    %2556 = vmatmul.mubr.f32.gmra.mxu0 %v2479
    %v2557 = vpop.f32.mrf.mxu0
    %v2558 = vadd.f32 0.0, %v2557
    %v2559 = vpop.f32.mrf.mxu0
    %2560 = vmatprep.mubr.f32.mxu0 0.0
    %2561 = vmatmul.mubr.f32.gmra.mxu0 %v2481
    %v2562 = vpop.f32.mrf.mxu0
    %v2563 = vadd.f32 0.0, %v2562
    %v2564 = vpop.f32.mrf.mxu0
    %2565 = vmatprep.mubr.f32.mxu0 0.0
    %2566 = vmatmul.mubr.f32.gmra.mxu0 %v2483
    %v2567 = vpop.f32.mrf.mxu0
    %v2568 = vadd.f32 0.0, %v2567
    %v2569 = vpop.f32.mrf.mxu0
    %2570 = vdwg.mxu0
    %v2571 = vmul.f32 %v2264, 0.25
    %v2572 = vmul.f32 %v2269, 0.25
    %v2573 = vmul.f32 %v2274, 0.25
    %v2574 = vmul.f32 %v2362, 0.25
    %v2575 = vmul.f32 %v2367, 0.25
    %v2576 = vmul.f32 %v2372, 0.25
    %v2577 = vmul.f32 %v2460, 0.25
    %v2578 = vmul.f32 %v2465, 0.25
    %v2579 = vmul.f32 %v2470, 0.25
    %v2580 = vmul.f32 %v2558, 0.25
    %v2581 = vmul.f32 %v2563, 0.25
    %v2582 = vmul.f32 %v2568, 0.25
    %v2583 = vadd.f32 %v2571, %v197
    %v2584 = vadd.f32 %v2572, %v197
    %v2585 = vadd.f32 %v2573, %v197
    %v2586 = vadd.f32 %v2574, %v197
    %v2587 = vadd.f32 %v2575, %v197
    %v2588 = vadd.f32 %v2576, %v197
    %v2589 = vadd.f32 %v2577, %v197
    %v2590 = vadd.f32 %v2578, %v197
    %v2591 = vadd.f32 %v2579, %v197
    %v2592 = vadd.f32 %v2580, %v197
    %v2593 = vadd.f32 %v2581, %v197
    %v2594 = vadd.f32 %v2582, %v197
    %v2595 = vsel %vm862, %v2583, -inf
    %2596 = vmax.xlane.f32.xlu0 %v2595
    %v2597 = vpop.xlane.xlu0 %2596
    %v2598 = vsel %vm862, %v2584, -inf
    %2599 = vmax.xlane.f32.xlu0 %v2598
    %v2600 = vpop.xlane.xlu0 %2599
    %v2601 = vsel %vm862, %v2585, -inf
    %2602 = vmax.xlane.f32.xlu0 %v2601
    %v2603 = vpop.xlane.xlu0 %2602
    %v2604 = vsel %vm862, %v2586, -inf
    %2605 = vmax.xlane.f32.xlu0 %v2604
    %v2606 = vpop.xlane.xlu0 %2605
    %v2607 = vsel %vm862, %v2587, -inf
    %2608 = vmax.xlane.f32.xlu0 %v2607
    %v2609 = vpop.xlane.xlu0 %2608
    %v2610 = vsel %vm862, %v2588, -inf
    %2611 = vmax.xlane.f32.xlu0 %v2610
    %v2612 = vpop.xlane.xlu0 %2611
    %v2613 = vsel %vm862, %v2589, -inf
    %2614 = vmax.xlane.f32.xlu0 %v2613
    %v2615 = vpop.xlane.xlu0 %2614
    %v2616 = vsel %vm862, %v2590, -inf
    %2617 = vmax.xlane.f32.xlu0 %v2616
    %v2618 = vpop.xlane.xlu0 %2617
    %v2619 = vsel %vm862, %v2591, -inf
    %2620 = vmax.xlane.f32.xlu0 %v2619
    %v2621 = vpop.xlane.xlu0 %2620
    %v2622 = vsel %vm862, %v2592, -inf
    %2623 = vmax.xlane.f32.xlu0 %v2622
    %v2624 = vpop.xlane.xlu0 %2623
    %v2625 = vsel %vm862, %v2593, -inf
    %2626 = vmax.xlane.f32.xlu0 %v2625
    %v2627 = vpop.xlane.xlu0 %2626
    %v2628 = vsel %vm862, %v2594, -inf
    %2629 = vmax.xlane.f32.xlu0 %v2628
    %v2630 = vpop.xlane.xlu0 %2629
    %v2631 = vsub.f32 %v2583, %v2597
    %v2632 = vsub.f32 %v2584, %v2600
    %v2633 = vsub.f32 %v2585, %v2603
    %v2634 = vsub.f32 %v2586, %v2606
    %v2635 = vsub.f32 %v2587, %v2609
    %v2636 = vsub.f32 %v2588, %v2612
    %v2637 = vsub.f32 %v2589, %v2615
    %v2638 = vsub.f32 %v2590, %v2618
    %v2639 = vsub.f32 %v2591, %v2621
    %v2640 = vsub.f32 %v2592, %v2624
    %v2641 = vsub.f32 %v2593, %v2627
    %v2642 = vsub.f32 %v2594, %v2630
    %v2643 = vmul.f32 %v2631, 1.442695
    %v2644 = vpow.pop %v2643
    %v2645 = vmul.f32 %v2632, 1.442695
    %v2646 = vpow.pop %v2645
    %v2647 = vmul.f32 %v2633, 1.442695
    %v2648 = vpow.pop %v2647
    %v2649 = vmul.f32 %v2634, 1.442695
    %v2650 = vpow.pop %v2649
    %v2651 = vmul.f32 %v2635, 1.442695
    %v2652 = vpow.pop %v2651
    %v2653 = vmul.f32 %v2636, 1.442695
    %v2654 = vpow.pop %v2653
    %v2655 = vmul.f32 %v2637, 1.442695
    %v2656 = vpow.pop %v2655
    %v2657 = vmul.f32 %v2638, 1.442695
    %v2658 = vpow.pop %v2657
    %v2659 = vmul.f32 %v2639, 1.442695
    %v2660 = vpow.pop %v2659
    %v2661 = vmul.f32 %v2640, 1.442695
    %v2662 = vpow.pop %v2661
    %v2663 = vmul.f32 %v2641, 1.442695
    %v2664 = vpow.pop %v2663
    %v2665 = vmul.f32 %v2642, 1.442695
    %v2666 = vpow.pop %v2665
    %v2667 = vsel %vm862, %v2644, 0.0
    %2668 = vadd.xlane.f32.xlu0 %v2667
    %v2669 = vpop.xlane.xlu0 %2668
    %v2670 = vsel %vm862, %v2646, 0.0
    %2671 = vadd.xlane.f32.xlu0 %v2670
    %v2672 = vpop.xlane.xlu0 %2671
    %v2673 = vsel %vm862, %v2648, 0.0
    %2674 = vadd.xlane.f32.xlu0 %v2673
    %v2675 = vpop.xlane.xlu0 %2674
    %v2676 = vsel %vm862, %v2650, 0.0
    %2677 = vadd.xlane.f32.xlu0 %v2676
    %v2678 = vpop.xlane.xlu0 %2677
    %v2679 = vsel %vm862, %v2652, 0.0
    %2680 = vadd.xlane.f32.xlu0 %v2679
    %v2681 = vpop.xlane.xlu0 %2680
    %v2682 = vsel %vm862, %v2654, 0.0
    %2683 = vadd.xlane.f32.xlu0 %v2682
    %v2684 = vpop.xlane.xlu0 %2683
    %v2685 = vsel %vm862, %v2656, 0.0
    %2686 = vadd.xlane.f32.xlu0 %v2685
    %v2687 = vpop.xlane.xlu0 %2686
    %v2688 = vsel %vm862, %v2658, 0.0
    %2689 = vadd.xlane.f32.xlu0 %v2688
    %v2690 = vpop.xlane.xlu0 %2689
    %v2691 = vsel %vm862, %v2660, 0.0
    %2692 = vadd.xlane.f32.xlu0 %v2691
    %v2693 = vpop.xlane.xlu0 %2692
    %v2694 = vsel %vm862, %v2662, 0.0
    %2695 = vadd.xlane.f32.xlu0 %v2694
    %v2696 = vpop.xlane.xlu0 %2695
    %v2697 = vsel %vm862, %v2664, 0.0
    %2698 = vadd.xlane.f32.xlu0 %v2697
    %v2699 = vpop.xlane.xlu0 %2698
    %v2700 = vsel %vm862, %v2666, 0.0
    %2701 = vadd.xlane.f32.xlu0 %v2700
    %v2702 = vpop.xlane.xlu0 %2701
    %v2703 = vrcp.pop %v2669
    %v2704 = vrcp.pop %v2672
    %v2705 = vrcp.pop %v2675
    %v2706 = vrcp.pop %v2678
    %v2707 = vrcp.pop %v2681
    %v2708 = vrcp.pop %v2684
    %v2709 = vrcp.pop %v2687
    %v2710 = vrcp.pop %v2690
    %v2711 = vrcp.pop %v2693
    %v2712 = vrcp.pop %v2696
    %v2713 = vrcp.pop %v2699
    %v2714 = vrcp.pop %v2702
    %v2715 = vmul.f32 %v2644, %v2703
    %v2716 = vmul.f32 %v2646, %v2704
    %v2717 = vmul.f32 %v2648, %v2705
    %v2718 = vmul.f32 %v2650, %v2706
    %v2719 = vmul.f32 %v2652, %v2707
    %v2720 = vmul.f32 %v2654, %v2708
    %v2721 = vmul.f32 %v2656, %v2709
    %v2722 = vmul.f32 %v2658, %v2710
    %v2723 = vmul.f32 %v2660, %v2711
    %v2724 = vmul.f32 %v2662, %v2712
    %v2725 = vmul.f32 %v2664, %v2713
    %v2726 = vmul.f32 %v2666, %v2714
    %2727 = vrot.lane.b32.xlu0 %v2133, 64
    %v2728 = vpop.permute.xlu0 %2727
    %2729 = vrot.lane.b32.xlu0 %v2138, 64
    %v2730 = vpop.permute.xlu0 %2729
    %2731 = vrot.lane.b32.xlu0 %v2143, 64
    %v2732 = vpop.permute.xlu0 %2731
    %v2737 = vsel %vm862, %v2715, 0
    %v2740 = vsel %vm862, %v2716, 0
    %v2743 = vsel %vm862, %v2717, 0
    %2745 = vmatprep.subr.mxu0 0.0
    %2746 = vmatpush1.msra.mxu0 0.0
    %2747 = vmatprep.subr.mxu0 0.0
    %2748 = vmatpush1.msra.mxu0 0.0
    %2749 = vmatprep.subr.mxu0 0.0
    %2750 = vmatpush1.msra.mxu0 0.0
    %2751 = vmatprep.subr.mxu0 0.0
    %2752 = vmatpush1.msra.mxu0 0.0
    %2753 = vmatprep.subr.mxu0 0.0
    %2754 = vmatpush1.msra.mxu0 0.0
    %2755 = vmatprep.subr.mxu0 0.0
    %2756 = vmatpush1.msra.mxu0 0.0
    %2757 = vmatprep.subr.mxu0 0.0
    %2758 = vmatpush1.msra.mxu0 0.0
    %2759 = vmatprep.subr.mxu0 0.0
    %2760 = vmatpush1.msra.mxu0 0.0
    %2761 = vmatprep.subr.mxu0 0.0
    %2762 = vmatpush1.msra.mxu0 0.0
    %2763 = vmatprep.subr.mxu0 0.0
    %2764 = vmatpush1.msra.mxu0 0.0
    %2765 = vmatprep.subr.mxu0 0.0
    %2766 = vmatpush1.msra.mxu0 0.0
    %2767 = vmatprep.subr.mxu0 0.0
    %2768 = vmatpush1.msra.mxu0 0.0
    %2769 = vmatprep.subr.mxu0 0.0
    %2770 = vmatpush1.msra.mxu0 0.0
    %2771 = vmatprep.subr.mxu0 0.0
    %2772 = vmatpush1.msra.mxu0 %v2732
    %2773 = vmatprep.subr.mxu0 0.0
    %2774 = vmatpush1.msra.mxu0 %v2730
    %2775 = vmatprep.subr.mxu0 0.0
    %2776 = vmatpush1.msra.mxu0 %v2728
    %2777 = vmatprep.subr.mxu0 0.0
    %2778 = vmatpush2.msra.mxu0 0.0
    %2779 = vmatprep.subr.mxu0 0.0
    %2780 = vmatpush2.msra.mxu0 0.0
    %2781 = vmatprep.subr.mxu0 0.0
    %2782 = vmatpush2.msra.mxu0 0.0
    %2783 = vmatprep.subr.mxu0 0.0
    %2784 = vmatpush2.msra.mxu0 0.0
    %2785 = vmatprep.subr.mxu0 0.0
    %2786 = vmatpush2.msra.mxu0 0.0
    %2787 = vmatprep.subr.mxu0 0.0
    %2788 = vmatpush2.msra.mxu0 0.0
    %2789 = vmatprep.subr.mxu0 0.0
    %2790 = vmatpush2.msra.mxu0 0.0
    %2791 = vmatprep.subr.mxu0 0.0
    %2792 = vmatpush2.msra.mxu0 0.0
    %2793 = vmatprep.subr.mxu0 0.0
    %2794 = vmatpush2.msra.mxu0 0.0
    %2795 = vmatprep.subr.mxu0 0.0
    %2796 = vmatpush2.msra.mxu0 0.0
    %2797 = vmatprep.subr.mxu0 0.0
    %2798 = vmatpush2.msra.mxu0 0.0
    %2799 = vmatprep.subr.mxu0 0.0
    %2800 = vmatpush2.msra.mxu0 0.0
    %2801 = vmatprep.subr.mxu0 0.0
    %2802 = vmatpush2.msra.mxu0 0.0
    %2803 = vmatprep.subr.mxu0 0.0
    %2804 = vmatpush2.msra.mxu0 0.0
    %2805 = vmatprep.subr.mxu0 0.0
    %2806 = vmatpush2.msra.mxu0 0.0
    %2807 = vmatprep.subr.mxu0 0.0
    %2808 = vmatpush2.msra.mxu0 0.0
    %2809 = vmatprep.mubr.f32.mxu0 0.0
    %2810 = vmatmul.mubr.f32.gmra.mxu0 %v2737
    %v2811 = vpop.f32.mrf.mxu0
    %v2812 = vadd.f32 0.0, %v2811
    %v2813 = vpop.f32.mrf.mxu0
    %2814 = vmatprep.mubr.f32.mxu0 0.0
    %2815 = vmatmul.mubr.f32.gmra.mxu0 %v2740
    %v2816 = vpop.f32.mrf.mxu0
    %v2817 = vadd.f32 0.0, %v2816
    %v2818 = vpop.f32.mrf.mxu0
    %2819 = vmatprep.mubr.f32.mxu0 0.0
    %2820 = vmatmul.mubr.f32.gmra.mxu0 %v2743
    %v2821 = vpop.f32.mrf.mxu0
    %v2822 = vadd.f32 0.0, %v2821
    %v2823 = vpop.f32.mrf.mxu0
    %2824 = vdwg.mxu0
    %2825 = vrot.lane.b32.xlu0 %v2148, 64
    %v2826 = vpop.permute.xlu0 %2825
    %2827 = vrot.lane.b32.xlu0 %v2153, 64
    %v2828 = vpop.permute.xlu0 %2827
    %2829 = vrot.lane.b32.xlu0 %v2158, 64
    %v2830 = vpop.permute.xlu0 %2829
    %v2835 = vsel %vm862, %v2718, 0
    %v2838 = vsel %vm862, %v2719, 0
    %v2841 = vsel %vm862, %v2720, 0
    %2843 = vmatprep.subr.mxu0 0.0
    %2844 = vmatpush1.msra.mxu0 0.0
    %2845 = vmatprep.subr.mxu0 0.0
    %2846 = vmatpush1.msra.mxu0 0.0
    %2847 = vmatprep.subr.mxu0 0.0
    %2848 = vmatpush1.msra.mxu0 0.0
    %2849 = vmatprep.subr.mxu0 0.0
    %2850 = vmatpush1.msra.mxu0 0.0
    %2851 = vmatprep.subr.mxu0 0.0
    %2852 = vmatpush1.msra.mxu0 0.0
    %2853 = vmatprep.subr.mxu0 0.0
    %2854 = vmatpush1.msra.mxu0 0.0
    %2855 = vmatprep.subr.mxu0 0.0
    %2856 = vmatpush1.msra.mxu0 0.0
    %2857 = vmatprep.subr.mxu0 0.0
    %2858 = vmatpush1.msra.mxu0 0.0
    %2859 = vmatprep.subr.mxu0 0.0
    %2860 = vmatpush1.msra.mxu0 0.0
    %2861 = vmatprep.subr.mxu0 0.0
    %2862 = vmatpush1.msra.mxu0 0.0
    %2863 = vmatprep.subr.mxu0 0.0
    %2864 = vmatpush1.msra.mxu0 0.0
    %2865 = vmatprep.subr.mxu0 0.0
    %2866 = vmatpush1.msra.mxu0 0.0
    %2867 = vmatprep.subr.mxu0 0.0
    %2868 = vmatpush1.msra.mxu0 0.0
    %2869 = vmatprep.subr.mxu0 0.0
    %2870 = vmatpush1.msra.mxu0 %v2830
    %2871 = vmatprep.subr.mxu0 0.0
    %2872 = vmatpush1.msra.mxu0 %v2828
    %2873 = vmatprep.subr.mxu0 0.0
    %2874 = vmatpush1.msra.mxu0 %v2826
    %2875 = vmatprep.subr.mxu0 0.0
    %2876 = vmatpush2.msra.mxu0 0.0
    %2877 = vmatprep.subr.mxu0 0.0
    %2878 = vmatpush2.msra.mxu0 0.0
    %2879 = vmatprep.subr.mxu0 0.0
    %2880 = vmatpush2.msra.mxu0 0.0
    %2881 = vmatprep.subr.mxu0 0.0
    %2882 = vmatpush2.msra.mxu0 0.0
    %2883 = vmatprep.subr.mxu0 0.0
    %2884 = vmatpush2.msra.mxu0 0.0
    %2885 = vmatprep.subr.mxu0 0.0
    %2886 = vmatpush2.msra.mxu0 0.0
    %2887 = vmatprep.subr.mxu0 0.0
    %2888 = vmatpush2.msra.mxu0 0.0
    %2889 = vmatprep.subr.mxu0 0.0
    %2890 = vmatpush2.msra.mxu0 0.0
    %2891 = vmatprep.subr.mxu0 0.0
    %2892 = vmatpush2.msra.mxu0 0.0
    %2893 = vmatprep.subr.mxu0 0.0
    %2894 = vmatpush2.msra.mxu0 0.0
    %2895 = vmatprep.subr.mxu0 0.0
    %2896 = vmatpush2.msra.mxu0 0.0
    %2897 = vmatprep.subr.mxu0 0.0
    %2898 = vmatpush2.msra.mxu0 0.0
    %2899 = vmatprep.subr.mxu0 0.0
    %2900 = vmatpush2.msra.mxu0 0.0
    %2901 = vmatprep.subr.mxu0 0.0
    %2902 = vmatpush2.msra.mxu0 0.0
    %2903 = vmatprep.subr.mxu0 0.0
    %2904 = vmatpush2.msra.mxu0 0.0
    %2905 = vmatprep.subr.mxu0 0.0
    %2906 = vmatpush2.msra.mxu0 0.0
    %2907 = vmatprep.mubr.f32.mxu0 0.0
    %2908 = vmatmul.mubr.f32.gmra.mxu0 %v2835
    %v2909 = vpop.f32.mrf.mxu0
    %v2910 = vadd.f32 0.0, %v2909
    %v2911 = vpop.f32.mrf.mxu0
    %2912 = vmatprep.mubr.f32.mxu0 0.0
    %2913 = vmatmul.mubr.f32.gmra.mxu0 %v2838
    %v2914 = vpop.f32.mrf.mxu0
    %v2915 = vadd.f32 0.0, %v2914
    %v2916 = vpop.f32.mrf.mxu0
    %2917 = vmatprep.mubr.f32.mxu0 0.0
    %2918 = vmatmul.mubr.f32.gmra.mxu0 %v2841
    %v2919 = vpop.f32.mrf.mxu0
    %v2920 = vadd.f32 0.0, %v2919
    %v2921 = vpop.f32.mrf.mxu0
    %2922 = vdwg.mxu0
    %2923 = vrot.lane.b32.xlu0 %v2168, 64
    %v2924 = vpop.permute.xlu0 %2923
    %2925 = vrot.lane.b32.xlu0 %v2170, 64
    %v2926 = vpop.permute.xlu0 %2925
    %2927 = vrot.lane.b32.xlu0 %v2172, 64
    %v2928 = vpop.permute.xlu0 %2927
    %v2933 = vsel %vm862, %v2721, 0
    %v2936 = vsel %vm862, %v2722, 0
    %v2939 = vsel %vm862, %v2723, 0
    %2941 = vmatprep.subr.mxu0 0.0
    %2942 = vmatpush1.msra.mxu0 0.0
    %2943 = vmatprep.subr.mxu0 0.0
    %2944 = vmatpush1.msra.mxu0 0.0
    %2945 = vmatprep.subr.mxu0 0.0
    %2946 = vmatpush1.msra.mxu0 0.0
    %2947 = vmatprep.subr.mxu0 0.0
    %2948 = vmatpush1.msra.mxu0 0.0
    %2949 = vmatprep.subr.mxu0 0.0
    %2950 = vmatpush1.msra.mxu0 0.0
    %2951 = vmatprep.subr.mxu0 0.0
    %2952 = vmatpush1.msra.mxu0 0.0
    %2953 = vmatprep.subr.mxu0 0.0
    %2954 = vmatpush1.msra.mxu0 0.0
    %2955 = vmatprep.subr.mxu0 0.0
    %2956 = vmatpush1.msra.mxu0 0.0
    %2957 = vmatprep.subr.mxu0 0.0
    %2958 = vmatpush1.msra.mxu0 0.0
    %2959 = vmatprep.subr.mxu0 0.0
    %2960 = vmatpush1.msra.mxu0 0.0
    %2961 = vmatprep.subr.mxu0 0.0
    %2962 = vmatpush1.msra.mxu0 0.0
    %2963 = vmatprep.subr.mxu0 0.0
    %2964 = vmatpush1.msra.mxu0 0.0
    %2965 = vmatprep.subr.mxu0 0.0
    %2966 = vmatpush1.msra.mxu0 0.0
    %2967 = vmatprep.subr.mxu0 0.0
    %2968 = vmatpush1.msra.mxu0 %v2928
    %2969 = vmatprep.subr.mxu0 0.0
    %2970 = vmatpush1.msra.mxu0 %v2926
    %2971 = vmatprep.subr.mxu0 0.0
    %2972 = vmatpush1.msra.mxu0 %v2924
    %2973 = vmatprep.subr.mxu0 0.0
    %2974 = vmatpush2.msra.mxu0 0.0
    %2975 = vmatprep.subr.mxu0 0.0
    %2976 = vmatpush2.msra.mxu0 0.0
    %2977 = vmatprep.subr.mxu0 0.0
    %2978 = vmatpush2.msra.mxu0 0.0
    %2979 = vmatprep.subr.mxu0 0.0
    %2980 = vmatpush2.msra.mxu0 0.0
    %2981 = vmatprep.subr.mxu0 0.0
    %2982 = vmatpush2.msra.mxu0 0.0
    %2983 = vmatprep.subr.mxu0 0.0
    %2984 = vmatpush2.msra.mxu0 0.0
    %2985 = vmatprep.subr.mxu0 0.0
    %2986 = vmatpush2.msra.mxu0 0.0
    %2987 = vmatprep.subr.mxu0 0.0
    %2988 = vmatpush2.msra.mxu0 0.0
    %2989 = vmatprep.subr.mxu0 0.0
    %2990 = vmatpush2.msra.mxu0 0.0
    %2991 = vmatprep.subr.mxu0 0.0
    %2992 = vmatpush2.msra.mxu0 0.0
    %2993 = vmatprep.subr.mxu0 0.0
    %2994 = vmatpush2.msra.mxu0 0.0
    %2995 = vmatprep.subr.mxu0 0.0
    %2996 = vmatpush2.msra.mxu0 0.0
    %2997 = vmatprep.subr.mxu0 0.0
    %2998 = vmatpush2.msra.mxu0 0.0
    %2999 = vmatprep.subr.mxu0 0.0
    %3000 = vmatpush2.msra.mxu0 0.0
    %3001 = vmatprep.subr.mxu0 0.0
    %3002 = vmatpush2.msra.mxu0 0.0
    %3003 = vmatprep.subr.mxu0 0.0
    %3004 = vmatpush2.msra.mxu0 0.0
    %3005 = vmatprep.mubr.f32.mxu0 0.0
    %3006 = vmatmul.mubr.f32.gmra.mxu0 %v2933
    %v3007 = vpop.f32.mrf.mxu0
    %v3008 = vadd.f32 0.0, %v3007
    %v3009 = vpop.f32.mrf.mxu0
    %3010 = vmatprep.mubr.f32.mxu0 0.0
    %3011 = vmatmul.mubr.f32.gmra.mxu0 %v2936
    %v3012 = vpop.f32.mrf.mxu0
    %v3013 = vadd.f32 0.0, %v3012
    %v3014 = vpop.f32.mrf.mxu0
    %3015 = vmatprep.mubr.f32.mxu0 0.0
    %3016 = vmatmul.mubr.f32.gmra.mxu0 %v2939
    %v3017 = vpop.f32.mrf.mxu0
    %v3018 = vadd.f32 0.0, %v3017
    %v3019 = vpop.f32.mrf.mxu0
    %3020 = vdwg.mxu0
    %3021 = vrot.lane.b32.xlu0 %v2174, 64
    %v3022 = vpop.permute.xlu0 %3021
    %3023 = vrot.lane.b32.xlu0 %v2176, 64
    %v3024 = vpop.permute.xlu0 %3023
    %3025 = vrot.lane.b32.xlu0 %v2178, 64
    %v3026 = vpop.permute.xlu0 %3025
    %v3031 = vsel %vm862, %v2724, 0
    %v3034 = vsel %vm862, %v2725, 0
    %v3037 = vsel %vm862, %v2726, 0
    %3039 = vmatprep.subr.mxu0 0.0
    %3040 = vmatpush1.msra.mxu0 0.0
    %3041 = vmatprep.subr.mxu0 0.0
    %3042 = vmatpush1.msra.mxu0 0.0
    %3043 = vmatprep.subr.mxu0 0.0
    %3044 = vmatpush1.msra.mxu0 0.0
    %3045 = vmatprep.subr.mxu0 0.0
    %3046 = vmatpush1.msra.mxu0 0.0
    %3047 = vmatprep.subr.mxu0 0.0
    %3048 = vmatpush1.msra.mxu0 0.0
    %3049 = vmatprep.subr.mxu0 0.0
    %3050 = vmatpush1.msra.mxu0 0.0
    %3051 = vmatprep.subr.mxu0 0.0
    %3052 = vmatpush1.msra.mxu0 0.0
    %3053 = vmatprep.subr.mxu0 0.0
    %3054 = vmatpush1.msra.mxu0 0.0
    %3055 = vmatprep.subr.mxu0 0.0
    %3056 = vmatpush1.msra.mxu0 0.0
    %3057 = vmatprep.subr.mxu0 0.0
    %3058 = vmatpush1.msra.mxu0 0.0
    %3059 = vmatprep.subr.mxu0 0.0
    %3060 = vmatpush1.msra.mxu0 0.0
    %3061 = vmatprep.subr.mxu0 0.0
    %3062 = vmatpush1.msra.mxu0 0.0
    %3063 = vmatprep.subr.mxu0 0.0
    %3064 = vmatpush1.msra.mxu0 0.0
    %3065 = vmatprep.subr.mxu0 0.0
    %3066 = vmatpush1.msra.mxu0 %v3026
    %3067 = vmatprep.subr.mxu0 0.0
    %3068 = vmatpush1.msra.mxu0 %v3024
    %3069 = vmatprep.subr.mxu0 0.0
    %3070 = vmatpush1.msra.mxu0 %v3022
    %3071 = vmatprep.subr.mxu0 0.0
    %3072 = vmatpush2.msra.mxu0 0.0
    %3073 = vmatprep.subr.mxu0 0.0
    %3074 = vmatpush2.msra.mxu0 0.0
    %3075 = vmatprep.subr.mxu0 0.0
    %3076 = vmatpush2.msra.mxu0 0.0
    %3077 = vmatprep.subr.mxu0 0.0
    %3078 = vmatpush2.msra.mxu0 0.0
    %3079 = vmatprep.subr.mxu0 0.0
    %3080 = vmatpush2.msra.mxu0 0.0
    %3081 = vmatprep.subr.mxu0 0.0
    %3082 = vmatpush2.msra.mxu0 0.0
    %3083 = vmatprep.subr.mxu0 0.0
    %3084 = vmatpush2.msra.mxu0 0.0
    %3085 = vmatprep.subr.mxu0 0.0
    %3086 = vmatpush2.msra.mxu0 0.0
    %3087 = vmatprep.subr.mxu0 0.0
    %3088 = vmatpush2.msra.mxu0 0.0
    %3089 = vmatprep.subr.mxu0 0.0
    %3090 = vmatpush2.msra.mxu0 0.0
    %3091 = vmatprep.subr.mxu0 0.0
    %3092 = vmatpush2.msra.mxu0 0.0
    %3093 = vmatprep.subr.mxu0 0.0
    %3094 = vmatpush2.msra.mxu0 0.0
    %3095 = vmatprep.subr.mxu0 0.0
    %3096 = vmatpush2.msra.mxu0 0.0
    %3097 = vmatprep.subr.mxu0 0.0
    %3098 = vmatpush2.msra.mxu0 0.0
    %3099 = vmatprep.subr.mxu0 0.0
    %3100 = vmatpush2.msra.mxu0 0.0
    %3101 = vmatprep.subr.mxu0 0.0
    %3102 = vmatpush2.msra.mxu0 0.0
    %3103 = vmatprep.mubr.f32.mxu0 0.0
    %3104 = vmatmul.mubr.f32.gmra.mxu0 %v3031
    %v3105 = vpop.f32.mrf.mxu0
    %v3106 = vadd.f32 0.0, %v3105
    %v3107 = vpop.f32.mrf.mxu0
    %3108 = vmatprep.mubr.f32.mxu0 0.0
    %3109 = vmatmul.mubr.f32.gmra.mxu0 %v3034
    %v3110 = vpop.f32.mrf.mxu0
    %v3111 = vadd.f32 0.0, %v3110
    %v3112 = vpop.f32.mrf.mxu0
    %3113 = vmatprep.mubr.f32.mxu0 0.0
    %3114 = vmatmul.mubr.f32.gmra.mxu0 %v3037
    %v3115 = vpop.f32.mrf.mxu0
    %v3116 = vadd.f32 0.0, %v3115
    %v3117 = vpop.f32.mrf.mxu0
    %3118 = vdwg.mxu0
    %3125 = vrot.lane.b32.xlu0 %v3008, 16
    %v3126 = vpop.permute.xlu0 %3125
    %3127 = vrot.lane.b32.xlu0 %v3013, 16
    %v3128 = vpop.permute.xlu0 %3127
    %3129 = vrot.lane.b32.xlu0 %v3018, 16
    %v3130 = vpop.permute.xlu0 %3129
    %3131 = vrot.lane.b32.xlu0 %v3106, 16
    %v3132 = vpop.permute.xlu0 %3131
    %3133 = vrot.lane.b32.xlu0 %v3111, 16
    %v3134 = vpop.permute.xlu0 %3133
    %3135 = vrot.lane.b32.xlu0 %v3116, 16
    %v3136 = vpop.permute.xlu0 %3135
    %v3143 = vsel %vm451, %v2812, %v3126
    %v3144 = vsel %vm451, %v2817, %v3128
    %v3145 = vsel %vm451, %v2822, %v3130
    %v3146 = vsel %vm451, %v2910, %v3132
    %v3147 = vsel %vm451, %v2915, %v3134
    %v3148 = vsel %vm451, %v2920, %v3136
    %s3149 = scalar_lea.vmem %s8, 32
    %v3150 = vld [vmem:[%s3149] sm:$0xff]
    %v3151 = vld [vmem:[%s3149 + $0x8] sm:$0xff]
    %v3152 = vld [vmem:[%s3149 + $0x10] sm:$0xff]
    %v3153 = vld [vmem:[%s3149 + $0x18] sm:$0xff]
    %s3154 = scalar_lea.vmem %s9, 1
    %v3155 = vld [vmem:[%s3154] sm:$0x1]
    %v3157 = vlaneseq
    %v3158 = vshrl.u32 %v3157, 7
    %v3159 = vsub.s32 0, %v3158
    %v3160 = vrot.slane %v3155, %v3159
    %v3163 = vsel %vm180, %v3143, 0
    %v3166 = vsel %vm180, %v3144, 0
    %v3169 = vsel %vm180, %v3145, 0
    %v3172 = vsel %vm180, %v3146, 0
    %v3175 = vsel %vm180, %v3147, 0
    %v3178 = vsel %vm180, %v3148, 0
    %3180 = vmatprep.subr.mxu0 0.0
    %3181 = vmatpush1.msra.mxu0 0.0
    %3182 = vmatprep.subr.mxu0 0.0
    %3183 = vmatpush1.msra.mxu0 0.0
    %3184 = vmatprep.subr.mxu0 0.0
    %3185 = vmatpush1.msra.mxu0 0.0
    %3186 = vmatprep.subr.mxu0 0.0
    %3187 = vmatpush1.msra.mxu0 0.0
    %3188 = vmatprep.subr.mxu0 0.0
    %3189 = vmatpush1.msra.mxu0 0.0
    %3190 = vmatprep.subr.mxu0 0.0
    %3191 = vmatpush1.msra.mxu0 0.0
    %3192 = vmatprep.subr.mxu0 0.0
    %3193 = vmatpush1.msra.mxu0 0.0
    %3194 = vmatprep.subr.mxu0 0.0
    %3195 = vmatpush1.msra.mxu0 0.0
    %3196 = vmatprep.subr.mxu0 0.0
    %3197 = vmatpush1.msra.mxu0 0.0
    %3198 = vmatprep.subr.mxu0 0.0
    %3199 = vmatpush1.msra.mxu0 0.0
    %3200 = vmatprep.subr.mxu0 0.0
    %3201 = vmatpush1.msra.mxu0 0.0
    %3202 = vmatprep.subr.mxu0 0.0
    %3203 = vmatpush1.msra.mxu0 0.0
    %3204 = vmatprep.subr.mxu0 0.0
    %3205 = vmatpush1.msra.mxu0 %v3153
    %3206 = vmatprep.subr.mxu0 0.0
    %3207 = vmatpush1.msra.mxu0 %v3152
    %3208 = vmatprep.subr.mxu0 0.0
    %3209 = vmatpush1.msra.mxu0 %v3151
    %3210 = vmatprep.subr.mxu0 0.0
    %3211 = vmatpush1.msra.mxu0 %v3150
    %3212 = vmatprep.subr.mxu0 0.0
    %3213 = vmatpush2.msra.mxu0 0.0
    %3214 = vmatprep.subr.mxu0 0.0
    %3215 = vmatpush2.msra.mxu0 0.0
    %3216 = vmatprep.subr.mxu0 0.0
    %3217 = vmatpush2.msra.mxu0 0.0
    %3218 = vmatprep.subr.mxu0 0.0
    %3219 = vmatpush2.msra.mxu0 0.0
    %3220 = vmatprep.subr.mxu0 0.0
    %3221 = vmatpush2.msra.mxu0 0.0
    %3222 = vmatprep.subr.mxu0 0.0
    %3223 = vmatpush2.msra.mxu0 0.0
    %3224 = vmatprep.subr.mxu0 0.0
    %3225 = vmatpush2.msra.mxu0 0.0
    %3226 = vmatprep.subr.mxu0 0.0
    %3227 = vmatpush2.msra.mxu0 0.0
    %3228 = vmatprep.subr.mxu0 0.0
    %3229 = vmatpush2.msra.mxu0 0.0
    %3230 = vmatprep.subr.mxu0 0.0
    %3231 = vmatpush2.msra.mxu0 0.0
    %3232 = vmatprep.subr.mxu0 0.0
    %3233 = vmatpush2.msra.mxu0 0.0
    %3234 = vmatprep.subr.mxu0 0.0
    %3235 = vmatpush2.msra.mxu0 0.0
    %3236 = vmatprep.subr.mxu0 0.0
    %3237 = vmatpush2.msra.mxu0 0.0
    %3238 = vmatprep.subr.mxu0 0.0
    %3239 = vmatpush2.msra.mxu0 0.0
    %3240 = vmatprep.subr.mxu0 0.0
    %3241 = vmatpush2.msra.mxu0 0.0
    %3242 = vmatprep.subr.mxu0 0.0
    %3243 = vmatpush2.msra.mxu0 0.0
    %3244 = vmatprep.mubr.f32.mxu0 0.0
    %3245 = vmatmul.mubr.f32.gmra.mxu0 %v3163
    %v3246 = vpop.f32.mrf.mxu0
    %v3247 = vadd.f32 %v3160, %v3246
    %v3248 = vpop.f32.mrf.mxu0
    %3249 = vmatprep.mubr.f32.mxu0 0.0
    %3250 = vmatmul.mubr.f32.gmra.mxu0 %v3166
    %v3251 = vpop.f32.mrf.mxu0
    %v3252 = vadd.f32 %v3160, %v3251
    %v3253 = vpop.f32.mrf.mxu0
    %3254 = vmatprep.mubr.f32.mxu0 0.0
    %3255 = vmatmul.mubr.f32.gmra.mxu0 %v3169
    %v3256 = vpop.f32.mrf.mxu0
    %v3257 = vadd.f32 %v3160, %v3256
    %v3258 = vpop.f32.mrf.mxu0
    %3259 = vmatprep.mubr.f32.mxu0 0.0
    %3260 = vmatmul.mubr.f32.gmra.mxu0 %v3172
    %v3261 = vpop.f32.mrf.mxu0
    %v3262 = vadd.f32 %v3160, %v3261
    %v3263 = vpop.f32.mrf.mxu0
    %3264 = vmatprep.mubr.f32.mxu0 0.0
    %3265 = vmatmul.mubr.f32.gmra.mxu0 %v3175
    %v3266 = vpop.f32.mrf.mxu0
    %v3267 = vadd.f32 %v3160, %v3266
    %v3268 = vpop.f32.mrf.mxu0
    %3269 = vmatprep.mubr.f32.mxu0 0.0
    %3270 = vmatmul.mubr.f32.gmra.mxu0 %v3178
    %v3271 = vpop.f32.mrf.mxu0
    %v3272 = vadd.f32 %v3160, %v3271
    %v3273 = vpop.f32.mrf.mxu0
    %3274 = vdwg.mxu0
    %v3275 = vadd.f32 %v1923, %v3247
    %v3276 = vadd.f32 %v1924, %v3252
    %v3277 = vadd.f32 %v1925, %v3257
    %v3278 = vadd.f32 %v1926, %v3262
    %v3279 = vadd.f32 %v1927, %v3267
    %v3280 = vadd.f32 %v1928, %v3272
    %s3281 = scalar_lea.vmem %s10, 1
    %v3282 = vld [vmem:[%s3281] sm:$0x1]
    %s3283 = scalar_lea.vmem %s11, 1
    %v3284 = vld [vmem:[%s3283] sm:$0x1]
    %v3285 = vsel %vm180, %v3275, 0.0
    %3286 = vadd.xlane.f32.xlu0 %v3285
    %v3287 = vpop.xlane.xlu0 %3286
    %v3288 = vsel %vm180, %v3276, 0.0
    %3289 = vadd.xlane.f32.xlu0 %v3288
    %v3290 = vpop.xlane.xlu0 %3289
    %v3291 = vsel %vm180, %v3277, 0.0
    %3292 = vadd.xlane.f32.xlu0 %v3291
    %v3293 = vpop.xlane.xlu0 %3292
    %v3294 = vsel %vm180, %v3278, 0.0
    %3295 = vadd.xlane.f32.xlu0 %v3294
    %v3296 = vpop.xlane.xlu0 %3295
    %v3297 = vsel %vm180, %v3279, 0.0
    %3298 = vadd.xlane.f32.xlu0 %v3297
    %v3299 = vpop.xlane.xlu0 %3298
    %v3300 = vsel %vm180, %v3280, 0.0
    %3301 = vadd.xlane.f32.xlu0 %v3300
    %v3302 = vpop.xlane.xlu0 %3301
    %v3303 = vmul.f32 %v3287, %v218
    %v3304 = vmul.f32 %v3290, %v218
    %v3305 = vmul.f32 %v3293, %v218
    %v3306 = vmul.f32 %v3296, %v218
    %v3307 = vmul.f32 %v3299, %v218
    %v3308 = vmul.f32 %v3302, %v218
    %v3309 = vsub.f32 %v3275, %v3303
    %v3310 = vsub.f32 %v3276, %v3304
    %v3311 = vsub.f32 %v3277, %v3305
    %v3312 = vsub.f32 %v3278, %v3306
    %v3313 = vsub.f32 %v3279, %v3307
    %v3314 = vsub.f32 %v3280, %v3308
    %v3315 = vmul.f32 %v3309, %v3309
    %v3316 = vmul.f32 %v3310, %v3310
    %v3317 = vmul.f32 %v3311, %v3311
    %v3318 = vmul.f32 %v3312, %v3312
    %v3319 = vmul.f32 %v3313, %v3313
    %v3320 = vmul.f32 %v3314, %v3314
    %v3321 = vsel %vm180, %v3315, 0.0
    %3322 = vadd.xlane.f32.xlu0 %v3321
    %v3323 = vpop.xlane.xlu0 %3322
    %v3324 = vsel %vm180, %v3316, 0.0
    %3325 = vadd.xlane.f32.xlu0 %v3324
    %v3326 = vpop.xlane.xlu0 %3325
    %v3327 = vsel %vm180, %v3317, 0.0
    %3328 = vadd.xlane.f32.xlu0 %v3327
    %v3329 = vpop.xlane.xlu0 %3328
    %v3330 = vsel %vm180, %v3318, 0.0
    %3331 = vadd.xlane.f32.xlu0 %v3330
    %v3332 = vpop.xlane.xlu0 %3331
    %v3333 = vsel %vm180, %v3319, 0.0
    %3334 = vadd.xlane.f32.xlu0 %v3333
    %v3335 = vpop.xlane.xlu0 %3334
    %v3336 = vsel %vm180, %v3320, 0.0
    %3337 = vadd.xlane.f32.xlu0 %v3336
    %v3338 = vpop.xlane.xlu0 %3337
    %v3339 = vmul.f32 %v3323, %v218
    %v3340 = vmul.f32 %v3326, %v218
    %v3341 = vmul.f32 %v3329, %v218
    %v3342 = vmul.f32 %v3332, %v218
    %v3343 = vmul.f32 %v3335, %v218
    %v3344 = vmul.f32 %v3338, %v218
    %v3345 = vadd.f32 %v3339, 1e-05
    %v3346 = vadd.f32 %v3340, 1e-05
    %v3347 = vadd.f32 %v3341, 1e-05
    %v3348 = vadd.f32 %v3342, 1e-05
    %v3349 = vadd.f32 %v3343, 1e-05
    %v3350 = vadd.f32 %v3344, 1e-05
    %v3351 = vrsqrt.pop %v3345
    %v3352 = vrsqrt.pop %v3346
    %v3353 = vrsqrt.pop %v3347
    %v3354 = vrsqrt.pop %v3348
    %v3355 = vrsqrt.pop %v3349
    %v3356 = vrsqrt.pop %v3350
    %v3357 = vmul.f32 %v3309, %v3351
    %v3358 = vmul.f32 %v3310, %v3352
    %v3359 = vmul.f32 %v3311, %v3353
    %v3360 = vmul.f32 %v3312, %v3354
    %v3361 = vmul.f32 %v3313, %v3355
    %v3362 = vmul.f32 %v3314, %v3356
    %v3364 = vlaneseq
    %v3365 = vshrl.u32 %v3364, 7
    %v3366 = vsub.s32 0, %v3365
    %v3367 = vrot.slane %v3282, %v3366
    %v3369 = vmul.f32 %v3357, %v3367
    %v3370 = vmul.f32 %v3358, %v3367
    %v3371 = vmul.f32 %v3359, %v3367
    %v3372 = vmul.f32 %v3360, %v3367
    %v3373 = vmul.f32 %v3361, %v3367
    %v3374 = vmul.f32 %v3362, %v3367
    %v3376 = vlaneseq
    %v3377 = vshrl.u32 %v3376, 7
    %v3378 = vsub.s32 0, %v3377
    %v3379 = vrot.slane %v3284, %v3378
    %v3381 = vadd.f32 %v3369, %v3379
    %v3382 = vadd.f32 %v3370, %v3379
    %v3383 = vadd.f32 %v3371, %v3379
    %v3384 = vadd.f32 %v3372, %v3379
    %v3385 = vadd.f32 %v3373, %v3379
    %v3386 = vadd.f32 %v3374, %v3379
    %s3387 = scalar_lea.vmem %s12, 32
    %v3388 = vld [vmem:[%s3387] sm:$0xff]
    %v3389 = vld [vmem:[%s3387 + $0x8] sm:$0xff]
    %v3390 = vld [vmem:[%s3387 + $0x10] sm:$0xff]
    %v3391 = vld [vmem:[%s3387 + $0x18] sm:$0xff]
    %s3392 = scalar_lea.vmem %s13, 1
    %v3393 = vld [vmem:[%s3392] sm:$0x1]
    %v3395 = vlaneseq
    %v3396 = vshrl.u32 %v3395, 7
    %v3397 = vsub.s32 0, %v3396
    %v3398 = vrot.slane %v3393, %v3397
    %v3401 = vsel %vm180, %v3381, 0
    %v3404 = vsel %vm180, %v3382, 0
    %v3407 = vsel %vm180, %v3383, 0
    %v3410 = vsel %vm180, %v3384, 0
    %v3413 = vsel %vm180, %v3385, 0
    %v3416 = vsel %vm180, %v3386, 0
    %3418 = vmatprep.subr.mxu0 0.0
    %3419 = vmatpush1.msra.mxu0 0.0
    %3420 = vmatprep.subr.mxu0 0.0
    %3421 = vmatpush1.msra.mxu0 0.0
    %3422 = vmatprep.subr.mxu0 0.0
    %3423 = vmatpush1.msra.mxu0 0.0
    %3424 = vmatprep.subr.mxu0 0.0
    %3425 = vmatpush1.msra.mxu0 0.0
    %3426 = vmatprep.subr.mxu0 0.0
    %3427 = vmatpush1.msra.mxu0 0.0
    %3428 = vmatprep.subr.mxu0 0.0
    %3429 = vmatpush1.msra.mxu0 0.0
    %3430 = vmatprep.subr.mxu0 0.0
    %3431 = vmatpush1.msra.mxu0 0.0
    %3432 = vmatprep.subr.mxu0 0.0
    %3433 = vmatpush1.msra.mxu0 0.0
    %3434 = vmatprep.subr.mxu0 0.0
    %3435 = vmatpush1.msra.mxu0 0.0
    %3436 = vmatprep.subr.mxu0 0.0
    %3437 = vmatpush1.msra.mxu0 0.0
    %3438 = vmatprep.subr.mxu0 0.0
    %3439 = vmatpush1.msra.mxu0 0.0
    %3440 = vmatprep.subr.mxu0 0.0
    %3441 = vmatpush1.msra.mxu0 0.0
    %3442 = vmatprep.subr.mxu0 0.0
    %3443 = vmatpush1.msra.mxu0 %v3391
    %3444 = vmatprep.subr.mxu0 0.0
    %3445 = vmatpush1.msra.mxu0 %v3390
    %3446 = vmatprep.subr.mxu0 0.0
    %3447 = vmatpush1.msra.mxu0 %v3389
    %3448 = vmatprep.subr.mxu0 0.0
    %3449 = vmatpush1.msra.mxu0 %v3388
    %3450 = vmatprep.subr.mxu0 0.0
    %3451 = vmatpush2.msra.mxu0 0.0
    %3452 = vmatprep.subr.mxu0 0.0
    %3453 = vmatpush2.msra.mxu0 0.0
    %3454 = vmatprep.subr.mxu0 0.0
    %3455 = vmatpush2.msra.mxu0 0.0
    %3456 = vmatprep.subr.mxu0 0.0
    %3457 = vmatpush2.msra.mxu0 0.0
    %3458 = vmatprep.subr.mxu0 0.0
    %3459 = vmatpush2.msra.mxu0 0.0
    %3460 = vmatprep.subr.mxu0 0.0
    %3461 = vmatpush2.msra.mxu0 0.0
    %3462 = vmatprep.subr.mxu0 0.0
    %3463 = vmatpush2.msra.mxu0 0.0
    %3464 = vmatprep.subr.mxu0 0.0
    %3465 = vmatpush2.msra.mxu0 0.0
    %3466 = vmatprep.subr.mxu0 0.0
    %3467 = vmatpush2.msra.mxu0 0.0
    %3468 = vmatprep.subr.mxu0 0.0
    %3469 = vmatpush2.msra.mxu0 0.0
    %3470 = vmatprep.subr.mxu0 0.0
    %3471 = vmatpush2.msra.mxu0 0.0
    %3472 = vmatprep.subr.mxu0 0.0
    %3473 = vmatpush2.msra.mxu0 0.0
    %3474 = vmatprep.subr.mxu0 0.0
    %3475 = vmatpush2.msra.mxu0 0.0
    %3476 = vmatprep.subr.mxu0 0.0
    %3477 = vmatpush2.msra.mxu0 0.0
    %3478 = vmatprep.subr.mxu0 0.0
    %3479 = vmatpush2.msra.mxu0 0.0
    %3480 = vmatprep.subr.mxu0 0.0
    %3481 = vmatpush2.msra.mxu0 0.0
    %3482 = vmatprep.mubr.f32.mxu0 0.0
    %3483 = vmatmul.mubr.f32.gmra.mxu0 %v3401
    %v3484 = vpop.f32.mrf.mxu0
    %v3485 = vadd.f32 %v3398, %v3484
    %v3486 = vpop.f32.mrf.mxu0
    %3487 = vmatprep.mubr.f32.mxu0 0.0
    %3488 = vmatmul.mubr.f32.gmra.mxu0 %v3404
    %v3489 = vpop.f32.mrf.mxu0
    %v3490 = vadd.f32 %v3398, %v3489
    %v3491 = vpop.f32.mrf.mxu0
    %3492 = vmatprep.mubr.f32.mxu0 0.0
    %3493 = vmatmul.mubr.f32.gmra.mxu0 %v3407
    %v3494 = vpop.f32.mrf.mxu0
    %v3495 = vadd.f32 %v3398, %v3494
    %v3496 = vpop.f32.mrf.mxu0
    %3497 = vmatprep.mubr.f32.mxu0 0.0
    %3498 = vmatmul.mubr.f32.gmra.mxu0 %v3410
    %v3499 = vpop.f32.mrf.mxu0
    %v3500 = vadd.f32 %v3398, %v3499
    %v3501 = vpop.f32.mrf.mxu0
    %3502 = vmatprep.mubr.f32.mxu0 0.0
    %3503 = vmatmul.mubr.f32.gmra.mxu0 %v3413
    %v3504 = vpop.f32.mrf.mxu0
    %v3505 = vadd.f32 %v3398, %v3504
    %v3506 = vpop.f32.mrf.mxu0
    %3507 = vmatprep.mubr.f32.mxu0 0.0
    %3508 = vmatmul.mubr.f32.gmra.mxu0 %v3416
    %v3509 = vpop.f32.mrf.mxu0
    %v3510 = vadd.f32 %v3398, %v3509
    %v3511 = vpop.f32.mrf.mxu0
    %3512 = vdwg.mxu0
    %v3513 = vmul.f32 %v3485, 0.5
    %v3514 = vmul.f32 %v3490, 0.5
    %v3515 = vmul.f32 %v3495, 0.5
    %v3516 = vmul.f32 %v3500, 0.5
    %v3517 = vmul.f32 %v3505, 0.5
    %v3518 = vmul.f32 %v3510, 0.5
    %v3519 = vmul.f32 %v3485, 0.70710677
    %v3520 = vmul.f32 %v3490, 0.70710677
    %v3521 = vmul.f32 %v3495, 0.70710677
    %v3522 = vmul.f32 %v3500, 0.70710677
    %v3523 = vmul.f32 %v3505, 0.70710677
    %v3524 = vmul.f32 %v3510, 0.70710677
    %v3525 = verf.f32.pop %v3519
    %v3526 = verf.f32.pop %v3520
    %v3527 = verf.f32.pop %v3521
    %v3528 = verf.f32.pop %v3522
    %v3529 = verf.f32.pop %v3523
    %v3530 = verf.f32.pop %v3524
    %v3531 = vadd.f32 %v3525, 1.0
    %v3532 = vadd.f32 %v3526, 1.0
    %v3533 = vadd.f32 %v3527, 1.0
    %v3534 = vadd.f32 %v3528, 1.0
    %v3535 = vadd.f32 %v3529, 1.0
    %v3536 = vadd.f32 %v3530, 1.0
    %v3537 = vmul.f32 %v3513, %v3531
    %v3538 = vmul.f32 %v3514, %v3532
    %v3539 = vmul.f32 %v3515, %v3533
    %v3540 = vmul.f32 %v3516, %v3534
    %v3541 = vmul.f32 %v3517, %v3535
    %v3542 = vmul.f32 %v3518, %v3536
    %s3543 = scalar_lea.vmem %s14, 128
    %v3544 = vld [vmem:[%s3543] sm:$0xff]
    %v3545 = vld [vmem:[%s3543 + $0x8] sm:$0xff]
    %v3546 = vld [vmem:[%s3543 + $0x10] sm:$0xff]
    %v3547 = vld [vmem:[%s3543 + $0x18] sm:$0xff]
    %v3548 = vld [vmem:[%s3543 + $0x20] sm:$0xff]
    %v3549 = vld [vmem:[%s3543 + $0x28] sm:$0xff]
    %v3550 = vld [vmem:[%s3543 + $0x30] sm:$0xff]
    %v3551 = vld [vmem:[%s3543 + $0x38] sm:$0xff]
    %v3552 = vld [vmem:[%s3543 + $0x40] sm:$0xff]
    %v3553 = vld [vmem:[%s3543 + $0x48] sm:$0xff]
    %v3554 = vld [vmem:[%s3543 + $0x50] sm:$0xff]
    %v3555 = vld [vmem:[%s3543 + $0x58] sm:$0xff]
    %v3556 = vld [vmem:[%s3543 + $0x60] sm:$0xff]
    %v3557 = vld [vmem:[%s3543 + $0x68] sm:$0xff]
    %v3558 = vld [vmem:[%s3543 + $0x70] sm:$0xff]
    %v3559 = vld [vmem:[%s3543 + $0x78] sm:$0xff]
    %s3560 = scalar_lea.vmem %s15, 1
    %v3561 = vld [vmem:[%s3560] sm:$0x1]
    %v3563 = vlaneseq
    %v3564 = vshrl.u32 %v3563, 7
    %v3565 = vsub.s32 0, %v3564
    %v3566 = vrot.slane %v3561, %v3565
    %3568 = vmatprep.subr.mxu0 0.0
    %3569 = vmatpush1.msra.mxu0 %v3559
    %3570 = vmatprep.subr.mxu0 0.0
    %3571 = vmatpush1.msra.mxu0 %v3558
    %3572 = vmatprep.subr.mxu0 0.0
    %3573 = vmatpush1.msra.mxu0 %v3557
    %3574 = vmatprep.subr.mxu0 0.0
    %3575 = vmatpush1.msra.mxu0 %v3556
    %3576 = vmatprep.subr.mxu0 0.0
    %3577 = vmatpush1.msra.mxu0 %v3555
    %3578 = vmatprep.subr.mxu0 0.0
    %3579 = vmatpush1.msra.mxu0 %v3554
    %3580 = vmatprep.subr.mxu0 0.0
    %3581 = vmatpush1.msra.mxu0 %v3553
    %3582 = vmatprep.subr.mxu0 0.0
    %3583 = vmatpush1.msra.mxu0 %v3552
    %3584 = vmatprep.subr.mxu0 0.0
    %3585 = vmatpush1.msra.mxu0 %v3551
    %3586 = vmatprep.subr.mxu0 0.0
    %3587 = vmatpush1.msra.mxu0 %v3550
    %3588 = vmatprep.subr.mxu0 0.0
    %3589 = vmatpush1.msra.mxu0 %v3549
    %3590 = vmatprep.subr.mxu0 0.0
    %3591 = vmatpush1.msra.mxu0 %v3548
    %3592 = vmatprep.subr.mxu0 0.0
    %3593 = vmatpush1.msra.mxu0 %v3547
    %3594 = vmatprep.subr.mxu0 0.0
    %3595 = vmatpush1.msra.mxu0 %v3546
    %3596 = vmatprep.subr.mxu0 0.0
    %3597 = vmatpush1.msra.mxu0 %v3545
    %3598 = vmatprep.subr.mxu0 0.0
    %3599 = vmatpush1.msra.mxu0 %v3544
    %3600 = vmatprep.subr.mxu0 0.0
    %3601 = vmatpush2.msra.mxu0 0.0
    %3602 = vmatprep.subr.mxu0 0.0
    %3603 = vmatpush2.msra.mxu0 0.0
    %3604 = vmatprep.subr.mxu0 0.0
    %3605 = vmatpush2.msra.mxu0 0.0
    %3606 = vmatprep.subr.mxu0 0.0
    %3607 = vmatpush2.msra.mxu0 0.0
    %3608 = vmatprep.subr.mxu0 0.0
    %3609 = vmatpush2.msra.mxu0 0.0
    %3610 = vmatprep.subr.mxu0 0.0
    %3611 = vmatpush2.msra.mxu0 0.0
    %3612 = vmatprep.subr.mxu0 0.0
    %3613 = vmatpush2.msra.mxu0 0.0
    %3614 = vmatprep.subr.mxu0 0.0
    %3615 = vmatpush2.msra.mxu0 0.0
    %3616 = vmatprep.subr.mxu0 0.0
    %3617 = vmatpush2.msra.mxu0 0.0
    %3618 = vmatprep.subr.mxu0 0.0
    %3619 = vmatpush2.msra.mxu0 0.0
    %3620 = vmatprep.subr.mxu0 0.0
    %3621 = vmatpush2.msra.mxu0 0.0
    %3622 = vmatprep.subr.mxu0 0.0
    %3623 = vmatpush2.msra.mxu0 0.0
    %3624 = vmatprep.subr.mxu0 0.0
    %3625 = vmatpush2.msra.mxu0 0.0
    %3626 = vmatprep.subr.mxu0 0.0
    %3627 = vmatpush2.msra.mxu0 0.0
    %3628 = vmatprep.subr.mxu0 0.0
    %3629 = vmatpush2.msra.mxu0 0.0
    %3630 = vmatprep.subr.mxu0 0.0
    %3631 = vmatpush2.msra.mxu0 0.0
    %3632 = vmatprep.mubr.f32.mxu0 0.0
    %3633 = vmatmul.mubr.f32.gmra.mxu0 %v3537
    %v3634 = vpop.f32.mrf.mxu0
    %v3635 = vpop.f32.mrf.mxu0
    %3636 = vmatprep.mubr.f32.mxu0 0.0
    %3637 = vmatmul.mubr.f32.gmra.mxu0 %v3538
    %v3638 = vpop.f32.mrf.mxu0
    %v3639 = vpop.f32.mrf.mxu0
    %3640 = vmatprep.mubr.f32.mxu0 0.0
    %3641 = vmatmul.mubr.f32.gmra.mxu0 %v3539
    %v3642 = vpop.f32.mrf.mxu0
    %v3643 = vadd.f32 %v3566, %v3642
    %v3644 = vpop.f32.mrf.mxu0
    %3645 = vmatprep.mubr.f32.mxu0 0.0
    %3646 = vmatmul.mubr.f32.gmra.mxu0 %v3540
    %v3647 = vpop.f32.mrf.mxu0
    %v3648 = vpop.f32.mrf.mxu0
    %3649 = vmatprep.mubr.f32.mxu0 0.0
    %3650 = vmatmul.mubr.f32.gmra.mxu0 %v3541
    %v3651 = vpop.f32.mrf.mxu0
    %v3652 = vpop.f32.mrf.mxu0
    %3653 = vmatprep.mubr.f32.mxu0 0.0
    %3654 = vmatmul.mubr.f32.gmra.mxu0 %v3542
    %v3655 = vpop.f32.mrf.mxu0
    %v3656 = vadd.f32 %v3566, %v3655
    %v3657 = vpop.f32.mrf.mxu0
    %3658 = vdwg.mxu0
    %v3659 = vadd.f32 %v3277, %v3643
    %v3660 = vadd.f32 %v3280, %v3656
    %v3661 = vld [vmem:[%s16] sm:$0x1]
    %v3662 = vld [vmem:[%s17] sm:$0x1]
    %v3665 = vrot.slane %v3660, 7
    %vm3666 = vcmask 1041409
    %v3667 = vsel %vm3666, %v3665, %v3659
    %vm3669 = vcmask 254976
    %v3670 = vsel %vm3669, %v3667, 0.0
    %3671 = vadd.xlane.f32.xlu0 %v3670
    %v3672 = vpop.xlane.xlu0 %3671
    %v3673 = vmul.f32 %v3672, %v218
    %v3675 = vrot.slane %v3673, 1
    %v3678 = vsub.f32 %v3659, %v3673
    %v3679 = vsub.f32 %v3660, %v3675
    %v3680 = vmul.f32 %v3678, %v3678
    %v3681 = vmul.f32 %v3679, %v3679
    %v3684 = vrot.slane %v3681, 7
    %v3685 = vsel %vm3666, %v3684, %v3680
    %v3687 = vsel %vm3669, %v3685, 0.0
    %3688 = vadd.xlane.f32.xlu0 %v3687
    %v3689 = vpop.xlane.xlu0 %3688
    %v3690 = vmul.f32 %v3689, %v218
    %v3691 = vadd.f32 %v3690, 1e-05
    %v3692 = vrsqrt.pop %v3691
    %v3694 = vrot.slane %v3692, 1
    %v3697 = vmul.f32 %v3678, %v3692
    %v3698 = vmul.f32 %v3679, %v3694
    %v3700 = vlaneseq
    %v3701 = vshrl.u32 %v3700, 7
    %v3702 = vsub.s32 0, %v3701
    %v3703 = vrot.slane %v3661, %v3702
    %v3705 = vmul.f32 %v3697, %v3703
    %v3706 = vmul.f32 %v3698, %v3703
    %v3708 = vlaneseq
    %v3709 = vshrl.u32 %v3708, 7
    %v3710 = vsub.s32 0, %v3709
    %v3711 = vrot.slane %v3662, %v3710
    %v3713 = vadd.f32 %v3705, %v3711
    %v3714 = vadd.f32 %v3706, %v3711
    %v3715 = vld [vmem:[%s18] sm:$0xff]
    %v3716 = vld [vmem:[%s18 + $0x8] sm:$0xff]
    %v3717 = vld [vmem:[%s18 + $0x10] sm:$0xff]
    %v3718 = vld [vmem:[%s18 + $0x18] sm:$0xff]
    %v3719 = vld [vmem:[%s19] sm:$0x1]
    %v3721 = vlaneseq
    %v3722 = vshrl.u32 %v3721, 7
    %v3723 = vsub.s32 0, %v3722
    %v3724 = vrot.slane %v3719, %v3723
    %v3728 = vrot.slane %v3714, 7
    %v3729 = vsel %vm3666, %v3728, %v3713
    %v3730 = vsel %vm180, %v3729, 0
    %3732 = vmatprep.subr.mxu0 0.0
    %3733 = vmatpush1.msra.mxu0 0.0
    %3734 = vmatprep.subr.mxu0 0.0
    %3735 = vmatpush1.msra.mxu0 0.0
    %3736 = vmatprep.subr.mxu0 0.0
    %3737 = vmatpush1.msra.mxu0 0.0
    %3738 = vmatprep.subr.mxu0 0.0
    %3739 = vmatpush1.msra.mxu0 0.0
    %3740 = vmatprep.subr.mxu0 0.0
    %3741 = vmatpush1.msra.mxu0 0.0
    %3742 = vmatprep.subr.mxu0 0.0
    %3743 = vmatpush1.msra.mxu0 0.0
    %3744 = vmatprep.subr.mxu0 0.0
    %3745 = vmatpush1.msra.mxu0 0.0
    %3746 = vmatprep.subr.mxu0 0.0
    %3747 = vmatpush1.msra.mxu0 0.0
    %3748 = vmatprep.subr.mxu0 0.0
    %3749 = vmatpush1.msra.mxu0 0.0
    %3750 = vmatprep.subr.mxu0 0.0
    %3751 = vmatpush1.msra.mxu0 0.0
    %3752 = vmatprep.subr.mxu0 0.0
    %3753 = vmatpush1.msra.mxu0 0.0
    %3754 = vmatprep.subr.mxu0 0.0
    %3755 = vmatpush1.msra.mxu0 0.0
    %3756 = vmatprep.subr.mxu0 0.0
    %3757 = vmatpush1.msra.mxu0 %v3718
    %3758 = vmatprep.subr.mxu0 0.0
    %3759 = vmatpush1.msra.mxu0 %v3717
    %3760 = vmatprep.subr.mxu0 0.0
    %3761 = vmatpush1.msra.mxu0 %v3716
    %3762 = vmatprep.subr.mxu0 0.0
    %3763 = vmatpush1.msra.mxu0 %v3715
    %3764 = vmatprep.subr.mxu0 0.0
    %3765 = vmatpush2.msra.mxu0 0.0
    %3766 = vmatprep.subr.mxu0 0.0
    %3767 = vmatpush2.msra.mxu0 0.0
    %3768 = vmatprep.subr.mxu0 0.0
    %3769 = vmatpush2.msra.mxu0 0.0
    %3770 = vmatprep.subr.mxu0 0.0
    %3771 = vmatpush2.msra.mxu0 0.0
    %3772 = vmatprep.subr.mxu0 0.0
    %3773 = vmatpush2.msra.mxu0 0.0
    %3774 = vmatprep.subr.mxu0 0.0
    %3775 = vmatpush2.msra.mxu0 0.0
    %3776 = vmatprep.subr.mxu0 0.0
    %3777 = vmatpush2.msra.mxu0 0.0
    %3778 = vmatprep.subr.mxu0 0.0
    %3779 = vmatpush2.msra.mxu0 0.0
    %3780 = vmatprep.subr.mxu0 0.0
    %3781 = vmatpush2.msra.mxu0 0.0
    %3782 = vmatprep.subr.mxu0 0.0
    %3783 = vmatpush2.msra.mxu0 0.0
    %3784 = vmatprep.subr.mxu0 0.0
    %3785 = vmatpush2.msra.mxu0 0.0
    %3786 = vmatprep.subr.mxu0 0.0
    %3787 = vmatpush2.msra.mxu0 0.0
    %3788 = vmatprep.subr.mxu0 0.0
    %3789 = vmatpush2.msra.mxu0 0.0
    %3790 = vmatprep.subr.mxu0 0.0
    %3791 = vmatpush2.msra.mxu0 0.0
    %3792 = vmatprep.subr.mxu0 0.0
    %3793 = vmatpush2.msra.mxu0 0.0
    %3794 = vmatprep.subr.mxu0 0.0
    %3795 = vmatpush2.msra.mxu0 0.0
    %3796 = vmatprep.mubr.f32.mxu0 0.0
    %3797 = vmatmul.mubr.f32.gmra.mxu0 %v3730
    %v3798 = vpop.f32.mrf.mxu0
    %v3799 = vadd.f32 %v3724, %v3798
    %v3800 = vpop.f32.mrf.mxu0
    %3801 = vdwg.mxu0
    %3802 = vst [vmem:[#allocation3] sm:$0x3] %v3799
    // Predicated region
    $region82: #{tpu_custom_call.1} parent=1 // pred_check
      _
    $region83: #{tpu_custom_call.1} parent=1 // pred_check_branch
      %3804 = sbr.rel (0) target = $region85
    $region84: #{tpu_custom_call.1} parent=1 // pred_region
      %s3806 = ssub.s32 32, 32
      %3807 = vsyncadd [#allocation4], %s3806
      %s3809 = sshll.u32 [#allocation3], 4
      %s3810 = int_to_ptr.vmem [resolvable:$true] %s3809
      %3812 = dma.vmem_to_hbm [thread:$0]  %s3810, 32, %s20, [#allocation4]
    $region85: #{tpu_custom_call.1} parent=1 // pred_fallthru
      _
    // Predicated region
    $region86: #{tpu_custom_call.1} parent=1 // pred_check
      _
    $region87: #{tpu_custom_call.1} parent=1 // pred_check_branch
      %3814 = sbr.rel (0) target = $region89
    $region88: #{tpu_custom_call.1} parent=1 // pred_region
      %3815 = dma.done [#allocation4], 32
    $region89: #{tpu_custom_call.1} parent=1 // pred_fallthru
      _
    %3816 = vsyncpa [#allocation4], 1

</llo_original>
